<compile_context>
chip_gen: v7x
topology: tpu7x:2x2x1
jax: 0.10.0
libtpu: 0.0.40
codegen_flags: <defaults>
</compile_context>

<pallas_src>
import math

import jax
import jax.numpy as jnp
from jax.experimental import pallas as pl
from jax.experimental.pallas import tpu as pltpu

# =============================================================================
# Config (mirrors cfg.* fields used by LightPatchformer_USDFSMB.__init__).
# forward()'s channel-group normalization (:4, 4:7, -1) implies enc_in == 8.
# =============================================================================
TIME_INTERVAL = 24        # cfg.dataset.time_interval -> lookback
F_HORIZON     = 4         # cfg.dataset.f_horizon     -> lookahead
PATCH_LEN     = 4         # cfg.model.patch_len       -> chunk_size
ENC_IN        = 8         # cfg.model.enc_in          (4 OHLC + 3 group + 1 single)
D_MODEL       = 32
N_HEADS       = 4
D_K = D_V     = 8
D_FF          = 64
E_LAYERS      = 2
NUM_CLASSES   = 3
SMAX_OUT      = False
SIGMOID_OUT   = False

LOOKBACK   = TIME_INTERVAL
LOOKAHEAD  = F_HORIZON
CHUNK      = PATCH_LEN
assert LOOKBACK % CHUNK == 0
NUM_CHUNKS = LOOKBACK // CHUNK                   # 6 patches per series
QKV_DIM    = N_HEADS * D_K                       # 32
ATTN_SCALE = float((D_MODEL // N_HEADS) ** -0.5)
HID4       = D_MODEL // 4                        # IEBlock hid_dim // 4

SLAB_ORDER = ("pos", "bias", "wp", "bp", "wqkv", "bqkv", "wo", "bo",
              "ln1g", "ln1b", "wff1", "bff1", "wff2", "bff2", "ln2g", "ln2b",
              "seg", "bproj")


# =============================================================================
# Fused branch kernel: embedding + E_LAYERS encoder layers + chunk projection
# =============================================================================
def _layernorm(x, g, b):
    mu = jnp.mean(x, axis=-1, keepdims=True)
    var = jnp.mean(jnp.square(x - mu), axis=-1, keepdims=True)
    return (x - mu) * jax.lax.rsqrt(var + 1e-5) * g + b


def _branch_kernel(patches_ref, pos_ref, bias_ref, wp_ref, bp_ref,
                   wqkv_ref, bqkv_ref, wo_ref, bo_ref,
                   ln1g_ref, ln1b_ref, wff1_ref, bff1_ref,
                   wff2_ref, bff2_ref, ln2g_ref, ln2b_ref,
                   seg_ref, bproj_ref, out_ref, prev_ref):
    # ---- DataEmbedding_Patchformer: W_P linear + learned pos (dropout = id) ----
    src = (jnp.dot(patches_ref[0], wp_ref[0], preferred_element_type=jnp.float32)
           + bp_ref[0] + pos_ref[0])                                  # (ROWS_PAD, D)

    # Precomputed additive block-diagonal mask bias {0, -1e30} (shared by branches).
    bias = bias_ref[...]                                              # (ROWS_PAD, ROWS_PAD)

    for li in range(E_LAYERS):
        # Fused QKV projection: (rows, D) @ (D, 3*H*d_k) -> lane-dense (rows, 96)
        qkv = (jnp.dot(src, wqkv_ref[0, li], preferred_element_type=jnp.float32)
               + bqkv_ref[0, li])
        wo = wo_ref[0, li]                                            # (H*d_v, D)

        acc = None
        for h in range(N_HEADS):
            q = qkv[:, h * D_K:(h + 1) * D_K]
            k = qkv[:, QKV_DIM + h * D_K: QKV_DIM + (h + 1) * D_K]
            v = qkv[:, 2 * QKV_DIM + h * D_V: 2 * QKV_DIM + (h + 1) * D_V]

            # Full Gram matrix for all sequences at once; cross-sequence entries
            # are killed by the additive bias before softmax.
            scores = jax.lax.dot_general(
                q, k, (((1,), (1,)), ((), ())),
                preferred_element_type=jnp.float32) * ATTN_SCALE
            if li > 0:                          # res_attention carry (PatchTST)
                scores = scores + prev_ref[h]
            if li < E_LAYERS - 1:               # keep carry in VMEM scratch, not vregs
                prev_ref[h] = scores

            masked = scores + bias
            m = jnp.max(masked, axis=-1, keepdims=True)
            e = jnp.exp(masked - m)
            attn = e * pl.reciprocal(jnp.sum(e, axis=-1, keepdims=True), approx=True)

            head_out = jnp.dot(attn, v, preferred_element_type=jnp.float32)
            # Per-head accumulation through the matching sublane slice of Wo —
            # avoids a lane-concat relayout chain.
            contrib = jnp.dot(head_out, wo[h * D_V:(h + 1) * D_V, :],
                              preferred_element_type=jnp.float32)
            acc = contrib if acc is None else acc + contrib

        attn_out = acc + bo_ref[0, li]

        # post-norm residual blocks (pre_norm=False), activation = relu
        src = _layernorm(src + attn_out, ln1g_ref[0, li], ln1b_ref[0, li])
        hid = jnp.maximum(
            jnp.dot(src, wff1_ref[0, li], preferred_element_type=jnp.float32)
            + bff1_ref[0, li], 0.0)
        ff = (jnp.dot(hid, wff2_ref[0, li], preferred_element_type=jnp.float32)
              + bff2_ref[0, li])
        src = _layernorm(src + ff, ln2g_ref[0, li], ln2b_ref[0, li])

    # chunk_proj (Linear(num_chunks -> 1) over the patch axis) folded into one
    # segment matmul: (BN, ROWS_PAD) @ (ROWS_PAD, D) -> (BN, D).  Padded dummy
    # rows have zero weight in seg.
    out_ref[0] = (jnp.dot(seg_ref[0], src, preferred_element_type=jnp.float32)
                  + bproj_ref[0])


def _branch_arg_spec(arr):
    nd = arr.ndim
    blk = (1,) + arr.shape[1:]
    return pl.BlockSpec(blk, lambda b, _n=nd: (b,) + (0,) * (_n - 1))


def run_branches(patches, packed):
    """Runs both patch-transformer branches in a single pallas_call.

    Returns (2, bn, D_MODEL): [0] = encoder_1 branch, [1] = encoder_2 branch.
    """
    rows_pad = packed["pos"].shape[1]
    bn = packed["seg"].shape[1]
    args = (patches,) + tuple(packed[k] for k in SLAB_ORDER)

    in_specs = [_branch_arg_spec(patches)]
    for k in SLAB_ORDER:
        a = packed[k]
        if k == "bias":
            # Shared 2-D mask bias: same block for both branches.
            in_specs.append(pl.BlockSpec(a.shape, lambda b: (0, 0)))
        else:
            in_specs.append(_branch_arg_spec(a))

    return pl.pallas_call(
        _branch_kernel,
        grid=(2,),
        in_specs=in_specs,
        out_specs=pl.BlockSpec((1, bn, D_MODEL), lambda b: (b, 0, 0)),
        out_shape=jax.ShapeDtypeStruct((2, bn, D_MODEL), jnp.float32),
        scratch_shapes=[pltpu.VMEM((N_HEADS, rows_pad, rows_pad), jnp.float32)],
        compiler_params=pltpu.CompilerParams(
            # "parallel": one branch per TensorCore on v7x; a cheap 2-step
            # serial loop on single-TC v5e/v6e.
            dimension_semantics=("parallel",),
            vmem_limit_bytes=16 * 1024 * 1024),
    )(*args)


# =============================================================================
# Deterministic parameter init (PyTorch-default Linear init)
# =============================================================================
_PKEY = jax.random.PRNGKey(42)
_PCNT = [0]


def _next_key():
    _PCNT[0] += 1
    return jax.random.fold_in(_PKEY, _PCNT[0])


def init_linear(d_in, d_out):
    bound = 1.0 / math.sqrt(d_in)
    w = jax.random.uniform(_next_key(), (d_in, d_out),
                           minval=-bound, maxval=bound, dtype=jnp.float32)
    b = jax.random.uniform(_next_key(), (d_out,),
                           minval=-bound, maxval=bound, dtype=jnp.float32)
    return dict(w=w, b=b)


def init_branch():
    layers = []
    for _ in range(E_LAYERS):
        wq = init_linear(D_MODEL, QKV_DIM)
        wk = init_linear(D_MODEL, QKV_DIM)
        wv = init_linear(D_MODEL, QKV_DIM)
        wo = init_linear(QKV_DIM, D_MODEL)
        ff1 = init_linear(D_MODEL, D_FF)
        ff2 = init_linear(D_FF, D_MODEL)
        layers.append(dict(
            w_qkv=jnp.concatenate([wq["w"], wk["w"], wv["w"]], axis=1),   # (D, 96)
            b_qkv=jnp.concatenate([wq["b"], wk["b"], wv["b"]], axis=0),   # (96,)
            w_o=wo["w"], b_o=wo["b"],
            w_ff1=ff1["w"], b_ff1=ff1["b"],
            w_ff2=ff2["w"], b_ff2=ff2["b"],
            ln1_g=jnp.ones((D_MODEL,), jnp.float32),
            ln1_b=jnp.zeros((D_MODEL,), jnp.float32),
            ln2_g=jnp.ones((D_MODEL,), jnp.float32),
            ln2_b=jnp.zeros((D_MODEL,), jnp.float32)))
    proj = init_linear(NUM_CHUNKS, 1)
    return dict(
        W_P=init_linear(CHUNK, D_MODEL),
        W_pos=jax.random.uniform(_next_key(), (NUM_CHUNKS, D_MODEL),
                                 minval=-0.02, maxval=0.02, dtype=jnp.float32),
        layers=layers,
        proj_w=proj["w"].reshape(NUM_CHUNKS),
        proj_b=proj["b"])


def init_params():
    branches = [init_branch(), init_branch()]
    ch = init_linear(ENC_IN, ENC_IN)
    ch["w"] = jnp.eye(ENC_IN, dtype=jnp.float32)   # torch.nn.init.eye_
    return dict(
        branches=branches,
        ar=init_linear(LOOKBACK, LOOKAHEAD),
        # TODO(synk): IEBlock source was not included with the module; implemented as
        # the standard LightTS IEBlock (spatial_proj MLP + eye-init channel_proj +
        # output_proj), which is what `IEBlock(...)` in the reference refers to.
        ie=dict(sp1=init_linear(2 * D_MODEL, D_MODEL),
                sp2=init_linear(D_MODEL, HID4),
                ch=ch,
                out=init_linear(HID4, LOOKAHEAD)),
        bn=dict(g=jnp.ones((LOOKAHEAD * ENC_IN,), jnp.float32),
                b=jnp.zeros((LOOKAHEAD * ENC_IN,), jnp.float32),
                mean=jnp.zeros((LOOKAHEAD * ENC_IN,), jnp.float32),
                var=jnp.ones((LOOKAHEAD * ENC_IN,), jnp.float32)),
        head=init_linear(LOOKAHEAD * ENC_IN, NUM_CLASSES))


# =============================================================================
# One-time kernel-input packing (hoisted out of forward per the perf review)
# =============================================================================
def pack_params(params, batch_size):
    B = batch_size
    bn = B * ENC_IN
    rows = bn * NUM_CHUNKS
    rows_pad = ((rows + 127) // 128) * 128
    # TODO(synk): full-Gram attention memory/FLOPs grow as rows^2; for large batch
    # sizes add a grid axis over sequence tiles instead of one (rows, rows) Gram.
    br = params["branches"]

    def pad_rows(a):
        return jnp.pad(a, ((0, rows_pad - rows), (0, 0)))

    pos = jnp.stack([pad_rows(jnp.tile(b["W_pos"], (bn, 1))) for b in br])  # (2,RP,D)
    wp = jnp.stack([b["W_P"]["w"] for b in br])                             # (2,CHUNK,D)
    bp = jnp.stack([b["W_P"]["b"].reshape(1, D_MODEL) for b in br])         # (2,1,D)

    def stack_l(key, shp=None):
        def one(bd):
            arrs = [(lay[key] if shp is None else lay[key].reshape(shp))
                    for lay in bd["layers"]]
            return jnp.stack(arrs)
        return jnp.stack([one(b) for b in br])

    wqkv = stack_l("w_qkv")                                           # (2, L, 32, 96)
    bqkv = stack_l("b_qkv", (1, 3 * QKV_DIM))                         # (2, L, 1, 96)
    wo = stack_l("w_o")                                               # (2, L, 32, 32)
    bo = stack_l("b_o", (1, D_MODEL))
    ln1g = stack_l("ln1_g", (1, D_MODEL))
    ln1b = stack_l("ln1_b", (1, D_MODEL))
    wff1 = stack_l("w_ff1")                                           # (2, L, 32, 64)
    bff1 = stack_l("b_ff1", (1, D_FF))
    wff2 = stack_l("w_ff2")                                           # (2, L, 64, 32)
    bff2 = stack_l("b_ff2", (1, D_MODEL))
    ln2g = stack_l("ln2_g", (1, D_MODEL))
    ln2b = stack_l("ln2_b", (1, D_MODEL))

    # Additive block-diagonal mask bias; padded dummy rows get their own "sequences"
    # so every softmax row keeps at least one unmasked entry.
    seq = jnp.arange(rows_pad, dtype=jnp.int32) // NUM_CHUNKS
    bias = jnp.where(seq[:, None] == seq[None, :], 0.0, -1e30).astype(jnp.float32)

    # chunk_proj weights folded into a (bn, rows_pad) segment-sum matrix
    # (zero weight on the padded rows).
    eye_bn = jnp.eye(bn, dtype=jnp.float32)
    seg = jnp.stack([
        jnp.pad(jnp.kron(eye_bn, b["proj_w"].reshape(1, NUM_CHUNKS)),
                ((0, 0), (0, rows_pad - rows)))
        for b in br])                                                 # (2, bn, RP)
    bproj = jnp.stack([b["proj_b"].reshape(1, 1) for b in br])        # (2, 1, 1)

    return dict(pos=pos, bias=bias, wp=wp, bp=bp, wqkv=wqkv, bqkv=bqkv,
                wo=wo, bo=bo, ln1g=ln1g, ln1b=ln1b, wff1=wff1, bff1=bff1,
                wff2=wff2, bff2=bff2, ln2g=ln2g, ln2b=ln2b, seg=seg, bproj=bproj)


def build_patches(x_norm, rows, rows_pad):
    """Per-call patch tensors for both branches (only per-call kernel input)."""
    B = x_norm.shape[0]
    xb1 = x_norm.reshape(B, NUM_CHUNKS, CHUNK, ENC_IN)                # [b, p, c, n]
    p1 = jnp.transpose(xb1, (0, 3, 1, 2)).reshape(rows, CHUNK)        # contiguous chunks
    xb2 = x_norm.reshape(B, CHUNK, NUM_CHUNKS, ENC_IN)                # [b, c, p, n]
    p2 = jnp.transpose(xb2, (0, 3, 2, 1)).reshape(rows, CHUNK)        # dilated chunks
    patches = jnp.stack([p1, p2])                                     # (2, rows, CHUNK)
    if rows_pad > rows:
        patches = jnp.pad(patches, ((0, 0), (0, rows_pad - rows), (0, 0)))
    return patches


# =============================================================================
# Model forward
# =============================================================================
def forward(params, packed, x):
    B, T, N = x.shape
    assert T == LOOKBACK and N == ENC_IN
    bn = B * N
    rows = bn * NUM_CHUNKS
    rows_pad = packed["pos"].shape[1]
    assert packed["seg"].shape[1] == bn, "pack_params() batch_size must match x"

    # ---- group instance normalization of the input (channels 0:4, 4:7, 7) ----
    mean_enc = jnp.mean(x, axis=1, keepdims=True)                     # (B, 1, N)
    std_enc = jnp.sqrt(jnp.var(x, axis=1, keepdims=True) + 1e-5)
    m_a = jnp.mean(mean_enc[:, :, :4], axis=2, keepdims=True)
    s_a = jnp.mean(std_enc[:, :, :4], axis=2, keepdims=True)
    m_b = jnp.mean(mean_enc[:, :, 4:7], axis=2, keepdims=True)
    s_b = jnp.mean(std_enc[:, :, 4:7], axis=2, keepdims=True)
    x_norm = jnp.concatenate([
        (x[:, :, :4] - m_a) / s_a,
        (x[:, :, 4:7] - m_b) / s_b,
        (x[:, :, 7:8] - mean_enc[:, :, 7:8]) / std_enc[:, :, 7:8],
    ], axis=2)

    # ---- fused dual-branch patch transformer (single pallas_call) ----
    patches = build_patches(x_norm, rows, rows_pad)
    out2 = run_branches(patches, packed)                              # (2, bn, D)
    x3 = jnp.concatenate([out2[0], out2[1]], axis=-1)                 # (bn, 2D) = [x1|x2]
    x3 = x3.reshape(B, N, 2 * D_MODEL)

    # ---- tiny tail ops: left to XLA as plain jnp per the performance review ----
    # AR highway
    xt = jnp.transpose(x_norm, (0, 2, 1)).reshape(bn, T)
    highway = (xt @ params["ar"]["w"] + params["ar"]["b"]).reshape(B, N, LOOKAHEAD)

    # IEBlock (LightTS): spatial MLP -> channel mixing -> output projection
    ie = params["ie"]
    h = x3 @ ie["sp1"]["w"] + ie["sp1"]["b"]
    h = jnp.where(h > 0, h, 0.01 * h)                                 # LeakyReLU(0.01)
    t = h @ ie["sp2"]["w"] + ie["sp2"]["b"]                           # (B, N, HID4)
    tp = jnp.transpose(t, (0, 2, 1))                                  # (B, HID4, N)
    x_ie = tp + (tp @ ie["ch"]["w"] + ie["ch"]["b"])                  # (B, HID4, N)
    out_ie = jnp.transpose(x_ie, (0, 2, 1)) @ ie["out"]["w"] + ie["out"]["b"]  # (B,N,LA)

    combined = out_ie + highway                                       # (B, N, LA)
    flat = jnp.transpose(combined, (0, 2, 1)).reshape(B, LOOKAHEAD * N)  # torch.flatten

    bn_p = params["bn"]                                               # BatchNorm1d (eval)
    flat = (flat - bn_p["mean"]) * jax.lax.rsqrt(bn_p["var"] + 1e-5) * bn_p["g"] + bn_p["b"]
    logits = flat @ params["head"]["w"] + params["head"]["b"]

    if SMAX_OUT:
        return jax.nn.softmax(logits, axis=1)
    if SIGMOID_OUT:
        return jax.nn.sigmoid(logits)[:, 0]
    return logits


# =============================================================================
if __name__ == "__main__":
    params = init_params()
    packed = pack_params(params, batch_size=2)        # one-time packing
    x = jax.random.normal(jax.random.PRNGKey(0),
                          (2, TIME_INTERVAL, ENC_IN), dtype=jnp.float32)
    fwd = jax.jit(forward)
    y = jax.block_until_ready(fwd(params, packed, x))
    assert y.shape == (2, NUM_CLASSES), y.shape
    assert bool(jnp.all(jnp.isfinite(y)))
    print("KERNEL_OK")
</pallas_src>

<mosaic_0001>
module attributes {stable_mosaic.version = 11 : i64} {
  func.func @_branch_kernel(%arg0: i32, %arg1: memref<1x128x4xf32, #tpu.memory_space<vmem>>, %arg2: memref<1x128x32xf32, #tpu.memory_space<vmem>>, %arg3: memref<128x128xf32, #tpu.memory_space<vmem>>, %arg4: memref<1x4x32xf32, #tpu.memory_space<vmem>>, %arg5: memref<1x1x32xf32, #tpu.memory_space<vmem>>, %arg6: memref<1x2x32x96xf32, #tpu.memory_space<vmem>>, %arg7: memref<1x2x1x96xf32, #tpu.memory_space<vmem>>, %arg8: memref<1x2x32x32xf32, #tpu.memory_space<vmem>>, %arg9: memref<1x2x1x32xf32, #tpu.memory_space<vmem>>, %arg10: memref<1x2x1x32xf32, #tpu.memory_space<vmem>>, %arg11: memref<1x2x1x32xf32, #tpu.memory_space<vmem>>, %arg12: memref<1x2x32x64xf32, #tpu.memory_space<vmem>>, %arg13: memref<1x2x1x64xf32, #tpu.memory_space<vmem>>, %arg14: memref<1x2x64x32xf32, #tpu.memory_space<vmem>>, %arg15: memref<1x2x1x32xf32, #tpu.memory_space<vmem>>, %arg16: memref<1x2x1x32xf32, #tpu.memory_space<vmem>>, %arg17: memref<1x2x1x32xf32, #tpu.memory_space<vmem>>, %arg18: memref<1x16x128xf32, #tpu.memory_space<vmem>>, %arg19: memref<1x1x1xf32, #tpu.memory_space<vmem>>, %arg20: memref<1x16x32xf32, #tpu.memory_space<vmem>>, %arg21: memref<4x128x128xf32, #tpu.memory_space<vmem>>) attributes {dimension_semantics = [#tpu.dimension_semantics<parallel>], iteration_bounds = array<i64: 2>, scalar_prefetch = 0 : i64, scratch_operands = 1 : i64, tpu.core_type = #tpu.core_type<tc>, window_params = [{transform_indices = @transform_0, window_bounds = array<i64: 1, 128, 4>}, {transform_indices = @transform_1, window_bounds = array<i64: 1, 128, 32>}, {pipeline_mode = #tpu.pipeline_mode<synchronous>, transform_indices = @transform_2, window_bounds = array<i64: 128, 128>}, {transform_indices = @transform_3, window_bounds = array<i64: 1, 4, 32>}, {transform_indices = @transform_4, window_bounds = array<i64: 1, 1, 32>}, {transform_indices = @transform_5, window_bounds = array<i64: 1, 2, 32, 96>}, {transform_indices = @transform_6, window_bounds = array<i64: 1, 2, 1, 96>}, {transform_indices = @transform_7, window_bounds = array<i64: 1, 2, 32, 32>}, {transform_indices = @transform_8, window_bounds = array<i64: 1, 2, 1, 32>}, {transform_indices = @transform_9, window_bounds = array<i64: 1, 2, 1, 32>}, {transform_indices = @transform_10, window_bounds = array<i64: 1, 2, 1, 32>}, {transform_indices = @transform_11, window_bounds = array<i64: 1, 2, 32, 64>}, {transform_indices = @transform_12, window_bounds = array<i64: 1, 2, 1, 64>}, {transform_indices = @transform_13, window_bounds = array<i64: 1, 2, 64, 32>}, {transform_indices = @transform_14, window_bounds = array<i64: 1, 2, 1, 32>}, {transform_indices = @transform_15, window_bounds = array<i64: 1, 2, 1, 32>}, {transform_indices = @transform_16, window_bounds = array<i64: 1, 2, 1, 32>}, {transform_indices = @transform_17, window_bounds = array<i64: 1, 16, 128>}, {transform_indices = @transform_18, window_bounds = array<i64: 1, 1, 1>}, {transform_indices = @transform_19, window_bounds = array<i64: 1, 16, 32>}]} {
    %c0 = arith.constant 0 : index
    %c0_0 = arith.constant 0 : index
    %c0_1 = arith.constant 0 : index
    %0 = vector.load %arg1[%c0, %c0_0, %c0_1] : memref<1x128x4xf32, #tpu.memory_space<vmem>>, vector<1x128x4xf32>
    %1 = vector.shape_cast %0 : vector<1x128x4xf32> to vector<128x4xf32>
    %c0_2 = arith.constant 0 : index
    %c0_3 = arith.constant 0 : index
    %c0_4 = arith.constant 0 : index
    %2 = vector.load %arg4[%c0_2, %c0_3, %c0_4] : memref<1x4x32xf32, #tpu.memory_space<vmem>>, vector<1x4x32xf32>
    %3 = vector.shape_cast %2 : vector<1x4x32xf32> to vector<4x32xf32>
    %cst = arith.constant dense<0.000000e+00> : vector<128x32xf32>
    %4 = tpu.matmul %1, %3, %cst {dimension_numbers = #tpu.dot_dimension_numbers<[1], [0], [0], [1], [0, 0, 1, 1], [], []>} : vector<128x4xf32>, vector<4x32xf32>, vector<128x32xf32> -> vector<128x32xf32>
    %c0_5 = arith.constant 0 : index
    %c0_6 = arith.constant 0 : index
    %c0_7 = arith.constant 0 : index
    %5 = vector.load %arg5[%c0_5, %c0_6, %c0_7] : memref<1x1x32xf32, #tpu.memory_space<vmem>>, vector<1x1x32xf32>
    %6 = vector.shape_cast %5 : vector<1x1x32xf32> to vector<1x32xf32>
    %7 = vector.broadcast %6 : vector<1x32xf32> to vector<128x32xf32>
    %8 = arith.addf %4, %7 : vector<128x32xf32>
    %c0_8 = arith.constant 0 : index
    %c0_9 = arith.constant 0 : index
    %c0_10 = arith.constant 0 : index
    %9 = vector.load %arg2[%c0_8, %c0_9, %c0_10] : memref<1x128x32xf32, #tpu.memory_space<vmem>>, vector<1x128x32xf32>
    %10 = vector.shape_cast %9 : vector<1x128x32xf32> to vector<128x32xf32>
    %11 = arith.addf %8, %10 : vector<128x32xf32>
    %c0_11 = arith.constant 0 : index
    %c0_12 = arith.constant 0 : index
    %12 = vector.load %arg3[%c0_11, %c0_12] : memref<128x128xf32, #tpu.memory_space<vmem>>, vector<128x128xf32>
    %c0_13 = arith.constant 0 : index
    %c0_14 = arith.constant 0 : index
    %c0_15 = arith.constant 0 : index
    %c0_16 = arith.constant 0 : index
    %13 = vector.load %arg6[%c0_13, %c0_14, %c0_15, %c0_16] : memref<1x2x32x96xf32, #tpu.memory_space<vmem>>, vector<1x1x32x96xf32>
    %14 = vector.shape_cast %13 : vector<1x1x32x96xf32> to vector<32x96xf32>
    %cst_17 = arith.constant dense<0.000000e+00> : vector<128x96xf32>
    %15 = tpu.matmul %11, %14, %cst_17 {dimension_numbers = #tpu.dot_dimension_numbers<[1], [0], [0], [1], [0, 0, 1, 1], [], []>} : vector<128x32xf32>, vector<32x96xf32>, vector<128x96xf32> -> vector<128x96xf32>
    %c0_18 = arith.constant 0 : index
    %c0_19 = arith.constant 0 : index
    %c0_20 = arith.constant 0 : index
    %c0_21 = arith.constant 0 : index
    %16 = vector.load %arg7[%c0_18, %c0_19, %c0_20, %c0_21] : memref<1x2x1x96xf32, #tpu.memory_space<vmem>>, vector<1x1x1x96xf32>
    %17 = vector.shape_cast %16 : vector<1x1x1x96xf32> to vector<1x96xf32>
    %18 = vector.broadcast %17 : vector<1x96xf32> to vector<128x96xf32>
    %19 = arith.addf %15, %18 : vector<128x96xf32>
    %c0_22 = arith.constant 0 : index
    %c0_23 = arith.constant 0 : index
    %c0_24 = arith.constant 0 : index
    %c0_25 = arith.constant 0 : index
    %20 = vector.load %arg8[%c0_22, %c0_23, %c0_24, %c0_25] : memref<1x2x32x32xf32, #tpu.memory_space<vmem>>, vector<1x1x32x32xf32>
    %21 = vector.shape_cast %20 : vector<1x1x32x32xf32> to vector<32x32xf32>
    %22 = vector.extract_strided_slice %19 {offsets = [0, 0], sizes = [128, 8], strides = [1, 1]} : vector<128x96xf32> to vector<128x8xf32>
    %23 = vector.extract_strided_slice %19 {offsets = [0, 32], sizes = [128, 8], strides = [1, 1]} : vector<128x96xf32> to vector<128x8xf32>
    %24 = vector.extract_strided_slice %19 {offsets = [0, 64], sizes = [128, 8], strides = [1, 1]} : vector<128x96xf32> to vector<128x8xf32>
    %cst_26 = arith.constant dense<0.000000e+00> : vector<128x128xf32>
    %25 = tpu.matmul %22, %23, %cst_26 {dimension_numbers = #tpu.dot_dimension_numbers<[1], [1], [0], [0], [0, 0, 1, 0], [], []>} : vector<128x8xf32>, vector<128x8xf32>, vector<128x128xf32> -> vector<128x128xf32>
    %cst_27 = arith.constant 0.353553385 : f32
    %26 = vector.broadcast %cst_27 : f32 to vector<128x128xf32>
    %27 = arith.mulf %25, %26 : vector<128x128xf32>
    %c0_28 = arith.constant 0 : index
    %c0_29 = arith.constant 0 : index
    %c0_30 = arith.constant 0 : index
    %28 = vector.load %arg21[%c0_28, %c0_29, %c0_30] : memref<4x128x128xf32, #tpu.memory_space<vmem>>, vector<1x128x128xf32>
    %29 = vector.shape_cast %28 : vector<1x128x128xf32> to vector<128x128xf32>
    %30 = vector.shape_cast %27 : vector<128x128xf32> to vector<1x128x128xf32>
    tpu.vector_store %arg21[%c0_28, %c0_29, %c0_30], %30 {strides = array<i32>} : memref<4x128x128xf32, #tpu.memory_space<vmem>>, vector<1x128x128xf32>,
    %31 = arith.addf %27, %12 : vector<128x128xf32>
    %cst_31 = arith.constant dense<0xFF800000> : vector<128xf32>
    %32 = vector.multi_reduction <maximumf>, %31, %cst_31 [1] : vector<128x128xf32> to vector<128xf32>
    %33 = vector.shape_cast %32 : vector<128xf32> to vector<128x1xf32>
    %34 = vector.broadcast %33 : vector<128x1xf32> to vector<128x128xf32>
    %35 = arith.subf %31, %34 : vector<128x128xf32>
    %36 = math.exp %35 : vector<128x128xf32>
    %cst_32 = arith.constant dense<0.000000e+00> : vector<128xf32>
    %37 = vector.multi_reduction <add>, %36, %cst_32 [1] : vector<128x128xf32> to vector<128xf32>
    %38 = vector.shape_cast %37 : vector<128xf32> to vector<128x1xf32>
    %39 = tpu.reciprocal %38 {approx = true} : vector<128x1xf32> -> vector<128x1xf32>
    %40 = vector.broadcast %39 : vector<128x1xf32> to vector<128x128xf32>
    %41 = arith.mulf %36, %40 : vector<128x128xf32>
    %cst_33 = arith.constant dense<0.000000e+00> : vector<128x8xf32>
    %42 = tpu.matmul %41, %24, %cst_33 {dimension_numbers = #tpu.dot_dimension_numbers<[1], [0], [0], [1], [0, 0, 1, 1], [], []>} : vector<128x128xf32>, vector<128x8xf32>, vector<128x8xf32> -> vector<128x8xf32>
    %43 = vector.extract_strided_slice %21 {offsets = [0, 0], sizes = [8, 32], strides = [1, 1]} : vector<32x32xf32> to vector<8x32xf32>
    %cst_34 = arith.constant dense<0.000000e+00> : vector<128x32xf32>
    %44 = tpu.matmul %42, %43, %cst_34 {dimension_numbers = #tpu.dot_dimension_numbers<[1], [0], [0], [1], [0, 0, 1, 1], [], []>} : vector<128x8xf32>, vector<8x32xf32>, vector<128x32xf32> -> vector<128x32xf32>
    %45 = vector.extract_strided_slice %19 {offsets = [0, 8], sizes = [128, 8], strides = [1, 1]} : vector<128x96xf32> to vector<128x8xf32>
    %46 = vector.extract_strided_slice %19 {offsets = [0, 40], sizes = [128, 8], strides = [1, 1]} : vector<128x96xf32> to vector<128x8xf32>
    %47 = vector.extract_strided_slice %19 {offsets = [0, 72], sizes = [128, 8], strides = [1, 1]} : vector<128x96xf32> to vector<128x8xf32>
    %cst_35 = arith.constant dense<0.000000e+00> : vector<128x128xf32>
    %48 = tpu.matmul %45, %46, %cst_35 {dimension_numbers = #tpu.dot_dimension_numbers<[1], [1], [0], [0], [0, 0, 1, 0], [], []>} : vector<128x8xf32>, vector<128x8xf32>, vector<128x128xf32> -> vector<128x128xf32>
    %cst_36 = arith.constant 0.353553385 : f32
    %49 = vector.broadcast %cst_36 : f32 to vector<128x128xf32>
    %50 = arith.mulf %48, %49 : vector<128x128xf32>
    %c1 = arith.constant 1 : index
    %c0_37 = arith.constant 0 : index
    %c0_38 = arith.constant 0 : index
    %51 = vector.load %arg21[%c1, %c0_37, %c0_38] : memref<4x128x128xf32, #tpu.memory_space<vmem>>, vector<1x128x128xf32>
    %52 = vector.shape_cast %51 : vector<1x128x128xf32> to vector<128x128xf32>
    %53 = vector.shape_cast %50 : vector<128x128xf32> to vector<1x128x128xf32>
    tpu.vector_store %arg21[%c1, %c0_37, %c0_38], %53 {strides = array<i32>} : memref<4x128x128xf32, #tpu.memory_space<vmem>>, vector<1x128x128xf32>,
    %54 = arith.addf %50, %12 : vector<128x128xf32>
    %cst_39 = arith.constant dense<0xFF800000> : vector<128xf32>
    %55 = vector.multi_reduction <maximumf>, %54, %cst_39 [1] : vector<128x128xf32> to vector<128xf32>
    %56 = vector.shape_cast %55 : vector<128xf32> to vector<128x1xf32>
    %57 = vector.broadcast %56 : vector<128x1xf32> to vector<128x128xf32>
    %58 = arith.subf %54, %57 : vector<128x128xf32>
    %59 = math.exp %58 : vector<128x128xf32>
    %cst_40 = arith.constant dense<0.000000e+00> : vector<128xf32>
    %60 = vector.multi_reduction <add>, %59, %cst_40 [1] : vector<128x128xf32> to vector<128xf32>
    %61 = vector.shape_cast %60 : vector<128xf32> to vector<128x1xf32>
    %62 = tpu.reciprocal %61 {approx = true} : vector<128x1xf32> -> vector<128x1xf32>
    %63 = vector.broadcast %62 : vector<128x1xf32> to vector<128x128xf32>
    %64 = arith.mulf %59, %63 : vector<128x128xf32>
    %cst_41 = arith.constant dense<0.000000e+00> : vector<128x8xf32>
    %65 = tpu.matmul %64, %47, %cst_41 {dimension_numbers = #tpu.dot_dimension_numbers<[1], [0], [0], [1], [0, 0, 1, 1], [], []>} : vector<128x128xf32>, vector<128x8xf32>, vector<128x8xf32> -> vector<128x8xf32>
    %66 = vector.extract_strided_slice %21 {offsets = [8, 0], sizes = [8, 32], strides = [1, 1]} : vector<32x32xf32> to vector<8x32xf32>
    %cst_42 = arith.constant dense<0.000000e+00> : vector<128x32xf32>
    %67 = tpu.matmul %65, %66, %cst_42 {dimension_numbers = #tpu.dot_dimension_numbers<[1], [0], [0], [1], [0, 0, 1, 1], [], []>} : vector<128x8xf32>, vector<8x32xf32>, vector<128x32xf32> -> vector<128x32xf32>
    %68 = arith.addf %44, %67 : vector<128x32xf32>
    %69 = vector.extract_strided_slice %19 {offsets = [0, 16], sizes = [128, 8], strides = [1, 1]} : vector<128x96xf32> to vector<128x8xf32>
    %70 = vector.extract_strided_slice %19 {offsets = [0, 48], sizes = [128, 8], strides = [1, 1]} : vector<128x96xf32> to vector<128x8xf32>
    %71 = vector.extract_strided_slice %19 {offsets = [0, 80], sizes = [128, 8], strides = [1, 1]} : vector<128x96xf32> to vector<128x8xf32>
    %cst_43 = arith.constant dense<0.000000e+00> : vector<128x128xf32>
    %72 = tpu.matmul %69, %70, %cst_43 {dimension_numbers = #tpu.dot_dimension_numbers<[1], [1], [0], [0], [0, 0, 1, 0], [], []>} : vector<128x8xf32>, vector<128x8xf32>, vector<128x128xf32> -> vector<128x128xf32>
    %cst_44 = arith.constant 0.353553385 : f32
    %73 = vector.broadcast %cst_44 : f32 to vector<128x128xf32>
    %74 = arith.mulf %72, %73 : vector<128x128xf32>
    %c2 = arith.constant 2 : index
    %c0_45 = arith.constant 0 : index
    %c0_46 = arith.constant 0 : index
    %75 = vector.load %arg21[%c2, %c0_45, %c0_46] : memref<4x128x128xf32, #tpu.memory_space<vmem>>, vector<1x128x128xf32>
    %76 = vector.shape_cast %75 : vector<1x128x128xf32> to vector<128x128xf32>
    %77 = vector.shape_cast %74 : vector<128x128xf32> to vector<1x128x128xf32>
    tpu.vector_store %arg21[%c2, %c0_45, %c0_46], %77 {strides = array<i32>} : memref<4x128x128xf32, #tpu.memory_space<vmem>>, vector<1x128x128xf32>,
    %78 = arith.addf %74, %12 : vector<128x128xf32>
    %cst_47 = arith.constant dense<0xFF800000> : vector<128xf32>
    %79 = vector.multi_reduction <maximumf>, %78, %cst_47 [1] : vector<128x128xf32> to vector<128xf32>
    %80 = vector.shape_cast %79 : vector<128xf32> to vector<128x1xf32>
    %81 = vector.broadcast %80 : vector<128x1xf32> to vector<128x128xf32>
    %82 = arith.subf %78, %81 : vector<128x128xf32>
    %83 = math.exp %82 : vector<128x128xf32>
    %cst_48 = arith.constant dense<0.000000e+00> : vector<128xf32>
    %84 = vector.multi_reduction <add>, %83, %cst_48 [1] : vector<128x128xf32> to vector<128xf32>
    %85 = vector.shape_cast %84 : vector<128xf32> to vector<128x1xf32>
    %86 = tpu.reciprocal %85 {approx = true} : vector<128x1xf32> -> vector<128x1xf32>
    %87 = vector.broadcast %86 : vector<128x1xf32> to vector<128x128xf32>
    %88 = arith.mulf %83, %87 : vector<128x128xf32>
    %cst_49 = arith.constant dense<0.000000e+00> : vector<128x8xf32>
    %89 = tpu.matmul %88, %71, %cst_49 {dimension_numbers = #tpu.dot_dimension_numbers<[1], [0], [0], [1], [0, 0, 1, 1], [], []>} : vector<128x128xf32>, vector<128x8xf32>, vector<128x8xf32> -> vector<128x8xf32>
    %90 = vector.extract_strided_slice %21 {offsets = [16, 0], sizes = [8, 32], strides = [1, 1]} : vector<32x32xf32> to vector<8x32xf32>
    %cst_50 = arith.constant dense<0.000000e+00> : vector<128x32xf32>
    %91 = tpu.matmul %89, %90, %cst_50 {dimension_numbers = #tpu.dot_dimension_numbers<[1], [0], [0], [1], [0, 0, 1, 1], [], []>} : vector<128x8xf32>, vector<8x32xf32>, vector<128x32xf32> -> vector<128x32xf32>
    %92 = arith.addf %68, %91 : vector<128x32xf32>
    %93 = vector.extract_strided_slice %19 {offsets = [0, 24], sizes = [128, 8], strides = [1, 1]} : vector<128x96xf32> to vector<128x8xf32>
    %94 = vector.extract_strided_slice %19 {offsets = [0, 56], sizes = [128, 8], strides = [1, 1]} : vector<128x96xf32> to vector<128x8xf32>
    %95 = vector.extract_strided_slice %19 {offsets = [0, 88], sizes = [128, 8], strides = [1, 1]} : vector<128x96xf32> to vector<128x8xf32>
    %cst_51 = arith.constant dense<0.000000e+00> : vector<128x128xf32>
    %96 = tpu.matmul %93, %94, %cst_51 {dimension_numbers = #tpu.dot_dimension_numbers<[1], [1], [0], [0], [0, 0, 1, 0], [], []>} : vector<128x8xf32>, vector<128x8xf32>, vector<128x128xf32> -> vector<128x128xf32>
    %cst_52 = arith.constant 0.353553385 : f32
    %97 = vector.broadcast %cst_52 : f32 to vector<128x128xf32>
    %98 = arith.mulf %96, %97 : vector<128x128xf32>
    %c3 = arith.constant 3 : index
    %c0_53 = arith.constant 0 : index
    %c0_54 = arith.constant 0 : index
    %99 = vector.load %arg21[%c3, %c0_53, %c0_54] : memref<4x128x128xf32, #tpu.memory_space<vmem>>, vector<1x128x128xf32>
    %100 = vector.shape_cast %99 : vector<1x128x128xf32> to vector<128x128xf32>
    %101 = vector.shape_cast %98 : vector<128x128xf32> to vector<1x128x128xf32>
    tpu.vector_store %arg21[%c3, %c0_53, %c0_54], %101 {strides = array<i32>} : memref<4x128x128xf32, #tpu.memory_space<vmem>>, vector<1x128x128xf32>,
    %102 = arith.addf %98, %12 : vector<128x128xf32>
    %cst_55 = arith.constant dense<0xFF800000> : vector<128xf32>
    %103 = vector.multi_reduction <maximumf>, %102, %cst_55 [1] : vector<128x128xf32> to vector<128xf32>
    %104 = vector.shape_cast %103 : vector<128xf32> to vector<128x1xf32>
    %105 = vector.broadcast %104 : vector<128x1xf32> to vector<128x128xf32>
    %106 = arith.subf %102, %105 : vector<128x128xf32>
    %107 = math.exp %106 : vector<128x128xf32>
    %cst_56 = arith.constant dense<0.000000e+00> : vector<128xf32>
    %108 = vector.multi_reduction <add>, %107, %cst_56 [1] : vector<128x128xf32> to vector<128xf32>
    %109 = vector.shape_cast %108 : vector<128xf32> to vector<128x1xf32>
    %110 = tpu.reciprocal %109 {approx = true} : vector<128x1xf32> -> vector<128x1xf32>
    %111 = vector.broadcast %110 : vector<128x1xf32> to vector<128x128xf32>
    %112 = arith.mulf %107, %111 : vector<128x128xf32>
    %cst_57 = arith.constant dense<0.000000e+00> : vector<128x8xf32>
    %113 = tpu.matmul %112, %95, %cst_57 {dimension_numbers = #tpu.dot_dimension_numbers<[1], [0], [0], [1], [0, 0, 1, 1], [], []>} : vector<128x128xf32>, vector<128x8xf32>, vector<128x8xf32> -> vector<128x8xf32>
    %114 = vector.extract_strided_slice %21 {offsets = [24, 0], sizes = [8, 32], strides = [1, 1]} : vector<32x32xf32> to vector<8x32xf32>
    %cst_58 = arith.constant dense<0.000000e+00> : vector<128x32xf32>
    %115 = tpu.matmul %113, %114, %cst_58 {dimension_numbers = #tpu.dot_dimension_numbers<[1], [0], [0], [1], [0, 0, 1, 1], [], []>} : vector<128x8xf32>, vector<8x32xf32>, vector<128x32xf32> -> vector<128x32xf32>
    %116 = arith.addf %92, %115 : vector<128x32xf32>
    %c0_59 = arith.constant 0 : index
    %c0_60 = arith.constant 0 : index
    %c0_61 = arith.constant 0 : index
    %c0_62 = arith.constant 0 : index
    %117 = vector.load %arg9[%c0_59, %c0_60, %c0_61, %c0_62] : memref<1x2x1x32xf32, #tpu.memory_space<vmem>>, vector<1x1x1x32xf32>
    %118 = vector.shape_cast %117 : vector<1x1x1x32xf32> to vector<1x32xf32>
    %119 = vector.broadcast %118 : vector<1x32xf32> to vector<128x32xf32>
    %120 = arith.addf %116, %119 : vector<128x32xf32>
    %121 = arith.addf %11, %120 : vector<128x32xf32>
    %c0_63 = arith.constant 0 : index
    %c0_64 = arith.constant 0 : index
    %c0_65 = arith.constant 0 : index
    %c0_66 = arith.constant 0 : index
    %122 = vector.load %arg10[%c0_63, %c0_64, %c0_65, %c0_66] : memref<1x2x1x32xf32, #tpu.memory_space<vmem>>, vector<1x1x1x32xf32>
    %123 = vector.shape_cast %122 : vector<1x1x1x32xf32> to vector<1x32xf32>
    %c0_67 = arith.constant 0 : index
    %c0_68 = arith.constant 0 : index
    %c0_69 = arith.constant 0 : index
    %c0_70 = arith.constant 0 : index
    %124 = vector.load %arg11[%c0_67, %c0_68, %c0_69, %c0_70] : memref<1x2x1x32xf32, #tpu.memory_space<vmem>>, vector<1x1x1x32xf32>
    %125 = vector.shape_cast %124 : vector<1x1x1x32xf32> to vector<1x32xf32>
    %cst_71 = arith.constant dense<0.000000e+00> : vector<128xf32>
    %126 = vector.multi_reduction <add>, %121, %cst_71 [1] : vector<128x32xf32> to vector<128xf32>
    %127 = vector.shape_cast %126 : vector<128xf32> to vector<128x1xf32>
    %cst_72 = arith.constant 3.200000e+01 : f32
    %128 = vector.broadcast %cst_72 : f32 to vector<128x1xf32>
    %129 = arith.divf %127, %128 : vector<128x1xf32>
    %130 = vector.broadcast %129 : vector<128x1xf32> to vector<128x32xf32>
    %131 = arith.subf %121, %130 : vector<128x32xf32>
    %132 = arith.mulf %131, %131 : vector<128x32xf32>
    %cst_73 = arith.constant dense<0.000000e+00> : vector<128xf32>
    %133 = vector.multi_reduction <add>, %132, %cst_73 [1] : vector<128x32xf32> to vector<128xf32>
    %134 = vector.shape_cast %133 : vector<128xf32> to vector<128x1xf32>
    %cst_74 = arith.constant 3.200000e+01 : f32
    %135 = vector.broadcast %cst_74 : f32 to vector<128x1xf32>
    %136 = arith.divf %134, %135 : vector<128x1xf32>
    %137 = vector.broadcast %129 : vector<128x1xf32> to vector<128x32xf32>
    %138 = arith.subf %121, %137 : vector<128x32xf32>
    %cst_75 = arith.constant 9.99999974E-6 : f32
    %139 = vector.broadcast %cst_75 : f32 to vector<128x1xf32>
    %140 = arith.addf %136, %139 : vector<128x1xf32>
    %141 = math.rsqrt %140 : vector<128x1xf32>
    %142 = vector.broadcast %141 : vector<128x1xf32> to vector<128x32xf32>
    %143 = arith.mulf %138, %142 : vector<128x32xf32>
    %144 = vector.broadcast %123 : vector<1x32xf32> to vector<128x32xf32>
    %145 = arith.mulf %143, %144 : vector<128x32xf32>
    %146 = vector.broadcast %125 : vector<1x32xf32> to vector<128x32xf32>
    %147 = arith.addf %145, %146 : vector<128x32xf32>
    %c0_76 = arith.constant 0 : index
    %c0_77 = arith.constant 0 : index
    %c0_78 = arith.constant 0 : index
    %c0_79 = arith.constant 0 : index
    %148 = vector.load %arg12[%c0_76, %c0_77, %c0_78, %c0_79] : memref<1x2x32x64xf32, #tpu.memory_space<vmem>>, vector<1x1x32x64xf32>
    %149 = vector.shape_cast %148 : vector<1x1x32x64xf32> to vector<32x64xf32>
    %cst_80 = arith.constant dense<0.000000e+00> : vector<128x64xf32>
    %150 = tpu.matmul %147, %149, %cst_80 {dimension_numbers = #tpu.dot_dimension_numbers<[1], [0], [0], [1], [0, 0, 1, 1], [], []>} : vector<128x32xf32>, vector<32x64xf32>, vector<128x64xf32> -> vector<128x64xf32>
    %c0_81 = arith.constant 0 : index
    %c0_82 = arith.constant 0 : index
    %c0_83 = arith.constant 0 : index
    %c0_84 = arith.constant 0 : index
    %151 = vector.load %arg13[%c0_81, %c0_82, %c0_83, %c0_84] : memref<1x2x1x64xf32, #tpu.memory_space<vmem>>, vector<1x1x1x64xf32>
    %152 = vector.shape_cast %151 : vector<1x1x1x64xf32> to vector<1x64xf32>
    %153 = vector.broadcast %152 : vector<1x64xf32> to vector<128x64xf32>
    %154 = arith.addf %150, %153 : vector<128x64xf32>
    %cst_85 = arith.constant 0.000000e+00 : f32
    %155 = vector.broadcast %cst_85 : f32 to vector<128x64xf32>
    %156 = arith.maximumf %154, %155 : vector<128x64xf32>
    %c0_86 = arith.constant 0 : index
    %c0_87 = arith.constant 0 : index
    %c0_88 = arith.constant 0 : index
    %c0_89 = arith.constant 0 : index
    %157 = vector.load %arg14[%c0_86, %c0_87, %c0_88, %c0_89] : memref<1x2x64x32xf32, #tpu.memory_space<vmem>>, vector<1x1x64x32xf32>
    %158 = vector.shape_cast %157 : vector<1x1x64x32xf32> to vector<64x32xf32>
    %cst_90 = arith.constant dense<0.000000e+00> : vector<128x32xf32>
    %159 = tpu.matmul %156, %158, %cst_90 {dimension_numbers = #tpu.dot_dimension_numbers<[1], [0], [0], [1], [0, 0, 1, 1], [], []>} : vector<128x64xf32>, vector<64x32xf32>, vector<128x32xf32> -> vector<128x32xf32>
    %c0_91 = arith.constant 0 : index
    %c0_92 = arith.constant 0 : index
    %c0_93 = arith.constant 0 : index
    %c0_94 = arith.constant 0 : index
    %160 = vector.load %arg15[%c0_91, %c0_92, %c0_93, %c0_94] : memref<1x2x1x32xf32, #tpu.memory_space<vmem>>, vector<1x1x1x32xf32>
    %161 = vector.shape_cast %160 : vector<1x1x1x32xf32> to vector<1x32xf32>
    %162 = vector.broadcast %161 : vector<1x32xf32> to vector<128x32xf32>
    %163 = arith.addf %159, %162 : vector<128x32xf32>
    %164 = arith.addf %147, %163 : vector<128x32xf32>
    %c0_95 = arith.constant 0 : index
    %c0_96 = arith.constant 0 : index
    %c0_97 = arith.constant 0 : index
    %c0_98 = arith.constant 0 : index
    %165 = vector.load %arg16[%c0_95, %c0_96, %c0_97, %c0_98] : memref<1x2x1x32xf32, #tpu.memory_space<vmem>>, vector<1x1x1x32xf32>
    %166 = vector.shape_cast %165 : vector<1x1x1x32xf32> to vector<1x32xf32>
    %c0_99 = arith.constant 0 : index
    %c0_100 = arith.constant 0 : index
    %c0_101 = arith.constant 0 : index
    %c0_102 = arith.constant 0 : index
    %167 = vector.load %arg17[%c0_99, %c0_100, %c0_101, %c0_102] : memref<1x2x1x32xf32, #tpu.memory_space<vmem>>, vector<1x1x1x32xf32>
    %168 = vector.shape_cast %167 : vector<1x1x1x32xf32> to vector<1x32xf32>
    %cst_103 = arith.constant dense<0.000000e+00> : vector<128xf32>
    %169 = vector.multi_reduction <add>, %164, %cst_103 [1] : vector<128x32xf32> to vector<128xf32>
    %170 = vector.shape_cast %169 : vector<128xf32> to vector<128x1xf32>
    %cst_104 = arith.constant 3.200000e+01 : f32
    %171 = vector.broadcast %cst_104 : f32 to vector<128x1xf32>
    %172 = arith.divf %170, %171 : vector<128x1xf32>
    %173 = vector.broadcast %172 : vector<128x1xf32> to vector<128x32xf32>
    %174 = arith.subf %164, %173 : vector<128x32xf32>
    %175 = arith.mulf %174, %174 : vector<128x32xf32>
    %cst_105 = arith.constant dense<0.000000e+00> : vector<128xf32>
    %176 = vector.multi_reduction <add>, %175, %cst_105 [1] : vector<128x32xf32> to vector<128xf32>
    %177 = vector.shape_cast %176 : vector<128xf32> to vector<128x1xf32>
    %cst_106 = arith.constant 3.200000e+01 : f32
    %178 = vector.broadcast %cst_106 : f32 to vector<128x1xf32>
    %179 = arith.divf %177, %178 : vector<128x1xf32>
    %180 = vector.broadcast %172 : vector<128x1xf32> to vector<128x32xf32>
    %181 = arith.subf %164, %180 : vector<128x32xf32>
    %cst_107 = arith.constant 9.99999974E-6 : f32
    %182 = vector.broadcast %cst_107 : f32 to vector<128x1xf32>
    %183 = arith.addf %179, %182 : vector<128x1xf32>
    %184 = math.rsqrt %183 : vector<128x1xf32>
    %185 = vector.broadcast %184 : vector<128x1xf32> to vector<128x32xf32>
    %186 = arith.mulf %181, %185 : vector<128x32xf32>
    %187 = vector.broadcast %166 : vector<1x32xf32> to vector<128x32xf32>
    %188 = arith.mulf %186, %187 : vector<128x32xf32>
    %189 = vector.broadcast %168 : vector<1x32xf32> to vector<128x32xf32>
    %190 = arith.addf %188, %189 : vector<128x32xf32>
    %c0_108 = arith.constant 0 : index
    %c1_109 = arith.constant 1 : index
    %c0_110 = arith.constant 0 : index
    %c0_111 = arith.constant 0 : index
    %191 = vector.load %arg6[%c0_108, %c1_109, %c0_110, %c0_111] : memref<1x2x32x96xf32, #tpu.memory_space<vmem>>, vector<1x1x32x96xf32>
    %192 = vector.shape_cast %191 : vector<1x1x32x96xf32> to vector<32x96xf32>
    %cst_112 = arith.constant dense<0.000000e+00> : vector<128x96xf32>
    %193 = tpu.matmul %190, %192, %cst_112 {dimension_numbers = #tpu.dot_dimension_numbers<[1], [0], [0], [1], [0, 0, 1, 1], [], []>} : vector<128x32xf32>, vector<32x96xf32>, vector<128x96xf32> -> vector<128x96xf32>
    %c0_113 = arith.constant 0 : index
    %c1_114 = arith.constant 1 : index
    %c0_115 = arith.constant 0 : index
    %c0_116 = arith.constant 0 : index
    %194 = vector.load %arg7[%c0_113, %c1_114, %c0_115, %c0_116] : memref<1x2x1x96xf32, #tpu.memory_space<vmem>>, vector<1x1x1x96xf32>
    %195 = vector.shape_cast %194 : vector<1x1x1x96xf32> to vector<1x96xf32>
    %196 = vector.broadcast %195 : vector<1x96xf32> to vector<128x96xf32>
    %197 = arith.addf %193, %196 : vector<128x96xf32>
    %c0_117 = arith.constant 0 : index
    %c1_118 = arith.constant 1 : index
    %c0_119 = arith.constant 0 : index
    %c0_120 = arith.constant 0 : index
    %198 = vector.load %arg8[%c0_117, %c1_118, %c0_119, %c0_120] : memref<1x2x32x32xf32, #tpu.memory_space<vmem>>, vector<1x1x32x32xf32>
    %199 = vector.shape_cast %198 : vector<1x1x32x32xf32> to vector<32x32xf32>
    %200 = vector.extract_strided_slice %197 {offsets = [0, 0], sizes = [128, 8], strides = [1, 1]} : vector<128x96xf32> to vector<128x8xf32>
    %201 = vector.extract_strided_slice %197 {offsets = [0, 32], sizes = [128, 8], strides = [1, 1]} : vector<128x96xf32> to vector<128x8xf32>
    %202 = vector.extract_strided_slice %197 {offsets = [0, 64], sizes = [128, 8], strides = [1, 1]} : vector<128x96xf32> to vector<128x8xf32>
    %cst_121 = arith.constant dense<0.000000e+00> : vector<128x128xf32>
    %203 = tpu.matmul %200, %201, %cst_121 {dimension_numbers = #tpu.dot_dimension_numbers<[1], [1], [0], [0], [0, 0, 1, 0], [], []>} : vector<128x8xf32>, vector<128x8xf32>, vector<128x128xf32> -> vector<128x128xf32>
    %cst_122 = arith.constant 0.353553385 : f32
    %204 = vector.broadcast %cst_122 : f32 to vector<128x128xf32>
    %205 = arith.mulf %203, %204 : vector<128x128xf32>
    %c0_123 = arith.constant 0 : index
    %c0_124 = arith.constant 0 : index
    %c0_125 = arith.constant 0 : index
    %206 = vector.load %arg21[%c0_123, %c0_124, %c0_125] : memref<4x128x128xf32, #tpu.memory_space<vmem>>, vector<1x128x128xf32>
    %207 = vector.shape_cast %206 : vector<1x128x128xf32> to vector<128x128xf32>
    %208 = arith.addf %205, %207 : vector<128x128xf32>
    %209 = arith.addf %208, %12 : vector<128x128xf32>
    %cst_126 = arith.constant dense<0xFF800000> : vector<128xf32>
    %210 = vector.multi_reduction <maximumf>, %209, %cst_126 [1] : vector<128x128xf32> to vector<128xf32>
    %211 = vector.shape_cast %210 : vector<128xf32> to vector<128x1xf32>
    %212 = vector.broadcast %211 : vector<128x1xf32> to vector<128x128xf32>
    %213 = arith.subf %209, %212 : vector<128x128xf32>
    %214 = math.exp %213 : vector<128x128xf32>
    %cst_127 = arith.constant dense<0.000000e+00> : vector<128xf32>
    %215 = vector.multi_reduction <add>, %214, %cst_127 [1] : vector<128x128xf32> to vector<128xf32>
    %216 = vector.shape_cast %215 : vector<128xf32> to vector<128x1xf32>
    %217 = tpu.reciprocal %216 {approx = true} : vector<128x1xf32> -> vector<128x1xf32>
    %218 = vector.broadcast %217 : vector<128x1xf32> to vector<128x128xf32>
    %219 = arith.mulf %214, %218 : vector<128x128xf32>
    %cst_128 = arith.constant dense<0.000000e+00> : vector<128x8xf32>
    %220 = tpu.matmul %219, %202, %cst_128 {dimension_numbers = #tpu.dot_dimension_numbers<[1], [0], [0], [1], [0, 0, 1, 1], [], []>} : vector<128x128xf32>, vector<128x8xf32>, vector<128x8xf32> -> vector<128x8xf32>
    %221 = vector.extract_strided_slice %199 {offsets = [0, 0], sizes = [8, 32], strides = [1, 1]} : vector<32x32xf32> to vector<8x32xf32>
    %cst_129 = arith.constant dense<0.000000e+00> : vector<128x32xf32>
    %222 = tpu.matmul %220, %221, %cst_129 {dimension_numbers = #tpu.dot_dimension_numbers<[1], [0], [0], [1], [0, 0, 1, 1], [], []>} : vector<128x8xf32>, vector<8x32xf32>, vector<128x32xf32> -> vector<128x32xf32>
    %223 = vector.extract_strided_slice %197 {offsets = [0, 8], sizes = [128, 8], strides = [1, 1]} : vector<128x96xf32> to vector<128x8xf32>
    %224 = vector.extract_strided_slice %197 {offsets = [0, 40], sizes = [128, 8], strides = [1, 1]} : vector<128x96xf32> to vector<128x8xf32>
    %225 = vector.extract_strided_slice %197 {offsets = [0, 72], sizes = [128, 8], strides = [1, 1]} : vector<128x96xf32> to vector<128x8xf32>
    %cst_130 = arith.constant dense<0.000000e+00> : vector<128x128xf32>
    %226 = tpu.matmul %223, %224, %cst_130 {dimension_numbers = #tpu.dot_dimension_numbers<[1], [1], [0], [0], [0, 0, 1, 0], [], []>} : vector<128x8xf32>, vector<128x8xf32>, vector<128x128xf32> -> vector<128x128xf32>
    %cst_131 = arith.constant 0.353553385 : f32
    %227 = vector.broadcast %cst_131 : f32 to vector<128x128xf32>
    %228 = arith.mulf %226, %227 : vector<128x128xf32>
    %c1_132 = arith.constant 1 : index
    %c0_133 = arith.constant 0 : index
    %c0_134 = arith.constant 0 : index
    %229 = vector.load %arg21[%c1_132, %c0_133, %c0_134] : memref<4x128x128xf32, #tpu.memory_space<vmem>>, vector<1x128x128xf32>
    %230 = vector.shape_cast %229 : vector<1x128x128xf32> to vector<128x128xf32>
    %231 = arith.addf %228, %230 : vector<128x128xf32>
    %232 = arith.addf %231, %12 : vector<128x128xf32>
    %cst_135 = arith.constant dense<0xFF800000> : vector<128xf32>
    %233 = vector.multi_reduction <maximumf>, %232, %cst_135 [1] : vector<128x128xf32> to vector<128xf32>
    %234 = vector.shape_cast %233 : vector<128xf32> to vector<128x1xf32>
    %235 = vector.broadcast %234 : vector<128x1xf32> to vector<128x128xf32>
    %236 = arith.subf %232, %235 : vector<128x128xf32>
    %237 = math.exp %236 : vector<128x128xf32>
    %cst_136 = arith.constant dense<0.000000e+00> : vector<128xf32>
    %238 = vector.multi_reduction <add>, %237, %cst_136 [1] : vector<128x128xf32> to vector<128xf32>
    %239 = vector.shape_cast %238 : vector<128xf32> to vector<128x1xf32>
    %240 = tpu.reciprocal %239 {approx = true} : vector<128x1xf32> -> vector<128x1xf32>
    %241 = vector.broadcast %240 : vector<128x1xf32> to vector<128x128xf32>
    %242 = arith.mulf %237, %241 : vector<128x128xf32>
    %cst_137 = arith.constant dense<0.000000e+00> : vector<128x8xf32>
    %243 = tpu.matmul %242, %225, %cst_137 {dimension_numbers = #tpu.dot_dimension_numbers<[1], [0], [0], [1], [0, 0, 1, 1], [], []>} : vector<128x128xf32>, vector<128x8xf32>, vector<128x8xf32> -> vector<128x8xf32>
    %244 = vector.extract_strided_slice %199 {offsets = [8, 0], sizes = [8, 32], strides = [1, 1]} : vector<32x32xf32> to vector<8x32xf32>
    %cst_138 = arith.constant dense<0.000000e+00> : vector<128x32xf32>
    %245 = tpu.matmul %243, %244, %cst_138 {dimension_numbers = #tpu.dot_dimension_numbers<[1], [0], [0], [1], [0, 0, 1, 1], [], []>} : vector<128x8xf32>, vector<8x32xf32>, vector<128x32xf32> -> vector<128x32xf32>
    %246 = arith.addf %222, %245 : vector<128x32xf32>
    %247 = vector.extract_strided_slice %197 {offsets = [0, 16], sizes = [128, 8], strides = [1, 1]} : vector<128x96xf32> to vector<128x8xf32>
    %248 = vector.extract_strided_slice %197 {offsets = [0, 48], sizes = [128, 8], strides = [1, 1]} : vector<128x96xf32> to vector<128x8xf32>
    %249 = vector.extract_strided_slice %197 {offsets = [0, 80], sizes = [128, 8], strides = [1, 1]} : vector<128x96xf32> to vector<128x8xf32>
    %cst_139 = arith.constant dense<0.000000e+00> : vector<128x128xf32>
    %250 = tpu.matmul %247, %248, %cst_139 {dimension_numbers = #tpu.dot_dimension_numbers<[1], [1], [0], [0], [0, 0, 1, 0], [], []>} : vector<128x8xf32>, vector<128x8xf32>, vector<128x128xf32> -> vector<128x128xf32>
    %cst_140 = arith.constant 0.353553385 : f32
    %251 = vector.broadcast %cst_140 : f32 to vector<128x128xf32>
    %252 = arith.mulf %250, %251 : vector<128x128xf32>
    %c2_141 = arith.constant 2 : index
    %c0_142 = arith.constant 0 : index
    %c0_143 = arith.constant 0 : index
    %253 = vector.load %arg21[%c2_141, %c0_142, %c0_143] : memref<4x128x128xf32, #tpu.memory_space<vmem>>, vector<1x128x128xf32>
    %254 = vector.shape_cast %253 : vector<1x128x128xf32> to vector<128x128xf32>
    %255 = arith.addf %252, %254 : vector<128x128xf32>
    %256 = arith.addf %255, %12 : vector<128x128xf32>
    %cst_144 = arith.constant dense<0xFF800000> : vector<128xf32>
    %257 = vector.multi_reduction <maximumf>, %256, %cst_144 [1] : vector<128x128xf32> to vector<128xf32>
    %258 = vector.shape_cast %257 : vector<128xf32> to vector<128x1xf32>
    %259 = vector.broadcast %258 : vector<128x1xf32> to vector<128x128xf32>
    %260 = arith.subf %256, %259 : vector<128x128xf32>
    %261 = math.exp %260 : vector<128x128xf32>
    %cst_145 = arith.constant dense<0.000000e+00> : vector<128xf32>
    %262 = vector.multi_reduction <add>, %261, %cst_145 [1] : vector<128x128xf32> to vector<128xf32>
    %263 = vector.shape_cast %262 : vector<128xf32> to vector<128x1xf32>
    %264 = tpu.reciprocal %263 {approx = true} : vector<128x1xf32> -> vector<128x1xf32>
    %265 = vector.broadcast %264 : vector<128x1xf32> to vector<128x128xf32>
    %266 = arith.mulf %261, %265 : vector<128x128xf32>
    %cst_146 = arith.constant dense<0.000000e+00> : vector<128x8xf32>
    %267 = tpu.matmul %266, %249, %cst_146 {dimension_numbers = #tpu.dot_dimension_numbers<[1], [0], [0], [1], [0, 0, 1, 1], [], []>} : vector<128x128xf32>, vector<128x8xf32>, vector<128x8xf32> -> vector<128x8xf32>
    %268 = vector.extract_strided_slice %199 {offsets = [16, 0], sizes = [8, 32], strides = [1, 1]} : vector<32x32xf32> to vector<8x32xf32>
    %cst_147 = arith.constant dense<0.000000e+00> : vector<128x32xf32>
    %269 = tpu.matmul %267, %268, %cst_147 {dimension_numbers = #tpu.dot_dimension_numbers<[1], [0], [0], [1], [0, 0, 1, 1], [], []>} : vector<128x8xf32>, vector<8x32xf32>, vector<128x32xf32> -> vector<128x32xf32>
    %270 = arith.addf %246, %269 : vector<128x32xf32>
    %271 = vector.extract_strided_slice %197 {offsets = [0, 24], sizes = [128, 8], strides = [1, 1]} : vector<128x96xf32> to vector<128x8xf32>
    %272 = vector.extract_strided_slice %197 {offsets = [0, 56], sizes = [128, 8], strides = [1, 1]} : vector<128x96xf32> to vector<128x8xf32>
    %273 = vector.extract_strided_slice %197 {offsets = [0, 88], sizes = [128, 8], strides = [1, 1]} : vector<128x96xf32> to vector<128x8xf32>
    %cst_148 = arith.constant dense<0.000000e+00> : vector<128x128xf32>
    %274 = tpu.matmul %271, %272, %cst_148 {dimension_numbers = #tpu.dot_dimension_numbers<[1], [1], [0], [0], [0, 0, 1, 0], [], []>} : vector<128x8xf32>, vector<128x8xf32>, vector<128x128xf32> -> vector<128x128xf32>
    %cst_149 = arith.constant 0.353553385 : f32
    %275 = vector.broadcast %cst_149 : f32 to vector<128x128xf32>
    %276 = arith.mulf %274, %275 : vector<128x128xf32>
    %c3_150 = arith.constant 3 : index
    %c0_151 = arith.constant 0 : index
    %c0_152 = arith.constant 0 : index
    %277 = vector.load %arg21[%c3_150, %c0_151, %c0_152] : memref<4x128x128xf32, #tpu.memory_space<vmem>>, vector<1x128x128xf32>
    %278 = vector.shape_cast %277 : vector<1x128x128xf32> to vector<128x128xf32>
    %279 = arith.addf %276, %278 : vector<128x128xf32>
    %280 = arith.addf %279, %12 : vector<128x128xf32>
    %cst_153 = arith.constant dense<0xFF800000> : vector<128xf32>
    %281 = vector.multi_reduction <maximumf>, %280, %cst_153 [1] : vector<128x128xf32> to vector<128xf32>
    %282 = vector.shape_cast %281 : vector<128xf32> to vector<128x1xf32>
    %283 = vector.broadcast %282 : vector<128x1xf32> to vector<128x128xf32>
    %284 = arith.subf %280, %283 : vector<128x128xf32>
    %285 = math.exp %284 : vector<128x128xf32>
    %cst_154 = arith.constant dense<0.000000e+00> : vector<128xf32>
    %286 = vector.multi_reduction <add>, %285, %cst_154 [1] : vector<128x128xf32> to vector<128xf32>
    %287 = vector.shape_cast %286 : vector<128xf32> to vector<128x1xf32>
    %288 = tpu.reciprocal %287 {approx = true} : vector<128x1xf32> -> vector<128x1xf32>
    %289 = vector.broadcast %288 : vector<128x1xf32> to vector<128x128xf32>
    %290 = arith.mulf %285, %289 : vector<128x128xf32>
    %cst_155 = arith.constant dense<0.000000e+00> : vector<128x8xf32>
    %291 = tpu.matmul %290, %273, %cst_155 {dimension_numbers = #tpu.dot_dimension_numbers<[1], [0], [0], [1], [0, 0, 1, 1], [], []>} : vector<128x128xf32>, vector<128x8xf32>, vector<128x8xf32> -> vector<128x8xf32>
    %292 = vector.extract_strided_slice %199 {offsets = [24, 0], sizes = [8, 32], strides = [1, 1]} : vector<32x32xf32> to vector<8x32xf32>
    %cst_156 = arith.constant dense<0.000000e+00> : vector<128x32xf32>
    %293 = tpu.matmul %291, %292, %cst_156 {dimension_numbers = #tpu.dot_dimension_numbers<[1], [0], [0], [1], [0, 0, 1, 1], [], []>} : vector<128x8xf32>, vector<8x32xf32>, vector<128x32xf32> -> vector<128x32xf32>
    %294 = arith.addf %270, %293 : vector<128x32xf32>
    %c0_157 = arith.constant 0 : index
    %c1_158 = arith.constant 1 : index
    %c0_159 = arith.constant 0 : index
    %c0_160 = arith.constant 0 : index
    %295 = vector.load %arg9[%c0_157, %c1_158, %c0_159, %c0_160] : memref<1x2x1x32xf32, #tpu.memory_space<vmem>>, vector<1x1x1x32xf32>
    %296 = vector.shape_cast %295 : vector<1x1x1x32xf32> to vector<1x32xf32>
    %297 = vector.broadcast %296 : vector<1x32xf32> to vector<128x32xf32>
    %298 = arith.addf %294, %297 : vector<128x32xf32>
    %299 = arith.addf %190, %298 : vector<128x32xf32>
    %c0_161 = arith.constant 0 : index
    %c1_162 = arith.constant 1 : index
    %c0_163 = arith.constant 0 : index
    %c0_164 = arith.constant 0 : index
    %300 = vector.load %arg10[%c0_161, %c1_162, %c0_163, %c0_164] : memref<1x2x1x32xf32, #tpu.memory_space<vmem>>, vector<1x1x1x32xf32>
    %301 = vector.shape_cast %300 : vector<1x1x1x32xf32> to vector<1x32xf32>
    %c0_165 = arith.constant 0 : index
    %c1_166 = arith.constant 1 : index
    %c0_167 = arith.constant 0 : index
    %c0_168 = arith.constant 0 : index
    %302 = vector.load %arg11[%c0_165, %c1_166, %c0_167, %c0_168] : memref<1x2x1x32xf32, #tpu.memory_space<vmem>>, vector<1x1x1x32xf32>
    %303 = vector.shape_cast %302 : vector<1x1x1x32xf32> to vector<1x32xf32>
    %cst_169 = arith.constant dense<0.000000e+00> : vector<128xf32>
    %304 = vector.multi_reduction <add>, %299, %cst_169 [1] : vector<128x32xf32> to vector<128xf32>
    %305 = vector.shape_cast %304 : vector<128xf32> to vector<128x1xf32>
    %cst_170 = arith.constant 3.200000e+01 : f32
    %306 = vector.broadcast %cst_170 : f32 to vector<128x1xf32>
    %307 = arith.divf %305, %306 : vector<128x1xf32>
    %308 = vector.broadcast %307 : vector<128x1xf32> to vector<128x32xf32>
    %309 = arith.subf %299, %308 : vector<128x32xf32>
    %310 = arith.mulf %309, %309 : vector<128x32xf32>
    %cst_171 = arith.constant dense<0.000000e+00> : vector<128xf32>
    %311 = vector.multi_reduction <add>, %310, %cst_171 [1] : vector<128x32xf32> to vector<128xf32>
    %312 = vector.shape_cast %311 : vector<128xf32> to vector<128x1xf32>
    %cst_172 = arith.constant 3.200000e+01 : f32
    %313 = vector.broadcast %cst_172 : f32 to vector<128x1xf32>
    %314 = arith.divf %312, %313 : vector<128x1xf32>
    %315 = vector.broadcast %307 : vector<128x1xf32> to vector<128x32xf32>
    %316 = arith.subf %299, %315 : vector<128x32xf32>
    %cst_173 = arith.constant 9.99999974E-6 : f32
    %317 = vector.broadcast %cst_173 : f32 to vector<128x1xf32>
    %318 = arith.addf %314, %317 : vector<128x1xf32>
    %319 = math.rsqrt %318 : vector<128x1xf32>
    %320 = vector.broadcast %319 : vector<128x1xf32> to vector<128x32xf32>
    %321 = arith.mulf %316, %320 : vector<128x32xf32>
    %322 = vector.broadcast %301 : vector<1x32xf32> to vector<128x32xf32>
    %323 = arith.mulf %321, %322 : vector<128x32xf32>
    %324 = vector.broadcast %303 : vector<1x32xf32> to vector<128x32xf32>
    %325 = arith.addf %323, %324 : vector<128x32xf32>
    %c0_174 = arith.constant 0 : index
    %c1_175 = arith.constant 1 : index
    %c0_176 = arith.constant 0 : index
    %c0_177 = arith.constant 0 : index
    %326 = vector.load %arg12[%c0_174, %c1_175, %c0_176, %c0_177] : memref<1x2x32x64xf32, #tpu.memory_space<vmem>>, vector<1x1x32x64xf32>
    %327 = vector.shape_cast %326 : vector<1x1x32x64xf32> to vector<32x64xf32>
    %cst_178 = arith.constant dense<0.000000e+00> : vector<128x64xf32>
    %328 = tpu.matmul %325, %327, %cst_178 {dimension_numbers = #tpu.dot_dimension_numbers<[1], [0], [0], [1], [0, 0, 1, 1], [], []>} : vector<128x32xf32>, vector<32x64xf32>, vector<128x64xf32> -> vector<128x64xf32>
    %c0_179 = arith.constant 0 : index
    %c1_180 = arith.constant 1 : index
    %c0_181 = arith.constant 0 : index
    %c0_182 = arith.constant 0 : index
    %329 = vector.load %arg13[%c0_179, %c1_180, %c0_181, %c0_182] : memref<1x2x1x64xf32, #tpu.memory_space<vmem>>, vector<1x1x1x64xf32>
    %330 = vector.shape_cast %329 : vector<1x1x1x64xf32> to vector<1x64xf32>
    %331 = vector.broadcast %330 : vector<1x64xf32> to vector<128x64xf32>
    %332 = arith.addf %328, %331 : vector<128x64xf32>
    %cst_183 = arith.constant 0.000000e+00 : f32
    %333 = vector.broadcast %cst_183 : f32 to vector<128x64xf32>
    %334 = arith.maximumf %332, %333 : vector<128x64xf32>
    %c0_184 = arith.constant 0 : index
    %c1_185 = arith.constant 1 : index
    %c0_186 = arith.constant 0 : index
    %c0_187 = arith.constant 0 : index
    %335 = vector.load %arg14[%c0_184, %c1_185, %c0_186, %c0_187] : memref<1x2x64x32xf32, #tpu.memory_space<vmem>>, vector<1x1x64x32xf32>
    %336 = vector.shape_cast %335 : vector<1x1x64x32xf32> to vector<64x32xf32>
    %cst_188 = arith.constant dense<0.000000e+00> : vector<128x32xf32>
    %337 = tpu.matmul %334, %336, %cst_188 {dimension_numbers = #tpu.dot_dimension_numbers<[1], [0], [0], [1], [0, 0, 1, 1], [], []>} : vector<128x64xf32>, vector<64x32xf32>, vector<128x32xf32> -> vector<128x32xf32>
    %c0_189 = arith.constant 0 : index
    %c1_190 = arith.constant 1 : index
    %c0_191 = arith.constant 0 : index
    %c0_192 = arith.constant 0 : index
    %338 = vector.load %arg15[%c0_189, %c1_190, %c0_191, %c0_192] : memref<1x2x1x32xf32, #tpu.memory_space<vmem>>, vector<1x1x1x32xf32>
    %339 = vector.shape_cast %338 : vector<1x1x1x32xf32> to vector<1x32xf32>
    %340 = vector.broadcast %339 : vector<1x32xf32> to vector<128x32xf32>
    %341 = arith.addf %337, %340 : vector<128x32xf32>
    %342 = arith.addf %325, %341 : vector<128x32xf32>
    %c0_193 = arith.constant 0 : index
    %c1_194 = arith.constant 1 : index
    %c0_195 = arith.constant 0 : index
    %c0_196 = arith.constant 0 : index
    %343 = vector.load %arg16[%c0_193, %c1_194, %c0_195, %c0_196] : memref<1x2x1x32xf32, #tpu.memory_space<vmem>>, vector<1x1x1x32xf32>
    %344 = vector.shape_cast %343 : vector<1x1x1x32xf32> to vector<1x32xf32>
    %c0_197 = arith.constant 0 : index
    %c1_198 = arith.constant 1 : index
    %c0_199 = arith.constant 0 : index
    %c0_200 = arith.constant 0 : index
    %345 = vector.load %arg17[%c0_197, %c1_198, %c0_199, %c0_200] : memref<1x2x1x32xf32, #tpu.memory_space<vmem>>, vector<1x1x1x32xf32>
    %346 = vector.shape_cast %345 : vector<1x1x1x32xf32> to vector<1x32xf32>
    %cst_201 = arith.constant dense<0.000000e+00> : vector<128xf32>
    %347 = vector.multi_reduction <add>, %342, %cst_201 [1] : vector<128x32xf32> to vector<128xf32>
    %348 = vector.shape_cast %347 : vector<128xf32> to vector<128x1xf32>
    %cst_202 = arith.constant 3.200000e+01 : f32
    %349 = vector.broadcast %cst_202 : f32 to vector<128x1xf32>
    %350 = arith.divf %348, %349 : vector<128x1xf32>
    %351 = vector.broadcast %350 : vector<128x1xf32> to vector<128x32xf32>
    %352 = arith.subf %342, %351 : vector<128x32xf32>
    %353 = arith.mulf %352, %352 : vector<128x32xf32>
    %cst_203 = arith.constant dense<0.000000e+00> : vector<128xf32>
    %354 = vector.multi_reduction <add>, %353, %cst_203 [1] : vector<128x32xf32> to vector<128xf32>
    %355 = vector.shape_cast %354 : vector<128xf32> to vector<128x1xf32>
    %cst_204 = arith.constant 3.200000e+01 : f32
    %356 = vector.broadcast %cst_204 : f32 to vector<128x1xf32>
    %357 = arith.divf %355, %356 : vector<128x1xf32>
    %358 = vector.broadcast %350 : vector<128x1xf32> to vector<128x32xf32>
    %359 = arith.subf %342, %358 : vector<128x32xf32>
    %cst_205 = arith.constant 9.99999974E-6 : f32
    %360 = vector.broadcast %cst_205 : f32 to vector<128x1xf32>
    %361 = arith.addf %357, %360 : vector<128x1xf32>
    %362 = math.rsqrt %361 : vector<128x1xf32>
    %363 = vector.broadcast %362 : vector<128x1xf32> to vector<128x32xf32>
    %364 = arith.mulf %359, %363 : vector<128x32xf32>
    %365 = vector.broadcast %344 : vector<1x32xf32> to vector<128x32xf32>
    %366 = arith.mulf %364, %365 : vector<128x32xf32>
    %367 = vector.broadcast %346 : vector<1x32xf32> to vector<128x32xf32>
    %368 = arith.addf %366, %367 : vector<128x32xf32>
    %c0_206 = arith.constant 0 : index
    %c0_207 = arith.constant 0 : index
    %c0_208 = arith.constant 0 : index
    %369 = vector.load %arg18[%c0_206, %c0_207, %c0_208] : memref<1x16x128xf32, #tpu.memory_space<vmem>>, vector<1x16x128xf32>
    %370 = vector.shape_cast %369 : vector<1x16x128xf32> to vector<16x128xf32>
    %cst_209 = arith.constant dense<0.000000e+00> : vector<16x32xf32>
    %371 = tpu.matmul %370, %368, %cst_209 {dimension_numbers = #tpu.dot_dimension_numbers<[1], [0], [0], [1], [0, 0, 1, 1], [], []>} : vector<16x128xf32>, vector<128x32xf32>, vector<16x32xf32> -> vector<16x32xf32>
    %c0_210 = arith.constant 0 : index
    %c0_211 = arith.constant 0 : index
    %c0_212 = arith.constant 0 : index
    %372 = vector.load %arg19[%c0_210, %c0_211, %c0_212] : memref<1x1x1xf32, #tpu.memory_space<vmem>>, vector<1x1x1xf32>
    %373 = vector.shape_cast %372 : vector<1x1x1xf32> to vector<1x1xf32>
    %374 = vector.broadcast %373 : vector<1x1xf32> to vector<16x32xf32>
    %375 = arith.addf %371, %374 : vector<16x32xf32>
    %c0_213 = arith.constant 0 : index
    %c0_214 = arith.constant 0 : index
    %c0_215 = arith.constant 0 : index
    %376 = vector.load %arg20[%c0_213, %c0_214, %c0_215] : memref<1x16x32xf32, #tpu.memory_space<vmem>>, vector<1x16x32xf32>
    %377 = vector.shape_cast %376 : vector<1x16x32xf32> to vector<16x32xf32>
    %378 = vector.shape_cast %375 : vector<16x32xf32> to vector<1x16x32xf32>
    tpu.vector_store %arg20[%c0_213, %c0_214, %c0_215], %378 {strides = array<i32>} : memref<1x16x32xf32, #tpu.memory_space<vmem>>, vector<1x16x32xf32>,
    return
  }
  func.func @transform_0(%arg0: i32) -> (i32, i32, i32) {
    %c0_i32 = arith.constant 0 : i32
    %c0_i32_0 = arith.constant 0 : i32
    %c0_i32_1 = arith.constant 0 : i32
    return %arg0, %c0_i32, %c0_i32_0 : i32, i32, i32
  }
  func.func @transform_1(%arg0: i32) -> (i32, i32, i32) {
    %c0_i32 = arith.constant 0 : i32
    %c0_i32_0 = arith.constant 0 : i32
    %c0_i32_1 = arith.constant 0 : i32
    return %arg0, %c0_i32, %c0_i32_0 : i32, i32, i32
  }
  func.func @transform_2(%arg0: i32) -> (i32, i32) {
    %c0_i32 = arith.constant 0 : i32
    %c0_i32_0 = arith.constant 0 : i32
    %c0_i32_1 = arith.constant 0 : i32
    return %c0_i32, %c0_i32_0 : i32, i32
  }
  func.func @transform_3(%arg0: i32) -> (i32, i32, i32) {
    %c0_i32 = arith.constant 0 : i32
    %c0_i32_0 = arith.constant 0 : i32
    %c0_i32_1 = arith.constant 0 : i32
    return %arg0, %c0_i32, %c0_i32_0 : i32, i32, i32
  }
  func.func @transform_4(%arg0: i32) -> (i32, i32, i32) {
    %c0_i32 = arith.constant 0 : i32
    %c0_i32_0 = arith.constant 0 : i32
    %c0_i32_1 = arith.constant 0 : i32
    return %arg0, %c0_i32, %c0_i32_0 : i32, i32, i32
  }
  func.func @transform_5(%arg0: i32) -> (i32, i32, i32, i32) {
    %c0_i32 = arith.constant 0 : i32
    %c0_i32_0 = arith.constant 0 : i32
    %c0_i32_1 = arith.constant 0 : i32
    %c0_i32_2 = arith.constant 0 : i32
    return %arg0, %c0_i32, %c0_i32_0, %c0_i32_1 : i32, i32, i32, i32
  }
  func.func @transform_6(%arg0: i32) -> (i32, i32, i32, i32) {
    %c0_i32 = arith.constant 0 : i32
    %c0_i32_0 = arith.constant 0 : i32
    %c0_i32_1 = arith.constant 0 : i32
    %c0_i32_2 = arith.constant 0 : i32
    return %arg0, %c0_i32, %c0_i32_0, %c0_i32_1 : i32, i32, i32, i32
  }
  func.func @transform_7(%arg0: i32) -> (i32, i32, i32, i32) {
    %c0_i32 = arith.constant 0 : i32
    %c0_i32_0 = arith.constant 0 : i32
    %c0_i32_1 = arith.constant 0 : i32
    %c0_i32_2 = arith.constant 0 : i32
    return %arg0, %c0_i32, %c0_i32_0, %c0_i32_1 : i32, i32, i32, i32
  }
  func.func @transform_8(%arg0: i32) -> (i32, i32, i32, i32) {
    %c0_i32 = arith.constant 0 : i32
    %c0_i32_0 = arith.constant 0 : i32
    %c0_i32_1 = arith.constant 0 : i32
    %c0_i32_2 = arith.constant 0 : i32
    return %arg0, %c0_i32, %c0_i32_0, %c0_i32_1 : i32, i32, i32, i32
  }
  func.func @transform_9(%arg0: i32) -> (i32, i32, i32, i32) {
    %c0_i32 = arith.constant 0 : i32
    %c0_i32_0 = arith.constant 0 : i32
    %c0_i32_1 = arith.constant 0 : i32
    %c0_i32_2 = arith.constant 0 : i32
    return %arg0, %c0_i32, %c0_i32_0, %c0_i32_1 : i32, i32, i32, i32
  }
  func.func @transform_10(%arg0: i32) -> (i32, i32, i32, i32) {
    %c0_i32 = arith.constant 0 : i32
    %c0_i32_0 = arith.constant 0 : i32
    %c0_i32_1 = arith.constant 0 : i32
    %c0_i32_2 = arith.constant 0 : i32
    return %arg0, %c0_i32, %c0_i32_0, %c0_i32_1 : i32, i32, i32, i32
  }
  func.func @transform_11(%arg0: i32) -> (i32, i32, i32, i32) {
    %c0_i32 = arith.constant 0 : i32
    %c0_i32_0 = arith.constant 0 : i32
    %c0_i32_1 = arith.constant 0 : i32
    %c0_i32_2 = arith.constant 0 : i32
    return %arg0, %c0_i32, %c0_i32_0, %c0_i32_1 : i32, i32, i32, i32
  }
  func.func @transform_12(%arg0: i32) -> (i32, i32, i32, i32) {
    %c0_i32 = arith.constant 0 : i32
    %c0_i32_0 = arith.constant 0 : i32
    %c0_i32_1 = arith.constant 0 : i32
    %c0_i32_2 = arith.constant 0 : i32
    return %arg0, %c0_i32, %c0_i32_0, %c0_i32_1 : i32, i32, i32, i32
  }
  func.func @transform_13(%arg0: i32) -> (i32, i32, i32, i32) {
    %c0_i32 = arith.constant 0 : i32
    %c0_i32_0 = arith.constant 0 : i32
    %c0_i32_1 = arith.constant 0 : i32
    %c0_i32_2 = arith.constant 0 : i32
    return %arg0, %c0_i32, %c0_i32_0, %c0_i32_1 : i32, i32, i32, i32
  }
  func.func @transform_14(%arg0: i32) -> (i32, i32, i32, i32) {
    %c0_i32 = arith.constant 0 : i32
    %c0_i32_0 = arith.constant 0 : i32
    %c0_i32_1 = arith.constant 0 : i32
    %c0_i32_2 = arith.constant 0 : i32
    return %arg0, %c0_i32, %c0_i32_0, %c0_i32_1 : i32, i32, i32, i32
  }
  func.func @transform_15(%arg0: i32) -> (i32, i32, i32, i32) {
    %c0_i32 = arith.constant 0 : i32
    %c0_i32_0 = arith.constant 0 : i32
    %c0_i32_1 = arith.constant 0 : i32
    %c0_i32_2 = arith.constant 0 : i32
    return %arg0, %c0_i32, %c0_i32_0, %c0_i32_1 : i32, i32, i32, i32
  }
  func.func @transform_16(%arg0: i32) -> (i32, i32, i32, i32) {
    %c0_i32 = arith.constant 0 : i32
    %c0_i32_0 = arith.constant 0 : i32
    %c0_i32_1 = arith.constant 0 : i32
    %c0_i32_2 = arith.constant 0 : i32
    return %arg0, %c0_i32, %c0_i32_0, %c0_i32_1 : i32, i32, i32, i32
  }
  func.func @transform_17(%arg0: i32) -> (i32, i32, i32) {
    %c0_i32 = arith.constant 0 : i32
    %c0_i32_0 = arith.constant 0 : i32
    %c0_i32_1 = arith.constant 0 : i32
    return %arg0, %c0_i32, %c0_i32_0 : i32, i32, i32
  }
  func.func @transform_18(%arg0: i32) -> (i32, i32, i32) {
    %c0_i32 = arith.constant 0 : i32
    %c0_i32_0 = arith.constant 0 : i32
    %c0_i32_1 = arith.constant 0 : i32
    return %arg0, %c0_i32, %c0_i32_0 : i32, i32, i32
  }
  func.func @transform_19(%arg0: i32) -> (i32, i32, i32) {
    %c0_i32 = arith.constant 0 : i32
    %c0_i32_0 = arith.constant 0 : i32
    %c0_i32_1 = arith.constant 0 : i32
    return %arg0, %c0_i32, %c0_i32_0 : i32, i32, i32
  }
}

</mosaic_0001>

<llo_original>
// kernel: forward.1
$region0: #{forward.1}
  #allocation0 [shape = 'u32[]', space=smem, size = 0x4, offset = 0x4, fixed_abs, tag = 'smem constant byte address 0x4 - core index']
  #allocation1 [shape = 'u32[144,128]{1,0:T(1,128)}', space=vmem, size = 0x12000, scoped, tag = 'internal scratch']
  #allocation2 [shape = 'f32[4,128,128]{2,1,0:T(8,128)}', space=vmem, size = 0x40000, scoped, tag = 'scratch operand']
  %s0 = inlined_call_operand.vmem [shape: f32[2,128,4], index: 0, kind: input, shape index: {}]
  %s1 = inlined_call_operand.vmem [shape: f32[2,128,32], index: 1, kind: input, shape index: {}]
  %s2 = inlined_call_operand.vmem [shape: f32[128,128], index: 2, kind: input, shape index: {}]
  %s3 = inlined_call_operand.vmem [shape: f32[2,4,32], index: 3, kind: input, shape index: {}]
  %s4 = inlined_call_operand.vmem [shape: f32[2,1,32], index: 4, kind: input, shape index: {}]
  %s5 = inlined_call_operand.vmem [shape: f32[2,2,32,96], index: 5, kind: input, shape index: {}]
  %s6 = inlined_call_operand.vmem [shape: f32[2,2,1,96], index: 6, kind: input, shape index: {}]
  %s7 = inlined_call_operand.vmem [shape: f32[2,2,32,32], index: 7, kind: input, shape index: {}]
  %s8 = inlined_call_operand.vmem [shape: f32[2,2,1,32], index: 8, kind: input, shape index: {}]
  %s9 = inlined_call_operand.vmem [shape: f32[2,2,1,32], index: 9, kind: input, shape index: {}]
  %s10 = inlined_call_operand.vmem [shape: f32[2,2,1,32], index: 10, kind: input, shape index: {}]
  %s11 = inlined_call_operand.vmem [shape: f32[2,2,32,64], index: 11, kind: input, shape index: {}]
  %s12 = inlined_call_operand.vmem [shape: f32[2,2,1,64], index: 12, kind: input, shape index: {}]
  %s13 = inlined_call_operand.vmem [shape: f32[2,2,64,32], index: 13, kind: input, shape index: {}]
  %s14 = inlined_call_operand.vmem [shape: f32[2,2,1,32], index: 14, kind: input, shape index: {}]
  %s15 = inlined_call_operand.vmem [shape: f32[2,2,1,32], index: 15, kind: input, shape index: {}]
  %s16 = inlined_call_operand.vmem [shape: f32[2,2,1,32], index: 16, kind: input, shape index: {}]
  %s17 = inlined_call_operand.vmem [shape: f32[2,16,128], index: 17, kind: input, shape index: {}]
  %s18 = inlined_call_operand.vmem [shape: f32[2,1,1], index: 18, kind: input, shape index: {}]
  %s19 = inlined_call_operand.vmem [shape: f32[2,16,32], index: 19, kind: output, shape index: {}]
  %s20 = sld [smem:[#allocation0]]
  $region109: #{forward.1} parent=0
    _
  %s22 = ssub.s32 1, %s20
  %s23 = scalar_select 0, %s22, %s20
  loop: start=0, step=1, limit=4
  $region2: #{forward.1} parent=0 // loop_pre_header
    _
  $region3: #{forward.1} parent=0 // loop_header
    %s25 = sphi 0, %s29
    %p26 = scmp.ge.s32.totalorder %s25, 4
    %s35 = sphi 0, %s37
    %s38 = sphi 0, %s35
    %s39 = sphi 0, %s38
    %s55 = sphi 0, %s39
    %s61 = sphi 0, %s63
    %s64 = sphi 0, %s61
    %s65 = sphi 0, %s64
    %s81 = sphi 0, %s65
    %s85 = sphi 0, %s85
    %s87 = sphi 0, %s85
    %s88 = sphi 0, %s87
    %s102 = sphi 0, %s88
    %s108 = sphi 0, %s110
    %s111 = sphi 0, %s108
    %s112 = sphi 0, %s111
    %s128 = sphi 0, %s112
    %s134 = sphi 0, %s136
    %s137 = sphi 0, %s134
    %s138 = sphi 0, %s137
    %s154 = sphi 0, %s138
    %s160 = sphi 0, %s162
    %s163 = sphi 0, %s160
    %s164 = sphi 0, %s163
    %s180 = sphi 0, %s164
    %s186 = sphi 0, %s188
    %s189 = sphi 0, %s186
    %s190 = sphi 0, %s189
    %s206 = sphi 0, %s190
    %s212 = sphi 0, %s214
    %s215 = sphi 0, %s212
    %s216 = sphi 0, %s215
    %s232 = sphi 0, %s216
    %s238 = sphi 0, %s240
    %s241 = sphi 0, %s238
    %s242 = sphi 0, %s241
    %s258 = sphi 0, %s242
    %s264 = sphi 0, %s266
    %s267 = sphi 0, %s264
    %s268 = sphi 0, %s267
    %s284 = sphi 0, %s268
    %s290 = sphi 0, %s292
    %s293 = sphi 0, %s290
    %s294 = sphi 0, %s293
    %s310 = sphi 0, %s294
    %s316 = sphi 0, %s318
    %s319 = sphi 0, %s316
    %s320 = sphi 0, %s319
    %s336 = sphi 0, %s320
    %s342 = sphi 0, %s344
    %s345 = sphi 0, %s342
    %s346 = sphi 0, %s345
    %s362 = sphi 0, %s346
    %s368 = sphi 0, %s370
    %s371 = sphi 0, %s368
    %s372 = sphi 0, %s371
    %s388 = sphi 0, %s372
    %s394 = sphi 0, %s396
    %s397 = sphi 0, %s394
    %s398 = sphi 0, %s397
    %s414 = sphi 0, %s398
    %s420 = sphi 0, %s422
    %s423 = sphi 0, %s420
    %s424 = sphi 0, %s423
    %s440 = sphi 0, %s424
    %s446 = sphi 0, %s448
    %s449 = sphi 0, %s446
    %s450 = sphi 0, %s449
    %s466 = sphi 0, %s450
    %s472 = sphi 0, %s474
    %s475 = sphi 0, %s472
    %s476 = sphi 0, %s475
    %s492 = sphi 0, %s476
    %s498 = sphi 0, %s500
    %s501 = sphi 0, %s498
    %s502 = sphi 0, %s501
    %s518 = sphi 0, %s502
    %s524 = sphi 0, %s526
    %s527 = sphi 0, %s524
    %s528 = sphi 0, %s527
    %s544 = sphi 0, %s528
  $region4: #{forward.1} parent=0 // loop_header_branch
    %28 = sbr.rel (%p26) target = $region8
  $region5: #{forward.1} parent=0 // loop_body
    %s30 = ssub.s32 %s25, 1
    %s31 = ssub.s32 %s25, 2
    %s32 = sadd.s32 %s25, 1
    %s33 = ssub.s32 %s25, %s32
    %p34 = scmp.eq.s32.totalorder %s33, 0
    %s36 = sadd.s32 %s35, 1
    %s37 = scalar_select %p34, %s35, %s36
    %p40 = pneg %p34
    %p41 = scmp.eq.s32.totalorder %s25, 1
    %p42 = por %p40, %p41
    %p43 = scmp.ne.s32.totalorder %s35, %s38
    %p44 = scmp.eq.s32.totalorder %s25, 0
    %p45 = por %p43, %p44
    %p46 = scmp.ne.s32.totalorder %s35, %s38
    %p47 = scmp.eq.s32.totalorder %s30, 1
    %p48 = por %p46, %p47
    %p49 = scmp.ne.s32.totalorder %s38, %s39
    %p50 = scmp.eq.s32.totalorder %s30, 0
    %p51 = por %p49, %p50
    %p52 = scmp.ne.s32.totalorder %s38, %s39
    %p53 = scmp.eq.s32.totalorder %s31, 1
    %p54 = por %p52, %p53
    %p56 = scmp.ne.s32.totalorder %s39, %s55
    %p57 = scmp.eq.s32.totalorder %s31, 0
    %p58 = por %p56, %p57
    %s59 = ssub.s32 %s25, %s32
    %p60 = scmp.eq.s32.totalorder %s59, 0
    %s62 = sadd.s32 %s61, 1
    %s63 = scalar_select %p60, %s61, %s62
    %p66 = pneg %p60
    %p67 = scmp.eq.s32.totalorder %s25, 1
    %p68 = por %p66, %p67
    %p69 = scmp.ne.s32.totalorder %s61, %s64
    %p70 = scmp.eq.s32.totalorder %s25, 0
    %p71 = por %p69, %p70
    %p72 = scmp.ne.s32.totalorder %s61, %s64
    %p73 = scmp.eq.s32.totalorder %s30, 1
    %p74 = por %p72, %p73
    %p75 = scmp.ne.s32.totalorder %s64, %s65
    %p76 = scmp.eq.s32.totalorder %s30, 0
    %p77 = por %p75, %p76
    %p78 = scmp.ne.s32.totalorder %s64, %s65
    %p79 = scmp.eq.s32.totalorder %s31, 1
    %p80 = por %p78, %p79
    %p82 = scmp.ne.s32.totalorder %s65, %s81
    %p83 = scmp.eq.s32.totalorder %s31, 0
    %p84 = por %p82, %p83
    %s86 = sadd.s32 %s85, 1
    %p89 = scmp.eq.s32.totalorder %s25, 1
    %p90 = scmp.ne.s32.totalorder %s85, %s87
    %p91 = scmp.eq.s32.totalorder %s25, 0
    %p92 = por %p90, %p91
    %p93 = scmp.ne.s32.totalorder %s85, %s87
    %p94 = scmp.eq.s32.totalorder %s30, 1
    %p95 = por %p93, %p94
    %p96 = scmp.ne.s32.totalorder %s87, %s88
    %p97 = scmp.eq.s32.totalorder %s30, 0
    %p98 = por %p96, %p97
    %p99 = scmp.ne.s32.totalorder %s87, %s88
    %p100 = scmp.eq.s32.totalorder %s31, 1
    %p101 = por %p99, %p100
    %p103 = scmp.ne.s32.totalorder %s88, %s102
    %p104 = scmp.eq.s32.totalorder %s31, 0
    %p105 = por %p103, %p104
    %s106 = ssub.s32 %s25, %s32
    %p107 = scmp.eq.s32.totalorder %s106, 0
    %s109 = sadd.s32 %s108, 1
    %s110 = scalar_select %p107, %s108, %s109
    %p113 = pneg %p107
    %p114 = scmp.eq.s32.totalorder %s25, 1
    %p115 = por %p113, %p114
    %p116 = scmp.ne.s32.totalorder %s108, %s111
    %p117 = scmp.eq.s32.totalorder %s25, 0
    %p118 = por %p116, %p117
    %p119 = scmp.ne.s32.totalorder %s108, %s111
    %p120 = scmp.eq.s32.totalorder %s30, 1
    %p121 = por %p119, %p120
    %p122 = scmp.ne.s32.totalorder %s111, %s112
    %p123 = scmp.eq.s32.totalorder %s30, 0
    %p124 = por %p122, %p123
    %p125 = scmp.ne.s32.totalorder %s111, %s112
    %p126 = scmp.eq.s32.totalorder %s31, 1
    %p127 = por %p125, %p126
    %p129 = scmp.ne.s32.totalorder %s112, %s128
    %p130 = scmp.eq.s32.totalorder %s31, 0
    %p131 = por %p129, %p130
    %s132 = ssub.s32 %s25, %s32
    %p133 = scmp.eq.s32.totalorder %s132, 0
    %s135 = sadd.s32 %s134, 1
    %s136 = scalar_select %p133, %s134, %s135
    %p139 = pneg %p133
    %p140 = scmp.eq.s32.totalorder %s25, 1
    %p141 = por %p139, %p140
    %p142 = scmp.ne.s32.totalorder %s134, %s137
    %p143 = scmp.eq.s32.totalorder %s25, 0
    %p144 = por %p142, %p143
    %p145 = scmp.ne.s32.totalorder %s134, %s137
    %p146 = scmp.eq.s32.totalorder %s30, 1
    %p147 = por %p145, %p146
    %p148 = scmp.ne.s32.totalorder %s137, %s138
    %p149 = scmp.eq.s32.totalorder %s30, 0
    %p150 = por %p148, %p149
    %p151 = scmp.ne.s32.totalorder %s137, %s138
    %p152 = scmp.eq.s32.totalorder %s31, 1
    %p153 = por %p151, %p152
    %p155 = scmp.ne.s32.totalorder %s138, %s154
    %p156 = scmp.eq.s32.totalorder %s31, 0
    %p157 = por %p155, %p156
    %s158 = ssub.s32 %s25, %s32
    %p159 = scmp.eq.s32.totalorder %s158, 0
    %s161 = sadd.s32 %s160, 1
    %s162 = scalar_select %p159, %s160, %s161
    %p165 = pneg %p159
    %p166 = scmp.eq.s32.totalorder %s25, 1
    %p167 = por %p165, %p166
    %p168 = scmp.ne.s32.totalorder %s160, %s163
    %p169 = scmp.eq.s32.totalorder %s25, 0
    %p170 = por %p168, %p169
    %p171 = scmp.ne.s32.totalorder %s160, %s163
    %p172 = scmp.eq.s32.totalorder %s30, 1
    %p173 = por %p171, %p172
    %p174 = scmp.ne.s32.totalorder %s163, %s164
    %p175 = scmp.eq.s32.totalorder %s30, 0
    %p176 = por %p174, %p175
    %p177 = scmp.ne.s32.totalorder %s163, %s164
    %p178 = scmp.eq.s32.totalorder %s31, 1
    %p179 = por %p177, %p178
    %p181 = scmp.ne.s32.totalorder %s164, %s180
    %p182 = scmp.eq.s32.totalorder %s31, 0
    %p183 = por %p181, %p182
    %s184 = ssub.s32 %s25, %s32
    %p185 = scmp.eq.s32.totalorder %s184, 0
    %s187 = sadd.s32 %s186, 1
    %s188 = scalar_select %p185, %s186, %s187
    %p191 = pneg %p185
    %p192 = scmp.eq.s32.totalorder %s25, 1
    %p193 = por %p191, %p192
    %p194 = scmp.ne.s32.totalorder %s186, %s189
    %p195 = scmp.eq.s32.totalorder %s25, 0
    %p196 = por %p194, %p195
    %p197 = scmp.ne.s32.totalorder %s186, %s189
    %p198 = scmp.eq.s32.totalorder %s30, 1
    %p199 = por %p197, %p198
    %p200 = scmp.ne.s32.totalorder %s189, %s190
    %p201 = scmp.eq.s32.totalorder %s30, 0
    %p202 = por %p200, %p201
    %p203 = scmp.ne.s32.totalorder %s189, %s190
    %p204 = scmp.eq.s32.totalorder %s31, 1
    %p205 = por %p203, %p204
    %p207 = scmp.ne.s32.totalorder %s190, %s206
    %p208 = scmp.eq.s32.totalorder %s31, 0
    %p209 = por %p207, %p208
    %s210 = ssub.s32 %s25, %s32
    %p211 = scmp.eq.s32.totalorder %s210, 0
    %s213 = sadd.s32 %s212, 1
    %s214 = scalar_select %p211, %s212, %s213
    %p217 = pneg %p211
    %p218 = scmp.eq.s32.totalorder %s25, 1
    %p219 = por %p217, %p218
    %p220 = scmp.ne.s32.totalorder %s212, %s215
    %p221 = scmp.eq.s32.totalorder %s25, 0
    %p222 = por %p220, %p221
    %p223 = scmp.ne.s32.totalorder %s212, %s215
    %p224 = scmp.eq.s32.totalorder %s30, 1
    %p225 = por %p223, %p224
    %p226 = scmp.ne.s32.totalorder %s215, %s216
    %p227 = scmp.eq.s32.totalorder %s30, 0
    %p228 = por %p226, %p227
    %p229 = scmp.ne.s32.totalorder %s215, %s216
    %p230 = scmp.eq.s32.totalorder %s31, 1
    %p231 = por %p229, %p230
    %p233 = scmp.ne.s32.totalorder %s216, %s232
    %p234 = scmp.eq.s32.totalorder %s31, 0
    %p235 = por %p233, %p234
    %s236 = ssub.s32 %s25, %s32
    %p237 = scmp.eq.s32.totalorder %s236, 0
    %s239 = sadd.s32 %s238, 1
    %s240 = scalar_select %p237, %s238, %s239
    %p243 = pneg %p237
    %p244 = scmp.eq.s32.totalorder %s25, 1
    %p245 = por %p243, %p244
    %p246 = scmp.ne.s32.totalorder %s238, %s241
    %p247 = scmp.eq.s32.totalorder %s25, 0
    %p248 = por %p246, %p247
    %p249 = scmp.ne.s32.totalorder %s238, %s241
    %p250 = scmp.eq.s32.totalorder %s30, 1
    %p251 = por %p249, %p250
    %p252 = scmp.ne.s32.totalorder %s241, %s242
    %p253 = scmp.eq.s32.totalorder %s30, 0
    %p254 = por %p252, %p253
    %p255 = scmp.ne.s32.totalorder %s241, %s242
    %p256 = scmp.eq.s32.totalorder %s31, 1
    %p257 = por %p255, %p256
    %p259 = scmp.ne.s32.totalorder %s242, %s258
    %p260 = scmp.eq.s32.totalorder %s31, 0
    %p261 = por %p259, %p260
    %s262 = ssub.s32 %s25, %s32
    %p263 = scmp.eq.s32.totalorder %s262, 0
    %s265 = sadd.s32 %s264, 1
    %s266 = scalar_select %p263, %s264, %s265
    %p269 = pneg %p263
    %p270 = scmp.eq.s32.totalorder %s25, 1
    %p271 = por %p269, %p270
    %p272 = scmp.ne.s32.totalorder %s264, %s267
    %p273 = scmp.eq.s32.totalorder %s25, 0
    %p274 = por %p272, %p273
    %p275 = scmp.ne.s32.totalorder %s264, %s267
    %p276 = scmp.eq.s32.totalorder %s30, 1
    %p277 = por %p275, %p276
    %p278 = scmp.ne.s32.totalorder %s267, %s268
    %p279 = scmp.eq.s32.totalorder %s30, 0
    %p280 = por %p278, %p279
    %p281 = scmp.ne.s32.totalorder %s267, %s268
    %p282 = scmp.eq.s32.totalorder %s31, 1
    %p283 = por %p281, %p282
    %p285 = scmp.ne.s32.totalorder %s268, %s284
    %p286 = scmp.eq.s32.totalorder %s31, 0
    %p287 = por %p285, %p286
    %s288 = ssub.s32 %s25, %s32
    %p289 = scmp.eq.s32.totalorder %s288, 0
    %s291 = sadd.s32 %s290, 1
    %s292 = scalar_select %p289, %s290, %s291
    %p295 = pneg %p289
    %p296 = scmp.eq.s32.totalorder %s25, 1
    %p297 = por %p295, %p296
    %p298 = scmp.ne.s32.totalorder %s290, %s293
    %p299 = scmp.eq.s32.totalorder %s25, 0
    %p300 = por %p298, %p299
    %p301 = scmp.ne.s32.totalorder %s290, %s293
    %p302 = scmp.eq.s32.totalorder %s30, 1
    %p303 = por %p301, %p302
    %p304 = scmp.ne.s32.totalorder %s293, %s294
    %p305 = scmp.eq.s32.totalorder %s30, 0
    %p306 = por %p304, %p305
    %p307 = scmp.ne.s32.totalorder %s293, %s294
    %p308 = scmp.eq.s32.totalorder %s31, 1
    %p309 = por %p307, %p308
    %p311 = scmp.ne.s32.totalorder %s294, %s310
    %p312 = scmp.eq.s32.totalorder %s31, 0
    %p313 = por %p311, %p312
    %s314 = ssub.s32 %s25, %s32
    %p315 = scmp.eq.s32.totalorder %s314, 0
    %s317 = sadd.s32 %s316, 1
    %s318 = scalar_select %p315, %s316, %s317
    %p321 = pneg %p315
    %p322 = scmp.eq.s32.totalorder %s25, 1
    %p323 = por %p321, %p322
    %p324 = scmp.ne.s32.totalorder %s316, %s319
    %p325 = scmp.eq.s32.totalorder %s25, 0
    %p326 = por %p324, %p325
    %p327 = scmp.ne.s32.totalorder %s316, %s319
    %p328 = scmp.eq.s32.totalorder %s30, 1
    %p329 = por %p327, %p328
    %p330 = scmp.ne.s32.totalorder %s319, %s320
    %p331 = scmp.eq.s32.totalorder %s30, 0
    %p332 = por %p330, %p331
    %p333 = scmp.ne.s32.totalorder %s319, %s320
    %p334 = scmp.eq.s32.totalorder %s31, 1
    %p335 = por %p333, %p334
    %p337 = scmp.ne.s32.totalorder %s320, %s336
    %p338 = scmp.eq.s32.totalorder %s31, 0
    %p339 = por %p337, %p338
    %s340 = ssub.s32 %s25, %s32
    %p341 = scmp.eq.s32.totalorder %s340, 0
    %s343 = sadd.s32 %s342, 1
    %s344 = scalar_select %p341, %s342, %s343
    %p347 = pneg %p341
    %p348 = scmp.eq.s32.totalorder %s25, 1
    %p349 = por %p347, %p348
    %p350 = scmp.ne.s32.totalorder %s342, %s345
    %p351 = scmp.eq.s32.totalorder %s25, 0
    %p352 = por %p350, %p351
    %p353 = scmp.ne.s32.totalorder %s342, %s345
    %p354 = scmp.eq.s32.totalorder %s30, 1
    %p355 = por %p353, %p354
    %p356 = scmp.ne.s32.totalorder %s345, %s346
    %p357 = scmp.eq.s32.totalorder %s30, 0
    %p358 = por %p356, %p357
    %p359 = scmp.ne.s32.totalorder %s345, %s346
    %p360 = scmp.eq.s32.totalorder %s31, 1
    %p361 = por %p359, %p360
    %p363 = scmp.ne.s32.totalorder %s346, %s362
    %p364 = scmp.eq.s32.totalorder %s31, 0
    %p365 = por %p363, %p364
    %s366 = ssub.s32 %s25, %s32
    %p367 = scmp.eq.s32.totalorder %s366, 0
    %s369 = sadd.s32 %s368, 1
    %s370 = scalar_select %p367, %s368, %s369
    %p373 = pneg %p367
    %p374 = scmp.eq.s32.totalorder %s25, 1
    %p375 = por %p373, %p374
    %p376 = scmp.ne.s32.totalorder %s368, %s371
    %p377 = scmp.eq.s32.totalorder %s25, 0
    %p378 = por %p376, %p377
    %p379 = scmp.ne.s32.totalorder %s368, %s371
    %p380 = scmp.eq.s32.totalorder %s30, 1
    %p381 = por %p379, %p380
    %p382 = scmp.ne.s32.totalorder %s371, %s372
    %p383 = scmp.eq.s32.totalorder %s30, 0
    %p384 = por %p382, %p383
    %p385 = scmp.ne.s32.totalorder %s371, %s372
    %p386 = scmp.eq.s32.totalorder %s31, 1
    %p387 = por %p385, %p386
    %p389 = scmp.ne.s32.totalorder %s372, %s388
    %p390 = scmp.eq.s32.totalorder %s31, 0
    %p391 = por %p389, %p390
    %s392 = ssub.s32 %s25, %s32
    %p393 = scmp.eq.s32.totalorder %s392, 0
    %s395 = sadd.s32 %s394, 1
    %s396 = scalar_select %p393, %s394, %s395
    %p399 = pneg %p393
    %p400 = scmp.eq.s32.totalorder %s25, 1
    %p401 = por %p399, %p400
    %p402 = scmp.ne.s32.totalorder %s394, %s397
    %p403 = scmp.eq.s32.totalorder %s25, 0
    %p404 = por %p402, %p403
    %p405 = scmp.ne.s32.totalorder %s394, %s397
    %p406 = scmp.eq.s32.totalorder %s30, 1
    %p407 = por %p405, %p406
    %p408 = scmp.ne.s32.totalorder %s397, %s398
    %p409 = scmp.eq.s32.totalorder %s30, 0
    %p410 = por %p408, %p409
    %p411 = scmp.ne.s32.totalorder %s397, %s398
    %p412 = scmp.eq.s32.totalorder %s31, 1
    %p413 = por %p411, %p412
    %p415 = scmp.ne.s32.totalorder %s398, %s414
    %p416 = scmp.eq.s32.totalorder %s31, 0
    %p417 = por %p415, %p416
    %s418 = ssub.s32 %s25, %s32
    %p419 = scmp.eq.s32.totalorder %s418, 0
    %s421 = sadd.s32 %s420, 1
    %s422 = scalar_select %p419, %s420, %s421
    %p425 = pneg %p419
    %p426 = scmp.eq.s32.totalorder %s25, 1
    %p427 = por %p425, %p426
    %p428 = scmp.ne.s32.totalorder %s420, %s423
    %p429 = scmp.eq.s32.totalorder %s25, 0
    %p430 = por %p428, %p429
    %p431 = scmp.ne.s32.totalorder %s420, %s423
    %p432 = scmp.eq.s32.totalorder %s30, 1
    %p433 = por %p431, %p432
    %p434 = scmp.ne.s32.totalorder %s423, %s424
    %p435 = scmp.eq.s32.totalorder %s30, 0
    %p436 = por %p434, %p435
    %p437 = scmp.ne.s32.totalorder %s423, %s424
    %p438 = scmp.eq.s32.totalorder %s31, 1
    %p439 = por %p437, %p438
    %p441 = scmp.ne.s32.totalorder %s424, %s440
    %p442 = scmp.eq.s32.totalorder %s31, 0
    %p443 = por %p441, %p442
    %s444 = ssub.s32 %s25, %s32
    %p445 = scmp.eq.s32.totalorder %s444, 0
    %s447 = sadd.s32 %s446, 1
    %s448 = scalar_select %p445, %s446, %s447
    %p451 = pneg %p445
    %p452 = scmp.eq.s32.totalorder %s25, 1
    %p453 = por %p451, %p452
    %p454 = scmp.ne.s32.totalorder %s446, %s449
    %p455 = scmp.eq.s32.totalorder %s25, 0
    %p456 = por %p454, %p455
    %p457 = scmp.ne.s32.totalorder %s446, %s449
    %p458 = scmp.eq.s32.totalorder %s30, 1
    %p459 = por %p457, %p458
    %p460 = scmp.ne.s32.totalorder %s449, %s450
    %p461 = scmp.eq.s32.totalorder %s30, 0
    %p462 = por %p460, %p461
    %p463 = scmp.ne.s32.totalorder %s449, %s450
    %p464 = scmp.eq.s32.totalorder %s31, 1
    %p465 = por %p463, %p464
    %p467 = scmp.ne.s32.totalorder %s450, %s466
    %p468 = scmp.eq.s32.totalorder %s31, 0
    %p469 = por %p467, %p468
    %s470 = ssub.s32 %s25, %s32
    %p471 = scmp.eq.s32.totalorder %s470, 0
    %s473 = sadd.s32 %s472, 1
    %s474 = scalar_select %p471, %s472, %s473
    %p477 = pneg %p471
    %p478 = scmp.eq.s32.totalorder %s25, 1
    %p479 = por %p477, %p478
    %p480 = scmp.ne.s32.totalorder %s472, %s475
    %p481 = scmp.eq.s32.totalorder %s25, 0
    %p482 = por %p480, %p481
    %p483 = scmp.ne.s32.totalorder %s472, %s475
    %p484 = scmp.eq.s32.totalorder %s30, 1
    %p485 = por %p483, %p484
    %p486 = scmp.ne.s32.totalorder %s475, %s476
    %p487 = scmp.eq.s32.totalorder %s30, 0
    %p488 = por %p486, %p487
    %p489 = scmp.ne.s32.totalorder %s475, %s476
    %p490 = scmp.eq.s32.totalorder %s31, 1
    %p491 = por %p489, %p490
    %p493 = scmp.ne.s32.totalorder %s476, %s492
    %p494 = scmp.eq.s32.totalorder %s31, 0
    %p495 = por %p493, %p494
    %s496 = ssub.s32 %s25, %s32
    %p497 = scmp.eq.s32.totalorder %s496, 0
    %s499 = sadd.s32 %s498, 1
    %s500 = scalar_select %p497, %s498, %s499
    %p503 = pneg %p497
    %p504 = scmp.eq.s32.totalorder %s25, 1
    %p505 = por %p503, %p504
    %p506 = scmp.ne.s32.totalorder %s498, %s501
    %p507 = scmp.eq.s32.totalorder %s25, 0
    %p508 = por %p506, %p507
    %p509 = scmp.ne.s32.totalorder %s498, %s501
    %p510 = scmp.eq.s32.totalorder %s30, 1
    %p511 = por %p509, %p510
    %p512 = scmp.ne.s32.totalorder %s501, %s502
    %p513 = scmp.eq.s32.totalorder %s30, 0
    %p514 = por %p512, %p513
    %p515 = scmp.ne.s32.totalorder %s501, %s502
    %p516 = scmp.eq.s32.totalorder %s31, 1
    %p517 = por %p515, %p516
    %p519 = scmp.ne.s32.totalorder %s502, %s518
    %p520 = scmp.eq.s32.totalorder %s31, 0
    %p521 = por %p519, %p520
    %s522 = ssub.s32 %s25, %s32
    %p523 = scmp.eq.s32.totalorder %s522, 0
    %s525 = sadd.s32 %s524, 1
    %s526 = scalar_select %p523, %s524, %s525
    %p529 = pneg %p523
    %p530 = scmp.eq.s32.totalorder %s25, 1
    %p531 = por %p529, %p530
    %p532 = scmp.ne.s32.totalorder %s524, %s527
    %p533 = scmp.eq.s32.totalorder %s25, 0
    %p534 = por %p532, %p533
    %p535 = scmp.ne.s32.totalorder %s524, %s527
    %p536 = scmp.eq.s32.totalorder %s30, 1
    %p537 = por %p535, %p536
    %p538 = scmp.ne.s32.totalorder %s527, %s528
    %p539 = scmp.eq.s32.totalorder %s30, 0
    %p540 = por %p538, %p539
    %p541 = scmp.ne.s32.totalorder %s527, %s528
    %p542 = scmp.eq.s32.totalorder %s31, 1
    %p543 = por %p541, %p542
    %p545 = scmp.ne.s32.totalorder %s528, %s544
    %p546 = scmp.eq.s32.totalorder %s31, 0
    %p547 = por %p545, %p546
    %p548 = scmp.le.s32.totalorder 1, %s25
    %p549 = scmp.lt.s32.totalorder %s25, 3
    %p550 = pnand %p548, %p549
    %p551 = pneg %p550
    // Predicated region
    $region9: #{forward.1} parent=5 // pred_check
      _
    $region10: #{forward.1} parent=5 // pred_check_branch
      %553 = sbr.rel (%p550) target = $region12
    $region11: #{forward.1} parent=5 // pred_region
      %s554 = ssub.s32 %s25, 1
      // Predicated region
      $region13: #{forward.1} parent=11 // pred_check
        %p555 = pneg %p98
      $region14: #{forward.1} parent=11 // pred_check_branch
        %557 = sbr.rel (%p555) target = $region16
      $region15: #{forward.1} parent=11 // pred_region
        _
      $region16: #{forward.1} parent=11 // pred_fallthru
        _
    $region12: #{forward.1} parent=5 // pred_fallthru
      _
    %p558 = scmp.lt.s32.totalorder %s25, 2
    // Predicated region
    $region17: #{forward.1} parent=5 // pred_check
      %p559 = pneg %p558
    $region18: #{forward.1} parent=5 // pred_check_branch
      %561 = sbr.rel (%p559) target = $region20
    $region19: #{forward.1} parent=5 // pred_region
      // Predicated region
      $region21: #{forward.1} parent=19 // pred_check
        %p562 = pneg %p45
      $region22: #{forward.1} parent=19 // pred_check_branch
        %564 = sbr.rel (%p562) target = $region24
      $region23: #{forward.1} parent=19 // pred_region
        %p565 = scmp.lt.s32.totalorder %s25, 1
        %s566 = scalar_select %p565, %s25, 1
        %s567 = smul.addr %s566, 16
        %s568 = smul.addr %s567, 8
        %s569 = scalar_lea.vmem %s0, %s568
      $region24: #{forward.1} parent=19 // pred_fallthru
        _
      // Predicated region
      $region25: #{forward.1} parent=19 // pred_check
        %p570 = pneg %p71
      $region26: #{forward.1} parent=19 // pred_check_branch
        %572 = sbr.rel (%p570) target = $region28
      $region27: #{forward.1} parent=19 // pred_region
        %p573 = scmp.lt.s32.totalorder %s25, 1
        %s574 = scalar_select %p573, %s25, 1
        %s575 = smul.addr %s574, 16
        %s576 = smul.addr %s575, 8
        %s577 = scalar_lea.vmem %s1, %s576
      $region28: #{forward.1} parent=19 // pred_fallthru
        _
      // Predicated region
      $region29: #{forward.1} parent=19 // pred_check
        %p578 = pneg %p118
      $region30: #{forward.1} parent=19 // pred_check_branch
        %580 = sbr.rel (%p578) target = $region32
      $region31: #{forward.1} parent=19 // pred_region
        %p581 = scmp.lt.s32.totalorder %s25, 1
        %s582 = scalar_select %p581, %s25, 1
        %s583 = smul.addr %s582, 4
        %s584 = scalar_lea.vmem %s3, %s583
      $region32: #{forward.1} parent=19 // pred_fallthru
        _
      // Predicated region
      $region33: #{forward.1} parent=19 // pred_check
        %p585 = pneg %p144
      $region34: #{forward.1} parent=19 // pred_check_branch
        %587 = sbr.rel (%p585) target = $region36
      $region35: #{forward.1} parent=19 // pred_region
        %p588 = scmp.lt.s32.totalorder %s25, 1
        %s589 = scalar_select %p588, %s25, 1
        %s590 = scalar_lea.vmem %s4, %s589
      $region36: #{forward.1} parent=19 // pred_fallthru
        _
      // Predicated region
      $region37: #{forward.1} parent=19 // pred_check
        %p591 = pneg %p170
      $region38: #{forward.1} parent=19 // pred_check_branch
        %593 = sbr.rel (%p591) target = $region40
      $region39: #{forward.1} parent=19 // pred_region
        %p594 = scmp.lt.s32.totalorder %s25, 1
        %s595 = scalar_select %p594, %s25, 1
        %s596 = smul.addr %s595, 8
        %s597 = smul.addr %s596, 8
        %s598 = scalar_lea.vmem %s5, %s597
      $region40: #{forward.1} parent=19 // pred_fallthru
        _
      // Predicated region
      $region41: #{forward.1} parent=19 // pred_check
        %p599 = pneg %p196
      $region42: #{forward.1} parent=19 // pred_check_branch
        %601 = sbr.rel (%p599) target = $region44
      $region43: #{forward.1} parent=19 // pred_region
        %p602 = scmp.lt.s32.totalorder %s25, 1
        %s603 = scalar_select %p602, %s25, 1
        %s604 = smul.addr %s603, 2
        %s605 = scalar_lea.vmem %s6, %s604
      $region44: #{forward.1} parent=19 // pred_fallthru
        _
      // Predicated region
      $region45: #{forward.1} parent=19 // pred_check
        %p606 = pneg %p222
      $region46: #{forward.1} parent=19 // pred_check_branch
        %608 = sbr.rel (%p606) target = $region48
      $region47: #{forward.1} parent=19 // pred_region
        %p609 = scmp.lt.s32.totalorder %s25, 1
        %s610 = scalar_select %p609, %s25, 1
        %s611 = smul.addr %s610, 8
        %s612 = smul.addr %s611, 8
        %s613 = scalar_lea.vmem %s7, %s612
      $region48: #{forward.1} parent=19 // pred_fallthru
        _
      // Predicated region
      $region49: #{forward.1} parent=19 // pred_check
        %p614 = pneg %p248
      $region50: #{forward.1} parent=19 // pred_check_branch
        %616 = sbr.rel (%p614) target = $region52
      $region51: #{forward.1} parent=19 // pred_region
        %p617 = scmp.lt.s32.totalorder %s25, 1
        %s618 = scalar_select %p617, %s25, 1
        %s619 = smul.addr %s618, 2
        %s620 = scalar_lea.vmem %s8, %s619
      $region52: #{forward.1} parent=19 // pred_fallthru
        _
      // Predicated region
      $region53: #{forward.1} parent=19 // pred_check
        %p621 = pneg %p274
      $region54: #{forward.1} parent=19 // pred_check_branch
        %623 = sbr.rel (%p621) target = $region56
      $region55: #{forward.1} parent=19 // pred_region
        %p624 = scmp.lt.s32.totalorder %s25, 1
        %s625 = scalar_select %p624, %s25, 1
        %s626 = smul.addr %s625, 2
        %s627 = scalar_lea.vmem %s9, %s626
      $region56: #{forward.1} parent=19 // pred_fallthru
        _
      // Predicated region
      $region57: #{forward.1} parent=19 // pred_check
        %p628 = pneg %p300
      $region58: #{forward.1} parent=19 // pred_check_branch
        %630 = sbr.rel (%p628) target = $region60
      $region59: #{forward.1} parent=19 // pred_region
        %p631 = scmp.lt.s32.totalorder %s25, 1
        %s632 = scalar_select %p631, %s25, 1
        %s633 = smul.addr %s632, 2
        %s634 = scalar_lea.vmem %s10, %s633
      $region60: #{forward.1} parent=19 // pred_fallthru
        _
      // Predicated region
      $region61: #{forward.1} parent=19 // pred_check
        %p635 = pneg %p326
      $region62: #{forward.1} parent=19 // pred_check_branch
        %637 = sbr.rel (%p635) target = $region64
      $region63: #{forward.1} parent=19 // pred_region
        %p638 = scmp.lt.s32.totalorder %s25, 1
        %s639 = scalar_select %p638, %s25, 1
        %s640 = smul.addr %s639, 8
        %s641 = smul.addr %s640, 8
        %s642 = scalar_lea.vmem %s11, %s641
      $region64: #{forward.1} parent=19 // pred_fallthru
        _
      // Predicated region
      $region65: #{forward.1} parent=19 // pred_check
        %p643 = pneg %p352
      $region66: #{forward.1} parent=19 // pred_check_branch
        %645 = sbr.rel (%p643) target = $region68
      $region67: #{forward.1} parent=19 // pred_region
        %p646 = scmp.lt.s32.totalorder %s25, 1
        %s647 = scalar_select %p646, %s25, 1
        %s648 = smul.addr %s647, 2
        %s649 = scalar_lea.vmem %s12, %s648
      $region68: #{forward.1} parent=19 // pred_fallthru
        _
      // Predicated region
      $region69: #{forward.1} parent=19 // pred_check
        %p650 = pneg %p378
      $region70: #{forward.1} parent=19 // pred_check_branch
        %652 = sbr.rel (%p650) target = $region72
      $region71: #{forward.1} parent=19 // pred_region
        %p653 = scmp.lt.s32.totalorder %s25, 1
        %s654 = scalar_select %p653, %s25, 1
        %s655 = smul.addr %s654, 16
        %s656 = smul.addr %s655, 8
        %s657 = scalar_lea.vmem %s13, %s656
      $region72: #{forward.1} parent=19 // pred_fallthru
        _
      // Predicated region
      $region73: #{forward.1} parent=19 // pred_check
        %p658 = pneg %p404
      $region74: #{forward.1} parent=19 // pred_check_branch
        %660 = sbr.rel (%p658) target = $region76
      $region75: #{forward.1} parent=19 // pred_region
        %p661 = scmp.lt.s32.totalorder %s25, 1
        %s662 = scalar_select %p661, %s25, 1
        %s663 = smul.addr %s662, 2
        %s664 = scalar_lea.vmem %s14, %s663
      $region76: #{forward.1} parent=19 // pred_fallthru
        _
      // Predicated region
      $region77: #{forward.1} parent=19 // pred_check
        %p665 = pneg %p430
      $region78: #{forward.1} parent=19 // pred_check_branch
        %667 = sbr.rel (%p665) target = $region80
      $region79: #{forward.1} parent=19 // pred_region
        %p668 = scmp.lt.s32.totalorder %s25, 1
        %s669 = scalar_select %p668, %s25, 1
        %s670 = smul.addr %s669, 2
        %s671 = scalar_lea.vmem %s15, %s670
      $region80: #{forward.1} parent=19 // pred_fallthru
        _
      // Predicated region
      $region81: #{forward.1} parent=19 // pred_check
        %p672 = pneg %p456
      $region82: #{forward.1} parent=19 // pred_check_branch
        %674 = sbr.rel (%p672) target = $region84
      $region83: #{forward.1} parent=19 // pred_region
        %p675 = scmp.lt.s32.totalorder %s25, 1
        %s676 = scalar_select %p675, %s25, 1
        %s677 = smul.addr %s676, 2
        %s678 = scalar_lea.vmem %s16, %s677
      $region84: #{forward.1} parent=19 // pred_fallthru
        _
      // Predicated region
      $region85: #{forward.1} parent=19 // pred_check
        %p679 = pneg %p482
      $region86: #{forward.1} parent=19 // pred_check_branch
        %681 = sbr.rel (%p679) target = $region88
      $region87: #{forward.1} parent=19 // pred_region
        %p682 = scmp.lt.s32.totalorder %s25, 1
        %s683 = scalar_select %p682, %s25, 1
        %s684 = smul.addr %s683, 2
        %s685 = smul.addr %s684, 8
        %s686 = scalar_lea.vmem %s17, %s685
      $region88: #{forward.1} parent=19 // pred_fallthru
        _
      // Predicated region
      $region89: #{forward.1} parent=19 // pred_check
        %p687 = pneg %p508
      $region90: #{forward.1} parent=19 // pred_check_branch
        %689 = sbr.rel (%p687) target = $region92
      $region91: #{forward.1} parent=19 // pred_region
        %p690 = scmp.lt.s32.totalorder %s25, 1
        %s691 = scalar_select %p690, %s25, 1
        %s692 = scalar_lea.vmem %s18, %s691
      $region92: #{forward.1} parent=19 // pred_fallthru
        _
    $region20: #{forward.1} parent=5 // pred_fallthru
      _
    %p693 = scmp.le.s32.totalorder 1, %s25
    %p694 = scmp.lt.s32.totalorder %s25, 3
    %p695 = pnand %p693, %p694
    %p696 = pneg %p695
    // Predicated region
    $region93: #{forward.1} parent=5 // pred_check
      _
    $region94: #{forward.1} parent=5 // pred_check_branch
      %698 = sbr.rel (%p695) target = $region96
    $region95: #{forward.1} parent=5 // pred_region
      %s699 = ssub.s32 %s25, 1
      %p700 = scmp.lt.s32.totalorder %s30, 1
      %s701 = scalar_select %p700, %s30, 1
      %s702 = smul.addr %s701, 16
      %s703 = smul.addr %s702, 8
      %s704 = scalar_lea.vmem %s0, %s703
      %p705 = pneg %p51
      %p706 = pneg %p48
      %p707 = scmp.lt.s32.totalorder %s30, 1
      %s708 = scalar_select %p707, %s30, 1
      %s709 = smul.addr %s708, 16
      %s710 = smul.addr %s709, 8
      %s711 = scalar_lea.vmem %s1, %s710
      %p712 = pneg %p77
      %p713 = pneg %p74
      %p714 = pneg %p98
      %p715 = pneg %p95
      %p716 = scmp.lt.s32.totalorder %s30, 1
      %s717 = scalar_select %p716, %s30, 1
      %s718 = smul.addr %s717, 4
      %s719 = scalar_lea.vmem %s3, %s718
      %p720 = pneg %p124
      %p721 = pneg %p121
      %p722 = scmp.lt.s32.totalorder %s30, 1
      %s723 = scalar_select %p722, %s30, 1
      %s724 = scalar_lea.vmem %s4, %s723
      %p725 = pneg %p150
      %p726 = pneg %p147
      %p727 = scmp.lt.s32.totalorder %s30, 1
      %s728 = scalar_select %p727, %s30, 1
      %s729 = smul.addr %s728, 8
      %s730 = smul.addr %s729, 8
      %s731 = scalar_lea.vmem %s5, %s730
      %p732 = pneg %p176
      %p733 = pneg %p173
      %p734 = scmp.lt.s32.totalorder %s30, 1
      %s735 = scalar_select %p734, %s30, 1
      %s736 = smul.addr %s735, 2
      %s737 = scalar_lea.vmem %s6, %s736
      %p738 = pneg %p202
      %p739 = pneg %p199
      %p740 = scmp.lt.s32.totalorder %s30, 1
      %s741 = scalar_select %p740, %s30, 1
      %s742 = smul.addr %s741, 8
      %s743 = smul.addr %s742, 8
      %s744 = scalar_lea.vmem %s7, %s743
      %p745 = pneg %p228
      %p746 = pneg %p225
      %p747 = scmp.lt.s32.totalorder %s30, 1
      %s748 = scalar_select %p747, %s30, 1
      %s749 = smul.addr %s748, 2
      %s750 = scalar_lea.vmem %s8, %s749
      %p751 = pneg %p254
      %p752 = pneg %p251
      %p753 = scmp.lt.s32.totalorder %s30, 1
      %s754 = scalar_select %p753, %s30, 1
      %s755 = smul.addr %s754, 2
      %s756 = scalar_lea.vmem %s9, %s755
      %p757 = pneg %p280
      %p758 = pneg %p277
      %p759 = scmp.lt.s32.totalorder %s30, 1
      %s760 = scalar_select %p759, %s30, 1
      %s761 = smul.addr %s760, 2
      %s762 = scalar_lea.vmem %s10, %s761
      %p763 = pneg %p306
      %p764 = pneg %p303
      %p765 = scmp.lt.s32.totalorder %s30, 1
      %s766 = scalar_select %p765, %s30, 1
      %s767 = smul.addr %s766, 8
      %s768 = smul.addr %s767, 8
      %s769 = scalar_lea.vmem %s11, %s768
      %p770 = pneg %p332
      %p771 = pneg %p329
      %p772 = scmp.lt.s32.totalorder %s30, 1
      %s773 = scalar_select %p772, %s30, 1
      %s774 = smul.addr %s773, 2
      %s775 = scalar_lea.vmem %s12, %s774
      %p776 = pneg %p358
      %p777 = pneg %p355
      %p778 = scmp.lt.s32.totalorder %s30, 1
      %s779 = scalar_select %p778, %s30, 1
      %s780 = smul.addr %s779, 16
      %s781 = smul.addr %s780, 8
      %s782 = scalar_lea.vmem %s13, %s781
      %p783 = pneg %p384
      %p784 = pneg %p381
      %p785 = scmp.lt.s32.totalorder %s30, 1
      %s786 = scalar_select %p785, %s30, 1
      %s787 = smul.addr %s786, 2
      %s788 = scalar_lea.vmem %s14, %s787
      %p789 = pneg %p410
      %p790 = pneg %p407
      %p791 = scmp.lt.s32.totalorder %s30, 1
      %s792 = scalar_select %p791, %s30, 1
      %s793 = smul.addr %s792, 2
      %s794 = scalar_lea.vmem %s15, %s793
      %p795 = pneg %p436
      %p796 = pneg %p433
      %p797 = scmp.lt.s32.totalorder %s30, 1
      %s798 = scalar_select %p797, %s30, 1
      %s799 = smul.addr %s798, 2
      %s800 = scalar_lea.vmem %s16, %s799
      %p801 = pneg %p462
      %p802 = pneg %p459
      %p803 = scmp.lt.s32.totalorder %s30, 1
      %s804 = scalar_select %p803, %s30, 1
      %s805 = smul.addr %s804, 2
      %s806 = smul.addr %s805, 8
      %s807 = scalar_lea.vmem %s17, %s806
      %p808 = pneg %p488
      %p809 = pneg %p485
      %p810 = scmp.lt.s32.totalorder %s30, 1
      %s811 = scalar_select %p810, %s30, 1
      %s812 = scalar_lea.vmem %s18, %s811
      %p813 = pneg %p514
      %p814 = pneg %p511
      %p815 = pneg %p540
      %p816 = pneg %p537
      %p817 = scmp.lt.s32.totalorder %s30, 1
      %s818 = scalar_select %p817, %s30, 1
      %s819 = smul.addr %s818, 2
      %s820 = smul.addr %s819, 8
      %s821 = scalar_lea.vmem %s19, %s820
      %p822 = scmp.lt.s32.totalorder %s30, 1
      %s823 = scalar_select %p822, %s30, 1
      %s824 = smul.addr %s823, 16
      %s825 = smul.addr %s824, 8
      %s826 = scalar_lea.vmem %s0, %s825
      %p827 = scmp.lt.s32.totalorder %s30, 1
      %s828 = scalar_select %p827, %s30, 1
      %s829 = smul.addr %s828, 16
      %s830 = smul.addr %s829, 8
      %s831 = scalar_lea.vmem %s1, %s830
      %p832 = scmp.lt.s32.totalorder %s30, 1
      %s833 = scalar_select %p832, %s30, 1
      %s834 = smul.addr %s833, 4
      %s835 = scalar_lea.vmem %s3, %s834
      %p836 = scmp.lt.s32.totalorder %s30, 1
      %s837 = scalar_select %p836, %s30, 1
      %s838 = scalar_lea.vmem %s4, %s837
      %p839 = scmp.lt.s32.totalorder %s30, 1
      %s840 = scalar_select %p839, %s30, 1
      %s841 = smul.addr %s840, 8
      %s842 = smul.addr %s841, 8
      %s843 = scalar_lea.vmem %s5, %s842
      %p844 = scmp.lt.s32.totalorder %s30, 1
      %s845 = scalar_select %p844, %s30, 1
      %s846 = smul.addr %s845, 2
      %s847 = scalar_lea.vmem %s6, %s846
      %p848 = scmp.lt.s32.totalorder %s30, 1
      %s849 = scalar_select %p848, %s30, 1
      %s850 = smul.addr %s849, 8
      %s851 = smul.addr %s850, 8
      %s852 = scalar_lea.vmem %s7, %s851
      %p853 = scmp.lt.s32.totalorder %s30, 1
      %s854 = scalar_select %p853, %s30, 1
      %s855 = smul.addr %s854, 2
      %s856 = scalar_lea.vmem %s8, %s855
      %p857 = scmp.lt.s32.totalorder %s30, 1
      %s858 = scalar_select %p857, %s30, 1
      %s859 = smul.addr %s858, 2
      %s860 = scalar_lea.vmem %s9, %s859
      %p861 = scmp.lt.s32.totalorder %s30, 1
      %s862 = scalar_select %p861, %s30, 1
      %s863 = smul.addr %s862, 2
      %s864 = scalar_lea.vmem %s10, %s863
      %p865 = scmp.lt.s32.totalorder %s30, 1
      %s866 = scalar_select %p865, %s30, 1
      %s867 = smul.addr %s866, 8
      %s868 = smul.addr %s867, 8
      %s869 = scalar_lea.vmem %s11, %s868
      %p870 = scmp.lt.s32.totalorder %s30, 1
      %s871 = scalar_select %p870, %s30, 1
      %s872 = smul.addr %s871, 2
      %s873 = scalar_lea.vmem %s12, %s872
      %p874 = scmp.lt.s32.totalorder %s30, 1
      %s875 = scalar_select %p874, %s30, 1
      %s876 = smul.addr %s875, 16
      %s877 = smul.addr %s876, 8
      %s878 = scalar_lea.vmem %s13, %s877
      %p879 = scmp.lt.s32.totalorder %s30, 1
      %s880 = scalar_select %p879, %s30, 1
      %s881 = smul.addr %s880, 2
      %s882 = scalar_lea.vmem %s14, %s881
      %p883 = scmp.lt.s32.totalorder %s30, 1
      %s884 = scalar_select %p883, %s30, 1
      %s885 = smul.addr %s884, 2
      %s886 = scalar_lea.vmem %s15, %s885
      %p887 = scmp.lt.s32.totalorder %s30, 1
      %s888 = scalar_select %p887, %s30, 1
      %s889 = smul.addr %s888, 2
      %s890 = scalar_lea.vmem %s16, %s889
      %p891 = scmp.lt.s32.totalorder %s30, 1
      %s892 = scalar_select %p891, %s30, 1
      %s893 = smul.addr %s892, 2
      %s894 = smul.addr %s893, 8
      %s895 = scalar_lea.vmem %s17, %s894
      %p896 = scmp.lt.s32.totalorder %s30, 1
      %s897 = scalar_select %p896, %s30, 1
      %s898 = scalar_lea.vmem %s18, %s897
      %p899 = scmp.lt.s32.totalorder %s30, 1
      %s900 = scalar_select %p899, %s30, 1
      %s901 = smul.addr %s900, 2
      %s902 = smul.addr %s901, 8
      %s903 = scalar_lea.vmem %s19, %s902
      %v904 = vld [vmem:[%s826] sm:$0xff]
      %v905 = vld [vmem:[%s826 + $0x8] sm:$0xff]
      %v906 = vld [vmem:[%s826 + $0x10] sm:$0xff]
      %v907 = vld [vmem:[%s826 + $0x18] sm:$0xff]
      %v908 = vld [vmem:[%s826 + $0x20] sm:$0xff]
      %v909 = vld [vmem:[%s826 + $0x28] sm:$0xff]
      %v910 = vld [vmem:[%s826 + $0x30] sm:$0xff]
      %v911 = vld [vmem:[%s826 + $0x38] sm:$0xff]
      %v912 = vld [vmem:[%s826 + $0x40] sm:$0xff]
      %v913 = vld [vmem:[%s826 + $0x48] sm:$0xff]
      %v914 = vld [vmem:[%s826 + $0x50] sm:$0xff]
      %v915 = vld [vmem:[%s826 + $0x58] sm:$0xff]
      %v916 = vld [vmem:[%s826 + $0x60] sm:$0xff]
      %v917 = vld [vmem:[%s826 + $0x68] sm:$0xff]
      %v918 = vld [vmem:[%s826 + $0x70] sm:$0xff]
      %v919 = vld [vmem:[%s826 + $0x78] sm:$0xff]
      %v920 = vld [vmem:[%s835] sm:$0xf]
      %v921 = vld [vmem:[%s838] sm:$0x1]
      %v923 = vlaneseq
      %v924 = vshrl.u32 %v923, 7
      %v925 = vsub.s32 0, %v924
      %v926 = vrot.slane %v921, %v925
      %vm928 = vcmask 31744
      %v930 = vsel %vm928, %v904, 0
      %v933 = vsel %vm928, %v905, 0
      %v936 = vsel %vm928, %v906, 0
      %v939 = vsel %vm928, %v907, 0
      %v942 = vsel %vm928, %v908, 0
      %v945 = vsel %vm928, %v909, 0
      %v948 = vsel %vm928, %v910, 0
      %v951 = vsel %vm928, %v911, 0
      %v954 = vsel %vm928, %v912, 0
      %v957 = vsel %vm928, %v913, 0
      %v960 = vsel %vm928, %v914, 0
      %v963 = vsel %vm928, %v915, 0
      %v966 = vsel %vm928, %v916, 0
      %v969 = vsel %vm928, %v917, 0
      %v972 = vsel %vm928, %v918, 0
      %v975 = vsel %vm928, %v919, 0
      %vm977 = vcmask 1043456
      %v979 = vsel %vm977, %v920, 0
      %981 = vmatprep.subr.mxu0 0.0
      %982 = vmatpush1.msra.mxu0 %v979
      %983 = vmatprep.subr.mxu0 0.0
      %984 = vmatpush1.msra.mxu0 0.0
      %985 = vmatprep.subr.mxu0 0.0
      %986 = vmatpush1.msra.mxu0 0.0
      %987 = vmatprep.subr.mxu0 0.0
      %988 = vmatpush1.msra.mxu0 0.0
      %989 = vmatprep.subr.mxu0 0.0
      %990 = vmatpush1.msra.mxu0 0.0
      %991 = vmatprep.subr.mxu0 0.0
      %992 = vmatpush1.msra.mxu0 0.0
      %993 = vmatprep.subr.mxu0 0.0
      %994 = vmatpush1.msra.mxu0 0.0
      %995 = vmatprep.subr.mxu0 0.0
      %996 = vmatpush1.msra.mxu0 0.0
      %997 = vmatprep.subr.mxu0 0.0
      %998 = vmatpush1.msra.mxu0 0.0
      %999 = vmatprep.subr.mxu0 0.0
      %1000 = vmatpush1.msra.mxu0 0.0
      %1001 = vmatprep.subr.mxu0 0.0
      %1002 = vmatpush1.msra.mxu0 0.0
      %1003 = vmatprep.subr.mxu0 0.0
      %1004 = vmatpush1.msra.mxu0 0.0
      %1005 = vmatprep.subr.mxu0 0.0
      %1006 = vmatpush1.msra.mxu0 0.0
      %1007 = vmatprep.subr.mxu0 0.0
      %1008 = vmatpush1.msra.mxu0 0.0
      %1009 = vmatprep.subr.mxu0 0.0
      %1010 = vmatpush1.msra.mxu0 0.0
      %1011 = vmatprep.subr.mxu0 0.0
      %1012 = vmatpush1.msra.mxu0 0.0
      %1013 = vmatprep.subr.mxu0 0.0
      %1014 = vmatpush1.msra.mxu0 0.0
      %1015 = vmatprep.subr.mxu0 0.0
      %1016 = vmatpush1.msra.mxu0 0.0
      %1017 = vmatprep.subr.mxu0 0.0
      %1018 = vmatpush1.msra.mxu0 0.0
      %1019 = vmatprep.subr.mxu0 0.0
      %1020 = vmatpush1.msra.mxu0 0.0
      %1021 = vmatprep.subr.mxu0 0.0
      %1022 = vmatpush1.msra.mxu0 0.0
      %1023 = vmatprep.subr.mxu0 0.0
      %1024 = vmatpush1.msra.mxu0 0.0
      %1025 = vmatprep.subr.mxu0 0.0
      %1026 = vmatpush1.msra.mxu0 0.0
      %1027 = vmatprep.subr.mxu0 0.0
      %1028 = vmatpush1.msra.mxu0 0.0
      %1029 = vmatprep.subr.mxu0 0.0
      %1030 = vmatpush1.msra.mxu0 0.0
      %1031 = vmatprep.subr.mxu0 0.0
      %1032 = vmatpush1.msra.mxu0 0.0
      %1033 = vmatprep.subr.mxu0 0.0
      %1034 = vmatpush1.msra.mxu0 0.0
      %1035 = vmatprep.subr.mxu0 0.0
      %1036 = vmatpush1.msra.mxu0 0.0
      %1037 = vmatprep.subr.mxu0 0.0
      %1038 = vmatpush1.msra.mxu0 0.0
      %1039 = vmatprep.subr.mxu0 0.0
      %1040 = vmatpush1.msra.mxu0 0.0
      %1041 = vmatprep.subr.mxu0 0.0
      %1042 = vmatpush1.msra.mxu0 0.0
      %1043 = vmatprep.subr.mxu0 0.0
      %1044 = vmatpush1.msra.mxu0 0.0
      %1045 = vmatprep.mubr.f32.mxu0 0.0
      %1046 = vmatmul.mubr.f32.gmra.mrb[0].mxu0 %v930
      %v1047 = vpop.f32.mrb[0].mxu0
      %v1048 = vadd.f32 %v926, %v1047
      %v1049 = vpop.f32.mrb[0].mxu0
      %1050 = vmatprep.mubr.f32.mxu0 0.0
      %1051 = vmatmul.mubr.f32.gmra.mrb[0].mxu0 %v933
      %v1052 = vpop.f32.mrb[0].mxu0
      %v1053 = vadd.f32 %v926, %v1052
      %v1054 = vpop.f32.mrb[0].mxu0
      %1055 = vmatprep.mubr.f32.mxu0 0.0
      %1056 = vmatmul.mubr.f32.gmra.mrb[0].mxu0 %v936
      %v1057 = vpop.f32.mrb[0].mxu0
      %v1058 = vadd.f32 %v926, %v1057
      %v1059 = vpop.f32.mrb[0].mxu0
      %1060 = vmatprep.mubr.f32.mxu0 0.0
      %1061 = vmatmul.mubr.f32.gmra.mrb[0].mxu0 %v939
      %v1062 = vpop.f32.mrb[0].mxu0
      %v1063 = vadd.f32 %v926, %v1062
      %v1064 = vpop.f32.mrb[0].mxu0
      %1065 = vmatprep.mubr.f32.mxu0 0.0
      %1066 = vmatmul.mubr.f32.gmra.mrb[0].mxu0 %v942
      %v1067 = vpop.f32.mrb[0].mxu0
      %v1068 = vadd.f32 %v926, %v1067
      %v1069 = vpop.f32.mrb[0].mxu0
      %1070 = vmatprep.mubr.f32.mxu0 0.0
      %1071 = vmatmul.mubr.f32.gmra.mrb[0].mxu0 %v945
      %v1072 = vpop.f32.mrb[0].mxu0
      %v1073 = vadd.f32 %v926, %v1072
      %v1074 = vpop.f32.mrb[0].mxu0
      %1075 = vmatprep.mubr.f32.mxu0 0.0
      %1076 = vmatmul.mubr.f32.gmra.mrb[0].mxu0 %v948
      %v1077 = vpop.f32.mrb[0].mxu0
      %v1078 = vadd.f32 %v926, %v1077
      %v1079 = vpop.f32.mrb[0].mxu0
      %1080 = vmatprep.mubr.f32.mxu0 0.0
      %1081 = vmatmul.mubr.f32.gmra.mrb[0].mxu0 %v951
      %v1082 = vpop.f32.mrb[0].mxu0
      %v1083 = vadd.f32 %v926, %v1082
      %v1084 = vpop.f32.mrb[0].mxu0
      %1085 = vmatprep.mubr.f32.mxu0 0.0
      %1086 = vmatmul.mubr.f32.gmra.mrb[0].mxu0 %v954
      %v1087 = vpop.f32.mrb[0].mxu0
      %v1088 = vadd.f32 %v926, %v1087
      %v1089 = vpop.f32.mrb[0].mxu0
      %1090 = vmatprep.mubr.f32.mxu0 0.0
      %1091 = vmatmul.mubr.f32.gmra.mrb[0].mxu0 %v957
      %v1092 = vpop.f32.mrb[0].mxu0
      %v1093 = vadd.f32 %v926, %v1092
      %v1094 = vpop.f32.mrb[0].mxu0
      %1095 = vmatprep.mubr.f32.mxu0 0.0
      %1096 = vmatmul.mubr.f32.gmra.mrb[0].mxu0 %v960
      %v1097 = vpop.f32.mrb[0].mxu0
      %v1098 = vadd.f32 %v926, %v1097
      %v1099 = vpop.f32.mrb[0].mxu0
      %1100 = vmatprep.mubr.f32.mxu0 0.0
      %1101 = vmatmul.mubr.f32.gmra.mrb[0].mxu0 %v963
      %v1102 = vpop.f32.mrb[0].mxu0
      %v1103 = vadd.f32 %v926, %v1102
      %v1104 = vpop.f32.mrb[0].mxu0
      %1105 = vmatprep.mubr.f32.mxu0 0.0
      %1106 = vmatmul.mubr.f32.gmra.mrb[0].mxu0 %v966
      %v1107 = vpop.f32.mrb[0].mxu0
      %v1108 = vadd.f32 %v926, %v1107
      %v1109 = vpop.f32.mrb[0].mxu0
      %1110 = vmatprep.mubr.f32.mxu0 0.0
      %1111 = vmatmul.mubr.f32.gmra.mrb[0].mxu0 %v969
      %v1112 = vpop.f32.mrb[0].mxu0
      %v1113 = vadd.f32 %v926, %v1112
      %v1114 = vpop.f32.mrb[0].mxu0
      %1115 = vmatprep.mubr.f32.mxu0 0.0
      %1116 = vmatmul.mubr.f32.gmra.mrb[0].mxu0 %v972
      %v1117 = vpop.f32.mrb[0].mxu0
      %v1118 = vadd.f32 %v926, %v1117
      %v1119 = vpop.f32.mrb[0].mxu0
      %1120 = vmatprep.mubr.f32.mxu0 0.0
      %1121 = vmatmul.mubr.f32.gmra.mrb[0].mxu0 %v975
      %v1122 = vpop.f32.mrb[0].mxu0
      %v1123 = vadd.f32 %v926, %v1122
      %v1124 = vpop.f32.mrb[0].mxu0
      %1125 = vdwg.mxu0
      %v1126 = vld [vmem:[%s831] sm:$0xff]
      %v1127 = vld [vmem:[%s831 + $0x8] sm:$0xff]
      %v1128 = vld [vmem:[%s831 + $0x10] sm:$0xff]
      %v1129 = vld [vmem:[%s831 + $0x18] sm:$0xff]
      %v1130 = vld [vmem:[%s831 + $0x20] sm:$0xff]
      %v1131 = vld [vmem:[%s831 + $0x28] sm:$0xff]
      %v1132 = vld [vmem:[%s831 + $0x30] sm:$0xff]
      %v1133 = vld [vmem:[%s831 + $0x38] sm:$0xff]
      %v1134 = vld [vmem:[%s831 + $0x40] sm:$0xff]
      %v1135 = vld [vmem:[%s831 + $0x48] sm:$0xff]
      %v1136 = vld [vmem:[%s831 + $0x50] sm:$0xff]
      %v1137 = vld [vmem:[%s831 + $0x58] sm:$0xff]
      %v1138 = vld [vmem:[%s831 + $0x60] sm:$0xff]
      %v1139 = vld [vmem:[%s831 + $0x68] sm:$0xff]
      %v1140 = vld [vmem:[%s831 + $0x70] sm:$0xff]
      %v1141 = vld [vmem:[%s831 + $0x78] sm:$0xff]
      %v1142 = vadd.f32 %v1048, %v1126
      %v1143 = vadd.f32 %v1053, %v1127
      %v1144 = vadd.f32 %v1058, %v1128
      %v1145 = vadd.f32 %v1063, %v1129
      %v1146 = vadd.f32 %v1068, %v1130
      %v1147 = vadd.f32 %v1073, %v1131
      %v1148 = vadd.f32 %v1078, %v1132
      %v1149 = vadd.f32 %v1083, %v1133
      %v1150 = vadd.f32 %v1088, %v1134
      %v1151 = vadd.f32 %v1093, %v1135
      %v1152 = vadd.f32 %v1098, %v1136
      %v1153 = vadd.f32 %v1103, %v1137
      %v1154 = vadd.f32 %v1108, %v1138
      %v1155 = vadd.f32 %v1113, %v1139
      %v1156 = vadd.f32 %v1118, %v1140
      %v1157 = vadd.f32 %v1123, %v1141
      %v1158 = vld [vmem:[%s2] sm:$0xff]
      %v1159 = vld [vmem:[%s2 + $0x8] sm:$0xff]
      %v1160 = vld [vmem:[%s2 + $0x10] sm:$0xff]
      %v1161 = vld [vmem:[%s2 + $0x18] sm:$0xff]
      %v1162 = vld [vmem:[%s2 + $0x20] sm:$0xff]
      %v1163 = vld [vmem:[%s2 + $0x28] sm:$0xff]
      %v1164 = vld [vmem:[%s2 + $0x30] sm:$0xff]
      %v1165 = vld [vmem:[%s2 + $0x38] sm:$0xff]
      %v1166 = vld [vmem:[%s2 + $0x40] sm:$0xff]
      %v1167 = vld [vmem:[%s2 + $0x48] sm:$0xff]
      %v1168 = vld [vmem:[%s2 + $0x50] sm:$0xff]
      %v1169 = vld [vmem:[%s2 + $0x58] sm:$0xff]
      %v1170 = vld [vmem:[%s2 + $0x60] sm:$0xff]
      %v1171 = vld [vmem:[%s2 + $0x68] sm:$0xff]
      %v1172 = vld [vmem:[%s2 + $0x70] sm:$0xff]
      %v1173 = vld [vmem:[%s2 + $0x78] sm:$0xff]
      %v1174 = vld [vmem:[%s843] sm:$0xff]
      %v1175 = vld [vmem:[%s843 + $0x8] sm:$0xff]
      %v1176 = vld [vmem:[%s843 + $0x10] sm:$0xff]
      %v1177 = vld [vmem:[%s843 + $0x18] sm:$0xff]
      %v1178 = vld [vmem:[%s847] sm:$0x1]
      %v1180 = vlaneseq
      %v1181 = vshrl.u32 %v1180, 7
      %v1182 = vsub.s32 0, %v1181
      %v1183 = vrot.slane %v1178, %v1182
      %vm1185 = vcmask 261120
      %v1187 = vsel %vm1185, %v1142, 0
      %v1190 = vsel %vm1185, %v1143, 0
      %v1193 = vsel %vm1185, %v1144, 0
      %v1196 = vsel %vm1185, %v1145, 0
      %v1199 = vsel %vm1185, %v1146, 0
      %v1202 = vsel %vm1185, %v1147, 0
      %v1205 = vsel %vm1185, %v1148, 0
      %v1208 = vsel %vm1185, %v1149, 0
      %v1211 = vsel %vm1185, %v1150, 0
      %v1214 = vsel %vm1185, %v1151, 0
      %v1217 = vsel %vm1185, %v1152, 0
      %v1220 = vsel %vm1185, %v1153, 0
      %v1223 = vsel %vm1185, %v1154, 0
      %v1226 = vsel %vm1185, %v1155, 0
      %v1229 = vsel %vm1185, %v1156, 0
      %v1232 = vsel %vm1185, %v1157, 0
      %1234 = vmatprep.subr.mxu0 0.0
      %1235 = vmatpush1.msra.mxu0 %v1174
      %1236 = vmatprep.subr.mxu0 0.0
      %1237 = vmatpush1.msra.mxu0 %v1175
      %1238 = vmatprep.subr.mxu0 0.0
      %1239 = vmatpush1.msra.mxu0 %v1176
      %1240 = vmatprep.subr.mxu0 0.0
      %1241 = vmatpush1.msra.mxu0 %v1177
      %1242 = vmatprep.subr.mxu0 0.0
      %1243 = vmatpush1.msra.mxu0 0.0
      %1244 = vmatprep.subr.mxu0 0.0
      %1245 = vmatpush1.msra.mxu0 0.0
      %1246 = vmatprep.subr.mxu0 0.0
      %1247 = vmatpush1.msra.mxu0 0.0
      %1248 = vmatprep.subr.mxu0 0.0
      %1249 = vmatpush1.msra.mxu0 0.0
      %1250 = vmatprep.subr.mxu0 0.0
      %1251 = vmatpush1.msra.mxu0 0.0
      %1252 = vmatprep.subr.mxu0 0.0
      %1253 = vmatpush1.msra.mxu0 0.0
      %1254 = vmatprep.subr.mxu0 0.0
      %1255 = vmatpush1.msra.mxu0 0.0
      %1256 = vmatprep.subr.mxu0 0.0
      %1257 = vmatpush1.msra.mxu0 0.0
      %1258 = vmatprep.subr.mxu0 0.0
      %1259 = vmatpush1.msra.mxu0 0.0
      %1260 = vmatprep.subr.mxu0 0.0
      %1261 = vmatpush1.msra.mxu0 0.0
      %1262 = vmatprep.subr.mxu0 0.0
      %1263 = vmatpush1.msra.mxu0 0.0
      %1264 = vmatprep.subr.mxu0 0.0
      %1265 = vmatpush1.msra.mxu0 0.0
      %1266 = vmatprep.subr.mxu0 0.0
      %1267 = vmatpush1.msra.mxu0 0.0
      %1268 = vmatprep.subr.mxu0 0.0
      %1269 = vmatpush1.msra.mxu0 0.0
      %1270 = vmatprep.subr.mxu0 0.0
      %1271 = vmatpush1.msra.mxu0 0.0
      %1272 = vmatprep.subr.mxu0 0.0
      %1273 = vmatpush1.msra.mxu0 0.0
      %1274 = vmatprep.subr.mxu0 0.0
      %1275 = vmatpush1.msra.mxu0 0.0
      %1276 = vmatprep.subr.mxu0 0.0
      %1277 = vmatpush1.msra.mxu0 0.0
      %1278 = vmatprep.subr.mxu0 0.0
      %1279 = vmatpush1.msra.mxu0 0.0
      %1280 = vmatprep.subr.mxu0 0.0
      %1281 = vmatpush1.msra.mxu0 0.0
      %1282 = vmatprep.subr.mxu0 0.0
      %1283 = vmatpush1.msra.mxu0 0.0
      %1284 = vmatprep.subr.mxu0 0.0
      %1285 = vmatpush1.msra.mxu0 0.0
      %1286 = vmatprep.subr.mxu0 0.0
      %1287 = vmatpush1.msra.mxu0 0.0
      %1288 = vmatprep.subr.mxu0 0.0
      %1289 = vmatpush1.msra.mxu0 0.0
      %1290 = vmatprep.subr.mxu0 0.0
      %1291 = vmatpush1.msra.mxu0 0.0
      %1292 = vmatprep.subr.mxu0 0.0
      %1293 = vmatpush1.msra.mxu0 0.0
      %1294 = vmatprep.subr.mxu0 0.0
      %1295 = vmatpush1.msra.mxu0 0.0
      %1296 = vmatprep.subr.mxu0 0.0
      %1297 = vmatpush1.msra.mxu0 0.0
      %1298 = vmatprep.mubr.f32.mxu0 0.0
      %1299 = vmatmul.mubr.f32.gmra.mrb[0].mxu0 %v1187
      %v1300 = vpop.f32.mrb[0].mxu0
      %v1301 = vadd.f32 %v1183, %v1300
      %v1302 = vpop.f32.mrb[0].mxu0
      %1303 = vmatprep.mubr.f32.mxu0 0.0
      %1304 = vmatmul.mubr.f32.gmra.mrb[0].mxu0 %v1190
      %v1305 = vpop.f32.mrb[0].mxu0
      %v1306 = vadd.f32 %v1183, %v1305
      %v1307 = vpop.f32.mrb[0].mxu0
      %1308 = vmatprep.mubr.f32.mxu0 0.0
      %1309 = vmatmul.mubr.f32.gmra.mrb[0].mxu0 %v1193
      %v1310 = vpop.f32.mrb[0].mxu0
      %v1311 = vadd.f32 %v1183, %v1310
      %v1312 = vpop.f32.mrb[0].mxu0
      %1313 = vmatprep.mubr.f32.mxu0 0.0
      %1314 = vmatmul.mubr.f32.gmra.mrb[0].mxu0 %v1196
      %v1315 = vpop.f32.mrb[0].mxu0
      %v1316 = vadd.f32 %v1183, %v1315
      %v1317 = vpop.f32.mrb[0].mxu0
      %1318 = vmatprep.mubr.f32.mxu0 0.0
      %1319 = vmatmul.mubr.f32.gmra.mrb[0].mxu0 %v1199
      %v1320 = vpop.f32.mrb[0].mxu0
      %v1321 = vadd.f32 %v1183, %v1320
      %v1322 = vpop.f32.mrb[0].mxu0
      %1323 = vmatprep.mubr.f32.mxu0 0.0
      %1324 = vmatmul.mubr.f32.gmra.mrb[0].mxu0 %v1202
      %v1325 = vpop.f32.mrb[0].mxu0
      %v1326 = vadd.f32 %v1183, %v1325
      %v1327 = vpop.f32.mrb[0].mxu0
      %1328 = vmatprep.mubr.f32.mxu0 0.0
      %1329 = vmatmul.mubr.f32.gmra.mrb[0].mxu0 %v1205
      %v1330 = vpop.f32.mrb[0].mxu0
      %v1331 = vadd.f32 %v1183, %v1330
      %v1332 = vpop.f32.mrb[0].mxu0
      %1333 = vmatprep.mubr.f32.mxu0 0.0
      %1334 = vmatmul.mubr.f32.gmra.mrb[0].mxu0 %v1208
      %v1335 = vpop.f32.mrb[0].mxu0
      %v1336 = vadd.f32 %v1183, %v1335
      %v1337 = vpop.f32.mrb[0].mxu0
      %1338 = vmatprep.mubr.f32.mxu0 0.0
      %1339 = vmatmul.mubr.f32.gmra.mrb[0].mxu0 %v1211
      %v1340 = vpop.f32.mrb[0].mxu0
      %v1341 = vadd.f32 %v1183, %v1340
      %v1342 = vpop.f32.mrb[0].mxu0
      %1343 = vmatprep.mubr.f32.mxu0 0.0
      %1344 = vmatmul.mubr.f32.gmra.mrb[0].mxu0 %v1214
      %v1345 = vpop.f32.mrb[0].mxu0
      %v1346 = vadd.f32 %v1183, %v1345
      %v1347 = vpop.f32.mrb[0].mxu0
      %1348 = vmatprep.mubr.f32.mxu0 0.0
      %1349 = vmatmul.mubr.f32.gmra.mrb[0].mxu0 %v1217
      %v1350 = vpop.f32.mrb[0].mxu0
      %v1351 = vadd.f32 %v1183, %v1350
      %v1352 = vpop.f32.mrb[0].mxu0
      %1353 = vmatprep.mubr.f32.mxu0 0.0
      %1354 = vmatmul.mubr.f32.gmra.mrb[0].mxu0 %v1220
      %v1355 = vpop.f32.mrb[0].mxu0
      %v1356 = vadd.f32 %v1183, %v1355
      %v1357 = vpop.f32.mrb[0].mxu0
      %1358 = vmatprep.mubr.f32.mxu0 0.0
      %1359 = vmatmul.mubr.f32.gmra.mrb[0].mxu0 %v1223
      %v1360 = vpop.f32.mrb[0].mxu0
      %v1361 = vadd.f32 %v1183, %v1360
      %v1362 = vpop.f32.mrb[0].mxu0
      %1363 = vmatprep.mubr.f32.mxu0 0.0
      %1364 = vmatmul.mubr.f32.gmra.mrb[0].mxu0 %v1226
      %v1365 = vpop.f32.mrb[0].mxu0
      %v1366 = vadd.f32 %v1183, %v1365
      %v1367 = vpop.f32.mrb[0].mxu0
      %1368 = vmatprep.mubr.f32.mxu0 0.0
      %1369 = vmatmul.mubr.f32.gmra.mrb[0].mxu0 %v1229
      %v1370 = vpop.f32.mrb[0].mxu0
      %v1371 = vadd.f32 %v1183, %v1370
      %v1372 = vpop.f32.mrb[0].mxu0
      %1373 = vmatprep.mubr.f32.mxu0 0.0
      %1374 = vmatmul.mubr.f32.gmra.mrb[0].mxu0 %v1232
      %v1375 = vpop.f32.mrb[0].mxu0
      %v1376 = vadd.f32 %v1183, %v1375
      %v1377 = vpop.f32.mrb[0].mxu0
      %1378 = vdwg.mxu0
      %v1379 = vld [vmem:[%s852] sm:$0xff]
      %v1380 = vld [vmem:[%s852 + $0x8] sm:$0xff]
      %v1381 = vld [vmem:[%s852 + $0x10] sm:$0xff]
      %v1382 = vld [vmem:[%s852 + $0x18] sm:$0xff]
      %1399 = vrot.lane.b32.xlu0 %v1301, 96
      %v1400 = vpop.permute.xlu0 %1399
      %1401 = vrot.lane.b32.xlu0 %v1306, 96
      %v1402 = vpop.permute.xlu0 %1401
      %1403 = vrot.lane.b32.xlu0 %v1311, 96
      %v1404 = vpop.permute.xlu0 %1403
      %1405 = vrot.lane.b32.xlu0 %v1316, 96
      %v1406 = vpop.permute.xlu0 %1405
      %1407 = vrot.lane.b32.xlu0 %v1321, 96
      %v1408 = vpop.permute.xlu0 %1407
      %1409 = vrot.lane.b32.xlu0 %v1326, 96
      %v1410 = vpop.permute.xlu0 %1409
      %1411 = vrot.lane.b32.xlu0 %v1331, 96
      %v1412 = vpop.permute.xlu0 %1411
      %1413 = vrot.lane.b32.xlu0 %v1336, 96
      %v1414 = vpop.permute.xlu0 %1413
      %1415 = vrot.lane.b32.xlu0 %v1341, 96
      %v1416 = vpop.permute.xlu0 %1415
      %1417 = vrot.lane.b32.xlu0 %v1346, 96
      %v1418 = vpop.permute.xlu0 %1417
      %1419 = vrot.lane.b32.xlu0 %v1351, 96
      %v1420 = vpop.permute.xlu0 %1419
      %1421 = vrot.lane.b32.xlu0 %v1356, 96
      %v1422 = vpop.permute.xlu0 %1421
      %1423 = vrot.lane.b32.xlu0 %v1361, 96
      %v1424 = vpop.permute.xlu0 %1423
      %1425 = vrot.lane.b32.xlu0 %v1366, 96
      %v1426 = vpop.permute.xlu0 %1425
      %1427 = vrot.lane.b32.xlu0 %v1371, 96
      %v1428 = vpop.permute.xlu0 %1427
      %1429 = vrot.lane.b32.xlu0 %v1376, 96
      %v1430 = vpop.permute.xlu0 %1429
      %vm1431 = vcmask 64512
      %v1432 = vsel %vm1431, %v1301, 0
      %v1434 = vsel %vm1431, %v1306, 0
      %v1436 = vsel %vm1431, %v1311, 0
      %v1438 = vsel %vm1431, %v1316, 0
      %v1440 = vsel %vm1431, %v1321, 0
      %v1442 = vsel %vm1431, %v1326, 0
      %v1444 = vsel %vm1431, %v1331, 0
      %v1446 = vsel %vm1431, %v1336, 0
      %v1448 = vsel %vm1431, %v1341, 0
      %v1450 = vsel %vm1431, %v1346, 0
      %v1452 = vsel %vm1431, %v1351, 0
      %v1454 = vsel %vm1431, %v1356, 0
      %v1456 = vsel %vm1431, %v1361, 0
      %v1458 = vsel %vm1431, %v1366, 0
      %v1460 = vsel %vm1431, %v1371, 0
      %v1462 = vsel %vm1431, %v1376, 0
      %v1464 = vsel %vm1431, %v1400, 0
      %v1466 = vsel %vm1431, %v1402, 0
      %v1468 = vsel %vm1431, %v1404, 0
      %v1470 = vsel %vm1431, %v1406, 0
      %v1472 = vsel %vm1431, %v1408, 0
      %v1474 = vsel %vm1431, %v1410, 0
      %v1476 = vsel %vm1431, %v1412, 0
      %v1478 = vsel %vm1431, %v1414, 0
      %v1480 = vsel %vm1431, %v1416, 0
      %v1482 = vsel %vm1431, %v1418, 0
      %v1484 = vsel %vm1431, %v1420, 0
      %v1486 = vsel %vm1431, %v1422, 0
      %v1488 = vsel %vm1431, %v1424, 0
      %v1490 = vsel %vm1431, %v1426, 0
      %v1492 = vsel %vm1431, %v1428, 0
      %v1494 = vsel %vm1431, %v1430, 0
      %1496 = vmatprep.subr.mxu0 0.0
      %1497 = vmatpush1.xpose.msra.mxu0 %v1464
      %1498 = vmatprep.subr.mxu0 0.0
      %1499 = vmatpush1.xpose.msra.mxu0 %v1466
      %1500 = vmatprep.subr.mxu0 0.0
      %1501 = vmatpush1.xpose.msra.mxu0 %v1468
      %1502 = vmatprep.subr.mxu0 0.0
      %1503 = vmatpush1.xpose.msra.mxu0 %v1470
      %1504 = vmatprep.subr.mxu0 0.0
      %1505 = vmatpush1.xpose.msra.mxu0 %v1472
      %1506 = vmatprep.subr.mxu0 0.0
      %1507 = vmatpush1.xpose.msra.mxu0 %v1474
      %1508 = vmatprep.subr.mxu0 0.0
      %1509 = vmatpush1.xpose.msra.mxu0 %v1476
      %1510 = vmatprep.subr.mxu0 0.0
      %1511 = vmatpush1.xpose.msra.mxu0 %v1478
      %1512 = vmatprep.subr.mxu0 0.0
      %1513 = vmatpush1.xpose.msra.mxu0 %v1480
      %1514 = vmatprep.subr.mxu0 0.0
      %1515 = vmatpush1.xpose.msra.mxu0 %v1482
      %1516 = vmatprep.subr.mxu0 0.0
      %1517 = vmatpush1.xpose.msra.mxu0 %v1484
      %1518 = vmatprep.subr.mxu0 0.0
      %1519 = vmatpush1.xpose.msra.mxu0 %v1486
      %1520 = vmatprep.subr.mxu0 0.0
      %1521 = vmatpush1.xpose.msra.mxu0 %v1488
      %1522 = vmatprep.subr.mxu0 0.0
      %1523 = vmatpush1.xpose.msra.mxu0 %v1490
      %1524 = vmatprep.subr.mxu0 0.0
      %1525 = vmatpush1.xpose.msra.mxu0 %v1492
      %1526 = vmatprep.subr.mxu0 0.0
      %1527 = vmatpush1.xpose.msra.mxu0 %v1494
      %1528 = vmatprep.subr.mxu0 0.0
      %1529 = vmatpush1.xpose.msra.mxu0 0.0
      %1530 = vmatprep.subr.mxu0 0.0
      %1531 = vmatpush1.xpose.msra.mxu0 0.0
      %1532 = vmatprep.subr.mxu0 0.0
      %1533 = vmatpush1.xpose.msra.mxu0 0.0
      %1534 = vmatprep.subr.mxu0 0.0
      %1535 = vmatpush1.xpose.msra.mxu0 0.0
      %1536 = vmatprep.subr.mxu0 0.0
      %1537 = vmatpush1.xpose.msra.mxu0 0.0
      %1538 = vmatprep.subr.mxu0 0.0
      %1539 = vmatpush1.xpose.msra.mxu0 0.0
      %1540 = vmatprep.subr.mxu0 0.0
      %1541 = vmatpush1.xpose.msra.mxu0 0.0
      %1542 = vmatprep.subr.mxu0 0.0
      %1543 = vmatpush1.xpose.msra.mxu0 0.0
      %1544 = vmatprep.subr.mxu0 0.0
      %1545 = vmatpush1.xpose.msra.mxu0 0.0
      %1546 = vmatprep.subr.mxu0 0.0
      %1547 = vmatpush1.xpose.msra.mxu0 0.0
      %1548 = vmatprep.subr.mxu0 0.0
      %1549 = vmatpush1.xpose.msra.mxu0 0.0
      %1550 = vmatprep.subr.mxu0 0.0
      %1551 = vmatpush1.xpose.msra.mxu0 0.0
      %1552 = vmatprep.subr.mxu0 0.0
      %1553 = vmatpush1.xpose.msra.mxu0 0.0
      %1554 = vmatprep.subr.mxu0 0.0
      %1555 = vmatpush1.xpose.msra.mxu0 0.0
      %1556 = vmatprep.subr.mxu0 0.0
      %1557 = vmatpush1.xpose.msra.mxu0 0.0
      %1558 = vmatprep.subr.mxu0 0.0
      %1559 = vmatpush1.xpose.msra.mxu0 0.0
      %1560 = vmatprep.mubr.f32.mxu0 0.0
      %1561 = vmatmul.mubr.f32.gmra.mrb[0].mxu0 %v1432
      %v1562 = vpop.f32.mrb[0].mxu0
      %v1563 = vadd.f32 0.0, %v1562
      %v1564 = vpop.f32.mrb[0].mxu0
      %1565 = vmatprep.mubr.f32.mxu0 0.0
      %1566 = vmatmul.mubr.f32.gmra.mrb[0].mxu0 %v1434
      %v1567 = vpop.f32.mrb[0].mxu0
      %v1568 = vadd.f32 0.0, %v1567
      %v1569 = vpop.f32.mrb[0].mxu0
      %1570 = vmatprep.mubr.f32.mxu0 0.0
      %1571 = vmatmul.mubr.f32.gmra.mrb[0].mxu0 %v1436
      %v1572 = vpop.f32.mrb[0].mxu0
      %v1573 = vadd.f32 0.0, %v1572
      %v1574 = vpop.f32.mrb[0].mxu0
      %1575 = vmatprep.mubr.f32.mxu0 0.0
      %1576 = vmatmul.mubr.f32.gmra.mrb[0].mxu0 %v1438
      %v1577 = vpop.f32.mrb[0].mxu0
      %v1578 = vadd.f32 0.0, %v1577
      %v1579 = vpop.f32.mrb[0].mxu0
      %1580 = vmatprep.mubr.f32.mxu0 0.0
      %1581 = vmatmul.mubr.f32.gmra.mrb[0].mxu0 %v1440
      %v1582 = vpop.f32.mrb[0].mxu0
      %v1583 = vadd.f32 0.0, %v1582
      %v1584 = vpop.f32.mrb[0].mxu0
      %1585 = vmatprep.mubr.f32.mxu0 0.0
      %1586 = vmatmul.mubr.f32.gmra.mrb[0].mxu0 %v1442
      %v1587 = vpop.f32.mrb[0].mxu0
      %v1588 = vadd.f32 0.0, %v1587
      %v1589 = vpop.f32.mrb[0].mxu0
      %1590 = vmatprep.mubr.f32.mxu0 0.0
      %1591 = vmatmul.mubr.f32.gmra.mrb[0].mxu0 %v1444
      %v1592 = vpop.f32.mrb[0].mxu0
      %v1593 = vadd.f32 0.0, %v1592
      %v1594 = vpop.f32.mrb[0].mxu0
      %1595 = vmatprep.mubr.f32.mxu0 0.0
      %1596 = vmatmul.mubr.f32.gmra.mrb[0].mxu0 %v1446
      %v1597 = vpop.f32.mrb[0].mxu0
      %v1598 = vadd.f32 0.0, %v1597
      %v1599 = vpop.f32.mrb[0].mxu0
      %1600 = vmatprep.mubr.f32.mxu0 0.0
      %1601 = vmatmul.mubr.f32.gmra.mrb[0].mxu0 %v1448
      %v1602 = vpop.f32.mrb[0].mxu0
      %v1603 = vadd.f32 0.0, %v1602
      %v1604 = vpop.f32.mrb[0].mxu0
      %1605 = vmatprep.mubr.f32.mxu0 0.0
      %1606 = vmatmul.mubr.f32.gmra.mrb[0].mxu0 %v1450
      %v1607 = vpop.f32.mrb[0].mxu0
      %v1608 = vadd.f32 0.0, %v1607
      %v1609 = vpop.f32.mrb[0].mxu0
      %1610 = vmatprep.mubr.f32.mxu0 0.0
      %1611 = vmatmul.mubr.f32.gmra.mrb[0].mxu0 %v1452
      %v1612 = vpop.f32.mrb[0].mxu0
      %v1613 = vadd.f32 0.0, %v1612
      %v1614 = vpop.f32.mrb[0].mxu0
      %1615 = vmatprep.mubr.f32.mxu0 0.0
      %1616 = vmatmul.mubr.f32.gmra.mrb[0].mxu0 %v1454
      %v1617 = vpop.f32.mrb[0].mxu0
      %v1618 = vadd.f32 0.0, %v1617
      %v1619 = vpop.f32.mrb[0].mxu0
      %1620 = vmatprep.mubr.f32.mxu0 0.0
      %1621 = vmatmul.mubr.f32.gmra.mrb[0].mxu0 %v1456
      %v1622 = vpop.f32.mrb[0].mxu0
      %v1623 = vadd.f32 0.0, %v1622
      %v1624 = vpop.f32.mrb[0].mxu0
      %1625 = vmatprep.mubr.f32.mxu0 0.0
      %1626 = vmatmul.mubr.f32.gmra.mrb[0].mxu0 %v1458
      %v1627 = vpop.f32.mrb[0].mxu0
      %v1628 = vadd.f32 0.0, %v1627
      %v1629 = vpop.f32.mrb[0].mxu0
      %1630 = vmatprep.mubr.f32.mxu0 0.0
      %1631 = vmatmul.mubr.f32.gmra.mrb[0].mxu0 %v1460
      %v1632 = vpop.f32.mrb[0].mxu0
      %v1633 = vadd.f32 0.0, %v1632
      %v1634 = vpop.f32.mrb[0].mxu0
      %1635 = vmatprep.mubr.f32.mxu0 0.0
      %1636 = vmatmul.mubr.f32.gmra.mrb[0].mxu0 %v1462
      %v1637 = vpop.f32.mrb[0].mxu0
      %v1638 = vadd.f32 0.0, %v1637
      %v1639 = vpop.f32.mrb[0].mxu0
      %1640 = vdwg.mxu0
      %v1641 = vmul.f32 %v1563, 0.35355338
      %v1642 = vmul.f32 %v1568, 0.35355338
      %v1643 = vmul.f32 %v1573, 0.35355338
      %v1644 = vmul.f32 %v1578, 0.35355338
      %v1645 = vmul.f32 %v1583, 0.35355338
      %v1646 = vmul.f32 %v1588, 0.35355338
      %v1647 = vmul.f32 %v1593, 0.35355338
      %v1648 = vmul.f32 %v1598, 0.35355338
      %v1649 = vmul.f32 %v1603, 0.35355338
      %v1650 = vmul.f32 %v1608, 0.35355338
      %v1651 = vmul.f32 %v1613, 0.35355338
      %v1652 = vmul.f32 %v1618, 0.35355338
      %v1653 = vmul.f32 %v1623, 0.35355338
      %v1654 = vmul.f32 %v1628, 0.35355338
      %v1655 = vmul.f32 %v1633, 0.35355338
      %v1656 = vmul.f32 %v1638, 0.35355338
      %1657 = vst [vmem:[#allocation2] sm:$0xff] %v1641
      %1658 = vst [vmem:[#allocation2 + $0x8] sm:$0xff] %v1642
      %1659 = vst [vmem:[#allocation2 + $0x10] sm:$0xff] %v1643
      %1660 = vst [vmem:[#allocation2 + $0x18] sm:$0xff] %v1644
      %1661 = vst [vmem:[#allocation2 + $0x20] sm:$0xff] %v1645
      %1662 = vst [vmem:[#allocation2 + $0x28] sm:$0xff] %v1646
      %1663 = vst [vmem:[#allocation2 + $0x30] sm:$0xff] %v1647
      %1664 = vst [vmem:[#allocation2 + $0x38] sm:$0xff] %v1648
      %1665 = vst [vmem:[#allocation2 + $0x40] sm:$0xff] %v1649
      %1666 = vst [vmem:[#allocation2 + $0x48] sm:$0xff] %v1650
      %1667 = vst [vmem:[#allocation2 + $0x50] sm:$0xff] %v1651
      %1668 = vst [vmem:[#allocation2 + $0x58] sm:$0xff] %v1652
      %1669 = vst [vmem:[#allocation2 + $0x60] sm:$0xff] %v1653
      %1670 = vst [vmem:[#allocation2 + $0x68] sm:$0xff] %v1654
      %1671 = vst [vmem:[#allocation2 + $0x70] sm:$0xff] %v1655
      %1672 = vst [vmem:[#allocation2 + $0x78] sm:$0xff] %v1656
      %v1673 = vadd.f32 %v1641, %v1158
      %v1674 = vadd.f32 %v1642, %v1159
      %v1675 = vadd.f32 %v1643, %v1160
      %v1676 = vadd.f32 %v1644, %v1161
      %v1677 = vadd.f32 %v1645, %v1162
      %v1678 = vadd.f32 %v1646, %v1163
      %v1679 = vadd.f32 %v1647, %v1164
      %v1680 = vadd.f32 %v1648, %v1165
      %v1681 = vadd.f32 %v1649, %v1166
      %v1682 = vadd.f32 %v1650, %v1167
      %v1683 = vadd.f32 %v1651, %v1168
      %v1684 = vadd.f32 %v1652, %v1169
      %v1685 = vadd.f32 %v1653, %v1170
      %v1686 = vadd.f32 %v1654, %v1171
      %v1687 = vadd.f32 %v1655, %v1172
      %v1688 = vadd.f32 %v1656, %v1173
      %1689 = vmax.xlane.f32.xlu0 %v1673
      %v1690 = vpop.xlane.xlu0 %1689
      %1691 = vmax.xlane.f32.xlu0 %v1674
      %v1692 = vpop.xlane.xlu0 %1691
      %1693 = vmax.xlane.f32.xlu0 %v1675
      %v1694 = vpop.xlane.xlu0 %1693
      %1695 = vmax.xlane.f32.xlu0 %v1676
      %v1696 = vpop.xlane.xlu0 %1695
      %1697 = vmax.xlane.f32.xlu0 %v1677
      %v1698 = vpop.xlane.xlu0 %1697
      %1699 = vmax.xlane.f32.xlu0 %v1678
      %v1700 = vpop.xlane.xlu0 %1699
      %1701 = vmax.xlane.f32.xlu0 %v1679
      %v1702 = vpop.xlane.xlu0 %1701
      %1703 = vmax.xlane.f32.xlu0 %v1680
      %v1704 = vpop.xlane.xlu0 %1703
      %1705 = vmax.xlane.f32.xlu0 %v1681
      %v1706 = vpop.xlane.xlu0 %1705
      %1707 = vmax.xlane.f32.xlu0 %v1682
      %v1708 = vpop.xlane.xlu0 %1707
      %1709 = vmax.xlane.f32.xlu0 %v1683
      %v1710 = vpop.xlane.xlu0 %1709
      %1711 = vmax.xlane.f32.xlu0 %v1684
      %v1712 = vpop.xlane.xlu0 %1711
      %1713 = vmax.xlane.f32.xlu0 %v1685
      %v1714 = vpop.xlane.xlu0 %1713
      %1715 = vmax.xlane.f32.xlu0 %v1686
      %v1716 = vpop.xlane.xlu0 %1715
      %1717 = vmax.xlane.f32.xlu0 %v1687
      %v1718 = vpop.xlane.xlu0 %1717
      %1719 = vmax.xlane.f32.xlu0 %v1688
      %v1720 = vpop.xlane.xlu0 %1719
      %v1721 = vsub.f32 %v1673, %v1690
      %v1722 = vsub.f32 %v1674, %v1692
      %v1723 = vsub.f32 %v1675, %v1694
      %v1724 = vsub.f32 %v1676, %v1696
      %v1725 = vsub.f32 %v1677, %v1698
      %v1726 = vsub.f32 %v1678, %v1700
      %v1727 = vsub.f32 %v1679, %v1702
      %v1728 = vsub.f32 %v1680, %v1704
      %v1729 = vsub.f32 %v1681, %v1706
      %v1730 = vsub.f32 %v1682, %v1708
      %v1731 = vsub.f32 %v1683, %v1710
      %v1732 = vsub.f32 %v1684, %v1712
      %v1733 = vsub.f32 %v1685, %v1714
      %v1734 = vsub.f32 %v1686, %v1716
      %v1735 = vsub.f32 %v1687, %v1718
      %v1736 = vsub.f32 %v1688, %v1720
      %v1737 = vmul.f32 %v1721, 1.442695
      %v1738 = vpow.pop %v1737
      %v1739 = vmul.f32 %v1722, 1.442695
      %v1740 = vpow.pop %v1739
      %v1741 = vmul.f32 %v1723, 1.442695
      %v1742 = vpow.pop %v1741
      %v1743 = vmul.f32 %v1724, 1.442695
      %v1744 = vpow.pop %v1743
      %v1745 = vmul.f32 %v1725, 1.442695
      %v1746 = vpow.pop %v1745
      %v1747 = vmul.f32 %v1726, 1.442695
      %v1748 = vpow.pop %v1747
      %v1749 = vmul.f32 %v1727, 1.442695
      %v1750 = vpow.pop %v1749
      %v1751 = vmul.f32 %v1728, 1.442695
      %v1752 = vpow.pop %v1751
      %v1753 = vmul.f32 %v1729, 1.442695
      %v1754 = vpow.pop %v1753
      %v1755 = vmul.f32 %v1730, 1.442695
      %v1756 = vpow.pop %v1755
      %v1757 = vmul.f32 %v1731, 1.442695
      %v1758 = vpow.pop %v1757
      %v1759 = vmul.f32 %v1732, 1.442695
      %v1760 = vpow.pop %v1759
      %v1761 = vmul.f32 %v1733, 1.442695
      %v1762 = vpow.pop %v1761
      %v1763 = vmul.f32 %v1734, 1.442695
      %v1764 = vpow.pop %v1763
      %v1765 = vmul.f32 %v1735, 1.442695
      %v1766 = vpow.pop %v1765
      %v1767 = vmul.f32 %v1736, 1.442695
      %v1768 = vpow.pop %v1767
      %1769 = vadd.xlane.f32.xlu0 %v1738
      %v1770 = vpop.xlane.xlu0 %1769
      %1771 = vadd.xlane.f32.xlu0 %v1740
      %v1772 = vpop.xlane.xlu0 %1771
      %1773 = vadd.xlane.f32.xlu0 %v1742
      %v1774 = vpop.xlane.xlu0 %1773
      %1775 = vadd.xlane.f32.xlu0 %v1744
      %v1776 = vpop.xlane.xlu0 %1775
      %1777 = vadd.xlane.f32.xlu0 %v1746
      %v1778 = vpop.xlane.xlu0 %1777
      %1779 = vadd.xlane.f32.xlu0 %v1748
      %v1780 = vpop.xlane.xlu0 %1779
      %1781 = vadd.xlane.f32.xlu0 %v1750
      %v1782 = vpop.xlane.xlu0 %1781
      %1783 = vadd.xlane.f32.xlu0 %v1752
      %v1784 = vpop.xlane.xlu0 %1783
      %1785 = vadd.xlane.f32.xlu0 %v1754
      %v1786 = vpop.xlane.xlu0 %1785
      %1787 = vadd.xlane.f32.xlu0 %v1756
      %v1788 = vpop.xlane.xlu0 %1787
      %1789 = vadd.xlane.f32.xlu0 %v1758
      %v1790 = vpop.xlane.xlu0 %1789
      %1791 = vadd.xlane.f32.xlu0 %v1760
      %v1792 = vpop.xlane.xlu0 %1791
      %1793 = vadd.xlane.f32.xlu0 %v1762
      %v1794 = vpop.xlane.xlu0 %1793
      %1795 = vadd.xlane.f32.xlu0 %v1764
      %v1796 = vpop.xlane.xlu0 %1795
      %1797 = vadd.xlane.f32.xlu0 %v1766
      %v1798 = vpop.xlane.xlu0 %1797
      %1799 = vadd.xlane.f32.xlu0 %v1768
      %v1800 = vpop.xlane.xlu0 %1799
      %v1801 = vrcp.pop %v1770
      %v1802 = vrcp.pop %v1772
      %v1803 = vrcp.pop %v1774
      %v1804 = vrcp.pop %v1776
      %v1805 = vrcp.pop %v1778
      %v1806 = vrcp.pop %v1780
      %v1807 = vrcp.pop %v1782
      %v1808 = vrcp.pop %v1784
      %v1809 = vrcp.pop %v1786
      %v1810 = vrcp.pop %v1788
      %v1811 = vrcp.pop %v1790
      %v1812 = vrcp.pop %v1792
      %v1813 = vrcp.pop %v1794
      %v1814 = vrcp.pop %v1796
      %v1815 = vrcp.pop %v1798
      %v1816 = vrcp.pop %v1800
      %v1817 = vmul.f32 %v1738, %v1801
      %v1818 = vmul.f32 %v1740, %v1802
      %v1819 = vmul.f32 %v1742, %v1803
      %v1820 = vmul.f32 %v1744, %v1804
      %v1821 = vmul.f32 %v1746, %v1805
      %v1822 = vmul.f32 %v1748, %v1806
      %v1823 = vmul.f32 %v1750, %v1807
      %v1824 = vmul.f32 %v1752, %v1808
      %v1825 = vmul.f32 %v1754, %v1809
      %v1826 = vmul.f32 %v1756, %v1810
      %v1827 = vmul.f32 %v1758, %v1811
      %v1828 = vmul.f32 %v1760, %v1812
      %v1829 = vmul.f32 %v1762, %v1813
      %v1830 = vmul.f32 %v1764, %v1814
      %v1831 = vmul.f32 %v1766, %v1815
      %v1832 = vmul.f32 %v1768, %v1816
      %1833 = vrot.lane.b32.xlu0 %v1301, 64
      %v1834 = vpop.permute.xlu0 %1833
      %1835 = vrot.lane.b32.xlu0 %v1306, 64
      %v1836 = vpop.permute.xlu0 %1835
      %1837 = vrot.lane.b32.xlu0 %v1311, 64
      %v1838 = vpop.permute.xlu0 %1837
      %1839 = vrot.lane.b32.xlu0 %v1316, 64
      %v1840 = vpop.permute.xlu0 %1839
      %1841 = vrot.lane.b32.xlu0 %v1321, 64
      %v1842 = vpop.permute.xlu0 %1841
      %1843 = vrot.lane.b32.xlu0 %v1326, 64
      %v1844 = vpop.permute.xlu0 %1843
      %1845 = vrot.lane.b32.xlu0 %v1331, 64
      %v1846 = vpop.permute.xlu0 %1845
      %1847 = vrot.lane.b32.xlu0 %v1336, 64
      %v1848 = vpop.permute.xlu0 %1847
      %1849 = vrot.lane.b32.xlu0 %v1341, 64
      %v1850 = vpop.permute.xlu0 %1849
      %1851 = vrot.lane.b32.xlu0 %v1346, 64
      %v1852 = vpop.permute.xlu0 %1851
      %1853 = vrot.lane.b32.xlu0 %v1351, 64
      %v1854 = vpop.permute.xlu0 %1853
      %1855 = vrot.lane.b32.xlu0 %v1356, 64
      %v1856 = vpop.permute.xlu0 %1855
      %1857 = vrot.lane.b32.xlu0 %v1361, 64
      %v1858 = vpop.permute.xlu0 %1857
      %1859 = vrot.lane.b32.xlu0 %v1366, 64
      %v1860 = vpop.permute.xlu0 %1859
      %1861 = vrot.lane.b32.xlu0 %v1371, 64
      %v1862 = vpop.permute.xlu0 %1861
      %1863 = vrot.lane.b32.xlu0 %v1376, 64
      %v1864 = vpop.permute.xlu0 %1863
      %1881 = vmatprep.subr.mxu0 0.0
      %1882 = vmatpush1.msra.mxu0 %v1834
      %1883 = vmatprep.subr.mxu0 0.0
      %1884 = vmatpush1.msra.mxu0 %v1836
      %1885 = vmatprep.subr.mxu0 0.0
      %1886 = vmatpush1.msra.mxu0 %v1838
      %1887 = vmatprep.subr.mxu0 0.0
      %1888 = vmatpush1.msra.mxu0 %v1840
      %1889 = vmatprep.subr.mxu0 0.0
      %1890 = vmatpush1.msra.mxu0 %v1842
      %1891 = vmatprep.subr.mxu0 0.0
      %1892 = vmatpush1.msra.mxu0 %v1844
      %1893 = vmatprep.subr.mxu0 0.0
      %1894 = vmatpush1.msra.mxu0 %v1846
      %1895 = vmatprep.subr.mxu0 0.0
      %1896 = vmatpush1.msra.mxu0 %v1848
      %1897 = vmatprep.subr.mxu0 0.0
      %1898 = vmatpush1.msra.mxu0 %v1850
      %1899 = vmatprep.subr.mxu0 0.0
      %1900 = vmatpush1.msra.mxu0 %v1852
      %1901 = vmatprep.subr.mxu0 0.0
      %1902 = vmatpush1.msra.mxu0 %v1854
      %1903 = vmatprep.subr.mxu0 0.0
      %1904 = vmatpush1.msra.mxu0 %v1856
      %1905 = vmatprep.subr.mxu0 0.0
      %1906 = vmatpush1.msra.mxu0 %v1858
      %1907 = vmatprep.subr.mxu0 0.0
      %1908 = vmatpush1.msra.mxu0 %v1860
      %1909 = vmatprep.subr.mxu0 0.0
      %1910 = vmatpush1.msra.mxu0 %v1862
      %1911 = vmatprep.subr.mxu0 0.0
      %1912 = vmatpush1.msra.mxu0 %v1864
      %1913 = vmatprep.subr.mxu0 0.0
      %1914 = vmatpush1.msra.mxu0 0.0
      %1915 = vmatprep.subr.mxu0 0.0
      %1916 = vmatpush1.msra.mxu0 0.0
      %1917 = vmatprep.subr.mxu0 0.0
      %1918 = vmatpush1.msra.mxu0 0.0
      %1919 = vmatprep.subr.mxu0 0.0
      %1920 = vmatpush1.msra.mxu0 0.0
      %1921 = vmatprep.subr.mxu0 0.0
      %1922 = vmatpush1.msra.mxu0 0.0
      %1923 = vmatprep.subr.mxu0 0.0
      %1924 = vmatpush1.msra.mxu0 0.0
      %1925 = vmatprep.subr.mxu0 0.0
      %1926 = vmatpush1.msra.mxu0 0.0
      %1927 = vmatprep.subr.mxu0 0.0
      %1928 = vmatpush1.msra.mxu0 0.0
      %1929 = vmatprep.subr.mxu0 0.0
      %1930 = vmatpush1.msra.mxu0 0.0
      %1931 = vmatprep.subr.mxu0 0.0
      %1932 = vmatpush1.msra.mxu0 0.0
      %1933 = vmatprep.subr.mxu0 0.0
      %1934 = vmatpush1.msra.mxu0 0.0
      %1935 = vmatprep.subr.mxu0 0.0
      %1936 = vmatpush1.msra.mxu0 0.0
      %1937 = vmatprep.subr.mxu0 0.0
      %1938 = vmatpush1.msra.mxu0 0.0
      %1939 = vmatprep.subr.mxu0 0.0
      %1940 = vmatpush1.msra.mxu0 0.0
      %1941 = vmatprep.subr.mxu0 0.0
      %1942 = vmatpush1.msra.mxu0 0.0
      %1943 = vmatprep.subr.mxu0 0.0
      %1944 = vmatpush1.msra.mxu0 0.0
      %1945 = vmatprep.mubr.f32.mxu0 0.0
      %1946 = vmatmul.mubr.f32.gmra.mrb[0].mxu0 %v1817
      %v1947 = vpop.f32.mrb[0].mxu0
      %v1948 = vadd.f32 0.0, %v1947
      %v1949 = vpop.f32.mrb[0].mxu0
      %1950 = vmatprep.mubr.f32.mxu0 0.0
      %1951 = vmatmul.mubr.f32.gmra.mrb[0].mxu0 %v1818
      %v1952 = vpop.f32.mrb[0].mxu0
      %v1953 = vadd.f32 0.0, %v1952
      %v1954 = vpop.f32.mrb[0].mxu0
      %1955 = vmatprep.mubr.f32.mxu0 0.0
      %1956 = vmatmul.mubr.f32.gmra.mrb[0].mxu0 %v1819
      %v1957 = vpop.f32.mrb[0].mxu0
      %v1958 = vadd.f32 0.0, %v1957
      %v1959 = vpop.f32.mrb[0].mxu0
      %1960 = vmatprep.mubr.f32.mxu0 0.0
      %1961 = vmatmul.mubr.f32.gmra.mrb[0].mxu0 %v1820
      %v1962 = vpop.f32.mrb[0].mxu0
      %v1963 = vadd.f32 0.0, %v1962
      %v1964 = vpop.f32.mrb[0].mxu0
      %1965 = vmatprep.mubr.f32.mxu0 0.0
      %1966 = vmatmul.mubr.f32.gmra.mrb[0].mxu0 %v1821
      %v1967 = vpop.f32.mrb[0].mxu0
      %v1968 = vadd.f32 0.0, %v1967
      %v1969 = vpop.f32.mrb[0].mxu0
      %1970 = vmatprep.mubr.f32.mxu0 0.0
      %1971 = vmatmul.mubr.f32.gmra.mrb[0].mxu0 %v1822
      %v1972 = vpop.f32.mrb[0].mxu0
      %v1973 = vadd.f32 0.0, %v1972
      %v1974 = vpop.f32.mrb[0].mxu0
      %1975 = vmatprep.mubr.f32.mxu0 0.0
      %1976 = vmatmul.mubr.f32.gmra.mrb[0].mxu0 %v1823
      %v1977 = vpop.f32.mrb[0].mxu0
      %v1978 = vadd.f32 0.0, %v1977
      %v1979 = vpop.f32.mrb[0].mxu0
      %1980 = vmatprep.mubr.f32.mxu0 0.0
      %1981 = vmatmul.mubr.f32.gmra.mrb[0].mxu0 %v1824
      %v1982 = vpop.f32.mrb[0].mxu0
      %v1983 = vadd.f32 0.0, %v1982
      %v1984 = vpop.f32.mrb[0].mxu0
      %1985 = vmatprep.mubr.f32.mxu0 0.0
      %1986 = vmatmul.mubr.f32.gmra.mrb[0].mxu0 %v1825
      %v1987 = vpop.f32.mrb[0].mxu0
      %v1988 = vadd.f32 0.0, %v1987
      %v1989 = vpop.f32.mrb[0].mxu0
      %1990 = vmatprep.mubr.f32.mxu0 0.0
      %1991 = vmatmul.mubr.f32.gmra.mrb[0].mxu0 %v1826
      %v1992 = vpop.f32.mrb[0].mxu0
      %v1993 = vadd.f32 0.0, %v1992
      %v1994 = vpop.f32.mrb[0].mxu0
      %1995 = vmatprep.mubr.f32.mxu0 0.0
      %1996 = vmatmul.mubr.f32.gmra.mrb[0].mxu0 %v1827
      %v1997 = vpop.f32.mrb[0].mxu0
      %v1998 = vadd.f32 0.0, %v1997
      %v1999 = vpop.f32.mrb[0].mxu0
      %2000 = vmatprep.mubr.f32.mxu0 0.0
      %2001 = vmatmul.mubr.f32.gmra.mrb[0].mxu0 %v1828
      %v2002 = vpop.f32.mrb[0].mxu0
      %v2003 = vadd.f32 0.0, %v2002
      %v2004 = vpop.f32.mrb[0].mxu0
      %2005 = vmatprep.mubr.f32.mxu0 0.0
      %2006 = vmatmul.mubr.f32.gmra.mrb[0].mxu0 %v1829
      %v2007 = vpop.f32.mrb[0].mxu0
      %v2008 = vadd.f32 0.0, %v2007
      %v2009 = vpop.f32.mrb[0].mxu0
      %2010 = vmatprep.mubr.f32.mxu0 0.0
      %2011 = vmatmul.mubr.f32.gmra.mrb[0].mxu0 %v1830
      %v2012 = vpop.f32.mrb[0].mxu0
      %v2013 = vadd.f32 0.0, %v2012
      %v2014 = vpop.f32.mrb[0].mxu0
      %2015 = vmatprep.mubr.f32.mxu0 0.0
      %2016 = vmatmul.mubr.f32.gmra.mrb[0].mxu0 %v1831
      %v2017 = vpop.f32.mrb[0].mxu0
      %v2018 = vadd.f32 0.0, %v2017
      %v2019 = vpop.f32.mrb[0].mxu0
      %2020 = vmatprep.mubr.f32.mxu0 0.0
      %2021 = vmatmul.mubr.f32.gmra.mrb[0].mxu0 %v1832
      %v2022 = vpop.f32.mrb[0].mxu0
      %v2023 = vadd.f32 0.0, %v2022
      %v2024 = vpop.f32.mrb[0].mxu0
      %2025 = vdwg.mxu0
      %2026 = vrot.lane.b32.xlu0 %v1301, 120
      %v2027 = vpop.permute.xlu0 %2026
      %2028 = vrot.lane.b32.xlu0 %v1306, 120
      %v2029 = vpop.permute.xlu0 %2028
      %2030 = vrot.lane.b32.xlu0 %v1311, 120
      %v2031 = vpop.permute.xlu0 %2030
      %2032 = vrot.lane.b32.xlu0 %v1316, 120
      %v2033 = vpop.permute.xlu0 %2032
      %2034 = vrot.lane.b32.xlu0 %v1321, 120
      %v2035 = vpop.permute.xlu0 %2034
      %2036 = vrot.lane.b32.xlu0 %v1326, 120
      %v2037 = vpop.permute.xlu0 %2036
      %2038 = vrot.lane.b32.xlu0 %v1331, 120
      %v2039 = vpop.permute.xlu0 %2038
      %2040 = vrot.lane.b32.xlu0 %v1336, 120
      %v2041 = vpop.permute.xlu0 %2040
      %2042 = vrot.lane.b32.xlu0 %v1341, 120
      %v2043 = vpop.permute.xlu0 %2042
      %2044 = vrot.lane.b32.xlu0 %v1346, 120
      %v2045 = vpop.permute.xlu0 %2044
      %2046 = vrot.lane.b32.xlu0 %v1351, 120
      %v2047 = vpop.permute.xlu0 %2046
      %2048 = vrot.lane.b32.xlu0 %v1356, 120
      %v2049 = vpop.permute.xlu0 %2048
      %2050 = vrot.lane.b32.xlu0 %v1361, 120
      %v2051 = vpop.permute.xlu0 %2050
      %2052 = vrot.lane.b32.xlu0 %v1366, 120
      %v2053 = vpop.permute.xlu0 %2052
      %2054 = vrot.lane.b32.xlu0 %v1371, 120
      %v2055 = vpop.permute.xlu0 %2054
      %2056 = vrot.lane.b32.xlu0 %v1376, 120
      %v2057 = vpop.permute.xlu0 %2056
      %2058 = vrot.lane.b32.xlu0 %v1301, 88
      %v2059 = vpop.permute.xlu0 %2058
      %2060 = vrot.lane.b32.xlu0 %v1306, 88
      %v2061 = vpop.permute.xlu0 %2060
      %2062 = vrot.lane.b32.xlu0 %v1311, 88
      %v2063 = vpop.permute.xlu0 %2062
      %2064 = vrot.lane.b32.xlu0 %v1316, 88
      %v2065 = vpop.permute.xlu0 %2064
      %2066 = vrot.lane.b32.xlu0 %v1321, 88
      %v2067 = vpop.permute.xlu0 %2066
      %2068 = vrot.lane.b32.xlu0 %v1326, 88
      %v2069 = vpop.permute.xlu0 %2068
      %2070 = vrot.lane.b32.xlu0 %v1331, 88
      %v2071 = vpop.permute.xlu0 %2070
      %2072 = vrot.lane.b32.xlu0 %v1336, 88
      %v2073 = vpop.permute.xlu0 %2072
      %2074 = vrot.lane.b32.xlu0 %v1341, 88
      %v2075 = vpop.permute.xlu0 %2074
      %2076 = vrot.lane.b32.xlu0 %v1346, 88
      %v2077 = vpop.permute.xlu0 %2076
      %2078 = vrot.lane.b32.xlu0 %v1351, 88
      %v2079 = vpop.permute.xlu0 %2078
      %2080 = vrot.lane.b32.xlu0 %v1356, 88
      %v2081 = vpop.permute.xlu0 %2080
      %2082 = vrot.lane.b32.xlu0 %v1361, 88
      %v2083 = vpop.permute.xlu0 %2082
      %2084 = vrot.lane.b32.xlu0 %v1366, 88
      %v2085 = vpop.permute.xlu0 %2084
      %2086 = vrot.lane.b32.xlu0 %v1371, 88
      %v2087 = vpop.permute.xlu0 %2086
      %2088 = vrot.lane.b32.xlu0 %v1376, 88
      %v2089 = vpop.permute.xlu0 %2088
      %v2090 = vsel %vm1431, %v2027, 0
      %v2092 = vsel %vm1431, %v2029, 0
      %v2094 = vsel %vm1431, %v2031, 0
      %v2096 = vsel %vm1431, %v2033, 0
      %v2098 = vsel %vm1431, %v2035, 0
      %v2100 = vsel %vm1431, %v2037, 0
      %v2102 = vsel %vm1431, %v2039, 0
      %v2104 = vsel %vm1431, %v2041, 0
      %v2106 = vsel %vm1431, %v2043, 0
      %v2108 = vsel %vm1431, %v2045, 0
      %v2110 = vsel %vm1431, %v2047, 0
      %v2112 = vsel %vm1431, %v2049, 0
      %v2114 = vsel %vm1431, %v2051, 0
      %v2116 = vsel %vm1431, %v2053, 0
      %v2118 = vsel %vm1431, %v2055, 0
      %v2120 = vsel %vm1431, %v2057, 0
      %v2122 = vsel %vm1431, %v2059, 0
      %v2124 = vsel %vm1431, %v2061, 0
      %v2126 = vsel %vm1431, %v2063, 0
      %v2128 = vsel %vm1431, %v2065, 0
      %v2130 = vsel %vm1431, %v2067, 0
      %v2132 = vsel %vm1431, %v2069, 0
      %v2134 = vsel %vm1431, %v2071, 0
      %v2136 = vsel %vm1431, %v2073, 0
      %v2138 = vsel %vm1431, %v2075, 0
      %v2140 = vsel %vm1431, %v2077, 0
      %v2142 = vsel %vm1431, %v2079, 0
      %v2144 = vsel %vm1431, %v2081, 0
      %v2146 = vsel %vm1431, %v2083, 0
      %v2148 = vsel %vm1431, %v2085, 0
      %v2150 = vsel %vm1431, %v2087, 0
      %v2152 = vsel %vm1431, %v2089, 0
      %2154 = vmatprep.subr.mxu0 0.0
      %2155 = vmatpush1.xpose.msra.mxu0 %v2122
      %2156 = vmatprep.subr.mxu0 0.0
      %2157 = vmatpush1.xpose.msra.mxu0 %v2124
      %2158 = vmatprep.subr.mxu0 0.0
      %2159 = vmatpush1.xpose.msra.mxu0 %v2126
      %2160 = vmatprep.subr.mxu0 0.0
      %2161 = vmatpush1.xpose.msra.mxu0 %v2128
      %2162 = vmatprep.subr.mxu0 0.0
      %2163 = vmatpush1.xpose.msra.mxu0 %v2130
      %2164 = vmatprep.subr.mxu0 0.0
      %2165 = vmatpush1.xpose.msra.mxu0 %v2132
      %2166 = vmatprep.subr.mxu0 0.0
      %2167 = vmatpush1.xpose.msra.mxu0 %v2134
      %2168 = vmatprep.subr.mxu0 0.0
      %2169 = vmatpush1.xpose.msra.mxu0 %v2136
      %2170 = vmatprep.subr.mxu0 0.0
      %2171 = vmatpush1.xpose.msra.mxu0 %v2138
      %2172 = vmatprep.subr.mxu0 0.0
      %2173 = vmatpush1.xpose.msra.mxu0 %v2140
      %2174 = vmatprep.subr.mxu0 0.0
      %2175 = vmatpush1.xpose.msra.mxu0 %v2142
      %2176 = vmatprep.subr.mxu0 0.0
      %2177 = vmatpush1.xpose.msra.mxu0 %v2144
      %2178 = vmatprep.subr.mxu0 0.0
      %2179 = vmatpush1.xpose.msra.mxu0 %v2146
      %2180 = vmatprep.subr.mxu0 0.0
      %2181 = vmatpush1.xpose.msra.mxu0 %v2148
      %2182 = vmatprep.subr.mxu0 0.0
      %2183 = vmatpush1.xpose.msra.mxu0 %v2150
      %2184 = vmatprep.subr.mxu0 0.0
      %2185 = vmatpush1.xpose.msra.mxu0 %v2152
      %2186 = vmatprep.subr.mxu0 0.0
      %2187 = vmatpush1.xpose.msra.mxu0 0.0
      %2188 = vmatprep.subr.mxu0 0.0
      %2189 = vmatpush1.xpose.msra.mxu0 0.0
      %2190 = vmatprep.subr.mxu0 0.0
      %2191 = vmatpush1.xpose.msra.mxu0 0.0
      %2192 = vmatprep.subr.mxu0 0.0
      %2193 = vmatpush1.xpose.msra.mxu0 0.0
      %2194 = vmatprep.subr.mxu0 0.0
      %2195 = vmatpush1.xpose.msra.mxu0 0.0
      %2196 = vmatprep.subr.mxu0 0.0
      %2197 = vmatpush1.xpose.msra.mxu0 0.0
      %2198 = vmatprep.subr.mxu0 0.0
      %2199 = vmatpush1.xpose.msra.mxu0 0.0
      %2200 = vmatprep.subr.mxu0 0.0
      %2201 = vmatpush1.xpose.msra.mxu0 0.0
      %2202 = vmatprep.subr.mxu0 0.0
      %2203 = vmatpush1.xpose.msra.mxu0 0.0
      %2204 = vmatprep.subr.mxu0 0.0
      %2205 = vmatpush1.xpose.msra.mxu0 0.0
      %2206 = vmatprep.subr.mxu0 0.0
      %2207 = vmatpush1.xpose.msra.mxu0 0.0
      %2208 = vmatprep.subr.mxu0 0.0
      %2209 = vmatpush1.xpose.msra.mxu0 0.0
      %2210 = vmatprep.subr.mxu0 0.0
      %2211 = vmatpush1.xpose.msra.mxu0 0.0
      %2212 = vmatprep.subr.mxu0 0.0
      %2213 = vmatpush1.xpose.msra.mxu0 0.0
      %2214 = vmatprep.subr.mxu0 0.0
      %2215 = vmatpush1.xpose.msra.mxu0 0.0
      %2216 = vmatprep.subr.mxu0 0.0
      %2217 = vmatpush1.xpose.msra.mxu0 0.0
      %2218 = vmatprep.mubr.f32.mxu0 0.0
      %2219 = vmatmul.mubr.f32.gmra.mrb[0].mxu0 %v2090
      %v2220 = vpop.f32.mrb[0].mxu0
      %v2221 = vadd.f32 0.0, %v2220
      %v2222 = vpop.f32.mrb[0].mxu0
      %2223 = vmatprep.mubr.f32.mxu0 0.0
      %2224 = vmatmul.mubr.f32.gmra.mrb[0].mxu0 %v2092
      %v2225 = vpop.f32.mrb[0].mxu0
      %v2226 = vadd.f32 0.0, %v2225
      %v2227 = vpop.f32.mrb[0].mxu0
      %2228 = vmatprep.mubr.f32.mxu0 0.0
      %2229 = vmatmul.mubr.f32.gmra.mrb[0].mxu0 %v2094
      %v2230 = vpop.f32.mrb[0].mxu0
      %v2231 = vadd.f32 0.0, %v2230
      %v2232 = vpop.f32.mrb[0].mxu0
      %2233 = vmatprep.mubr.f32.mxu0 0.0
      %2234 = vmatmul.mubr.f32.gmra.mrb[0].mxu0 %v2096
      %v2235 = vpop.f32.mrb[0].mxu0
      %v2236 = vadd.f32 0.0, %v2235
      %v2237 = vpop.f32.mrb[0].mxu0
      %2238 = vmatprep.mubr.f32.mxu0 0.0
      %2239 = vmatmul.mubr.f32.gmra.mrb[0].mxu0 %v2098
      %v2240 = vpop.f32.mrb[0].mxu0
      %v2241 = vadd.f32 0.0, %v2240
      %v2242 = vpop.f32.mrb[0].mxu0
      %2243 = vmatprep.mubr.f32.mxu0 0.0
      %2244 = vmatmul.mubr.f32.gmra.mrb[0].mxu0 %v2100
      %v2245 = vpop.f32.mrb[0].mxu0
      %v2246 = vadd.f32 0.0, %v2245
      %v2247 = vpop.f32.mrb[0].mxu0
      %2248 = vmatprep.mubr.f32.mxu0 0.0
      %2249 = vmatmul.mubr.f32.gmra.mrb[0].mxu0 %v2102
      %v2250 = vpop.f32.mrb[0].mxu0
      %v2251 = vadd.f32 0.0, %v2250
      %v2252 = vpop.f32.mrb[0].mxu0
      %2253 = vmatprep.mubr.f32.mxu0 0.0
      %2254 = vmatmul.mubr.f32.gmra.mrb[0].mxu0 %v2104
      %v2255 = vpop.f32.mrb[0].mxu0
      %v2256 = vadd.f32 0.0, %v2255
      %v2257 = vpop.f32.mrb[0].mxu0
      %2258 = vmatprep.mubr.f32.mxu0 0.0
      %2259 = vmatmul.mubr.f32.gmra.mrb[0].mxu0 %v2106
      %v2260 = vpop.f32.mrb[0].mxu0
      %v2261 = vadd.f32 0.0, %v2260
      %v2262 = vpop.f32.mrb[0].mxu0
      %2263 = vmatprep.mubr.f32.mxu0 0.0
      %2264 = vmatmul.mubr.f32.gmra.mrb[0].mxu0 %v2108
      %v2265 = vpop.f32.mrb[0].mxu0
      %v2266 = vadd.f32 0.0, %v2265
      %v2267 = vpop.f32.mrb[0].mxu0
      %2268 = vmatprep.mubr.f32.mxu0 0.0
      %2269 = vmatmul.mubr.f32.gmra.mrb[0].mxu0 %v2110
      %v2270 = vpop.f32.mrb[0].mxu0
      %v2271 = vadd.f32 0.0, %v2270
      %v2272 = vpop.f32.mrb[0].mxu0
      %2273 = vmatprep.mubr.f32.mxu0 0.0
      %2274 = vmatmul.mubr.f32.gmra.mrb[0].mxu0 %v2112
      %v2275 = vpop.f32.mrb[0].mxu0
      %v2276 = vadd.f32 0.0, %v2275
      %v2277 = vpop.f32.mrb[0].mxu0
      %2278 = vmatprep.mubr.f32.mxu0 0.0
      %2279 = vmatmul.mubr.f32.gmra.mrb[0].mxu0 %v2114
      %v2280 = vpop.f32.mrb[0].mxu0
      %v2281 = vadd.f32 0.0, %v2280
      %v2282 = vpop.f32.mrb[0].mxu0
      %2283 = vmatprep.mubr.f32.mxu0 0.0
      %2284 = vmatmul.mubr.f32.gmra.mrb[0].mxu0 %v2116
      %v2285 = vpop.f32.mrb[0].mxu0
      %v2286 = vadd.f32 0.0, %v2285
      %v2287 = vpop.f32.mrb[0].mxu0
      %2288 = vmatprep.mubr.f32.mxu0 0.0
      %2289 = vmatmul.mubr.f32.gmra.mrb[0].mxu0 %v2118
      %v2290 = vpop.f32.mrb[0].mxu0
      %v2291 = vadd.f32 0.0, %v2290
      %v2292 = vpop.f32.mrb[0].mxu0
      %2293 = vmatprep.mubr.f32.mxu0 0.0
      %2294 = vmatmul.mubr.f32.gmra.mrb[0].mxu0 %v2120
      %v2295 = vpop.f32.mrb[0].mxu0
      %v2296 = vadd.f32 0.0, %v2295
      %v2297 = vpop.f32.mrb[0].mxu0
      %2298 = vdwg.mxu0
      %v2299 = vmul.f32 %v2221, 0.35355338
      %v2300 = vmul.f32 %v2226, 0.35355338
      %v2301 = vmul.f32 %v2231, 0.35355338
      %v2302 = vmul.f32 %v2236, 0.35355338
      %v2303 = vmul.f32 %v2241, 0.35355338
      %v2304 = vmul.f32 %v2246, 0.35355338
      %v2305 = vmul.f32 %v2251, 0.35355338
      %v2306 = vmul.f32 %v2256, 0.35355338
      %v2307 = vmul.f32 %v2261, 0.35355338
      %v2308 = vmul.f32 %v2266, 0.35355338
      %v2309 = vmul.f32 %v2271, 0.35355338
      %v2310 = vmul.f32 %v2276, 0.35355338
      %v2311 = vmul.f32 %v2281, 0.35355338
      %v2312 = vmul.f32 %v2286, 0.35355338
      %v2313 = vmul.f32 %v2291, 0.35355338
      %v2314 = vmul.f32 %v2296, 0.35355338
      %s2315 = scalar_lea.vmem [#allocation2], 128
      %2316 = vst [vmem:[%s2315] sm:$0xff] %v2299
      %2317 = vst [vmem:[%s2315 + $0x8] sm:$0xff] %v2300
      %2318 = vst [vmem:[%s2315 + $0x10] sm:$0xff] %v2301
      %2319 = vst [vmem:[%s2315 + $0x18] sm:$0xff] %v2302
      %2320 = vst [vmem:[%s2315 + $0x20] sm:$0xff] %v2303
      %2321 = vst [vmem:[%s2315 + $0x28] sm:$0xff] %v2304
      %2322 = vst [vmem:[%s2315 + $0x30] sm:$0xff] %v2305
      %2323 = vst [vmem:[%s2315 + $0x38] sm:$0xff] %v2306
      %2324 = vst [vmem:[%s2315 + $0x40] sm:$0xff] %v2307
      %2325 = vst [vmem:[%s2315 + $0x48] sm:$0xff] %v2308
      %2326 = vst [vmem:[%s2315 + $0x50] sm:$0xff] %v2309
      %2327 = vst [vmem:[%s2315 + $0x58] sm:$0xff] %v2310
      %2328 = vst [vmem:[%s2315 + $0x60] sm:$0xff] %v2311
      %2329 = vst [vmem:[%s2315 + $0x68] sm:$0xff] %v2312
      %2330 = vst [vmem:[%s2315 + $0x70] sm:$0xff] %v2313
      %2331 = vst [vmem:[%s2315 + $0x78] sm:$0xff] %v2314
      %v2332 = vadd.f32 %v2299, %v1158
      %v2333 = vadd.f32 %v2300, %v1159
      %v2334 = vadd.f32 %v2301, %v1160
      %v2335 = vadd.f32 %v2302, %v1161
      %v2336 = vadd.f32 %v2303, %v1162
      %v2337 = vadd.f32 %v2304, %v1163
      %v2338 = vadd.f32 %v2305, %v1164
      %v2339 = vadd.f32 %v2306, %v1165
      %v2340 = vadd.f32 %v2307, %v1166
      %v2341 = vadd.f32 %v2308, %v1167
      %v2342 = vadd.f32 %v2309, %v1168
      %v2343 = vadd.f32 %v2310, %v1169
      %v2344 = vadd.f32 %v2311, %v1170
      %v2345 = vadd.f32 %v2312, %v1171
      %v2346 = vadd.f32 %v2313, %v1172
      %v2347 = vadd.f32 %v2314, %v1173
      %2348 = vmax.xlane.f32.xlu0 %v2332
      %v2349 = vpop.xlane.xlu0 %2348
      %2350 = vmax.xlane.f32.xlu0 %v2333
      %v2351 = vpop.xlane.xlu0 %2350
      %2352 = vmax.xlane.f32.xlu0 %v2334
      %v2353 = vpop.xlane.xlu0 %2352
      %2354 = vmax.xlane.f32.xlu0 %v2335
      %v2355 = vpop.xlane.xlu0 %2354
      %2356 = vmax.xlane.f32.xlu0 %v2336
      %v2357 = vpop.xlane.xlu0 %2356
      %2358 = vmax.xlane.f32.xlu0 %v2337
      %v2359 = vpop.xlane.xlu0 %2358
      %2360 = vmax.xlane.f32.xlu0 %v2338
      %v2361 = vpop.xlane.xlu0 %2360
      %2362 = vmax.xlane.f32.xlu0 %v2339
      %v2363 = vpop.xlane.xlu0 %2362
      %2364 = vmax.xlane.f32.xlu0 %v2340
      %v2365 = vpop.xlane.xlu0 %2364
      %2366 = vmax.xlane.f32.xlu0 %v2341
      %v2367 = vpop.xlane.xlu0 %2366
      %2368 = vmax.xlane.f32.xlu0 %v2342
      %v2369 = vpop.xlane.xlu0 %2368
      %2370 = vmax.xlane.f32.xlu0 %v2343
      %v2371 = vpop.xlane.xlu0 %2370
      %2372 = vmax.xlane.f32.xlu0 %v2344
      %v2373 = vpop.xlane.xlu0 %2372
      %2374 = vmax.xlane.f32.xlu0 %v2345
      %v2375 = vpop.xlane.xlu0 %2374
      %2376 = vmax.xlane.f32.xlu0 %v2346
      %v2377 = vpop.xlane.xlu0 %2376
      %2378 = vmax.xlane.f32.xlu0 %v2347
      %v2379 = vpop.xlane.xlu0 %2378
      %v2380 = vsub.f32 %v2332, %v2349
      %v2381 = vsub.f32 %v2333, %v2351
      %v2382 = vsub.f32 %v2334, %v2353
      %v2383 = vsub.f32 %v2335, %v2355
      %v2384 = vsub.f32 %v2336, %v2357
      %v2385 = vsub.f32 %v2337, %v2359
      %v2386 = vsub.f32 %v2338, %v2361
      %v2387 = vsub.f32 %v2339, %v2363
      %v2388 = vsub.f32 %v2340, %v2365
      %v2389 = vsub.f32 %v2341, %v2367
      %v2390 = vsub.f32 %v2342, %v2369
      %v2391 = vsub.f32 %v2343, %v2371
      %v2392 = vsub.f32 %v2344, %v2373
      %v2393 = vsub.f32 %v2345, %v2375
      %v2394 = vsub.f32 %v2346, %v2377
      %v2395 = vsub.f32 %v2347, %v2379
      %v2396 = vmul.f32 %v2380, 1.442695
      %v2397 = vpow.pop %v2396
      %v2398 = vmul.f32 %v2381, 1.442695
      %v2399 = vpow.pop %v2398
      %v2400 = vmul.f32 %v2382, 1.442695
      %v2401 = vpow.pop %v2400
      %v2402 = vmul.f32 %v2383, 1.442695
      %v2403 = vpow.pop %v2402
      %v2404 = vmul.f32 %v2384, 1.442695
      %v2405 = vpow.pop %v2404
      %v2406 = vmul.f32 %v2385, 1.442695
      %v2407 = vpow.pop %v2406
      %v2408 = vmul.f32 %v2386, 1.442695
      %v2409 = vpow.pop %v2408
      %v2410 = vmul.f32 %v2387, 1.442695
      %v2411 = vpow.pop %v2410
      %v2412 = vmul.f32 %v2388, 1.442695
      %v2413 = vpow.pop %v2412
      %v2414 = vmul.f32 %v2389, 1.442695
      %v2415 = vpow.pop %v2414
      %v2416 = vmul.f32 %v2390, 1.442695
      %v2417 = vpow.pop %v2416
      %v2418 = vmul.f32 %v2391, 1.442695
      %v2419 = vpow.pop %v2418
      %v2420 = vmul.f32 %v2392, 1.442695
      %v2421 = vpow.pop %v2420
      %v2422 = vmul.f32 %v2393, 1.442695
      %v2423 = vpow.pop %v2422
      %v2424 = vmul.f32 %v2394, 1.442695
      %v2425 = vpow.pop %v2424
      %v2426 = vmul.f32 %v2395, 1.442695
      %v2427 = vpow.pop %v2426
      %2428 = vadd.xlane.f32.xlu0 %v2397
      %v2429 = vpop.xlane.xlu0 %2428
      %2430 = vadd.xlane.f32.xlu0 %v2399
      %v2431 = vpop.xlane.xlu0 %2430
      %2432 = vadd.xlane.f32.xlu0 %v2401
      %v2433 = vpop.xlane.xlu0 %2432
      %2434 = vadd.xlane.f32.xlu0 %v2403
      %v2435 = vpop.xlane.xlu0 %2434
      %2436 = vadd.xlane.f32.xlu0 %v2405
      %v2437 = vpop.xlane.xlu0 %2436
      %2438 = vadd.xlane.f32.xlu0 %v2407
      %v2439 = vpop.xlane.xlu0 %2438
      %2440 = vadd.xlane.f32.xlu0 %v2409
      %v2441 = vpop.xlane.xlu0 %2440
      %2442 = vadd.xlane.f32.xlu0 %v2411
      %v2443 = vpop.xlane.xlu0 %2442
      %2444 = vadd.xlane.f32.xlu0 %v2413
      %v2445 = vpop.xlane.xlu0 %2444
      %2446 = vadd.xlane.f32.xlu0 %v2415
      %v2447 = vpop.xlane.xlu0 %2446
      %2448 = vadd.xlane.f32.xlu0 %v2417
      %v2449 = vpop.xlane.xlu0 %2448
      %2450 = vadd.xlane.f32.xlu0 %v2419
      %v2451 = vpop.xlane.xlu0 %2450
      %2452 = vadd.xlane.f32.xlu0 %v2421
      %v2453 = vpop.xlane.xlu0 %2452
      %2454 = vadd.xlane.f32.xlu0 %v2423
      %v2455 = vpop.xlane.xlu0 %2454
      %2456 = vadd.xlane.f32.xlu0 %v2425
      %v2457 = vpop.xlane.xlu0 %2456
      %2458 = vadd.xlane.f32.xlu0 %v2427
      %v2459 = vpop.xlane.xlu0 %2458
      %v2460 = vrcp.pop %v2429
      %v2461 = vrcp.pop %v2431
      %v2462 = vrcp.pop %v2433
      %v2463 = vrcp.pop %v2435
      %v2464 = vrcp.pop %v2437
      %v2465 = vrcp.pop %v2439
      %v2466 = vrcp.pop %v2441
      %v2467 = vrcp.pop %v2443
      %v2468 = vrcp.pop %v2445
      %v2469 = vrcp.pop %v2447
      %v2470 = vrcp.pop %v2449
      %v2471 = vrcp.pop %v2451
      %v2472 = vrcp.pop %v2453
      %v2473 = vrcp.pop %v2455
      %v2474 = vrcp.pop %v2457
      %v2475 = vrcp.pop %v2459
      %v2476 = vmul.f32 %v2397, %v2460
      %v2477 = vmul.f32 %v2399, %v2461
      %v2478 = vmul.f32 %v2401, %v2462
      %v2479 = vmul.f32 %v2403, %v2463
      %v2480 = vmul.f32 %v2405, %v2464
      %v2481 = vmul.f32 %v2407, %v2465
      %v2482 = vmul.f32 %v2409, %v2466
      %v2483 = vmul.f32 %v2411, %v2467
      %v2484 = vmul.f32 %v2413, %v2468
      %v2485 = vmul.f32 %v2415, %v2469
      %v2486 = vmul.f32 %v2417, %v2470
      %v2487 = vmul.f32 %v2419, %v2471
      %v2488 = vmul.f32 %v2421, %v2472
      %v2489 = vmul.f32 %v2423, %v2473
      %v2490 = vmul.f32 %v2425, %v2474
      %v2491 = vmul.f32 %v2427, %v2475
      %2492 = vrot.lane.b32.xlu0 %v1301, 56
      %v2493 = vpop.permute.xlu0 %2492
      %2494 = vrot.lane.b32.xlu0 %v1306, 56
      %v2495 = vpop.permute.xlu0 %2494
      %2496 = vrot.lane.b32.xlu0 %v1311, 56
      %v2497 = vpop.permute.xlu0 %2496
      %2498 = vrot.lane.b32.xlu0 %v1316, 56
      %v2499 = vpop.permute.xlu0 %2498
      %2500 = vrot.lane.b32.xlu0 %v1321, 56
      %v2501 = vpop.permute.xlu0 %2500
      %2502 = vrot.lane.b32.xlu0 %v1326, 56
      %v2503 = vpop.permute.xlu0 %2502
      %2504 = vrot.lane.b32.xlu0 %v1331, 56
      %v2505 = vpop.permute.xlu0 %2504
      %2506 = vrot.lane.b32.xlu0 %v1336, 56
      %v2507 = vpop.permute.xlu0 %2506
      %2508 = vrot.lane.b32.xlu0 %v1341, 56
      %v2509 = vpop.permute.xlu0 %2508
      %2510 = vrot.lane.b32.xlu0 %v1346, 56
      %v2511 = vpop.permute.xlu0 %2510
      %2512 = vrot.lane.b32.xlu0 %v1351, 56
      %v2513 = vpop.permute.xlu0 %2512
      %2514 = vrot.lane.b32.xlu0 %v1356, 56
      %v2515 = vpop.permute.xlu0 %2514
      %2516 = vrot.lane.b32.xlu0 %v1361, 56
      %v2517 = vpop.permute.xlu0 %2516
      %2518 = vrot.lane.b32.xlu0 %v1366, 56
      %v2519 = vpop.permute.xlu0 %2518
      %2520 = vrot.lane.b32.xlu0 %v1371, 56
      %v2521 = vpop.permute.xlu0 %2520
      %2522 = vrot.lane.b32.xlu0 %v1376, 56
      %v2523 = vpop.permute.xlu0 %2522
      %2540 = vmatprep.subr.mxu0 0.0
      %2541 = vmatpush1.msra.mxu0 %v2493
      %2542 = vmatprep.subr.mxu0 0.0
      %2543 = vmatpush1.msra.mxu0 %v2495
      %2544 = vmatprep.subr.mxu0 0.0
      %2545 = vmatpush1.msra.mxu0 %v2497
      %2546 = vmatprep.subr.mxu0 0.0
      %2547 = vmatpush1.msra.mxu0 %v2499
      %2548 = vmatprep.subr.mxu0 0.0
      %2549 = vmatpush1.msra.mxu0 %v2501
      %2550 = vmatprep.subr.mxu0 0.0
      %2551 = vmatpush1.msra.mxu0 %v2503
      %2552 = vmatprep.subr.mxu0 0.0
      %2553 = vmatpush1.msra.mxu0 %v2505
      %2554 = vmatprep.subr.mxu0 0.0
      %2555 = vmatpush1.msra.mxu0 %v2507
      %2556 = vmatprep.subr.mxu0 0.0
      %2557 = vmatpush1.msra.mxu0 %v2509
      %2558 = vmatprep.subr.mxu0 0.0
      %2559 = vmatpush1.msra.mxu0 %v2511
      %2560 = vmatprep.subr.mxu0 0.0
      %2561 = vmatpush1.msra.mxu0 %v2513
      %2562 = vmatprep.subr.mxu0 0.0
      %2563 = vmatpush1.msra.mxu0 %v2515
      %2564 = vmatprep.subr.mxu0 0.0
      %2565 = vmatpush1.msra.mxu0 %v2517
      %2566 = vmatprep.subr.mxu0 0.0
      %2567 = vmatpush1.msra.mxu0 %v2519
      %2568 = vmatprep.subr.mxu0 0.0
      %2569 = vmatpush1.msra.mxu0 %v2521
      %2570 = vmatprep.subr.mxu0 0.0
      %2571 = vmatpush1.msra.mxu0 %v2523
      %2572 = vmatprep.subr.mxu0 0.0
      %2573 = vmatpush1.msra.mxu0 0.0
      %2574 = vmatprep.subr.mxu0 0.0
      %2575 = vmatpush1.msra.mxu0 0.0
      %2576 = vmatprep.subr.mxu0 0.0
      %2577 = vmatpush1.msra.mxu0 0.0
      %2578 = vmatprep.subr.mxu0 0.0
      %2579 = vmatpush1.msra.mxu0 0.0
      %2580 = vmatprep.subr.mxu0 0.0
      %2581 = vmatpush1.msra.mxu0 0.0
      %2582 = vmatprep.subr.mxu0 0.0
      %2583 = vmatpush1.msra.mxu0 0.0
      %2584 = vmatprep.subr.mxu0 0.0
      %2585 = vmatpush1.msra.mxu0 0.0
      %2586 = vmatprep.subr.mxu0 0.0
      %2587 = vmatpush1.msra.mxu0 0.0
      %2588 = vmatprep.subr.mxu0 0.0
      %2589 = vmatpush1.msra.mxu0 0.0
      %2590 = vmatprep.subr.mxu0 0.0
      %2591 = vmatpush1.msra.mxu0 0.0
      %2592 = vmatprep.subr.mxu0 0.0
      %2593 = vmatpush1.msra.mxu0 0.0
      %2594 = vmatprep.subr.mxu0 0.0
      %2595 = vmatpush1.msra.mxu0 0.0
      %2596 = vmatprep.subr.mxu0 0.0
      %2597 = vmatpush1.msra.mxu0 0.0
      %2598 = vmatprep.subr.mxu0 0.0
      %2599 = vmatpush1.msra.mxu0 0.0
      %2600 = vmatprep.subr.mxu0 0.0
      %2601 = vmatpush1.msra.mxu0 0.0
      %2602 = vmatprep.subr.mxu0 0.0
      %2603 = vmatpush1.msra.mxu0 0.0
      %2604 = vmatprep.mubr.f32.mxu0 0.0
      %2605 = vmatmul.mubr.f32.gmra.mrb[0].mxu0 %v2476
      %v2606 = vpop.f32.mrb[0].mxu0
      %v2607 = vadd.f32 0.0, %v2606
      %v2608 = vpop.f32.mrb[0].mxu0
      %2609 = vmatprep.mubr.f32.mxu0 0.0
      %2610 = vmatmul.mubr.f32.gmra.mrb[0].mxu0 %v2477
      %v2611 = vpop.f32.mrb[0].mxu0
      %v2612 = vadd.f32 0.0, %v2611
      %v2613 = vpop.f32.mrb[0].mxu0
      %2614 = vmatprep.mubr.f32.mxu0 0.0
      %2615 = vmatmul.mubr.f32.gmra.mrb[0].mxu0 %v2478
      %v2616 = vpop.f32.mrb[0].mxu0
      %v2617 = vadd.f32 0.0, %v2616
      %v2618 = vpop.f32.mrb[0].mxu0
      %2619 = vmatprep.mubr.f32.mxu0 0.0
      %2620 = vmatmul.mubr.f32.gmra.mrb[0].mxu0 %v2479
      %v2621 = vpop.f32.mrb[0].mxu0
      %v2622 = vadd.f32 0.0, %v2621
      %v2623 = vpop.f32.mrb[0].mxu0
      %2624 = vmatprep.mubr.f32.mxu0 0.0
      %2625 = vmatmul.mubr.f32.gmra.mrb[0].mxu0 %v2480
      %v2626 = vpop.f32.mrb[0].mxu0
      %v2627 = vadd.f32 0.0, %v2626
      %v2628 = vpop.f32.mrb[0].mxu0
      %2629 = vmatprep.mubr.f32.mxu0 0.0
      %2630 = vmatmul.mubr.f32.gmra.mrb[0].mxu0 %v2481
      %v2631 = vpop.f32.mrb[0].mxu0
      %v2632 = vadd.f32 0.0, %v2631
      %v2633 = vpop.f32.mrb[0].mxu0
      %2634 = vmatprep.mubr.f32.mxu0 0.0
      %2635 = vmatmul.mubr.f32.gmra.mrb[0].mxu0 %v2482
      %v2636 = vpop.f32.mrb[0].mxu0
      %v2637 = vadd.f32 0.0, %v2636
      %v2638 = vpop.f32.mrb[0].mxu0
      %2639 = vmatprep.mubr.f32.mxu0 0.0
      %2640 = vmatmul.mubr.f32.gmra.mrb[0].mxu0 %v2483
      %v2641 = vpop.f32.mrb[0].mxu0
      %v2642 = vadd.f32 0.0, %v2641
      %v2643 = vpop.f32.mrb[0].mxu0
      %2644 = vmatprep.mubr.f32.mxu0 0.0
      %2645 = vmatmul.mubr.f32.gmra.mrb[0].mxu0 %v2484
      %v2646 = vpop.f32.mrb[0].mxu0
      %v2647 = vadd.f32 0.0, %v2646
      %v2648 = vpop.f32.mrb[0].mxu0
      %2649 = vmatprep.mubr.f32.mxu0 0.0
      %2650 = vmatmul.mubr.f32.gmra.mrb[0].mxu0 %v2485
      %v2651 = vpop.f32.mrb[0].mxu0
      %v2652 = vadd.f32 0.0, %v2651
      %v2653 = vpop.f32.mrb[0].mxu0
      %2654 = vmatprep.mubr.f32.mxu0 0.0
      %2655 = vmatmul.mubr.f32.gmra.mrb[0].mxu0 %v2486
      %v2656 = vpop.f32.mrb[0].mxu0
      %v2657 = vadd.f32 0.0, %v2656
      %v2658 = vpop.f32.mrb[0].mxu0
      %2659 = vmatprep.mubr.f32.mxu0 0.0
      %2660 = vmatmul.mubr.f32.gmra.mrb[0].mxu0 %v2487
      %v2661 = vpop.f32.mrb[0].mxu0
      %v2662 = vadd.f32 0.0, %v2661
      %v2663 = vpop.f32.mrb[0].mxu0
      %2664 = vmatprep.mubr.f32.mxu0 0.0
      %2665 = vmatmul.mubr.f32.gmra.mrb[0].mxu0 %v2488
      %v2666 = vpop.f32.mrb[0].mxu0
      %v2667 = vadd.f32 0.0, %v2666
      %v2668 = vpop.f32.mrb[0].mxu0
      %2669 = vmatprep.mubr.f32.mxu0 0.0
      %2670 = vmatmul.mubr.f32.gmra.mrb[0].mxu0 %v2489
      %v2671 = vpop.f32.mrb[0].mxu0
      %v2672 = vadd.f32 0.0, %v2671
      %v2673 = vpop.f32.mrb[0].mxu0
      %2674 = vmatprep.mubr.f32.mxu0 0.0
      %2675 = vmatmul.mubr.f32.gmra.mrb[0].mxu0 %v2490
      %v2676 = vpop.f32.mrb[0].mxu0
      %v2677 = vadd.f32 0.0, %v2676
      %v2678 = vpop.f32.mrb[0].mxu0
      %2679 = vmatprep.mubr.f32.mxu0 0.0
      %2680 = vmatmul.mubr.f32.gmra.mrb[0].mxu0 %v2491
      %v2681 = vpop.f32.mrb[0].mxu0
      %v2682 = vadd.f32 0.0, %v2681
      %v2683 = vpop.f32.mrb[0].mxu0
      %2684 = vdwg.mxu0
      %v2686 = vsel %vm1431, %v2607, 0
      %v2689 = vsel %vm1431, %v2612, 0
      %v2692 = vsel %vm1431, %v2617, 0
      %v2695 = vsel %vm1431, %v2622, 0
      %v2698 = vsel %vm1431, %v2627, 0
      %v2701 = vsel %vm1431, %v2632, 0
      %v2704 = vsel %vm1431, %v2637, 0
      %v2707 = vsel %vm1431, %v2642, 0
      %v2710 = vsel %vm1431, %v2647, 0
      %v2713 = vsel %vm1431, %v2652, 0
      %v2716 = vsel %vm1431, %v2657, 0
      %v2719 = vsel %vm1431, %v2662, 0
      %v2722 = vsel %vm1431, %v2667, 0
      %v2725 = vsel %vm1431, %v2672, 0
      %v2728 = vsel %vm1431, %v2677, 0
      %v2731 = vsel %vm1431, %v2682, 0
      %2733 = vmatprep.subr.mxu0 0.0
      %2734 = vmatpush1.msra.mxu0 %v1380
      %2735 = vmatprep.subr.mxu0 0.0
      %2736 = vmatpush1.msra.mxu0 0.0
      %2737 = vmatprep.subr.mxu0 0.0
      %2738 = vmatpush1.msra.mxu0 0.0
      %2739 = vmatprep.subr.mxu0 0.0
      %2740 = vmatpush1.msra.mxu0 0.0
      %2741 = vmatprep.subr.mxu0 0.0
      %2742 = vmatpush1.msra.mxu0 0.0
      %2743 = vmatprep.subr.mxu0 0.0
      %2744 = vmatpush1.msra.mxu0 0.0
      %2745 = vmatprep.subr.mxu0 0.0
      %2746 = vmatpush1.msra.mxu0 0.0
      %2747 = vmatprep.subr.mxu0 0.0
      %2748 = vmatpush1.msra.mxu0 0.0
      %2749 = vmatprep.subr.mxu0 0.0
      %2750 = vmatpush1.msra.mxu0 0.0
      %2751 = vmatprep.subr.mxu0 0.0
      %2752 = vmatpush1.msra.mxu0 0.0
      %2753 = vmatprep.subr.mxu0 0.0
      %2754 = vmatpush1.msra.mxu0 0.0
      %2755 = vmatprep.subr.mxu0 0.0
      %2756 = vmatpush1.msra.mxu0 0.0
      %2757 = vmatprep.subr.mxu0 0.0
      %2758 = vmatpush1.msra.mxu0 0.0
      %2759 = vmatprep.subr.mxu0 0.0
      %2760 = vmatpush1.msra.mxu0 0.0
      %2761 = vmatprep.subr.mxu0 0.0
      %2762 = vmatpush1.msra.mxu0 0.0
      %2763 = vmatprep.subr.mxu0 0.0
      %2764 = vmatpush1.msra.mxu0 0.0
      %2765 = vmatprep.subr.mxu0 0.0
      %2766 = vmatpush1.msra.mxu0 0.0
      %2767 = vmatprep.subr.mxu0 0.0
      %2768 = vmatpush1.msra.mxu0 0.0
      %2769 = vmatprep.subr.mxu0 0.0
      %2770 = vmatpush1.msra.mxu0 0.0
      %2771 = vmatprep.subr.mxu0 0.0
      %2772 = vmatpush1.msra.mxu0 0.0
      %2773 = vmatprep.subr.mxu0 0.0
      %2774 = vmatpush1.msra.mxu0 0.0
      %2775 = vmatprep.subr.mxu0 0.0
      %2776 = vmatpush1.msra.mxu0 0.0
      %2777 = vmatprep.subr.mxu0 0.0
      %2778 = vmatpush1.msra.mxu0 0.0
      %2779 = vmatprep.subr.mxu0 0.0
      %2780 = vmatpush1.msra.mxu0 0.0
      %2781 = vmatprep.subr.mxu0 0.0
      %2782 = vmatpush1.msra.mxu0 0.0
      %2783 = vmatprep.subr.mxu0 0.0
      %2784 = vmatpush1.msra.mxu0 0.0
      %2785 = vmatprep.subr.mxu0 0.0
      %2786 = vmatpush1.msra.mxu0 0.0
      %2787 = vmatprep.subr.mxu0 0.0
      %2788 = vmatpush1.msra.mxu0 0.0
      %2789 = vmatprep.subr.mxu0 0.0
      %2790 = vmatpush1.msra.mxu0 0.0
      %2791 = vmatprep.subr.mxu0 0.0
      %2792 = vmatpush1.msra.mxu0 0.0
      %2793 = vmatprep.subr.mxu0 0.0
      %2794 = vmatpush1.msra.mxu0 0.0
      %2795 = vmatprep.subr.mxu0 0.0
      %2796 = vmatpush1.msra.mxu0 0.0
      %2797 = vmatprep.mubr.f32.mxu0 0.0
      %2798 = vmatmul.mubr.f32.gmra.mrb[0].mxu0 %v2686
      %v2799 = vpop.f32.mrb[0].mxu0
      %v2800 = vadd.f32 0.0, %v2799
      %v2801 = vpop.f32.mrb[0].mxu0
      %2802 = vmatprep.mubr.f32.mxu0 0.0
      %2803 = vmatmul.mubr.f32.gmra.mrb[0].mxu0 %v2689
      %v2804 = vpop.f32.mrb[0].mxu0
      %v2805 = vadd.f32 0.0, %v2804
      %v2806 = vpop.f32.mrb[0].mxu0
      %2807 = vmatprep.mubr.f32.mxu0 0.0
      %2808 = vmatmul.mubr.f32.gmra.mrb[0].mxu0 %v2692
      %v2809 = vpop.f32.mrb[0].mxu0
      %v2810 = vadd.f32 0.0, %v2809
      %v2811 = vpop.f32.mrb[0].mxu0
      %2812 = vmatprep.mubr.f32.mxu0 0.0
      %2813 = vmatmul.mubr.f32.gmra.mrb[0].mxu0 %v2695
      %v2814 = vpop.f32.mrb[0].mxu0
      %v2815 = vadd.f32 0.0, %v2814
      %v2816 = vpop.f32.mrb[0].mxu0
      %2817 = vmatprep.mubr.f32.mxu0 0.0
      %2818 = vmatmul.mubr.f32.gmra.mrb[0].mxu0 %v2698
      %v2819 = vpop.f32.mrb[0].mxu0
      %v2820 = vadd.f32 0.0, %v2819
      %v2821 = vpop.f32.mrb[0].mxu0
      %2822 = vmatprep.mubr.f32.mxu0 0.0
      %2823 = vmatmul.mubr.f32.gmra.mrb[0].mxu0 %v2701
      %v2824 = vpop.f32.mrb[0].mxu0
      %v2825 = vadd.f32 0.0, %v2824
      %v2826 = vpop.f32.mrb[0].mxu0
      %2827 = vmatprep.mubr.f32.mxu0 0.0
      %2828 = vmatmul.mubr.f32.gmra.mrb[0].mxu0 %v2704
      %v2829 = vpop.f32.mrb[0].mxu0
      %v2830 = vadd.f32 0.0, %v2829
      %v2831 = vpop.f32.mrb[0].mxu0
      %2832 = vmatprep.mubr.f32.mxu0 0.0
      %2833 = vmatmul.mubr.f32.gmra.mrb[0].mxu0 %v2707
      %v2834 = vpop.f32.mrb[0].mxu0
      %v2835 = vadd.f32 0.0, %v2834
      %v2836 = vpop.f32.mrb[0].mxu0
      %2837 = vmatprep.mubr.f32.mxu0 0.0
      %2838 = vmatmul.mubr.f32.gmra.mrb[0].mxu0 %v2710
      %v2839 = vpop.f32.mrb[0].mxu0
      %v2840 = vadd.f32 0.0, %v2839
      %v2841 = vpop.f32.mrb[0].mxu0
      %2842 = vmatprep.mubr.f32.mxu0 0.0
      %2843 = vmatmul.mubr.f32.gmra.mrb[0].mxu0 %v2713
      %v2844 = vpop.f32.mrb[0].mxu0
      %v2845 = vadd.f32 0.0, %v2844
      %v2846 = vpop.f32.mrb[0].mxu0
      %2847 = vmatprep.mubr.f32.mxu0 0.0
      %2848 = vmatmul.mubr.f32.gmra.mrb[0].mxu0 %v2716
      %v2849 = vpop.f32.mrb[0].mxu0
      %v2850 = vadd.f32 0.0, %v2849
      %v2851 = vpop.f32.mrb[0].mxu0
      %2852 = vmatprep.mubr.f32.mxu0 0.0
      %2853 = vmatmul.mubr.f32.gmra.mrb[0].mxu0 %v2719
      %v2854 = vpop.f32.mrb[0].mxu0
      %v2855 = vadd.f32 0.0, %v2854
      %v2856 = vpop.f32.mrb[0].mxu0
      %2857 = vmatprep.mubr.f32.mxu0 0.0
      %2858 = vmatmul.mubr.f32.gmra.mrb[0].mxu0 %v2722
      %v2859 = vpop.f32.mrb[0].mxu0
      %v2860 = vadd.f32 0.0, %v2859
      %v2861 = vpop.f32.mrb[0].mxu0
      %2862 = vmatprep.mubr.f32.mxu0 0.0
      %2863 = vmatmul.mubr.f32.gmra.mrb[0].mxu0 %v2725
      %v2864 = vpop.f32.mrb[0].mxu0
      %v2865 = vadd.f32 0.0, %v2864
      %v2866 = vpop.f32.mrb[0].mxu0
      %2867 = vmatprep.mubr.f32.mxu0 0.0
      %2868 = vmatmul.mubr.f32.gmra.mrb[0].mxu0 %v2728
      %v2869 = vpop.f32.mrb[0].mxu0
      %v2870 = vadd.f32 0.0, %v2869
      %v2871 = vpop.f32.mrb[0].mxu0
      %2872 = vmatprep.mubr.f32.mxu0 0.0
      %2873 = vmatmul.mubr.f32.gmra.mrb[0].mxu0 %v2731
      %v2874 = vpop.f32.mrb[0].mxu0
      %v2875 = vadd.f32 0.0, %v2874
      %v2876 = vpop.f32.mrb[0].mxu0
      %2877 = vdwg.mxu0
      %v2879 = vsel %vm1431, %v1948, 0
      %v2882 = vsel %vm1431, %v1953, 0
      %v2885 = vsel %vm1431, %v1958, 0
      %v2888 = vsel %vm1431, %v1963, 0
      %v2891 = vsel %vm1431, %v1968, 0
      %v2894 = vsel %vm1431, %v1973, 0
      %v2897 = vsel %vm1431, %v1978, 0
      %v2900 = vsel %vm1431, %v1983, 0
      %v2903 = vsel %vm1431, %v1988, 0
      %v2906 = vsel %vm1431, %v1993, 0
      %v2909 = vsel %vm1431, %v1998, 0
      %v2912 = vsel %vm1431, %v2003, 0
      %v2915 = vsel %vm1431, %v2008, 0
      %v2918 = vsel %vm1431, %v2013, 0
      %v2921 = vsel %vm1431, %v2018, 0
      %v2924 = vsel %vm1431, %v2023, 0
      %2926 = vmatprep.subr.mxu0 0.0
      %2927 = vmatpush1.msra.mxu0 %v1379
      %2928 = vmatprep.subr.mxu0 0.0
      %2929 = vmatpush1.msra.mxu0 0.0
      %2930 = vmatprep.subr.mxu0 0.0
      %2931 = vmatpush1.msra.mxu0 0.0
      %2932 = vmatprep.subr.mxu0 0.0
      %2933 = vmatpush1.msra.mxu0 0.0
      %2934 = vmatprep.subr.mxu0 0.0
      %2935 = vmatpush1.msra.mxu0 0.0
      %2936 = vmatprep.subr.mxu0 0.0
      %2937 = vmatpush1.msra.mxu0 0.0
      %2938 = vmatprep.subr.mxu0 0.0
      %2939 = vmatpush1.msra.mxu0 0.0
      %2940 = vmatprep.subr.mxu0 0.0
      %2941 = vmatpush1.msra.mxu0 0.0
      %2942 = vmatprep.subr.mxu0 0.0
      %2943 = vmatpush1.msra.mxu0 0.0
      %2944 = vmatprep.subr.mxu0 0.0
      %2945 = vmatpush1.msra.mxu0 0.0
      %2946 = vmatprep.subr.mxu0 0.0
      %2947 = vmatpush1.msra.mxu0 0.0
      %2948 = vmatprep.subr.mxu0 0.0
      %2949 = vmatpush1.msra.mxu0 0.0
      %2950 = vmatprep.subr.mxu0 0.0
      %2951 = vmatpush1.msra.mxu0 0.0
      %2952 = vmatprep.subr.mxu0 0.0
      %2953 = vmatpush1.msra.mxu0 0.0
      %2954 = vmatprep.subr.mxu0 0.0
      %2955 = vmatpush1.msra.mxu0 0.0
      %2956 = vmatprep.subr.mxu0 0.0
      %2957 = vmatpush1.msra.mxu0 0.0
      %2958 = vmatprep.subr.mxu0 0.0
      %2959 = vmatpush1.msra.mxu0 0.0
      %2960 = vmatprep.subr.mxu0 0.0
      %2961 = vmatpush1.msra.mxu0 0.0
      %2962 = vmatprep.subr.mxu0 0.0
      %2963 = vmatpush1.msra.mxu0 0.0
      %2964 = vmatprep.subr.mxu0 0.0
      %2965 = vmatpush1.msra.mxu0 0.0
      %2966 = vmatprep.subr.mxu0 0.0
      %2967 = vmatpush1.msra.mxu0 0.0
      %2968 = vmatprep.subr.mxu0 0.0
      %2969 = vmatpush1.msra.mxu0 0.0
      %2970 = vmatprep.subr.mxu0 0.0
      %2971 = vmatpush1.msra.mxu0 0.0
      %2972 = vmatprep.subr.mxu0 0.0
      %2973 = vmatpush1.msra.mxu0 0.0
      %2974 = vmatprep.subr.mxu0 0.0
      %2975 = vmatpush1.msra.mxu0 0.0
      %2976 = vmatprep.subr.mxu0 0.0
      %2977 = vmatpush1.msra.mxu0 0.0
      %2978 = vmatprep.subr.mxu0 0.0
      %2979 = vmatpush1.msra.mxu0 0.0
      %2980 = vmatprep.subr.mxu0 0.0
      %2981 = vmatpush1.msra.mxu0 0.0
      %2982 = vmatprep.subr.mxu0 0.0
      %2983 = vmatpush1.msra.mxu0 0.0
      %2984 = vmatprep.subr.mxu0 0.0
      %2985 = vmatpush1.msra.mxu0 0.0
      %2986 = vmatprep.subr.mxu0 0.0
      %2987 = vmatpush1.msra.mxu0 0.0
      %2988 = vmatprep.subr.mxu0 0.0
      %2989 = vmatpush1.msra.mxu0 0.0
      %2990 = vmatprep.mubr.f32.mxu0 0.0
      %2991 = vmatmul.mubr.f32.gmra.mrb[0].mxu0 %v2879
      %v2992 = vpop.f32.mrb[0].mxu0
      %v2993 = vadd.f32 %v2800, %v2992
      %v2994 = vpop.f32.mrb[0].mxu0
      %2995 = vmatprep.mubr.f32.mxu0 0.0
      %2996 = vmatmul.mubr.f32.gmra.mrb[0].mxu0 %v2882
      %v2997 = vpop.f32.mrb[0].mxu0
      %v2998 = vadd.f32 %v2805, %v2997
      %v2999 = vpop.f32.mrb[0].mxu0
      %3000 = vmatprep.mubr.f32.mxu0 0.0
      %3001 = vmatmul.mubr.f32.gmra.mrb[0].mxu0 %v2885
      %v3002 = vpop.f32.mrb[0].mxu0
      %v3003 = vadd.f32 %v2810, %v3002
      %v3004 = vpop.f32.mrb[0].mxu0
      %3005 = vmatprep.mubr.f32.mxu0 0.0
      %3006 = vmatmul.mubr.f32.gmra.mrb[0].mxu0 %v2888
      %v3007 = vpop.f32.mrb[0].mxu0
      %v3008 = vadd.f32 %v2815, %v3007
      %v3009 = vpop.f32.mrb[0].mxu0
      %3010 = vmatprep.mubr.f32.mxu0 0.0
      %3011 = vmatmul.mubr.f32.gmra.mrb[0].mxu0 %v2891
      %v3012 = vpop.f32.mrb[0].mxu0
      %v3013 = vadd.f32 %v2820, %v3012
      %v3014 = vpop.f32.mrb[0].mxu0
      %3015 = vmatprep.mubr.f32.mxu0 0.0
      %3016 = vmatmul.mubr.f32.gmra.mrb[0].mxu0 %v2894
      %v3017 = vpop.f32.mrb[0].mxu0
      %v3018 = vadd.f32 %v2825, %v3017
      %v3019 = vpop.f32.mrb[0].mxu0
      %3020 = vmatprep.mubr.f32.mxu0 0.0
      %3021 = vmatmul.mubr.f32.gmra.mrb[0].mxu0 %v2897
      %v3022 = vpop.f32.mrb[0].mxu0
      %v3023 = vadd.f32 %v2830, %v3022
      %v3024 = vpop.f32.mrb[0].mxu0
      %3025 = vmatprep.mubr.f32.mxu0 0.0
      %3026 = vmatmul.mubr.f32.gmra.mrb[0].mxu0 %v2900
      %v3027 = vpop.f32.mrb[0].mxu0
      %v3028 = vadd.f32 %v2835, %v3027
      %v3029 = vpop.f32.mrb[0].mxu0
      %3030 = vmatprep.mubr.f32.mxu0 0.0
      %3031 = vmatmul.mubr.f32.gmra.mrb[0].mxu0 %v2903
      %v3032 = vpop.f32.mrb[0].mxu0
      %v3033 = vadd.f32 %v2840, %v3032
      %v3034 = vpop.f32.mrb[0].mxu0
      %3035 = vmatprep.mubr.f32.mxu0 0.0
      %3036 = vmatmul.mubr.f32.gmra.mrb[0].mxu0 %v2906
      %v3037 = vpop.f32.mrb[0].mxu0
      %v3038 = vadd.f32 %v2845, %v3037
      %v3039 = vpop.f32.mrb[0].mxu0
      %3040 = vmatprep.mubr.f32.mxu0 0.0
      %3041 = vmatmul.mubr.f32.gmra.mrb[0].mxu0 %v2909
      %v3042 = vpop.f32.mrb[0].mxu0
      %v3043 = vadd.f32 %v2850, %v3042
      %v3044 = vpop.f32.mrb[0].mxu0
      %3045 = vmatprep.mubr.f32.mxu0 0.0
      %3046 = vmatmul.mubr.f32.gmra.mrb[0].mxu0 %v2912
      %v3047 = vpop.f32.mrb[0].mxu0
      %v3048 = vadd.f32 %v2855, %v3047
      %v3049 = vpop.f32.mrb[0].mxu0
      %3050 = vmatprep.mubr.f32.mxu0 0.0
      %3051 = vmatmul.mubr.f32.gmra.mrb[0].mxu0 %v2915
      %v3052 = vpop.f32.mrb[0].mxu0
      %v3053 = vadd.f32 %v2860, %v3052
      %v3054 = vpop.f32.mrb[0].mxu0
      %3055 = vmatprep.mubr.f32.mxu0 0.0
      %3056 = vmatmul.mubr.f32.gmra.mrb[0].mxu0 %v2918
      %v3057 = vpop.f32.mrb[0].mxu0
      %v3058 = vadd.f32 %v2865, %v3057
      %v3059 = vpop.f32.mrb[0].mxu0
      %3060 = vmatprep.mubr.f32.mxu0 0.0
      %3061 = vmatmul.mubr.f32.gmra.mrb[0].mxu0 %v2921
      %v3062 = vpop.f32.mrb[0].mxu0
      %v3063 = vadd.f32 %v2870, %v3062
      %v3064 = vpop.f32.mrb[0].mxu0
      %3065 = vmatprep.mubr.f32.mxu0 0.0
      %3066 = vmatmul.mubr.f32.gmra.mrb[0].mxu0 %v2924
      %v3067 = vpop.f32.mrb[0].mxu0
      %v3068 = vadd.f32 %v2875, %v3067
      %v3069 = vpop.f32.mrb[0].mxu0
      %3070 = vdwg.mxu0
      %3071 = vrot.lane.b32.xlu0 %v1301, 112
      %v3072 = vpop.permute.xlu0 %3071
      %3073 = vrot.lane.b32.xlu0 %v1306, 112
      %v3074 = vpop.permute.xlu0 %3073
      %3075 = vrot.lane.b32.xlu0 %v1311, 112
      %v3076 = vpop.permute.xlu0 %3075
      %3077 = vrot.lane.b32.xlu0 %v1316, 112
      %v3078 = vpop.permute.xlu0 %3077
      %3079 = vrot.lane.b32.xlu0 %v1321, 112
      %v3080 = vpop.permute.xlu0 %3079
      %3081 = vrot.lane.b32.xlu0 %v1326, 112
      %v3082 = vpop.permute.xlu0 %3081
      %3083 = vrot.lane.b32.xlu0 %v1331, 112
      %v3084 = vpop.permute.xlu0 %3083
      %3085 = vrot.lane.b32.xlu0 %v1336, 112
      %v3086 = vpop.permute.xlu0 %3085
      %3087 = vrot.lane.b32.xlu0 %v1341, 112
      %v3088 = vpop.permute.xlu0 %3087
      %3089 = vrot.lane.b32.xlu0 %v1346, 112
      %v3090 = vpop.permute.xlu0 %3089
      %3091 = vrot.lane.b32.xlu0 %v1351, 112
      %v3092 = vpop.permute.xlu0 %3091
      %3093 = vrot.lane.b32.xlu0 %v1356, 112
      %v3094 = vpop.permute.xlu0 %3093
      %3095 = vrot.lane.b32.xlu0 %v1361, 112
      %v3096 = vpop.permute.xlu0 %3095
      %3097 = vrot.lane.b32.xlu0 %v1366, 112
      %v3098 = vpop.permute.xlu0 %3097
      %3099 = vrot.lane.b32.xlu0 %v1371, 112
      %v3100 = vpop.permute.xlu0 %3099
      %3101 = vrot.lane.b32.xlu0 %v1376, 112
      %v3102 = vpop.permute.xlu0 %3101
      %3103 = vrot.lane.b32.xlu0 %v1301, 80
      %v3104 = vpop.permute.xlu0 %3103
      %3105 = vrot.lane.b32.xlu0 %v1306, 80
      %v3106 = vpop.permute.xlu0 %3105
      %3107 = vrot.lane.b32.xlu0 %v1311, 80
      %v3108 = vpop.permute.xlu0 %3107
      %3109 = vrot.lane.b32.xlu0 %v1316, 80
      %v3110 = vpop.permute.xlu0 %3109
      %3111 = vrot.lane.b32.xlu0 %v1321, 80
      %v3112 = vpop.permute.xlu0 %3111
      %3113 = vrot.lane.b32.xlu0 %v1326, 80
      %v3114 = vpop.permute.xlu0 %3113
      %3115 = vrot.lane.b32.xlu0 %v1331, 80
      %v3116 = vpop.permute.xlu0 %3115
      %3117 = vrot.lane.b32.xlu0 %v1336, 80
      %v3118 = vpop.permute.xlu0 %3117
      %3119 = vrot.lane.b32.xlu0 %v1341, 80
      %v3120 = vpop.permute.xlu0 %3119
      %3121 = vrot.lane.b32.xlu0 %v1346, 80
      %v3122 = vpop.permute.xlu0 %3121
      %3123 = vrot.lane.b32.xlu0 %v1351, 80
      %v3124 = vpop.permute.xlu0 %3123
      %3125 = vrot.lane.b32.xlu0 %v1356, 80
      %v3126 = vpop.permute.xlu0 %3125
      %3127 = vrot.lane.b32.xlu0 %v1361, 80
      %v3128 = vpop.permute.xlu0 %3127
      %3129 = vrot.lane.b32.xlu0 %v1366, 80
      %v3130 = vpop.permute.xlu0 %3129
      %3131 = vrot.lane.b32.xlu0 %v1371, 80
      %v3132 = vpop.permute.xlu0 %3131
      %3133 = vrot.lane.b32.xlu0 %v1376, 80
      %v3134 = vpop.permute.xlu0 %3133
      %v3135 = vsel %vm1431, %v3072, 0
      %v3137 = vsel %vm1431, %v3074, 0
      %v3139 = vsel %vm1431, %v3076, 0
      %v3141 = vsel %vm1431, %v3078, 0
      %v3143 = vsel %vm1431, %v3080, 0
      %v3145 = vsel %vm1431, %v3082, 0
      %v3147 = vsel %vm1431, %v3084, 0
      %v3149 = vsel %vm1431, %v3086, 0
      %v3151 = vsel %vm1431, %v3088, 0
      %v3153 = vsel %vm1431, %v3090, 0
      %v3155 = vsel %vm1431, %v3092, 0
      %v3157 = vsel %vm1431, %v3094, 0
      %v3159 = vsel %vm1431, %v3096, 0
      %v3161 = vsel %vm1431, %v3098, 0
      %v3163 = vsel %vm1431, %v3100, 0
      %v3165 = vsel %vm1431, %v3102, 0
      %v3167 = vsel %vm1431, %v3104, 0
      %v3169 = vsel %vm1431, %v3106, 0
      %v3171 = vsel %vm1431, %v3108, 0
      %v3173 = vsel %vm1431, %v3110, 0
      %v3175 = vsel %vm1431, %v3112, 0
      %v3177 = vsel %vm1431, %v3114, 0
      %v3179 = vsel %vm1431, %v3116, 0
      %v3181 = vsel %vm1431, %v3118, 0
      %v3183 = vsel %vm1431, %v3120, 0
      %v3185 = vsel %vm1431, %v3122, 0
      %v3187 = vsel %vm1431, %v3124, 0
      %v3189 = vsel %vm1431, %v3126, 0
      %v3191 = vsel %vm1431, %v3128, 0
      %v3193 = vsel %vm1431, %v3130, 0
      %v3195 = vsel %vm1431, %v3132, 0
      %v3197 = vsel %vm1431, %v3134, 0
      %3199 = vmatprep.subr.mxu0 0.0
      %3200 = vmatpush1.xpose.msra.mxu0 %v3167
      %3201 = vmatprep.subr.mxu0 0.0
      %3202 = vmatpush1.xpose.msra.mxu0 %v3169
      %3203 = vmatprep.subr.mxu0 0.0
      %3204 = vmatpush1.xpose.msra.mxu0 %v3171
      %3205 = vmatprep.subr.mxu0 0.0
      %3206 = vmatpush1.xpose.msra.mxu0 %v3173
      %3207 = vmatprep.subr.mxu0 0.0
      %3208 = vmatpush1.xpose.msra.mxu0 %v3175
      %3209 = vmatprep.subr.mxu0 0.0
      %3210 = vmatpush1.xpose.msra.mxu0 %v3177
      %3211 = vmatprep.subr.mxu0 0.0
      %3212 = vmatpush1.xpose.msra.mxu0 %v3179
      %3213 = vmatprep.subr.mxu0 0.0
      %3214 = vmatpush1.xpose.msra.mxu0 %v3181
      %3215 = vmatprep.subr.mxu0 0.0
      %3216 = vmatpush1.xpose.msra.mxu0 %v3183
      %3217 = vmatprep.subr.mxu0 0.0
      %3218 = vmatpush1.xpose.msra.mxu0 %v3185
      %3219 = vmatprep.subr.mxu0 0.0
      %3220 = vmatpush1.xpose.msra.mxu0 %v3187
      %3221 = vmatprep.subr.mxu0 0.0
      %3222 = vmatpush1.xpose.msra.mxu0 %v3189
      %3223 = vmatprep.subr.mxu0 0.0
      %3224 = vmatpush1.xpose.msra.mxu0 %v3191
      %3225 = vmatprep.subr.mxu0 0.0
      %3226 = vmatpush1.xpose.msra.mxu0 %v3193
      %3227 = vmatprep.subr.mxu0 0.0
      %3228 = vmatpush1.xpose.msra.mxu0 %v3195
      %3229 = vmatprep.subr.mxu0 0.0
      %3230 = vmatpush1.xpose.msra.mxu0 %v3197
      %3231 = vmatprep.subr.mxu0 0.0
      %3232 = vmatpush1.xpose.msra.mxu0 0.0
      %3233 = vmatprep.subr.mxu0 0.0
      %3234 = vmatpush1.xpose.msra.mxu0 0.0
      %3235 = vmatprep.subr.mxu0 0.0
      %3236 = vmatpush1.xpose.msra.mxu0 0.0
      %3237 = vmatprep.subr.mxu0 0.0
      %3238 = vmatpush1.xpose.msra.mxu0 0.0
      %3239 = vmatprep.subr.mxu0 0.0
      %3240 = vmatpush1.xpose.msra.mxu0 0.0
      %3241 = vmatprep.subr.mxu0 0.0
      %3242 = vmatpush1.xpose.msra.mxu0 0.0
      %3243 = vmatprep.subr.mxu0 0.0
      %3244 = vmatpush1.xpose.msra.mxu0 0.0
      %3245 = vmatprep.subr.mxu0 0.0
      %3246 = vmatpush1.xpose.msra.mxu0 0.0
      %3247 = vmatprep.subr.mxu0 0.0
      %3248 = vmatpush1.xpose.msra.mxu0 0.0
      %3249 = vmatprep.subr.mxu0 0.0
      %3250 = vmatpush1.xpose.msra.mxu0 0.0
      %3251 = vmatprep.subr.mxu0 0.0
      %3252 = vmatpush1.xpose.msra.mxu0 0.0
      %3253 = vmatprep.subr.mxu0 0.0
      %3254 = vmatpush1.xpose.msra.mxu0 0.0
      %3255 = vmatprep.subr.mxu0 0.0
      %3256 = vmatpush1.xpose.msra.mxu0 0.0
      %3257 = vmatprep.subr.mxu0 0.0
      %3258 = vmatpush1.xpose.msra.mxu0 0.0
      %3259 = vmatprep.subr.mxu0 0.0
      %3260 = vmatpush1.xpose.msra.mxu0 0.0
      %3261 = vmatprep.subr.mxu0 0.0
      %3262 = vmatpush1.xpose.msra.mxu0 0.0
      %3263 = vmatprep.mubr.f32.mxu0 0.0
      %3264 = vmatmul.mubr.f32.gmra.mrb[0].mxu0 %v3135
      %v3265 = vpop.f32.mrb[0].mxu0
      %v3266 = vadd.f32 0.0, %v3265
      %v3267 = vpop.f32.mrb[0].mxu0
      %3268 = vmatprep.mubr.f32.mxu0 0.0
      %3269 = vmatmul.mubr.f32.gmra.mrb[0].mxu0 %v3137
      %v3270 = vpop.f32.mrb[0].mxu0
      %v3271 = vadd.f32 0.0, %v3270
      %v3272 = vpop.f32.mrb[0].mxu0
      %3273 = vmatprep.mubr.f32.mxu0 0.0
      %3274 = vmatmul.mubr.f32.gmra.mrb[0].mxu0 %v3139
      %v3275 = vpop.f32.mrb[0].mxu0
      %v3276 = vadd.f32 0.0, %v3275
      %v3277 = vpop.f32.mrb[0].mxu0
      %3278 = vmatprep.mubr.f32.mxu0 0.0
      %3279 = vmatmul.mubr.f32.gmra.mrb[0].mxu0 %v3141
      %v3280 = vpop.f32.mrb[0].mxu0
      %v3281 = vadd.f32 0.0, %v3280
      %v3282 = vpop.f32.mrb[0].mxu0
      %3283 = vmatprep.mubr.f32.mxu0 0.0
      %3284 = vmatmul.mubr.f32.gmra.mrb[0].mxu0 %v3143
      %v3285 = vpop.f32.mrb[0].mxu0
      %v3286 = vadd.f32 0.0, %v3285
      %v3287 = vpop.f32.mrb[0].mxu0
      %3288 = vmatprep.mubr.f32.mxu0 0.0
      %3289 = vmatmul.mubr.f32.gmra.mrb[0].mxu0 %v3145
      %v3290 = vpop.f32.mrb[0].mxu0
      %v3291 = vadd.f32 0.0, %v3290
      %v3292 = vpop.f32.mrb[0].mxu0
      %3293 = vmatprep.mubr.f32.mxu0 0.0
      %3294 = vmatmul.mubr.f32.gmra.mrb[0].mxu0 %v3147
      %v3295 = vpop.f32.mrb[0].mxu0
      %v3296 = vadd.f32 0.0, %v3295
      %v3297 = vpop.f32.mrb[0].mxu0
      %3298 = vmatprep.mubr.f32.mxu0 0.0
      %3299 = vmatmul.mubr.f32.gmra.mrb[0].mxu0 %v3149
      %v3300 = vpop.f32.mrb[0].mxu0
      %v3301 = vadd.f32 0.0, %v3300
      %v3302 = vpop.f32.mrb[0].mxu0
      %3303 = vmatprep.mubr.f32.mxu0 0.0
      %3304 = vmatmul.mubr.f32.gmra.mrb[0].mxu0 %v3151
      %v3305 = vpop.f32.mrb[0].mxu0
      %v3306 = vadd.f32 0.0, %v3305
      %v3307 = vpop.f32.mrb[0].mxu0
      %3308 = vmatprep.mubr.f32.mxu0 0.0
      %3309 = vmatmul.mubr.f32.gmra.mrb[0].mxu0 %v3153
      %v3310 = vpop.f32.mrb[0].mxu0
      %v3311 = vadd.f32 0.0, %v3310
      %v3312 = vpop.f32.mrb[0].mxu0
      %3313 = vmatprep.mubr.f32.mxu0 0.0
      %3314 = vmatmul.mubr.f32.gmra.mrb[0].mxu0 %v3155
      %v3315 = vpop.f32.mrb[0].mxu0
      %v3316 = vadd.f32 0.0, %v3315
      %v3317 = vpop.f32.mrb[0].mxu0
      %3318 = vmatprep.mubr.f32.mxu0 0.0
      %3319 = vmatmul.mubr.f32.gmra.mrb[0].mxu0 %v3157
      %v3320 = vpop.f32.mrb[0].mxu0
      %v3321 = vadd.f32 0.0, %v3320
      %v3322 = vpop.f32.mrb[0].mxu0
      %3323 = vmatprep.mubr.f32.mxu0 0.0
      %3324 = vmatmul.mubr.f32.gmra.mrb[0].mxu0 %v3159
      %v3325 = vpop.f32.mrb[0].mxu0
      %v3326 = vadd.f32 0.0, %v3325
      %v3327 = vpop.f32.mrb[0].mxu0
      %3328 = vmatprep.mubr.f32.mxu0 0.0
      %3329 = vmatmul.mubr.f32.gmra.mrb[0].mxu0 %v3161
      %v3330 = vpop.f32.mrb[0].mxu0
      %v3331 = vadd.f32 0.0, %v3330
      %v3332 = vpop.f32.mrb[0].mxu0
      %3333 = vmatprep.mubr.f32.mxu0 0.0
      %3334 = vmatmul.mubr.f32.gmra.mrb[0].mxu0 %v3163
      %v3335 = vpop.f32.mrb[0].mxu0
      %v3336 = vadd.f32 0.0, %v3335
      %v3337 = vpop.f32.mrb[0].mxu0
      %3338 = vmatprep.mubr.f32.mxu0 0.0
      %3339 = vmatmul.mubr.f32.gmra.mrb[0].mxu0 %v3165
      %v3340 = vpop.f32.mrb[0].mxu0
      %v3341 = vadd.f32 0.0, %v3340
      %v3342 = vpop.f32.mrb[0].mxu0
      %3343 = vdwg.mxu0
      %v3344 = vmul.f32 %v3266, 0.35355338
      %v3345 = vmul.f32 %v3271, 0.35355338
      %v3346 = vmul.f32 %v3276, 0.35355338
      %v3347 = vmul.f32 %v3281, 0.35355338
      %v3348 = vmul.f32 %v3286, 0.35355338
      %v3349 = vmul.f32 %v3291, 0.35355338
      %v3350 = vmul.f32 %v3296, 0.35355338
      %v3351 = vmul.f32 %v3301, 0.35355338
      %v3352 = vmul.f32 %v3306, 0.35355338
      %v3353 = vmul.f32 %v3311, 0.35355338
      %v3354 = vmul.f32 %v3316, 0.35355338
      %v3355 = vmul.f32 %v3321, 0.35355338
      %v3356 = vmul.f32 %v3326, 0.35355338
      %v3357 = vmul.f32 %v3331, 0.35355338
      %v3358 = vmul.f32 %v3336, 0.35355338
      %v3359 = vmul.f32 %v3341, 0.35355338
      %s3360 = scalar_lea.vmem [#allocation2], 256
      %3361 = vst [vmem:[%s3360] sm:$0xff] %v3344
      %3362 = vst [vmem:[%s3360 + $0x8] sm:$0xff] %v3345
      %3363 = vst [vmem:[%s3360 + $0x10] sm:$0xff] %v3346
      %3364 = vst [vmem:[%s3360 + $0x18] sm:$0xff] %v3347
      %3365 = vst [vmem:[%s3360 + $0x20] sm:$0xff] %v3348
      %3366 = vst [vmem:[%s3360 + $0x28] sm:$0xff] %v3349
      %3367 = vst [vmem:[%s3360 + $0x30] sm:$0xff] %v3350
      %3368 = vst [vmem:[%s3360 + $0x38] sm:$0xff] %v3351
      %3369 = vst [vmem:[%s3360 + $0x40] sm:$0xff] %v3352
      %3370 = vst [vmem:[%s3360 + $0x48] sm:$0xff] %v3353
      %3371 = vst [vmem:[%s3360 + $0x50] sm:$0xff] %v3354
      %3372 = vst [vmem:[%s3360 + $0x58] sm:$0xff] %v3355
      %3373 = vst [vmem:[%s3360 + $0x60] sm:$0xff] %v3356
      %3374 = vst [vmem:[%s3360 + $0x68] sm:$0xff] %v3357
      %3375 = vst [vmem:[%s3360 + $0x70] sm:$0xff] %v3358
      %3376 = vst [vmem:[%s3360 + $0x78] sm:$0xff] %v3359
      %v3377 = vadd.f32 %v3344, %v1158
      %v3378 = vadd.f32 %v3345, %v1159
      %v3379 = vadd.f32 %v3346, %v1160
      %v3380 = vadd.f32 %v3347, %v1161
      %v3381 = vadd.f32 %v3348, %v1162
      %v3382 = vadd.f32 %v3349, %v1163
      %v3383 = vadd.f32 %v3350, %v1164
      %v3384 = vadd.f32 %v3351, %v1165
      %v3385 = vadd.f32 %v3352, %v1166
      %v3386 = vadd.f32 %v3353, %v1167
      %v3387 = vadd.f32 %v3354, %v1168
      %v3388 = vadd.f32 %v3355, %v1169
      %v3389 = vadd.f32 %v3356, %v1170
      %v3390 = vadd.f32 %v3357, %v1171
      %v3391 = vadd.f32 %v3358, %v1172
      %v3392 = vadd.f32 %v3359, %v1173
      %3393 = vmax.xlane.f32.xlu0 %v3377
      %v3394 = vpop.xlane.xlu0 %3393
      %3395 = vmax.xlane.f32.xlu0 %v3378
      %v3396 = vpop.xlane.xlu0 %3395
      %3397 = vmax.xlane.f32.xlu0 %v3379
      %v3398 = vpop.xlane.xlu0 %3397
      %3399 = vmax.xlane.f32.xlu0 %v3380
      %v3400 = vpop.xlane.xlu0 %3399
      %3401 = vmax.xlane.f32.xlu0 %v3381
      %v3402 = vpop.xlane.xlu0 %3401
      %3403 = vmax.xlane.f32.xlu0 %v3382
      %v3404 = vpop.xlane.xlu0 %3403
      %3405 = vmax.xlane.f32.xlu0 %v3383
      %v3406 = vpop.xlane.xlu0 %3405
      %3407 = vmax.xlane.f32.xlu0 %v3384
      %v3408 = vpop.xlane.xlu0 %3407
      %3409 = vmax.xlane.f32.xlu0 %v3385
      %v3410 = vpop.xlane.xlu0 %3409
      %3411 = vmax.xlane.f32.xlu0 %v3386
      %v3412 = vpop.xlane.xlu0 %3411
      %3413 = vmax.xlane.f32.xlu0 %v3387
      %v3414 = vpop.xlane.xlu0 %3413
      %3415 = vmax.xlane.f32.xlu0 %v3388
      %v3416 = vpop.xlane.xlu0 %3415
      %3417 = vmax.xlane.f32.xlu0 %v3389
      %v3418 = vpop.xlane.xlu0 %3417
      %3419 = vmax.xlane.f32.xlu0 %v3390
      %v3420 = vpop.xlane.xlu0 %3419
      %3421 = vmax.xlane.f32.xlu0 %v3391
      %v3422 = vpop.xlane.xlu0 %3421
      %3423 = vmax.xlane.f32.xlu0 %v3392
      %v3424 = vpop.xlane.xlu0 %3423
      %v3425 = vsub.f32 %v3377, %v3394
      %v3426 = vsub.f32 %v3378, %v3396
      %v3427 = vsub.f32 %v3379, %v3398
      %v3428 = vsub.f32 %v3380, %v3400
      %v3429 = vsub.f32 %v3381, %v3402
      %v3430 = vsub.f32 %v3382, %v3404
      %v3431 = vsub.f32 %v3383, %v3406
      %v3432 = vsub.f32 %v3384, %v3408
      %v3433 = vsub.f32 %v3385, %v3410
      %v3434 = vsub.f32 %v3386, %v3412
      %v3435 = vsub.f32 %v3387, %v3414
      %v3436 = vsub.f32 %v3388, %v3416
      %v3437 = vsub.f32 %v3389, %v3418
      %v3438 = vsub.f32 %v3390, %v3420
      %v3439 = vsub.f32 %v3391, %v3422
      %v3440 = vsub.f32 %v3392, %v3424
      %v3441 = vmul.f32 %v3425, 1.442695
      %v3442 = vpow.pop %v3441
      %v3443 = vmul.f32 %v3426, 1.442695
      %v3444 = vpow.pop %v3443
      %v3445 = vmul.f32 %v3427, 1.442695
      %v3446 = vpow.pop %v3445
      %v3447 = vmul.f32 %v3428, 1.442695
      %v3448 = vpow.pop %v3447
      %v3449 = vmul.f32 %v3429, 1.442695
      %v3450 = vpow.pop %v3449
      %v3451 = vmul.f32 %v3430, 1.442695
      %v3452 = vpow.pop %v3451
      %v3453 = vmul.f32 %v3431, 1.442695
      %v3454 = vpow.pop %v3453
      %v3455 = vmul.f32 %v3432, 1.442695
      %v3456 = vpow.pop %v3455
      %v3457 = vmul.f32 %v3433, 1.442695
      %v3458 = vpow.pop %v3457
      %v3459 = vmul.f32 %v3434, 1.442695
      %v3460 = vpow.pop %v3459
      %v3461 = vmul.f32 %v3435, 1.442695
      %v3462 = vpow.pop %v3461
      %v3463 = vmul.f32 %v3436, 1.442695
      %v3464 = vpow.pop %v3463
      %v3465 = vmul.f32 %v3437, 1.442695
      %v3466 = vpow.pop %v3465
      %v3467 = vmul.f32 %v3438, 1.442695
      %v3468 = vpow.pop %v3467
      %v3469 = vmul.f32 %v3439, 1.442695
      %v3470 = vpow.pop %v3469
      %v3471 = vmul.f32 %v3440, 1.442695
      %v3472 = vpow.pop %v3471
      %3473 = vadd.xlane.f32.xlu0 %v3442
      %v3474 = vpop.xlane.xlu0 %3473
      %3475 = vadd.xlane.f32.xlu0 %v3444
      %v3476 = vpop.xlane.xlu0 %3475
      %3477 = vadd.xlane.f32.xlu0 %v3446
      %v3478 = vpop.xlane.xlu0 %3477
      %3479 = vadd.xlane.f32.xlu0 %v3448
      %v3480 = vpop.xlane.xlu0 %3479
      %3481 = vadd.xlane.f32.xlu0 %v3450
      %v3482 = vpop.xlane.xlu0 %3481
      %3483 = vadd.xlane.f32.xlu0 %v3452
      %v3484 = vpop.xlane.xlu0 %3483
      %3485 = vadd.xlane.f32.xlu0 %v3454
      %v3486 = vpop.xlane.xlu0 %3485
      %3487 = vadd.xlane.f32.xlu0 %v3456
      %v3488 = vpop.xlane.xlu0 %3487
      %3489 = vadd.xlane.f32.xlu0 %v3458
      %v3490 = vpop.xlane.xlu0 %3489
      %3491 = vadd.xlane.f32.xlu0 %v3460
      %v3492 = vpop.xlane.xlu0 %3491
      %3493 = vadd.xlane.f32.xlu0 %v3462
      %v3494 = vpop.xlane.xlu0 %3493
      %3495 = vadd.xlane.f32.xlu0 %v3464
      %v3496 = vpop.xlane.xlu0 %3495
      %3497 = vadd.xlane.f32.xlu0 %v3466
      %v3498 = vpop.xlane.xlu0 %3497
      %3499 = vadd.xlane.f32.xlu0 %v3468
      %v3500 = vpop.xlane.xlu0 %3499
      %3501 = vadd.xlane.f32.xlu0 %v3470
      %v3502 = vpop.xlane.xlu0 %3501
      %3503 = vadd.xlane.f32.xlu0 %v3472
      %v3504 = vpop.xlane.xlu0 %3503
      %v3505 = vrcp.pop %v3474
      %v3506 = vrcp.pop %v3476
      %v3507 = vrcp.pop %v3478
      %v3508 = vrcp.pop %v3480
      %v3509 = vrcp.pop %v3482
      %v3510 = vrcp.pop %v3484
      %v3511 = vrcp.pop %v3486
      %v3512 = vrcp.pop %v3488
      %v3513 = vrcp.pop %v3490
      %v3514 = vrcp.pop %v3492
      %v3515 = vrcp.pop %v3494
      %v3516 = vrcp.pop %v3496
      %v3517 = vrcp.pop %v3498
      %v3518 = vrcp.pop %v3500
      %v3519 = vrcp.pop %v3502
      %v3520 = vrcp.pop %v3504
      %v3521 = vmul.f32 %v3442, %v3505
      %v3522 = vmul.f32 %v3444, %v3506
      %v3523 = vmul.f32 %v3446, %v3507
      %v3524 = vmul.f32 %v3448, %v3508
      %v3525 = vmul.f32 %v3450, %v3509
      %v3526 = vmul.f32 %v3452, %v3510
      %v3527 = vmul.f32 %v3454, %v3511
      %v3528 = vmul.f32 %v3456, %v3512
      %v3529 = vmul.f32 %v3458, %v3513
      %v3530 = vmul.f32 %v3460, %v3514
      %v3531 = vmul.f32 %v3462, %v3515
      %v3532 = vmul.f32 %v3464, %v3516
      %v3533 = vmul.f32 %v3466, %v3517
      %v3534 = vmul.f32 %v3468, %v3518
      %v3535 = vmul.f32 %v3470, %v3519
      %v3536 = vmul.f32 %v3472, %v3520
      %3537 = vrot.lane.b32.xlu0 %v1301, 48
      %v3538 = vpop.permute.xlu0 %3537
      %3539 = vrot.lane.b32.xlu0 %v1306, 48
      %v3540 = vpop.permute.xlu0 %3539
      %3541 = vrot.lane.b32.xlu0 %v1311, 48
      %v3542 = vpop.permute.xlu0 %3541
      %3543 = vrot.lane.b32.xlu0 %v1316, 48
      %v3544 = vpop.permute.xlu0 %3543
      %3545 = vrot.lane.b32.xlu0 %v1321, 48
      %v3546 = vpop.permute.xlu0 %3545
      %3547 = vrot.lane.b32.xlu0 %v1326, 48
      %v3548 = vpop.permute.xlu0 %3547
      %3549 = vrot.lane.b32.xlu0 %v1331, 48
      %v3550 = vpop.permute.xlu0 %3549
      %3551 = vrot.lane.b32.xlu0 %v1336, 48
      %v3552 = vpop.permute.xlu0 %3551
      %3553 = vrot.lane.b32.xlu0 %v1341, 48
      %v3554 = vpop.permute.xlu0 %3553
      %3555 = vrot.lane.b32.xlu0 %v1346, 48
      %v3556 = vpop.permute.xlu0 %3555
      %3557 = vrot.lane.b32.xlu0 %v1351, 48
      %v3558 = vpop.permute.xlu0 %3557
      %3559 = vrot.lane.b32.xlu0 %v1356, 48
      %v3560 = vpop.permute.xlu0 %3559
      %3561 = vrot.lane.b32.xlu0 %v1361, 48
      %v3562 = vpop.permute.xlu0 %3561
      %3563 = vrot.lane.b32.xlu0 %v1366, 48
      %v3564 = vpop.permute.xlu0 %3563
      %3565 = vrot.lane.b32.xlu0 %v1371, 48
      %v3566 = vpop.permute.xlu0 %3565
      %3567 = vrot.lane.b32.xlu0 %v1376, 48
      %v3568 = vpop.permute.xlu0 %3567
      %3585 = vmatprep.subr.mxu0 0.0
      %3586 = vmatpush1.msra.mxu0 %v3538
      %3587 = vmatprep.subr.mxu0 0.0
      %3588 = vmatpush1.msra.mxu0 %v3540
      %3589 = vmatprep.subr.mxu0 0.0
      %3590 = vmatpush1.msra.mxu0 %v3542
      %3591 = vmatprep.subr.mxu0 0.0
      %3592 = vmatpush1.msra.mxu0 %v3544
      %3593 = vmatprep.subr.mxu0 0.0
      %3594 = vmatpush1.msra.mxu0 %v3546
      %3595 = vmatprep.subr.mxu0 0.0
      %3596 = vmatpush1.msra.mxu0 %v3548
      %3597 = vmatprep.subr.mxu0 0.0
      %3598 = vmatpush1.msra.mxu0 %v3550
      %3599 = vmatprep.subr.mxu0 0.0
      %3600 = vmatpush1.msra.mxu0 %v3552
      %3601 = vmatprep.subr.mxu0 0.0
      %3602 = vmatpush1.msra.mxu0 %v3554
      %3603 = vmatprep.subr.mxu0 0.0
      %3604 = vmatpush1.msra.mxu0 %v3556
      %3605 = vmatprep.subr.mxu0 0.0
      %3606 = vmatpush1.msra.mxu0 %v3558
      %3607 = vmatprep.subr.mxu0 0.0
      %3608 = vmatpush1.msra.mxu0 %v3560
      %3609 = vmatprep.subr.mxu0 0.0
      %3610 = vmatpush1.msra.mxu0 %v3562
      %3611 = vmatprep.subr.mxu0 0.0
      %3612 = vmatpush1.msra.mxu0 %v3564
      %3613 = vmatprep.subr.mxu0 0.0
      %3614 = vmatpush1.msra.mxu0 %v3566
      %3615 = vmatprep.subr.mxu0 0.0
      %3616 = vmatpush1.msra.mxu0 %v3568
      %3617 = vmatprep.subr.mxu0 0.0
      %3618 = vmatpush1.msra.mxu0 0.0
      %3619 = vmatprep.subr.mxu0 0.0
      %3620 = vmatpush1.msra.mxu0 0.0
      %3621 = vmatprep.subr.mxu0 0.0
      %3622 = vmatpush1.msra.mxu0 0.0
      %3623 = vmatprep.subr.mxu0 0.0
      %3624 = vmatpush1.msra.mxu0 0.0
      %3625 = vmatprep.subr.mxu0 0.0
      %3626 = vmatpush1.msra.mxu0 0.0
      %3627 = vmatprep.subr.mxu0 0.0
      %3628 = vmatpush1.msra.mxu0 0.0
      %3629 = vmatprep.subr.mxu0 0.0
      %3630 = vmatpush1.msra.mxu0 0.0
      %3631 = vmatprep.subr.mxu0 0.0
      %3632 = vmatpush1.msra.mxu0 0.0
      %3633 = vmatprep.subr.mxu0 0.0
      %3634 = vmatpush1.msra.mxu0 0.0
      %3635 = vmatprep.subr.mxu0 0.0
      %3636 = vmatpush1.msra.mxu0 0.0
      %3637 = vmatprep.subr.mxu0 0.0
      %3638 = vmatpush1.msra.mxu0 0.0
      %3639 = vmatprep.subr.mxu0 0.0
      %3640 = vmatpush1.msra.mxu0 0.0
      %3641 = vmatprep.subr.mxu0 0.0
      %3642 = vmatpush1.msra.mxu0 0.0
      %3643 = vmatprep.subr.mxu0 0.0
      %3644 = vmatpush1.msra.mxu0 0.0
      %3645 = vmatprep.subr.mxu0 0.0
      %3646 = vmatpush1.msra.mxu0 0.0
      %3647 = vmatprep.subr.mxu0 0.0
      %3648 = vmatpush1.msra.mxu0 0.0
      %3649 = vmatprep.mubr.f32.mxu0 0.0
      %3650 = vmatmul.mubr.f32.gmra.mrb[0].mxu0 %v3521
      %v3651 = vpop.f32.mrb[0].mxu0
      %v3652 = vadd.f32 0.0, %v3651
      %v3653 = vpop.f32.mrb[0].mxu0
      %3654 = vmatprep.mubr.f32.mxu0 0.0
      %3655 = vmatmul.mubr.f32.gmra.mrb[0].mxu0 %v3522
      %v3656 = vpop.f32.mrb[0].mxu0
      %v3657 = vadd.f32 0.0, %v3656
      %v3658 = vpop.f32.mrb[0].mxu0
      %3659 = vmatprep.mubr.f32.mxu0 0.0
      %3660 = vmatmul.mubr.f32.gmra.mrb[0].mxu0 %v3523
      %v3661 = vpop.f32.mrb[0].mxu0
      %v3662 = vadd.f32 0.0, %v3661
      %v3663 = vpop.f32.mrb[0].mxu0
      %3664 = vmatprep.mubr.f32.mxu0 0.0
      %3665 = vmatmul.mubr.f32.gmra.mrb[0].mxu0 %v3524
      %v3666 = vpop.f32.mrb[0].mxu0
      %v3667 = vadd.f32 0.0, %v3666
      %v3668 = vpop.f32.mrb[0].mxu0
      %3669 = vmatprep.mubr.f32.mxu0 0.0
      %3670 = vmatmul.mubr.f32.gmra.mrb[0].mxu0 %v3525
      %v3671 = vpop.f32.mrb[0].mxu0
      %v3672 = vadd.f32 0.0, %v3671
      %v3673 = vpop.f32.mrb[0].mxu0
      %3674 = vmatprep.mubr.f32.mxu0 0.0
      %3675 = vmatmul.mubr.f32.gmra.mrb[0].mxu0 %v3526
      %v3676 = vpop.f32.mrb[0].mxu0
      %v3677 = vadd.f32 0.0, %v3676
      %v3678 = vpop.f32.mrb[0].mxu0
      %3679 = vmatprep.mubr.f32.mxu0 0.0
      %3680 = vmatmul.mubr.f32.gmra.mrb[0].mxu0 %v3527
      %v3681 = vpop.f32.mrb[0].mxu0
      %v3682 = vadd.f32 0.0, %v3681
      %v3683 = vpop.f32.mrb[0].mxu0
      %3684 = vmatprep.mubr.f32.mxu0 0.0
      %3685 = vmatmul.mubr.f32.gmra.mrb[0].mxu0 %v3528
      %v3686 = vpop.f32.mrb[0].mxu0
      %v3687 = vadd.f32 0.0, %v3686
      %v3688 = vpop.f32.mrb[0].mxu0
      %3689 = vmatprep.mubr.f32.mxu0 0.0
      %3690 = vmatmul.mubr.f32.gmra.mrb[0].mxu0 %v3529
      %v3691 = vpop.f32.mrb[0].mxu0
      %v3692 = vadd.f32 0.0, %v3691
      %v3693 = vpop.f32.mrb[0].mxu0
      %3694 = vmatprep.mubr.f32.mxu0 0.0
      %3695 = vmatmul.mubr.f32.gmra.mrb[0].mxu0 %v3530
      %v3696 = vpop.f32.mrb[0].mxu0
      %v3697 = vadd.f32 0.0, %v3696
      %v3698 = vpop.f32.mrb[0].mxu0
      %3699 = vmatprep.mubr.f32.mxu0 0.0
      %3700 = vmatmul.mubr.f32.gmra.mrb[0].mxu0 %v3531
      %v3701 = vpop.f32.mrb[0].mxu0
      %v3702 = vadd.f32 0.0, %v3701
      %v3703 = vpop.f32.mrb[0].mxu0
      %3704 = vmatprep.mubr.f32.mxu0 0.0
      %3705 = vmatmul.mubr.f32.gmra.mrb[0].mxu0 %v3532
      %v3706 = vpop.f32.mrb[0].mxu0
      %v3707 = vadd.f32 0.0, %v3706
      %v3708 = vpop.f32.mrb[0].mxu0
      %3709 = vmatprep.mubr.f32.mxu0 0.0
      %3710 = vmatmul.mubr.f32.gmra.mrb[0].mxu0 %v3533
      %v3711 = vpop.f32.mrb[0].mxu0
      %v3712 = vadd.f32 0.0, %v3711
      %v3713 = vpop.f32.mrb[0].mxu0
      %3714 = vmatprep.mubr.f32.mxu0 0.0
      %3715 = vmatmul.mubr.f32.gmra.mrb[0].mxu0 %v3534
      %v3716 = vpop.f32.mrb[0].mxu0
      %v3717 = vadd.f32 0.0, %v3716
      %v3718 = vpop.f32.mrb[0].mxu0
      %3719 = vmatprep.mubr.f32.mxu0 0.0
      %3720 = vmatmul.mubr.f32.gmra.mrb[0].mxu0 %v3535
      %v3721 = vpop.f32.mrb[0].mxu0
      %v3722 = vadd.f32 0.0, %v3721
      %v3723 = vpop.f32.mrb[0].mxu0
      %3724 = vmatprep.mubr.f32.mxu0 0.0
      %3725 = vmatmul.mubr.f32.gmra.mrb[0].mxu0 %v3536
      %v3726 = vpop.f32.mrb[0].mxu0
      %v3727 = vadd.f32 0.0, %v3726
      %v3728 = vpop.f32.mrb[0].mxu0
      %3729 = vdwg.mxu0
      %v3731 = vsel %vm1431, %v3652, 0
      %v3734 = vsel %vm1431, %v3657, 0
      %v3737 = vsel %vm1431, %v3662, 0
      %v3740 = vsel %vm1431, %v3667, 0
      %v3743 = vsel %vm1431, %v3672, 0
      %v3746 = vsel %vm1431, %v3677, 0
      %v3749 = vsel %vm1431, %v3682, 0
      %v3752 = vsel %vm1431, %v3687, 0
      %v3755 = vsel %vm1431, %v3692, 0
      %v3758 = vsel %vm1431, %v3697, 0
      %v3761 = vsel %vm1431, %v3702, 0
      %v3764 = vsel %vm1431, %v3707, 0
      %v3767 = vsel %vm1431, %v3712, 0
      %v3770 = vsel %vm1431, %v3717, 0
      %v3773 = vsel %vm1431, %v3722, 0
      %v3776 = vsel %vm1431, %v3727, 0
      %3778 = vmatprep.subr.mxu0 0.0
      %3779 = vmatpush1.msra.mxu0 %v1381
      %3780 = vmatprep.subr.mxu0 0.0
      %3781 = vmatpush1.msra.mxu0 0.0
      %3782 = vmatprep.subr.mxu0 0.0
      %3783 = vmatpush1.msra.mxu0 0.0
      %3784 = vmatprep.subr.mxu0 0.0
      %3785 = vmatpush1.msra.mxu0 0.0
      %3786 = vmatprep.subr.mxu0 0.0
      %3787 = vmatpush1.msra.mxu0 0.0
      %3788 = vmatprep.subr.mxu0 0.0
      %3789 = vmatpush1.msra.mxu0 0.0
      %3790 = vmatprep.subr.mxu0 0.0
      %3791 = vmatpush1.msra.mxu0 0.0
      %3792 = vmatprep.subr.mxu0 0.0
      %3793 = vmatpush1.msra.mxu0 0.0
      %3794 = vmatprep.subr.mxu0 0.0
      %3795 = vmatpush1.msra.mxu0 0.0
      %3796 = vmatprep.subr.mxu0 0.0
      %3797 = vmatpush1.msra.mxu0 0.0
      %3798 = vmatprep.subr.mxu0 0.0
      %3799 = vmatpush1.msra.mxu0 0.0
      %3800 = vmatprep.subr.mxu0 0.0
      %3801 = vmatpush1.msra.mxu0 0.0
      %3802 = vmatprep.subr.mxu0 0.0
      %3803 = vmatpush1.msra.mxu0 0.0
      %3804 = vmatprep.subr.mxu0 0.0
      %3805 = vmatpush1.msra.mxu0 0.0
      %3806 = vmatprep.subr.mxu0 0.0
      %3807 = vmatpush1.msra.mxu0 0.0
      %3808 = vmatprep.subr.mxu0 0.0
      %3809 = vmatpush1.msra.mxu0 0.0
      %3810 = vmatprep.subr.mxu0 0.0
      %3811 = vmatpush1.msra.mxu0 0.0
      %3812 = vmatprep.subr.mxu0 0.0
      %3813 = vmatpush1.msra.mxu0 0.0
      %3814 = vmatprep.subr.mxu0 0.0
      %3815 = vmatpush1.msra.mxu0 0.0
      %3816 = vmatprep.subr.mxu0 0.0
      %3817 = vmatpush1.msra.mxu0 0.0
      %3818 = vmatprep.subr.mxu0 0.0
      %3819 = vmatpush1.msra.mxu0 0.0
      %3820 = vmatprep.subr.mxu0 0.0
      %3821 = vmatpush1.msra.mxu0 0.0
      %3822 = vmatprep.subr.mxu0 0.0
      %3823 = vmatpush1.msra.mxu0 0.0
      %3824 = vmatprep.subr.mxu0 0.0
      %3825 = vmatpush1.msra.mxu0 0.0
      %3826 = vmatprep.subr.mxu0 0.0
      %3827 = vmatpush1.msra.mxu0 0.0
      %3828 = vmatprep.subr.mxu0 0.0
      %3829 = vmatpush1.msra.mxu0 0.0
      %3830 = vmatprep.subr.mxu0 0.0
      %3831 = vmatpush1.msra.mxu0 0.0
      %3832 = vmatprep.subr.mxu0 0.0
      %3833 = vmatpush1.msra.mxu0 0.0
      %3834 = vmatprep.subr.mxu0 0.0
      %3835 = vmatpush1.msra.mxu0 0.0
      %3836 = vmatprep.subr.mxu0 0.0
      %3837 = vmatpush1.msra.mxu0 0.0
      %3838 = vmatprep.subr.mxu0 0.0
      %3839 = vmatpush1.msra.mxu0 0.0
      %3840 = vmatprep.subr.mxu0 0.0
      %3841 = vmatpush1.msra.mxu0 0.0
      %3842 = vmatprep.mubr.f32.mxu0 0.0
      %3843 = vmatmul.mubr.f32.gmra.mrb[0].mxu0 %v3731
      %v3844 = vpop.f32.mrb[0].mxu0
      %v3845 = vadd.f32 0.0, %v3844
      %v3846 = vpop.f32.mrb[0].mxu0
      %3847 = vmatprep.mubr.f32.mxu0 0.0
      %3848 = vmatmul.mubr.f32.gmra.mrb[0].mxu0 %v3734
      %v3849 = vpop.f32.mrb[0].mxu0
      %v3850 = vadd.f32 0.0, %v3849
      %v3851 = vpop.f32.mrb[0].mxu0
      %3852 = vmatprep.mubr.f32.mxu0 0.0
      %3853 = vmatmul.mubr.f32.gmra.mrb[0].mxu0 %v3737
      %v3854 = vpop.f32.mrb[0].mxu0
      %v3855 = vadd.f32 0.0, %v3854
      %v3856 = vpop.f32.mrb[0].mxu0
      %3857 = vmatprep.mubr.f32.mxu0 0.0
      %3858 = vmatmul.mubr.f32.gmra.mrb[0].mxu0 %v3740
      %v3859 = vpop.f32.mrb[0].mxu0
      %v3860 = vadd.f32 0.0, %v3859
      %v3861 = vpop.f32.mrb[0].mxu0
      %3862 = vmatprep.mubr.f32.mxu0 0.0
      %3863 = vmatmul.mubr.f32.gmra.mrb[0].mxu0 %v3743
      %v3864 = vpop.f32.mrb[0].mxu0
      %v3865 = vadd.f32 0.0, %v3864
      %v3866 = vpop.f32.mrb[0].mxu0
      %3867 = vmatprep.mubr.f32.mxu0 0.0
      %3868 = vmatmul.mubr.f32.gmra.mrb[0].mxu0 %v3746
      %v3869 = vpop.f32.mrb[0].mxu0
      %v3870 = vadd.f32 0.0, %v3869
      %v3871 = vpop.f32.mrb[0].mxu0
      %3872 = vmatprep.mubr.f32.mxu0 0.0
      %3873 = vmatmul.mubr.f32.gmra.mrb[0].mxu0 %v3749
      %v3874 = vpop.f32.mrb[0].mxu0
      %v3875 = vadd.f32 0.0, %v3874
      %v3876 = vpop.f32.mrb[0].mxu0
      %3877 = vmatprep.mubr.f32.mxu0 0.0
      %3878 = vmatmul.mubr.f32.gmra.mrb[0].mxu0 %v3752
      %v3879 = vpop.f32.mrb[0].mxu0
      %v3880 = vadd.f32 0.0, %v3879
      %v3881 = vpop.f32.mrb[0].mxu0
      %3882 = vmatprep.mubr.f32.mxu0 0.0
      %3883 = vmatmul.mubr.f32.gmra.mrb[0].mxu0 %v3755
      %v3884 = vpop.f32.mrb[0].mxu0
      %v3885 = vadd.f32 0.0, %v3884
      %v3886 = vpop.f32.mrb[0].mxu0
      %3887 = vmatprep.mubr.f32.mxu0 0.0
      %3888 = vmatmul.mubr.f32.gmra.mrb[0].mxu0 %v3758
      %v3889 = vpop.f32.mrb[0].mxu0
      %v3890 = vadd.f32 0.0, %v3889
      %v3891 = vpop.f32.mrb[0].mxu0
      %3892 = vmatprep.mubr.f32.mxu0 0.0
      %3893 = vmatmul.mubr.f32.gmra.mrb[0].mxu0 %v3761
      %v3894 = vpop.f32.mrb[0].mxu0
      %v3895 = vadd.f32 0.0, %v3894
      %v3896 = vpop.f32.mrb[0].mxu0
      %3897 = vmatprep.mubr.f32.mxu0 0.0
      %3898 = vmatmul.mubr.f32.gmra.mrb[0].mxu0 %v3764
      %v3899 = vpop.f32.mrb[0].mxu0
      %v3900 = vadd.f32 0.0, %v3899
      %v3901 = vpop.f32.mrb[0].mxu0
      %3902 = vmatprep.mubr.f32.mxu0 0.0
      %3903 = vmatmul.mubr.f32.gmra.mrb[0].mxu0 %v3767
      %v3904 = vpop.f32.mrb[0].mxu0
      %v3905 = vadd.f32 0.0, %v3904
      %v3906 = vpop.f32.mrb[0].mxu0
      %3907 = vmatprep.mubr.f32.mxu0 0.0
      %3908 = vmatmul.mubr.f32.gmra.mrb[0].mxu0 %v3770
      %v3909 = vpop.f32.mrb[0].mxu0
      %v3910 = vadd.f32 0.0, %v3909
      %v3911 = vpop.f32.mrb[0].mxu0
      %3912 = vmatprep.mubr.f32.mxu0 0.0
      %3913 = vmatmul.mubr.f32.gmra.mrb[0].mxu0 %v3773
      %v3914 = vpop.f32.mrb[0].mxu0
      %v3915 = vadd.f32 0.0, %v3914
      %v3916 = vpop.f32.mrb[0].mxu0
      %3917 = vmatprep.mubr.f32.mxu0 0.0
      %3918 = vmatmul.mubr.f32.gmra.mrb[0].mxu0 %v3776
      %v3919 = vpop.f32.mrb[0].mxu0
      %v3920 = vadd.f32 0.0, %v3919
      %v3921 = vpop.f32.mrb[0].mxu0
      %3922 = vdwg.mxu0
      %v3923 = vadd.f32 %v2993, %v3845
      %v3924 = vadd.f32 %v2998, %v3850
      %v3925 = vadd.f32 %v3003, %v3855
      %v3926 = vadd.f32 %v3008, %v3860
      %v3927 = vadd.f32 %v3013, %v3865
      %v3928 = vadd.f32 %v3018, %v3870
      %v3929 = vadd.f32 %v3023, %v3875
      %v3930 = vadd.f32 %v3028, %v3880
      %v3931 = vadd.f32 %v3033, %v3885
      %v3932 = vadd.f32 %v3038, %v3890
      %v3933 = vadd.f32 %v3043, %v3895
      %v3934 = vadd.f32 %v3048, %v3900
      %v3935 = vadd.f32 %v3053, %v3905
      %v3936 = vadd.f32 %v3058, %v3910
      %v3937 = vadd.f32 %v3063, %v3915
      %v3938 = vadd.f32 %v3068, %v3920
      %3939 = vrot.lane.b32.xlu0 %v1301, 104
      %v3940 = vpop.permute.xlu0 %3939
      %3941 = vrot.lane.b32.xlu0 %v1306, 104
      %v3942 = vpop.permute.xlu0 %3941
      %3943 = vrot.lane.b32.xlu0 %v1311, 104
      %v3944 = vpop.permute.xlu0 %3943
      %3945 = vrot.lane.b32.xlu0 %v1316, 104
      %v3946 = vpop.permute.xlu0 %3945
      %3947 = vrot.lane.b32.xlu0 %v1321, 104
      %v3948 = vpop.permute.xlu0 %3947
      %3949 = vrot.lane.b32.xlu0 %v1326, 104
      %v3950 = vpop.permute.xlu0 %3949
      %3951 = vrot.lane.b32.xlu0 %v1331, 104
      %v3952 = vpop.permute.xlu0 %3951
      %3953 = vrot.lane.b32.xlu0 %v1336, 104
      %v3954 = vpop.permute.xlu0 %3953
      %3955 = vrot.lane.b32.xlu0 %v1341, 104
      %v3956 = vpop.permute.xlu0 %3955
      %3957 = vrot.lane.b32.xlu0 %v1346, 104
      %v3958 = vpop.permute.xlu0 %3957
      %3959 = vrot.lane.b32.xlu0 %v1351, 104
      %v3960 = vpop.permute.xlu0 %3959
      %3961 = vrot.lane.b32.xlu0 %v1356, 104
      %v3962 = vpop.permute.xlu0 %3961
      %3963 = vrot.lane.b32.xlu0 %v1361, 104
      %v3964 = vpop.permute.xlu0 %3963
      %3965 = vrot.lane.b32.xlu0 %v1366, 104
      %v3966 = vpop.permute.xlu0 %3965
      %3967 = vrot.lane.b32.xlu0 %v1371, 104
      %v3968 = vpop.permute.xlu0 %3967
      %3969 = vrot.lane.b32.xlu0 %v1376, 104
      %v3970 = vpop.permute.xlu0 %3969
      %3971 = vrot.lane.b32.xlu0 %v1301, 72
      %v3972 = vpop.permute.xlu0 %3971
      %3973 = vrot.lane.b32.xlu0 %v1306, 72
      %v3974 = vpop.permute.xlu0 %3973
      %3975 = vrot.lane.b32.xlu0 %v1311, 72
      %v3976 = vpop.permute.xlu0 %3975
      %3977 = vrot.lane.b32.xlu0 %v1316, 72
      %v3978 = vpop.permute.xlu0 %3977
      %3979 = vrot.lane.b32.xlu0 %v1321, 72
      %v3980 = vpop.permute.xlu0 %3979
      %3981 = vrot.lane.b32.xlu0 %v1326, 72
      %v3982 = vpop.permute.xlu0 %3981
      %3983 = vrot.lane.b32.xlu0 %v1331, 72
      %v3984 = vpop.permute.xlu0 %3983
      %3985 = vrot.lane.b32.xlu0 %v1336, 72
      %v3986 = vpop.permute.xlu0 %3985
      %3987 = vrot.lane.b32.xlu0 %v1341, 72
      %v3988 = vpop.permute.xlu0 %3987
      %3989 = vrot.lane.b32.xlu0 %v1346, 72
      %v3990 = vpop.permute.xlu0 %3989
      %3991 = vrot.lane.b32.xlu0 %v1351, 72
      %v3992 = vpop.permute.xlu0 %3991
      %3993 = vrot.lane.b32.xlu0 %v1356, 72
      %v3994 = vpop.permute.xlu0 %3993
      %3995 = vrot.lane.b32.xlu0 %v1361, 72
      %v3996 = vpop.permute.xlu0 %3995
      %3997 = vrot.lane.b32.xlu0 %v1366, 72
      %v3998 = vpop.permute.xlu0 %3997
      %3999 = vrot.lane.b32.xlu0 %v1371, 72
      %v4000 = vpop.permute.xlu0 %3999
      %4001 = vrot.lane.b32.xlu0 %v1376, 72
      %v4002 = vpop.permute.xlu0 %4001
      %v4003 = vsel %vm1431, %v3940, 0
      %v4005 = vsel %vm1431, %v3942, 0
      %v4007 = vsel %vm1431, %v3944, 0
      %v4009 = vsel %vm1431, %v3946, 0
      %v4011 = vsel %vm1431, %v3948, 0
      %v4013 = vsel %vm1431, %v3950, 0
      %v4015 = vsel %vm1431, %v3952, 0
      %v4017 = vsel %vm1431, %v3954, 0
      %v4019 = vsel %vm1431, %v3956, 0
      %v4021 = vsel %vm1431, %v3958, 0
      %v4023 = vsel %vm1431, %v3960, 0
      %v4025 = vsel %vm1431, %v3962, 0
      %v4027 = vsel %vm1431, %v3964, 0
      %v4029 = vsel %vm1431, %v3966, 0
      %v4031 = vsel %vm1431, %v3968, 0
      %v4033 = vsel %vm1431, %v3970, 0
      %v4035 = vsel %vm1431, %v3972, 0
      %v4037 = vsel %vm1431, %v3974, 0
      %v4039 = vsel %vm1431, %v3976, 0
      %v4041 = vsel %vm1431, %v3978, 0
      %v4043 = vsel %vm1431, %v3980, 0
      %v4045 = vsel %vm1431, %v3982, 0
      %v4047 = vsel %vm1431, %v3984, 0
      %v4049 = vsel %vm1431, %v3986, 0
      %v4051 = vsel %vm1431, %v3988, 0
      %v4053 = vsel %vm1431, %v3990, 0
      %v4055 = vsel %vm1431, %v3992, 0
      %v4057 = vsel %vm1431, %v3994, 0
      %v4059 = vsel %vm1431, %v3996, 0
      %v4061 = vsel %vm1431, %v3998, 0
      %v4063 = vsel %vm1431, %v4000, 0
      %v4065 = vsel %vm1431, %v4002, 0
      %4067 = vmatprep.subr.mxu0 0.0
      %4068 = vmatpush1.xpose.msra.mxu0 %v4035
      %4069 = vmatprep.subr.mxu0 0.0
      %4070 = vmatpush1.xpose.msra.mxu0 %v4037
      %4071 = vmatprep.subr.mxu0 0.0
      %4072 = vmatpush1.xpose.msra.mxu0 %v4039
      %4073 = vmatprep.subr.mxu0 0.0
      %4074 = vmatpush1.xpose.msra.mxu0 %v4041
      %4075 = vmatprep.subr.mxu0 0.0
      %4076 = vmatpush1.xpose.msra.mxu0 %v4043
      %4077 = vmatprep.subr.mxu0 0.0
      %4078 = vmatpush1.xpose.msra.mxu0 %v4045
      %4079 = vmatprep.subr.mxu0 0.0
      %4080 = vmatpush1.xpose.msra.mxu0 %v4047
      %4081 = vmatprep.subr.mxu0 0.0
      %4082 = vmatpush1.xpose.msra.mxu0 %v4049
      %4083 = vmatprep.subr.mxu0 0.0
      %4084 = vmatpush1.xpose.msra.mxu0 %v4051
      %4085 = vmatprep.subr.mxu0 0.0
      %4086 = vmatpush1.xpose.msra.mxu0 %v4053
      %4087 = vmatprep.subr.mxu0 0.0
      %4088 = vmatpush1.xpose.msra.mxu0 %v4055
      %4089 = vmatprep.subr.mxu0 0.0
      %4090 = vmatpush1.xpose.msra.mxu0 %v4057
      %4091 = vmatprep.subr.mxu0 0.0
      %4092 = vmatpush1.xpose.msra.mxu0 %v4059
      %4093 = vmatprep.subr.mxu0 0.0
      %4094 = vmatpush1.xpose.msra.mxu0 %v4061
      %4095 = vmatprep.subr.mxu0 0.0
      %4096 = vmatpush1.xpose.msra.mxu0 %v4063
      %4097 = vmatprep.subr.mxu0 0.0
      %4098 = vmatpush1.xpose.msra.mxu0 %v4065
      %4099 = vmatprep.subr.mxu0 0.0
      %4100 = vmatpush1.xpose.msra.mxu0 0.0
      %4101 = vmatprep.subr.mxu0 0.0
      %4102 = vmatpush1.xpose.msra.mxu0 0.0
      %4103 = vmatprep.subr.mxu0 0.0
      %4104 = vmatpush1.xpose.msra.mxu0 0.0
      %4105 = vmatprep.subr.mxu0 0.0
      %4106 = vmatpush1.xpose.msra.mxu0 0.0
      %4107 = vmatprep.subr.mxu0 0.0
      %4108 = vmatpush1.xpose.msra.mxu0 0.0
      %4109 = vmatprep.subr.mxu0 0.0
      %4110 = vmatpush1.xpose.msra.mxu0 0.0
      %4111 = vmatprep.subr.mxu0 0.0
      %4112 = vmatpush1.xpose.msra.mxu0 0.0
      %4113 = vmatprep.subr.mxu0 0.0
      %4114 = vmatpush1.xpose.msra.mxu0 0.0
      %4115 = vmatprep.subr.mxu0 0.0
      %4116 = vmatpush1.xpose.msra.mxu0 0.0
      %4117 = vmatprep.subr.mxu0 0.0
      %4118 = vmatpush1.xpose.msra.mxu0 0.0
      %4119 = vmatprep.subr.mxu0 0.0
      %4120 = vmatpush1.xpose.msra.mxu0 0.0
      %4121 = vmatprep.subr.mxu0 0.0
      %4122 = vmatpush1.xpose.msra.mxu0 0.0
      %4123 = vmatprep.subr.mxu0 0.0
      %4124 = vmatpush1.xpose.msra.mxu0 0.0
      %4125 = vmatprep.subr.mxu0 0.0
      %4126 = vmatpush1.xpose.msra.mxu0 0.0
      %4127 = vmatprep.subr.mxu0 0.0
      %4128 = vmatpush1.xpose.msra.mxu0 0.0
      %4129 = vmatprep.subr.mxu0 0.0
      %4130 = vmatpush1.xpose.msra.mxu0 0.0
      %4131 = vmatprep.mubr.f32.mxu0 0.0
      %4132 = vmatmul.mubr.f32.gmra.mrb[0].mxu0 %v4003
      %v4133 = vpop.f32.mrb[0].mxu0
      %v4134 = vadd.f32 0.0, %v4133
      %v4135 = vpop.f32.mrb[0].mxu0
      %4136 = vmatprep.mubr.f32.mxu0 0.0
      %4137 = vmatmul.mubr.f32.gmra.mrb[0].mxu0 %v4005
      %v4138 = vpop.f32.mrb[0].mxu0
      %v4139 = vadd.f32 0.0, %v4138
      %v4140 = vpop.f32.mrb[0].mxu0
      %4141 = vmatprep.mubr.f32.mxu0 0.0
      %4142 = vmatmul.mubr.f32.gmra.mrb[0].mxu0 %v4007
      %v4143 = vpop.f32.mrb[0].mxu0
      %v4144 = vadd.f32 0.0, %v4143
      %v4145 = vpop.f32.mrb[0].mxu0
      %4146 = vmatprep.mubr.f32.mxu0 0.0
      %4147 = vmatmul.mubr.f32.gmra.mrb[0].mxu0 %v4009
      %v4148 = vpop.f32.mrb[0].mxu0
      %v4149 = vadd.f32 0.0, %v4148
      %v4150 = vpop.f32.mrb[0].mxu0
      %4151 = vmatprep.mubr.f32.mxu0 0.0
      %4152 = vmatmul.mubr.f32.gmra.mrb[0].mxu0 %v4011
      %v4153 = vpop.f32.mrb[0].mxu0
      %v4154 = vadd.f32 0.0, %v4153
      %v4155 = vpop.f32.mrb[0].mxu0
      %4156 = vmatprep.mubr.f32.mxu0 0.0
      %4157 = vmatmul.mubr.f32.gmra.mrb[0].mxu0 %v4013
      %v4158 = vpop.f32.mrb[0].mxu0
      %v4159 = vadd.f32 0.0, %v4158
      %v4160 = vpop.f32.mrb[0].mxu0
      %4161 = vmatprep.mubr.f32.mxu0 0.0
      %4162 = vmatmul.mubr.f32.gmra.mrb[0].mxu0 %v4015
      %v4163 = vpop.f32.mrb[0].mxu0
      %v4164 = vadd.f32 0.0, %v4163
      %v4165 = vpop.f32.mrb[0].mxu0
      %4166 = vmatprep.mubr.f32.mxu0 0.0
      %4167 = vmatmul.mubr.f32.gmra.mrb[0].mxu0 %v4017
      %v4168 = vpop.f32.mrb[0].mxu0
      %v4169 = vadd.f32 0.0, %v4168
      %v4170 = vpop.f32.mrb[0].mxu0
      %4171 = vmatprep.mubr.f32.mxu0 0.0
      %4172 = vmatmul.mubr.f32.gmra.mrb[0].mxu0 %v4019
      %v4173 = vpop.f32.mrb[0].mxu0
      %v4174 = vadd.f32 0.0, %v4173
      %v4175 = vpop.f32.mrb[0].mxu0
      %4176 = vmatprep.mubr.f32.mxu0 0.0
      %4177 = vmatmul.mubr.f32.gmra.mrb[0].mxu0 %v4021
      %v4178 = vpop.f32.mrb[0].mxu0
      %v4179 = vadd.f32 0.0, %v4178
      %v4180 = vpop.f32.mrb[0].mxu0
      %4181 = vmatprep.mubr.f32.mxu0 0.0
      %4182 = vmatmul.mubr.f32.gmra.mrb[0].mxu0 %v4023
      %v4183 = vpop.f32.mrb[0].mxu0
      %v4184 = vadd.f32 0.0, %v4183
      %v4185 = vpop.f32.mrb[0].mxu0
      %4186 = vmatprep.mubr.f32.mxu0 0.0
      %4187 = vmatmul.mubr.f32.gmra.mrb[0].mxu0 %v4025
      %v4188 = vpop.f32.mrb[0].mxu0
      %v4189 = vadd.f32 0.0, %v4188
      %v4190 = vpop.f32.mrb[0].mxu0
      %4191 = vmatprep.mubr.f32.mxu0 0.0
      %4192 = vmatmul.mubr.f32.gmra.mrb[0].mxu0 %v4027
      %v4193 = vpop.f32.mrb[0].mxu0
      %v4194 = vadd.f32 0.0, %v4193
      %v4195 = vpop.f32.mrb[0].mxu0
      %4196 = vmatprep.mubr.f32.mxu0 0.0
      %4197 = vmatmul.mubr.f32.gmra.mrb[0].mxu0 %v4029
      %v4198 = vpop.f32.mrb[0].mxu0
      %v4199 = vadd.f32 0.0, %v4198
      %v4200 = vpop.f32.mrb[0].mxu0
      %4201 = vmatprep.mubr.f32.mxu0 0.0
      %4202 = vmatmul.mubr.f32.gmra.mrb[0].mxu0 %v4031
      %v4203 = vpop.f32.mrb[0].mxu0
      %v4204 = vadd.f32 0.0, %v4203
      %v4205 = vpop.f32.mrb[0].mxu0
      %4206 = vmatprep.mubr.f32.mxu0 0.0
      %4207 = vmatmul.mubr.f32.gmra.mrb[0].mxu0 %v4033
      %v4208 = vpop.f32.mrb[0].mxu0
      %v4209 = vadd.f32 0.0, %v4208
      %v4210 = vpop.f32.mrb[0].mxu0
      %4211 = vdwg.mxu0
      %v4212 = vmul.f32 %v4134, 0.35355338
      %v4213 = vmul.f32 %v4139, 0.35355338
      %v4214 = vmul.f32 %v4144, 0.35355338
      %v4215 = vmul.f32 %v4149, 0.35355338
      %v4216 = vmul.f32 %v4154, 0.35355338
      %v4217 = vmul.f32 %v4159, 0.35355338
      %v4218 = vmul.f32 %v4164, 0.35355338
      %v4219 = vmul.f32 %v4169, 0.35355338
      %v4220 = vmul.f32 %v4174, 0.35355338
      %v4221 = vmul.f32 %v4179, 0.35355338
      %v4222 = vmul.f32 %v4184, 0.35355338
      %v4223 = vmul.f32 %v4189, 0.35355338
      %v4224 = vmul.f32 %v4194, 0.35355338
      %v4225 = vmul.f32 %v4199, 0.35355338
      %v4226 = vmul.f32 %v4204, 0.35355338
      %v4227 = vmul.f32 %v4209, 0.35355338
      %s4228 = scalar_lea.vmem [#allocation2], 384
      %4229 = vst [vmem:[%s4228] sm:$0xff] %v4212
      %4230 = vst [vmem:[%s4228 + $0x8] sm:$0xff] %v4213
      %4231 = vst [vmem:[%s4228 + $0x10] sm:$0xff] %v4214
      %4232 = vst [vmem:[%s4228 + $0x18] sm:$0xff] %v4215
      %4233 = vst [vmem:[%s4228 + $0x20] sm:$0xff] %v4216
      %4234 = vst [vmem:[%s4228 + $0x28] sm:$0xff] %v4217
      %4235 = vst [vmem:[%s4228 + $0x30] sm:$0xff] %v4218
      %4236 = vst [vmem:[%s4228 + $0x38] sm:$0xff] %v4219
      %4237 = vst [vmem:[%s4228 + $0x40] sm:$0xff] %v4220
      %4238 = vst [vmem:[%s4228 + $0x48] sm:$0xff] %v4221
      %4239 = vst [vmem:[%s4228 + $0x50] sm:$0xff] %v4222
      %4240 = vst [vmem:[%s4228 + $0x58] sm:$0xff] %v4223
      %4241 = vst [vmem:[%s4228 + $0x60] sm:$0xff] %v4224
      %4242 = vst [vmem:[%s4228 + $0x68] sm:$0xff] %v4225
      %4243 = vst [vmem:[%s4228 + $0x70] sm:$0xff] %v4226
      %4244 = vst [vmem:[%s4228 + $0x78] sm:$0xff] %v4227
      %v4245 = vadd.f32 %v4212, %v1158
      %v4246 = vadd.f32 %v4213, %v1159
      %v4247 = vadd.f32 %v4214, %v1160
      %v4248 = vadd.f32 %v4215, %v1161
      %v4249 = vadd.f32 %v4216, %v1162
      %v4250 = vadd.f32 %v4217, %v1163
      %v4251 = vadd.f32 %v4218, %v1164
      %v4252 = vadd.f32 %v4219, %v1165
      %v4253 = vadd.f32 %v4220, %v1166
      %v4254 = vadd.f32 %v4221, %v1167
      %v4255 = vadd.f32 %v4222, %v1168
      %v4256 = vadd.f32 %v4223, %v1169
      %v4257 = vadd.f32 %v4224, %v1170
      %v4258 = vadd.f32 %v4225, %v1171
      %v4259 = vadd.f32 %v4226, %v1172
      %v4260 = vadd.f32 %v4227, %v1173
      %4261 = vmax.xlane.f32.xlu0 %v4245
      %v4262 = vpop.xlane.xlu0 %4261
      %4263 = vmax.xlane.f32.xlu0 %v4246
      %v4264 = vpop.xlane.xlu0 %4263
      %4265 = vmax.xlane.f32.xlu0 %v4247
      %v4266 = vpop.xlane.xlu0 %4265
      %4267 = vmax.xlane.f32.xlu0 %v4248
      %v4268 = vpop.xlane.xlu0 %4267
      %4269 = vmax.xlane.f32.xlu0 %v4249
      %v4270 = vpop.xlane.xlu0 %4269
      %4271 = vmax.xlane.f32.xlu0 %v4250
      %v4272 = vpop.xlane.xlu0 %4271
      %4273 = vmax.xlane.f32.xlu0 %v4251
      %v4274 = vpop.xlane.xlu0 %4273
      %4275 = vmax.xlane.f32.xlu0 %v4252
      %v4276 = vpop.xlane.xlu0 %4275
      %4277 = vmax.xlane.f32.xlu0 %v4253
      %v4278 = vpop.xlane.xlu0 %4277
      %4279 = vmax.xlane.f32.xlu0 %v4254
      %v4280 = vpop.xlane.xlu0 %4279
      %4281 = vmax.xlane.f32.xlu0 %v4255
      %v4282 = vpop.xlane.xlu0 %4281
      %4283 = vmax.xlane.f32.xlu0 %v4256
      %v4284 = vpop.xlane.xlu0 %4283
      %4285 = vmax.xlane.f32.xlu0 %v4257
      %v4286 = vpop.xlane.xlu0 %4285
      %4287 = vmax.xlane.f32.xlu0 %v4258
      %v4288 = vpop.xlane.xlu0 %4287
      %4289 = vmax.xlane.f32.xlu0 %v4259
      %v4290 = vpop.xlane.xlu0 %4289
      %4291 = vmax.xlane.f32.xlu0 %v4260
      %v4292 = vpop.xlane.xlu0 %4291
      %v4293 = vsub.f32 %v4245, %v4262
      %v4294 = vsub.f32 %v4246, %v4264
      %v4295 = vsub.f32 %v4247, %v4266
      %v4296 = vsub.f32 %v4248, %v4268
      %v4297 = vsub.f32 %v4249, %v4270
      %v4298 = vsub.f32 %v4250, %v4272
      %v4299 = vsub.f32 %v4251, %v4274
      %v4300 = vsub.f32 %v4252, %v4276
      %v4301 = vsub.f32 %v4253, %v4278
      %v4302 = vsub.f32 %v4254, %v4280
      %v4303 = vsub.f32 %v4255, %v4282
      %v4304 = vsub.f32 %v4256, %v4284
      %v4305 = vsub.f32 %v4257, %v4286
      %v4306 = vsub.f32 %v4258, %v4288
      %v4307 = vsub.f32 %v4259, %v4290
      %v4308 = vsub.f32 %v4260, %v4292
      %v4309 = vmul.f32 %v4293, 1.442695
      %v4310 = vpow.pop %v4309
      %v4311 = vmul.f32 %v4294, 1.442695
      %v4312 = vpow.pop %v4311
      %v4313 = vmul.f32 %v4295, 1.442695
      %v4314 = vpow.pop %v4313
      %v4315 = vmul.f32 %v4296, 1.442695
      %v4316 = vpow.pop %v4315
      %v4317 = vmul.f32 %v4297, 1.442695
      %v4318 = vpow.pop %v4317
      %v4319 = vmul.f32 %v4298, 1.442695
      %v4320 = vpow.pop %v4319
      %v4321 = vmul.f32 %v4299, 1.442695
      %v4322 = vpow.pop %v4321
      %v4323 = vmul.f32 %v4300, 1.442695
      %v4324 = vpow.pop %v4323
      %v4325 = vmul.f32 %v4301, 1.442695
      %v4326 = vpow.pop %v4325
      %v4327 = vmul.f32 %v4302, 1.442695
      %v4328 = vpow.pop %v4327
      %v4329 = vmul.f32 %v4303, 1.442695
      %v4330 = vpow.pop %v4329
      %v4331 = vmul.f32 %v4304, 1.442695
      %v4332 = vpow.pop %v4331
      %v4333 = vmul.f32 %v4305, 1.442695
      %v4334 = vpow.pop %v4333
      %v4335 = vmul.f32 %v4306, 1.442695
      %v4336 = vpow.pop %v4335
      %v4337 = vmul.f32 %v4307, 1.442695
      %v4338 = vpow.pop %v4337
      %v4339 = vmul.f32 %v4308, 1.442695
      %v4340 = vpow.pop %v4339
      %4341 = vadd.xlane.f32.xlu0 %v4310
      %v4342 = vpop.xlane.xlu0 %4341
      %4343 = vadd.xlane.f32.xlu0 %v4312
      %v4344 = vpop.xlane.xlu0 %4343
      %4345 = vadd.xlane.f32.xlu0 %v4314
      %v4346 = vpop.xlane.xlu0 %4345
      %4347 = vadd.xlane.f32.xlu0 %v4316
      %v4348 = vpop.xlane.xlu0 %4347
      %4349 = vadd.xlane.f32.xlu0 %v4318
      %v4350 = vpop.xlane.xlu0 %4349
      %4351 = vadd.xlane.f32.xlu0 %v4320
      %v4352 = vpop.xlane.xlu0 %4351
      %4353 = vadd.xlane.f32.xlu0 %v4322
      %v4354 = vpop.xlane.xlu0 %4353
      %4355 = vadd.xlane.f32.xlu0 %v4324
      %v4356 = vpop.xlane.xlu0 %4355
      %4357 = vadd.xlane.f32.xlu0 %v4326
      %v4358 = vpop.xlane.xlu0 %4357
      %4359 = vadd.xlane.f32.xlu0 %v4328
      %v4360 = vpop.xlane.xlu0 %4359
      %4361 = vadd.xlane.f32.xlu0 %v4330
      %v4362 = vpop.xlane.xlu0 %4361
      %4363 = vadd.xlane.f32.xlu0 %v4332
      %v4364 = vpop.xlane.xlu0 %4363
      %4365 = vadd.xlane.f32.xlu0 %v4334
      %v4366 = vpop.xlane.xlu0 %4365
      %4367 = vadd.xlane.f32.xlu0 %v4336
      %v4368 = vpop.xlane.xlu0 %4367
      %4369 = vadd.xlane.f32.xlu0 %v4338
      %v4370 = vpop.xlane.xlu0 %4369
      %4371 = vadd.xlane.f32.xlu0 %v4340
      %v4372 = vpop.xlane.xlu0 %4371
      %v4373 = vrcp.pop %v4342
      %v4374 = vrcp.pop %v4344
      %v4375 = vrcp.pop %v4346
      %v4376 = vrcp.pop %v4348
      %v4377 = vrcp.pop %v4350
      %v4378 = vrcp.pop %v4352
      %v4379 = vrcp.pop %v4354
      %v4380 = vrcp.pop %v4356
      %v4381 = vrcp.pop %v4358
      %v4382 = vrcp.pop %v4360
      %v4383 = vrcp.pop %v4362
      %v4384 = vrcp.pop %v4364
      %v4385 = vrcp.pop %v4366
      %v4386 = vrcp.pop %v4368
      %v4387 = vrcp.pop %v4370
      %v4388 = vrcp.pop %v4372
      %v4389 = vmul.f32 %v4310, %v4373
      %v4390 = vmul.f32 %v4312, %v4374
      %v4391 = vmul.f32 %v4314, %v4375
      %v4392 = vmul.f32 %v4316, %v4376
      %v4393 = vmul.f32 %v4318, %v4377
      %v4394 = vmul.f32 %v4320, %v4378
      %v4395 = vmul.f32 %v4322, %v4379
      %v4396 = vmul.f32 %v4324, %v4380
      %v4397 = vmul.f32 %v4326, %v4381
      %v4398 = vmul.f32 %v4328, %v4382
      %v4399 = vmul.f32 %v4330, %v4383
      %v4400 = vmul.f32 %v4332, %v4384
      %v4401 = vmul.f32 %v4334, %v4385
      %v4402 = vmul.f32 %v4336, %v4386
      %v4403 = vmul.f32 %v4338, %v4387
      %v4404 = vmul.f32 %v4340, %v4388
      %4405 = vrot.lane.b32.xlu0 %v1301, 40
      %v4406 = vpop.permute.xlu0 %4405
      %4407 = vrot.lane.b32.xlu0 %v1306, 40
      %v4408 = vpop.permute.xlu0 %4407
      %4409 = vrot.lane.b32.xlu0 %v1311, 40
      %v4410 = vpop.permute.xlu0 %4409
      %4411 = vrot.lane.b32.xlu0 %v1316, 40
      %v4412 = vpop.permute.xlu0 %4411
      %4413 = vrot.lane.b32.xlu0 %v1321, 40
      %v4414 = vpop.permute.xlu0 %4413
      %4415 = vrot.lane.b32.xlu0 %v1326, 40
      %v4416 = vpop.permute.xlu0 %4415
      %4417 = vrot.lane.b32.xlu0 %v1331, 40
      %v4418 = vpop.permute.xlu0 %4417
      %4419 = vrot.lane.b32.xlu0 %v1336, 40
      %v4420 = vpop.permute.xlu0 %4419
      %4421 = vrot.lane.b32.xlu0 %v1341, 40
      %v4422 = vpop.permute.xlu0 %4421
      %4423 = vrot.lane.b32.xlu0 %v1346, 40
      %v4424 = vpop.permute.xlu0 %4423
      %4425 = vrot.lane.b32.xlu0 %v1351, 40
      %v4426 = vpop.permute.xlu0 %4425
      %4427 = vrot.lane.b32.xlu0 %v1356, 40
      %v4428 = vpop.permute.xlu0 %4427
      %4429 = vrot.lane.b32.xlu0 %v1361, 40
      %v4430 = vpop.permute.xlu0 %4429
      %4431 = vrot.lane.b32.xlu0 %v1366, 40
      %v4432 = vpop.permute.xlu0 %4431
      %4433 = vrot.lane.b32.xlu0 %v1371, 40
      %v4434 = vpop.permute.xlu0 %4433
      %4435 = vrot.lane.b32.xlu0 %v1376, 40
      %v4436 = vpop.permute.xlu0 %4435
      %4453 = vmatprep.subr.mxu0 0.0
      %4454 = vmatpush1.msra.mxu0 %v4406
      %4455 = vmatprep.subr.mxu0 0.0
      %4456 = vmatpush1.msra.mxu0 %v4408
      %4457 = vmatprep.subr.mxu0 0.0
      %4458 = vmatpush1.msra.mxu0 %v4410
      %4459 = vmatprep.subr.mxu0 0.0
      %4460 = vmatpush1.msra.mxu0 %v4412
      %4461 = vmatprep.subr.mxu0 0.0
      %4462 = vmatpush1.msra.mxu0 %v4414
      %4463 = vmatprep.subr.mxu0 0.0
      %4464 = vmatpush1.msra.mxu0 %v4416
      %4465 = vmatprep.subr.mxu0 0.0
      %4466 = vmatpush1.msra.mxu0 %v4418
      %4467 = vmatprep.subr.mxu0 0.0
      %4468 = vmatpush1.msra.mxu0 %v4420
      %4469 = vmatprep.subr.mxu0 0.0
      %4470 = vmatpush1.msra.mxu0 %v4422
      %4471 = vmatprep.subr.mxu0 0.0
      %4472 = vmatpush1.msra.mxu0 %v4424
      %4473 = vmatprep.subr.mxu0 0.0
      %4474 = vmatpush1.msra.mxu0 %v4426
      %4475 = vmatprep.subr.mxu0 0.0
      %4476 = vmatpush1.msra.mxu0 %v4428
      %4477 = vmatprep.subr.mxu0 0.0
      %4478 = vmatpush1.msra.mxu0 %v4430
      %4479 = vmatprep.subr.mxu0 0.0
      %4480 = vmatpush1.msra.mxu0 %v4432
      %4481 = vmatprep.subr.mxu0 0.0
      %4482 = vmatpush1.msra.mxu0 %v4434
      %4483 = vmatprep.subr.mxu0 0.0
      %4484 = vmatpush1.msra.mxu0 %v4436
      %4485 = vmatprep.subr.mxu0 0.0
      %4486 = vmatpush1.msra.mxu0 0.0
      %4487 = vmatprep.subr.mxu0 0.0
      %4488 = vmatpush1.msra.mxu0 0.0
      %4489 = vmatprep.subr.mxu0 0.0
      %4490 = vmatpush1.msra.mxu0 0.0
      %4491 = vmatprep.subr.mxu0 0.0
      %4492 = vmatpush1.msra.mxu0 0.0
      %4493 = vmatprep.subr.mxu0 0.0
      %4494 = vmatpush1.msra.mxu0 0.0
      %4495 = vmatprep.subr.mxu0 0.0
      %4496 = vmatpush1.msra.mxu0 0.0
      %4497 = vmatprep.subr.mxu0 0.0
      %4498 = vmatpush1.msra.mxu0 0.0
      %4499 = vmatprep.subr.mxu0 0.0
      %4500 = vmatpush1.msra.mxu0 0.0
      %4501 = vmatprep.subr.mxu0 0.0
      %4502 = vmatpush1.msra.mxu0 0.0
      %4503 = vmatprep.subr.mxu0 0.0
      %4504 = vmatpush1.msra.mxu0 0.0
      %4505 = vmatprep.subr.mxu0 0.0
      %4506 = vmatpush1.msra.mxu0 0.0
      %4507 = vmatprep.subr.mxu0 0.0
      %4508 = vmatpush1.msra.mxu0 0.0
      %4509 = vmatprep.subr.mxu0 0.0
      %4510 = vmatpush1.msra.mxu0 0.0
      %4511 = vmatprep.subr.mxu0 0.0
      %4512 = vmatpush1.msra.mxu0 0.0
      %4513 = vmatprep.subr.mxu0 0.0
      %4514 = vmatpush1.msra.mxu0 0.0
      %4515 = vmatprep.subr.mxu0 0.0
      %4516 = vmatpush1.msra.mxu0 0.0
      %4517 = vmatprep.mubr.f32.mxu0 0.0
      %4518 = vmatmul.mubr.f32.gmra.mrb[0].mxu0 %v4389
      %v4519 = vpop.f32.mrb[0].mxu0
      %v4520 = vadd.f32 0.0, %v4519
      %v4521 = vpop.f32.mrb[0].mxu0
      %4522 = vmatprep.mubr.f32.mxu0 0.0
      %4523 = vmatmul.mubr.f32.gmra.mrb[0].mxu0 %v4390
      %v4524 = vpop.f32.mrb[0].mxu0
      %v4525 = vadd.f32 0.0, %v4524
      %v4526 = vpop.f32.mrb[0].mxu0
      %4527 = vmatprep.mubr.f32.mxu0 0.0
      %4528 = vmatmul.mubr.f32.gmra.mrb[0].mxu0 %v4391
      %v4529 = vpop.f32.mrb[0].mxu0
      %v4530 = vadd.f32 0.0, %v4529
      %v4531 = vpop.f32.mrb[0].mxu0
      %4532 = vmatprep.mubr.f32.mxu0 0.0
      %4533 = vmatmul.mubr.f32.gmra.mrb[0].mxu0 %v4392
      %v4534 = vpop.f32.mrb[0].mxu0
      %v4535 = vadd.f32 0.0, %v4534
      %v4536 = vpop.f32.mrb[0].mxu0
      %4537 = vmatprep.mubr.f32.mxu0 0.0
      %4538 = vmatmul.mubr.f32.gmra.mrb[0].mxu0 %v4393
      %v4539 = vpop.f32.mrb[0].mxu0
      %v4540 = vadd.f32 0.0, %v4539
      %v4541 = vpop.f32.mrb[0].mxu0
      %4542 = vmatprep.mubr.f32.mxu0 0.0
      %4543 = vmatmul.mubr.f32.gmra.mrb[0].mxu0 %v4394
      %v4544 = vpop.f32.mrb[0].mxu0
      %v4545 = vadd.f32 0.0, %v4544
      %v4546 = vpop.f32.mrb[0].mxu0
      %4547 = vmatprep.mubr.f32.mxu0 0.0
      %4548 = vmatmul.mubr.f32.gmra.mrb[0].mxu0 %v4395
      %v4549 = vpop.f32.mrb[0].mxu0
      %v4550 = vadd.f32 0.0, %v4549
      %v4551 = vpop.f32.mrb[0].mxu0
      %4552 = vmatprep.mubr.f32.mxu0 0.0
      %4553 = vmatmul.mubr.f32.gmra.mrb[0].mxu0 %v4396
      %v4554 = vpop.f32.mrb[0].mxu0
      %v4555 = vadd.f32 0.0, %v4554
      %v4556 = vpop.f32.mrb[0].mxu0
      %4557 = vmatprep.mubr.f32.mxu0 0.0
      %4558 = vmatmul.mubr.f32.gmra.mrb[0].mxu0 %v4397
      %v4559 = vpop.f32.mrb[0].mxu0
      %v4560 = vadd.f32 0.0, %v4559
      %v4561 = vpop.f32.mrb[0].mxu0
      %4562 = vmatprep.mubr.f32.mxu0 0.0
      %4563 = vmatmul.mubr.f32.gmra.mrb[0].mxu0 %v4398
      %v4564 = vpop.f32.mrb[0].mxu0
      %v4565 = vadd.f32 0.0, %v4564
      %v4566 = vpop.f32.mrb[0].mxu0
      %4567 = vmatprep.mubr.f32.mxu0 0.0
      %4568 = vmatmul.mubr.f32.gmra.mrb[0].mxu0 %v4399
      %v4569 = vpop.f32.mrb[0].mxu0
      %v4570 = vadd.f32 0.0, %v4569
      %v4571 = vpop.f32.mrb[0].mxu0
      %4572 = vmatprep.mubr.f32.mxu0 0.0
      %4573 = vmatmul.mubr.f32.gmra.mrb[0].mxu0 %v4400
      %v4574 = vpop.f32.mrb[0].mxu0
      %v4575 = vadd.f32 0.0, %v4574
      %v4576 = vpop.f32.mrb[0].mxu0
      %4577 = vmatprep.mubr.f32.mxu0 0.0
      %4578 = vmatmul.mubr.f32.gmra.mrb[0].mxu0 %v4401
      %v4579 = vpop.f32.mrb[0].mxu0
      %v4580 = vadd.f32 0.0, %v4579
      %v4581 = vpop.f32.mrb[0].mxu0
      %4582 = vmatprep.mubr.f32.mxu0 0.0
      %4583 = vmatmul.mubr.f32.gmra.mrb[0].mxu0 %v4402
      %v4584 = vpop.f32.mrb[0].mxu0
      %v4585 = vadd.f32 0.0, %v4584
      %v4586 = vpop.f32.mrb[0].mxu0
      %4587 = vmatprep.mubr.f32.mxu0 0.0
      %4588 = vmatmul.mubr.f32.gmra.mrb[0].mxu0 %v4403
      %v4589 = vpop.f32.mrb[0].mxu0
      %v4590 = vadd.f32 0.0, %v4589
      %v4591 = vpop.f32.mrb[0].mxu0
      %4592 = vmatprep.mubr.f32.mxu0 0.0
      %4593 = vmatmul.mubr.f32.gmra.mrb[0].mxu0 %v4404
      %v4594 = vpop.f32.mrb[0].mxu0
      %v4595 = vadd.f32 0.0, %v4594
      %v4596 = vpop.f32.mrb[0].mxu0
      %4597 = vdwg.mxu0
      %v4599 = vsel %vm1431, %v4520, 0
      %v4602 = vsel %vm1431, %v4525, 0
      %v4605 = vsel %vm1431, %v4530, 0
      %v4608 = vsel %vm1431, %v4535, 0
      %v4611 = vsel %vm1431, %v4540, 0
      %v4614 = vsel %vm1431, %v4545, 0
      %v4617 = vsel %vm1431, %v4550, 0
      %v4620 = vsel %vm1431, %v4555, 0
      %v4623 = vsel %vm1431, %v4560, 0
      %v4626 = vsel %vm1431, %v4565, 0
      %v4629 = vsel %vm1431, %v4570, 0
      %v4632 = vsel %vm1431, %v4575, 0
      %v4635 = vsel %vm1431, %v4580, 0
      %v4638 = vsel %vm1431, %v4585, 0
      %v4641 = vsel %vm1431, %v4590, 0
      %v4644 = vsel %vm1431, %v4595, 0
      %4646 = vmatprep.subr.mxu0 0.0
      %4647 = vmatpush1.msra.mxu0 %v1382
      %4648 = vmatprep.subr.mxu0 0.0
      %4649 = vmatpush1.msra.mxu0 0.0
      %4650 = vmatprep.subr.mxu0 0.0
      %4651 = vmatpush1.msra.mxu0 0.0
      %4652 = vmatprep.subr.mxu0 0.0
      %4653 = vmatpush1.msra.mxu0 0.0
      %4654 = vmatprep.subr.mxu0 0.0
      %4655 = vmatpush1.msra.mxu0 0.0
      %4656 = vmatprep.subr.mxu0 0.0
      %4657 = vmatpush1.msra.mxu0 0.0
      %4658 = vmatprep.subr.mxu0 0.0
      %4659 = vmatpush1.msra.mxu0 0.0
      %4660 = vmatprep.subr.mxu0 0.0
      %4661 = vmatpush1.msra.mxu0 0.0
      %4662 = vmatprep.subr.mxu0 0.0
      %4663 = vmatpush1.msra.mxu0 0.0
      %4664 = vmatprep.subr.mxu0 0.0
      %4665 = vmatpush1.msra.mxu0 0.0
      %4666 = vmatprep.subr.mxu0 0.0
      %4667 = vmatpush1.msra.mxu0 0.0
      %4668 = vmatprep.subr.mxu0 0.0
      %4669 = vmatpush1.msra.mxu0 0.0
      %4670 = vmatprep.subr.mxu0 0.0
      %4671 = vmatpush1.msra.mxu0 0.0
      %4672 = vmatprep.subr.mxu0 0.0
      %4673 = vmatpush1.msra.mxu0 0.0
      %4674 = vmatprep.subr.mxu0 0.0
      %4675 = vmatpush1.msra.mxu0 0.0
      %4676 = vmatprep.subr.mxu0 0.0
      %4677 = vmatpush1.msra.mxu0 0.0
      %4678 = vmatprep.subr.mxu0 0.0
      %4679 = vmatpush1.msra.mxu0 0.0
      %4680 = vmatprep.subr.mxu0 0.0
      %4681 = vmatpush1.msra.mxu0 0.0
      %4682 = vmatprep.subr.mxu0 0.0
      %4683 = vmatpush1.msra.mxu0 0.0
      %4684 = vmatprep.subr.mxu0 0.0
      %4685 = vmatpush1.msra.mxu0 0.0
      %4686 = vmatprep.subr.mxu0 0.0
      %4687 = vmatpush1.msra.mxu0 0.0
      %4688 = vmatprep.subr.mxu0 0.0
      %4689 = vmatpush1.msra.mxu0 0.0
      %4690 = vmatprep.subr.mxu0 0.0
      %4691 = vmatpush1.msra.mxu0 0.0
      %4692 = vmatprep.subr.mxu0 0.0
      %4693 = vmatpush1.msra.mxu0 0.0
      %4694 = vmatprep.subr.mxu0 0.0
      %4695 = vmatpush1.msra.mxu0 0.0
      %4696 = vmatprep.subr.mxu0 0.0
      %4697 = vmatpush1.msra.mxu0 0.0
      %4698 = vmatprep.subr.mxu0 0.0
      %4699 = vmatpush1.msra.mxu0 0.0
      %4700 = vmatprep.subr.mxu0 0.0
      %4701 = vmatpush1.msra.mxu0 0.0
      %4702 = vmatprep.subr.mxu0 0.0
      %4703 = vmatpush1.msra.mxu0 0.0
      %4704 = vmatprep.subr.mxu0 0.0
      %4705 = vmatpush1.msra.mxu0 0.0
      %4706 = vmatprep.subr.mxu0 0.0
      %4707 = vmatpush1.msra.mxu0 0.0
      %4708 = vmatprep.subr.mxu0 0.0
      %4709 = vmatpush1.msra.mxu0 0.0
      %4710 = vmatprep.mubr.f32.mxu0 0.0
      %4711 = vmatmul.mubr.f32.gmra.mrb[0].mxu0 %v4599
      %v4712 = vpop.f32.mrb[0].mxu0
      %v4713 = vadd.f32 0.0, %v4712
      %v4714 = vpop.f32.mrb[0].mxu0
      %4715 = vmatprep.mubr.f32.mxu0 0.0
      %4716 = vmatmul.mubr.f32.gmra.mrb[0].mxu0 %v4602
      %v4717 = vpop.f32.mrb[0].mxu0
      %v4718 = vadd.f32 0.0, %v4717
      %v4719 = vpop.f32.mrb[0].mxu0
      %4720 = vmatprep.mubr.f32.mxu0 0.0
      %4721 = vmatmul.mubr.f32.gmra.mrb[0].mxu0 %v4605
      %v4722 = vpop.f32.mrb[0].mxu0
      %v4723 = vadd.f32 0.0, %v4722
      %v4724 = vpop.f32.mrb[0].mxu0
      %4725 = vmatprep.mubr.f32.mxu0 0.0
      %4726 = vmatmul.mubr.f32.gmra.mrb[0].mxu0 %v4608
      %v4727 = vpop.f32.mrb[0].mxu0
      %v4728 = vadd.f32 0.0, %v4727
      %v4729 = vpop.f32.mrb[0].mxu0
      %4730 = vmatprep.mubr.f32.mxu0 0.0
      %4731 = vmatmul.mubr.f32.gmra.mrb[0].mxu0 %v4611
      %v4732 = vpop.f32.mrb[0].mxu0
      %v4733 = vadd.f32 0.0, %v4732
      %v4734 = vpop.f32.mrb[0].mxu0
      %4735 = vmatprep.mubr.f32.mxu0 0.0
      %4736 = vmatmul.mubr.f32.gmra.mrb[0].mxu0 %v4614
      %v4737 = vpop.f32.mrb[0].mxu0
      %v4738 = vadd.f32 0.0, %v4737
      %v4739 = vpop.f32.mrb[0].mxu0
      %4740 = vmatprep.mubr.f32.mxu0 0.0
      %4741 = vmatmul.mubr.f32.gmra.mrb[0].mxu0 %v4617
      %v4742 = vpop.f32.mrb[0].mxu0
      %v4743 = vadd.f32 0.0, %v4742
      %v4744 = vpop.f32.mrb[0].mxu0
      %4745 = vmatprep.mubr.f32.mxu0 0.0
      %4746 = vmatmul.mubr.f32.gmra.mrb[0].mxu0 %v4620
      %v4747 = vpop.f32.mrb[0].mxu0
      %v4748 = vadd.f32 0.0, %v4747
      %v4749 = vpop.f32.mrb[0].mxu0
      %4750 = vmatprep.mubr.f32.mxu0 0.0
      %4751 = vmatmul.mubr.f32.gmra.mrb[0].mxu0 %v4623
      %v4752 = vpop.f32.mrb[0].mxu0
      %v4753 = vadd.f32 0.0, %v4752
      %v4754 = vpop.f32.mrb[0].mxu0
      %4755 = vmatprep.mubr.f32.mxu0 0.0
      %4756 = vmatmul.mubr.f32.gmra.mrb[0].mxu0 %v4626
      %v4757 = vpop.f32.mrb[0].mxu0
      %v4758 = vadd.f32 0.0, %v4757
      %v4759 = vpop.f32.mrb[0].mxu0
      %4760 = vmatprep.mubr.f32.mxu0 0.0
      %4761 = vmatmul.mubr.f32.gmra.mrb[0].mxu0 %v4629
      %v4762 = vpop.f32.mrb[0].mxu0
      %v4763 = vadd.f32 0.0, %v4762
      %v4764 = vpop.f32.mrb[0].mxu0
      %4765 = vmatprep.mubr.f32.mxu0 0.0
      %4766 = vmatmul.mubr.f32.gmra.mrb[0].mxu0 %v4632
      %v4767 = vpop.f32.mrb[0].mxu0
      %v4768 = vadd.f32 0.0, %v4767
      %v4769 = vpop.f32.mrb[0].mxu0
      %4770 = vmatprep.mubr.f32.mxu0 0.0
      %4771 = vmatmul.mubr.f32.gmra.mrb[0].mxu0 %v4635
      %v4772 = vpop.f32.mrb[0].mxu0
      %v4773 = vadd.f32 0.0, %v4772
      %v4774 = vpop.f32.mrb[0].mxu0
      %4775 = vmatprep.mubr.f32.mxu0 0.0
      %4776 = vmatmul.mubr.f32.gmra.mrb[0].mxu0 %v4638
      %v4777 = vpop.f32.mrb[0].mxu0
      %v4778 = vadd.f32 0.0, %v4777
      %v4779 = vpop.f32.mrb[0].mxu0
      %4780 = vmatprep.mubr.f32.mxu0 0.0
      %4781 = vmatmul.mubr.f32.gmra.mrb[0].mxu0 %v4641
      %v4782 = vpop.f32.mrb[0].mxu0
      %v4783 = vadd.f32 0.0, %v4782
      %v4784 = vpop.f32.mrb[0].mxu0
      %4785 = vmatprep.mubr.f32.mxu0 0.0
      %4786 = vmatmul.mubr.f32.gmra.mrb[0].mxu0 %v4644
      %v4787 = vpop.f32.mrb[0].mxu0
      %v4788 = vadd.f32 0.0, %v4787
      %v4789 = vpop.f32.mrb[0].mxu0
      %4790 = vdwg.mxu0
      %v4791 = vadd.f32 %v3923, %v4713
      %v4792 = vadd.f32 %v3924, %v4718
      %v4793 = vadd.f32 %v3925, %v4723
      %v4794 = vadd.f32 %v3926, %v4728
      %v4795 = vadd.f32 %v3927, %v4733
      %v4796 = vadd.f32 %v3928, %v4738
      %v4797 = vadd.f32 %v3929, %v4743
      %v4798 = vadd.f32 %v3930, %v4748
      %v4799 = vadd.f32 %v3931, %v4753
      %v4800 = vadd.f32 %v3932, %v4758
      %v4801 = vadd.f32 %v3933, %v4763
      %v4802 = vadd.f32 %v3934, %v4768
      %v4803 = vadd.f32 %v3935, %v4773
      %v4804 = vadd.f32 %v3936, %v4778
      %v4805 = vadd.f32 %v3937, %v4783
      %v4806 = vadd.f32 %v3938, %v4788
      %v4807 = vld [vmem:[%s856] sm:$0x1]
      %v4809 = vlaneseq
      %v4810 = vshrl.u32 %v4809, 7
      %v4811 = vsub.s32 0, %v4810
      %v4812 = vrot.slane %v4807, %v4811
      %v4814 = vadd.f32 %v4791, %v4812
      %v4815 = vadd.f32 %v4792, %v4812
      %v4816 = vadd.f32 %v4793, %v4812
      %v4817 = vadd.f32 %v4794, %v4812
      %v4818 = vadd.f32 %v4795, %v4812
      %v4819 = vadd.f32 %v4796, %v4812
      %v4820 = vadd.f32 %v4797, %v4812
      %v4821 = vadd.f32 %v4798, %v4812
      %v4822 = vadd.f32 %v4799, %v4812
      %v4823 = vadd.f32 %v4800, %v4812
      %v4824 = vadd.f32 %v4801, %v4812
      %v4825 = vadd.f32 %v4802, %v4812
      %v4826 = vadd.f32 %v4803, %v4812
      %v4827 = vadd.f32 %v4804, %v4812
      %v4828 = vadd.f32 %v4805, %v4812
      %v4829 = vadd.f32 %v4806, %v4812
      %v4830 = vadd.f32 %v1142, %v4814
      %v4831 = vadd.f32 %v1143, %v4815
      %v4832 = vadd.f32 %v1144, %v4816
      %v4833 = vadd.f32 %v1145, %v4817
      %v4834 = vadd.f32 %v1146, %v4818
      %v4835 = vadd.f32 %v1147, %v4819
      %v4836 = vadd.f32 %v1148, %v4820
      %v4837 = vadd.f32 %v1149, %v4821
      %v4838 = vadd.f32 %v1150, %v4822
      %v4839 = vadd.f32 %v1151, %v4823
      %v4840 = vadd.f32 %v1152, %v4824
      %v4841 = vadd.f32 %v1153, %v4825
      %v4842 = vadd.f32 %v1154, %v4826
      %v4843 = vadd.f32 %v1155, %v4827
      %v4844 = vadd.f32 %v1156, %v4828
      %v4845 = vadd.f32 %v1157, %v4829
      %v4846 = vld [vmem:[%s860] sm:$0x1]
      %v4847 = vld [vmem:[%s864] sm:$0x1]
      %v4848 = vsel %vm1185, %v4830, 0.0
      %4849 = vadd.xlane.f32.xlu0 %v4848
      %v4850 = vpop.xlane.xlu0 %4849
      %v4851 = vsel %vm1185, %v4831, 0.0
      %4852 = vadd.xlane.f32.xlu0 %v4851
      %v4853 = vpop.xlane.xlu0 %4852
      %v4854 = vsel %vm1185, %v4832, 0.0
      %4855 = vadd.xlane.f32.xlu0 %v4854
      %v4856 = vpop.xlane.xlu0 %4855
      %v4857 = vsel %vm1185, %v4833, 0.0
      %4858 = vadd.xlane.f32.xlu0 %v4857
      %v4859 = vpop.xlane.xlu0 %4858
      %v4860 = vsel %vm1185, %v4834, 0.0
      %4861 = vadd.xlane.f32.xlu0 %v4860
      %v4862 = vpop.xlane.xlu0 %4861
      %v4863 = vsel %vm1185, %v4835, 0.0
      %4864 = vadd.xlane.f32.xlu0 %v4863
      %v4865 = vpop.xlane.xlu0 %4864
      %v4866 = vsel %vm1185, %v4836, 0.0
      %4867 = vadd.xlane.f32.xlu0 %v4866
      %v4868 = vpop.xlane.xlu0 %4867
      %v4869 = vsel %vm1185, %v4837, 0.0
      %4870 = vadd.xlane.f32.xlu0 %v4869
      %v4871 = vpop.xlane.xlu0 %4870
      %v4872 = vsel %vm1185, %v4838, 0.0
      %4873 = vadd.xlane.f32.xlu0 %v4872
      %v4874 = vpop.xlane.xlu0 %4873
      %v4875 = vsel %vm1185, %v4839, 0.0
      %4876 = vadd.xlane.f32.xlu0 %v4875
      %v4877 = vpop.xlane.xlu0 %4876
      %v4878 = vsel %vm1185, %v4840, 0.0
      %4879 = vadd.xlane.f32.xlu0 %v4878
      %v4880 = vpop.xlane.xlu0 %4879
      %v4881 = vsel %vm1185, %v4841, 0.0
      %4882 = vadd.xlane.f32.xlu0 %v4881
      %v4883 = vpop.xlane.xlu0 %4882
      %v4884 = vsel %vm1185, %v4842, 0.0
      %4885 = vadd.xlane.f32.xlu0 %v4884
      %v4886 = vpop.xlane.xlu0 %4885
      %v4887 = vsel %vm1185, %v4843, 0.0
      %4888 = vadd.xlane.f32.xlu0 %v4887
      %v4889 = vpop.xlane.xlu0 %4888
      %v4890 = vsel %vm1185, %v4844, 0.0
      %4891 = vadd.xlane.f32.xlu0 %v4890
      %v4892 = vpop.xlane.xlu0 %4891
      %v4893 = vsel %vm1185, %v4845, 0.0
      %4894 = vadd.xlane.f32.xlu0 %v4893
      %v4895 = vpop.xlane.xlu0 %4894
      %v4896 = vrcp.pop 32.0
      %v4897 = vmul.f32 %v4850, %v4896
      %v4898 = vmul.f32 %v4853, %v4896
      %v4899 = vmul.f32 %v4856, %v4896
      %v4900 = vmul.f32 %v4859, %v4896
      %v4901 = vmul.f32 %v4862, %v4896
      %v4902 = vmul.f32 %v4865, %v4896
      %v4903 = vmul.f32 %v4868, %v4896
      %v4904 = vmul.f32 %v4871, %v4896
      %v4905 = vmul.f32 %v4874, %v4896
      %v4906 = vmul.f32 %v4877, %v4896
      %v4907 = vmul.f32 %v4880, %v4896
      %v4908 = vmul.f32 %v4883, %v4896
      %v4909 = vmul.f32 %v4886, %v4896
      %v4910 = vmul.f32 %v4889, %v4896
      %v4911 = vmul.f32 %v4892, %v4896
      %v4912 = vmul.f32 %v4895, %v4896
      %v4913 = vsub.f32 %v4830, %v4897
      %v4914 = vsub.f32 %v4831, %v4898
      %v4915 = vsub.f32 %v4832, %v4899
      %v4916 = vsub.f32 %v4833, %v4900
      %v4917 = vsub.f32 %v4834, %v4901
      %v4918 = vsub.f32 %v4835, %v4902
      %v4919 = vsub.f32 %v4836, %v4903
      %v4920 = vsub.f32 %v4837, %v4904
      %v4921 = vsub.f32 %v4838, %v4905
      %v4922 = vsub.f32 %v4839, %v4906
      %v4923 = vsub.f32 %v4840, %v4907
      %v4924 = vsub.f32 %v4841, %v4908
      %v4925 = vsub.f32 %v4842, %v4909
      %v4926 = vsub.f32 %v4843, %v4910
      %v4927 = vsub.f32 %v4844, %v4911
      %v4928 = vsub.f32 %v4845, %v4912
      %v4929 = vmul.f32 %v4913, %v4913
      %v4930 = vmul.f32 %v4914, %v4914
      %v4931 = vmul.f32 %v4915, %v4915
      %v4932 = vmul.f32 %v4916, %v4916
      %v4933 = vmul.f32 %v4917, %v4917
      %v4934 = vmul.f32 %v4918, %v4918
      %v4935 = vmul.f32 %v4919, %v4919
      %v4936 = vmul.f32 %v4920, %v4920
      %v4937 = vmul.f32 %v4921, %v4921
      %v4938 = vmul.f32 %v4922, %v4922
      %v4939 = vmul.f32 %v4923, %v4923
      %v4940 = vmul.f32 %v4924, %v4924
      %v4941 = vmul.f32 %v4925, %v4925
      %v4942 = vmul.f32 %v4926, %v4926
      %v4943 = vmul.f32 %v4927, %v4927
      %v4944 = vmul.f32 %v4928, %v4928
      %v4945 = vsel %vm1185, %v4929, 0.0
      %4946 = vadd.xlane.f32.xlu0 %v4945
      %v4947 = vpop.xlane.xlu0 %4946
      %v4948 = vsel %vm1185, %v4930, 0.0
      %4949 = vadd.xlane.f32.xlu0 %v4948
      %v4950 = vpop.xlane.xlu0 %4949
      %v4951 = vsel %vm1185, %v4931, 0.0
      %4952 = vadd.xlane.f32.xlu0 %v4951
      %v4953 = vpop.xlane.xlu0 %4952
      %v4954 = vsel %vm1185, %v4932, 0.0
      %4955 = vadd.xlane.f32.xlu0 %v4954
      %v4956 = vpop.xlane.xlu0 %4955
      %v4957 = vsel %vm1185, %v4933, 0.0
      %4958 = vadd.xlane.f32.xlu0 %v4957
      %v4959 = vpop.xlane.xlu0 %4958
      %v4960 = vsel %vm1185, %v4934, 0.0
      %4961 = vadd.xlane.f32.xlu0 %v4960
      %v4962 = vpop.xlane.xlu0 %4961
      %v4963 = vsel %vm1185, %v4935, 0.0
      %4964 = vadd.xlane.f32.xlu0 %v4963
      %v4965 = vpop.xlane.xlu0 %4964
      %v4966 = vsel %vm1185, %v4936, 0.0
      %4967 = vadd.xlane.f32.xlu0 %v4966
      %v4968 = vpop.xlane.xlu0 %4967
      %v4969 = vsel %vm1185, %v4937, 0.0
      %4970 = vadd.xlane.f32.xlu0 %v4969
      %v4971 = vpop.xlane.xlu0 %4970
      %v4972 = vsel %vm1185, %v4938, 0.0
      %4973 = vadd.xlane.f32.xlu0 %v4972
      %v4974 = vpop.xlane.xlu0 %4973
      %v4975 = vsel %vm1185, %v4939, 0.0
      %4976 = vadd.xlane.f32.xlu0 %v4975
      %v4977 = vpop.xlane.xlu0 %4976
      %v4978 = vsel %vm1185, %v4940, 0.0
      %4979 = vadd.xlane.f32.xlu0 %v4978
      %v4980 = vpop.xlane.xlu0 %4979
      %v4981 = vsel %vm1185, %v4941, 0.0
      %4982 = vadd.xlane.f32.xlu0 %v4981
      %v4983 = vpop.xlane.xlu0 %4982
      %v4984 = vsel %vm1185, %v4942, 0.0
      %4985 = vadd.xlane.f32.xlu0 %v4984
      %v4986 = vpop.xlane.xlu0 %4985
      %v4987 = vsel %vm1185, %v4943, 0.0
      %4988 = vadd.xlane.f32.xlu0 %v4987
      %v4989 = vpop.xlane.xlu0 %4988
      %v4990 = vsel %vm1185, %v4944, 0.0
      %4991 = vadd.xlane.f32.xlu0 %v4990
      %v4992 = vpop.xlane.xlu0 %4991
      %v4993 = vmul.f32 %v4947, %v4896
      %v4994 = vmul.f32 %v4950, %v4896
      %v4995 = vmul.f32 %v4953, %v4896
      %v4996 = vmul.f32 %v4956, %v4896
      %v4997 = vmul.f32 %v4959, %v4896
      %v4998 = vmul.f32 %v4962, %v4896
      %v4999 = vmul.f32 %v4965, %v4896
      %v5000 = vmul.f32 %v4968, %v4896
      %v5001 = vmul.f32 %v4971, %v4896
      %v5002 = vmul.f32 %v4974, %v4896
      %v5003 = vmul.f32 %v4977, %v4896
      %v5004 = vmul.f32 %v4980, %v4896
      %v5005 = vmul.f32 %v4983, %v4896
      %v5006 = vmul.f32 %v4986, %v4896
      %v5007 = vmul.f32 %v4989, %v4896
      %v5008 = vmul.f32 %v4992, %v4896
      %v5009 = vadd.f32 %v4993, 1e-05
      %v5010 = vadd.f32 %v4994, 1e-05
      %v5011 = vadd.f32 %v4995, 1e-05
      %v5012 = vadd.f32 %v4996, 1e-05
      %v5013 = vadd.f32 %v4997, 1e-05
      %v5014 = vadd.f32 %v4998, 1e-05
      %v5015 = vadd.f32 %v4999, 1e-05
      %v5016 = vadd.f32 %v5000, 1e-05
      %v5017 = vadd.f32 %v5001, 1e-05
      %v5018 = vadd.f32 %v5002, 1e-05
      %v5019 = vadd.f32 %v5003, 1e-05
      %v5020 = vadd.f32 %v5004, 1e-05
      %v5021 = vadd.f32 %v5005, 1e-05
      %v5022 = vadd.f32 %v5006, 1e-05
      %v5023 = vadd.f32 %v5007, 1e-05
      %v5024 = vadd.f32 %v5008, 1e-05
      %v5025 = vrsqrt.pop %v5009
      %v5026 = vrsqrt.pop %v5010
      %v5027 = vrsqrt.pop %v5011
      %v5028 = vrsqrt.pop %v5012
      %v5029 = vrsqrt.pop %v5013
      %v5030 = vrsqrt.pop %v5014
      %v5031 = vrsqrt.pop %v5015
      %v5032 = vrsqrt.pop %v5016
      %v5033 = vrsqrt.pop %v5017
      %v5034 = vrsqrt.pop %v5018
      %v5035 = vrsqrt.pop %v5019
      %v5036 = vrsqrt.pop %v5020
      %v5037 = vrsqrt.pop %v5021
      %v5038 = vrsqrt.pop %v5022
      %v5039 = vrsqrt.pop %v5023
      %v5040 = vrsqrt.pop %v5024
      %v5041 = vmul.f32 %v4913, %v5025
      %v5042 = vmul.f32 %v4914, %v5026
      %v5043 = vmul.f32 %v4915, %v5027
      %v5044 = vmul.f32 %v4916, %v5028
      %v5045 = vmul.f32 %v4917, %v5029
      %v5046 = vmul.f32 %v4918, %v5030
      %v5047 = vmul.f32 %v4919, %v5031
      %v5048 = vmul.f32 %v4920, %v5032
      %v5049 = vmul.f32 %v4921, %v5033
      %v5050 = vmul.f32 %v4922, %v5034
      %v5051 = vmul.f32 %v4923, %v5035
      %v5052 = vmul.f32 %v4924, %v5036
      %v5053 = vmul.f32 %v4925, %v5037
      %v5054 = vmul.f32 %v4926, %v5038
      %v5055 = vmul.f32 %v4927, %v5039
      %v5056 = vmul.f32 %v4928, %v5040
      %v5058 = vlaneseq
      %v5059 = vshrl.u32 %v5058, 7
      %v5060 = vsub.s32 0, %v5059
      %v5061 = vrot.slane %v4846, %v5060
      %v5063 = vmul.f32 %v5041, %v5061
      %v5064 = vmul.f32 %v5042, %v5061
      %v5065 = vmul.f32 %v5043, %v5061
      %v5066 = vmul.f32 %v5044, %v5061
      %v5067 = vmul.f32 %v5045, %v5061
      %v5068 = vmul.f32 %v5046, %v5061
      %v5069 = vmul.f32 %v5047, %v5061
      %v5070 = vmul.f32 %v5048, %v5061
      %v5071 = vmul.f32 %v5049, %v5061
      %v5072 = vmul.f32 %v5050, %v5061
      %v5073 = vmul.f32 %v5051, %v5061
      %v5074 = vmul.f32 %v5052, %v5061
      %v5075 = vmul.f32 %v5053, %v5061
      %v5076 = vmul.f32 %v5054, %v5061
      %v5077 = vmul.f32 %v5055, %v5061
      %v5078 = vmul.f32 %v5056, %v5061
      %v5080 = vlaneseq
      %v5081 = vshrl.u32 %v5080, 7
      %v5082 = vsub.s32 0, %v5081
      %v5083 = vrot.slane %v4847, %v5082
      %v5085 = vadd.f32 %v5063, %v5083
      %v5086 = vadd.f32 %v5064, %v5083
      %v5087 = vadd.f32 %v5065, %v5083
      %v5088 = vadd.f32 %v5066, %v5083
      %v5089 = vadd.f32 %v5067, %v5083
      %v5090 = vadd.f32 %v5068, %v5083
      %v5091 = vadd.f32 %v5069, %v5083
      %v5092 = vadd.f32 %v5070, %v5083
      %v5093 = vadd.f32 %v5071, %v5083
      %v5094 = vadd.f32 %v5072, %v5083
      %v5095 = vadd.f32 %v5073, %v5083
      %v5096 = vadd.f32 %v5074, %v5083
      %v5097 = vadd.f32 %v5075, %v5083
      %v5098 = vadd.f32 %v5076, %v5083
      %v5099 = vadd.f32 %v5077, %v5083
      %v5100 = vadd.f32 %v5078, %v5083
      %v5101 = vld [vmem:[%s869] sm:$0xff]
      %v5102 = vld [vmem:[%s869 + $0x8] sm:$0xff]
      %v5103 = vld [vmem:[%s869 + $0x10] sm:$0xff]
      %v5104 = vld [vmem:[%s869 + $0x18] sm:$0xff]
      %v5105 = vld [vmem:[%s873] sm:$0x1]
      %v5107 = vlaneseq
      %v5108 = vshrl.u32 %v5107, 7
      %v5109 = vsub.s32 0, %v5108
      %v5110 = vrot.slane %v5105, %v5109
      %v5113 = vsel %vm1185, %v5085, 0
      %v5116 = vsel %vm1185, %v5086, 0
      %v5119 = vsel %vm1185, %v5087, 0
      %v5122 = vsel %vm1185, %v5088, 0
      %v5125 = vsel %vm1185, %v5089, 0
      %v5128 = vsel %vm1185, %v5090, 0
      %v5131 = vsel %vm1185, %v5091, 0
      %v5134 = vsel %vm1185, %v5092, 0
      %v5137 = vsel %vm1185, %v5093, 0
      %v5140 = vsel %vm1185, %v5094, 0
      %v5143 = vsel %vm1185, %v5095, 0
      %v5146 = vsel %vm1185, %v5096, 0
      %v5149 = vsel %vm1185, %v5097, 0
      %v5152 = vsel %vm1185, %v5098, 0
      %v5155 = vsel %vm1185, %v5099, 0
      %v5158 = vsel %vm1185, %v5100, 0
      %5160 = vmatprep.subr.mxu0 0.0
      %5161 = vmatpush1.msra.mxu0 %v5101
      %5162 = vmatprep.subr.mxu0 0.0
      %5163 = vmatpush1.msra.mxu0 %v5102
      %5164 = vmatprep.subr.mxu0 0.0
      %5165 = vmatpush1.msra.mxu0 %v5103
      %5166 = vmatprep.subr.mxu0 0.0
      %5167 = vmatpush1.msra.mxu0 %v5104
      %5168 = vmatprep.subr.mxu0 0.0
      %5169 = vmatpush1.msra.mxu0 0.0
      %5170 = vmatprep.subr.mxu0 0.0
      %5171 = vmatpush1.msra.mxu0 0.0
      %5172 = vmatprep.subr.mxu0 0.0
      %5173 = vmatpush1.msra.mxu0 0.0
      %5174 = vmatprep.subr.mxu0 0.0
      %5175 = vmatpush1.msra.mxu0 0.0
      %5176 = vmatprep.subr.mxu0 0.0
      %5177 = vmatpush1.msra.mxu0 0.0
      %5178 = vmatprep.subr.mxu0 0.0
      %5179 = vmatpush1.msra.mxu0 0.0
      %5180 = vmatprep.subr.mxu0 0.0
      %5181 = vmatpush1.msra.mxu0 0.0
      %5182 = vmatprep.subr.mxu0 0.0
      %5183 = vmatpush1.msra.mxu0 0.0
      %5184 = vmatprep.subr.mxu0 0.0
      %5185 = vmatpush1.msra.mxu0 0.0
      %5186 = vmatprep.subr.mxu0 0.0
      %5187 = vmatpush1.msra.mxu0 0.0
      %5188 = vmatprep.subr.mxu0 0.0
      %5189 = vmatpush1.msra.mxu0 0.0
      %5190 = vmatprep.subr.mxu0 0.0
      %5191 = vmatpush1.msra.mxu0 0.0
      %5192 = vmatprep.subr.mxu0 0.0
      %5193 = vmatpush1.msra.mxu0 0.0
      %5194 = vmatprep.subr.mxu0 0.0
      %5195 = vmatpush1.msra.mxu0 0.0
      %5196 = vmatprep.subr.mxu0 0.0
      %5197 = vmatpush1.msra.mxu0 0.0
      %5198 = vmatprep.subr.mxu0 0.0
      %5199 = vmatpush1.msra.mxu0 0.0
      %5200 = vmatprep.subr.mxu0 0.0
      %5201 = vmatpush1.msra.mxu0 0.0
      %5202 = vmatprep.subr.mxu0 0.0
      %5203 = vmatpush1.msra.mxu0 0.0
      %5204 = vmatprep.subr.mxu0 0.0
      %5205 = vmatpush1.msra.mxu0 0.0
      %5206 = vmatprep.subr.mxu0 0.0
      %5207 = vmatpush1.msra.mxu0 0.0
      %5208 = vmatprep.subr.mxu0 0.0
      %5209 = vmatpush1.msra.mxu0 0.0
      %5210 = vmatprep.subr.mxu0 0.0
      %5211 = vmatpush1.msra.mxu0 0.0
      %5212 = vmatprep.subr.mxu0 0.0
      %5213 = vmatpush1.msra.mxu0 0.0
      %5214 = vmatprep.subr.mxu0 0.0
      %5215 = vmatpush1.msra.mxu0 0.0
      %5216 = vmatprep.subr.mxu0 0.0
      %5217 = vmatpush1.msra.mxu0 0.0
      %5218 = vmatprep.subr.mxu0 0.0
      %5219 = vmatpush1.msra.mxu0 0.0
      %5220 = vmatprep.subr.mxu0 0.0
      %5221 = vmatpush1.msra.mxu0 0.0
      %5222 = vmatprep.subr.mxu0 0.0
      %5223 = vmatpush1.msra.mxu0 0.0
      %5224 = vmatprep.mubr.f32.mxu0 0.0
      %5225 = vmatmul.mubr.f32.gmra.mrb[0].mxu0 %v5113
      %v5226 = vpop.f32.mrb[0].mxu0
      %v5227 = vadd.f32 %v5110, %v5226
      %v5228 = vpop.f32.mrb[0].mxu0
      %5229 = vmatprep.mubr.f32.mxu0 0.0
      %5230 = vmatmul.mubr.f32.gmra.mrb[0].mxu0 %v5116
      %v5231 = vpop.f32.mrb[0].mxu0
      %v5232 = vadd.f32 %v5110, %v5231
      %v5233 = vpop.f32.mrb[0].mxu0
      %5234 = vmatprep.mubr.f32.mxu0 0.0
      %5235 = vmatmul.mubr.f32.gmra.mrb[0].mxu0 %v5119
      %v5236 = vpop.f32.mrb[0].mxu0
      %v5237 = vadd.f32 %v5110, %v5236
      %v5238 = vpop.f32.mrb[0].mxu0
      %5239 = vmatprep.mubr.f32.mxu0 0.0
      %5240 = vmatmul.mubr.f32.gmra.mrb[0].mxu0 %v5122
      %v5241 = vpop.f32.mrb[0].mxu0
      %v5242 = vadd.f32 %v5110, %v5241
      %v5243 = vpop.f32.mrb[0].mxu0
      %5244 = vmatprep.mubr.f32.mxu0 0.0
      %5245 = vmatmul.mubr.f32.gmra.mrb[0].mxu0 %v5125
      %v5246 = vpop.f32.mrb[0].mxu0
      %v5247 = vadd.f32 %v5110, %v5246
      %v5248 = vpop.f32.mrb[0].mxu0
      %5249 = vmatprep.mubr.f32.mxu0 0.0
      %5250 = vmatmul.mubr.f32.gmra.mrb[0].mxu0 %v5128
      %v5251 = vpop.f32.mrb[0].mxu0
      %v5252 = vadd.f32 %v5110, %v5251
      %v5253 = vpop.f32.mrb[0].mxu0
      %5254 = vmatprep.mubr.f32.mxu0 0.0
      %5255 = vmatmul.mubr.f32.gmra.mrb[0].mxu0 %v5131
      %v5256 = vpop.f32.mrb[0].mxu0
      %v5257 = vadd.f32 %v5110, %v5256
      %v5258 = vpop.f32.mrb[0].mxu0
      %5259 = vmatprep.mubr.f32.mxu0 0.0
      %5260 = vmatmul.mubr.f32.gmra.mrb[0].mxu0 %v5134
      %v5261 = vpop.f32.mrb[0].mxu0
      %v5262 = vadd.f32 %v5110, %v5261
      %v5263 = vpop.f32.mrb[0].mxu0
      %5264 = vmatprep.mubr.f32.mxu0 0.0
      %5265 = vmatmul.mubr.f32.gmra.mrb[0].mxu0 %v5137
      %v5266 = vpop.f32.mrb[0].mxu0
      %v5267 = vadd.f32 %v5110, %v5266
      %v5268 = vpop.f32.mrb[0].mxu0
      %5269 = vmatprep.mubr.f32.mxu0 0.0
      %5270 = vmatmul.mubr.f32.gmra.mrb[0].mxu0 %v5140
      %v5271 = vpop.f32.mrb[0].mxu0
      %v5272 = vadd.f32 %v5110, %v5271
      %v5273 = vpop.f32.mrb[0].mxu0
      %5274 = vmatprep.mubr.f32.mxu0 0.0
      %5275 = vmatmul.mubr.f32.gmra.mrb[0].mxu0 %v5143
      %v5276 = vpop.f32.mrb[0].mxu0
      %v5277 = vadd.f32 %v5110, %v5276
      %v5278 = vpop.f32.mrb[0].mxu0
      %5279 = vmatprep.mubr.f32.mxu0 0.0
      %5280 = vmatmul.mubr.f32.gmra.mrb[0].mxu0 %v5146
      %v5281 = vpop.f32.mrb[0].mxu0
      %v5282 = vadd.f32 %v5110, %v5281
      %v5283 = vpop.f32.mrb[0].mxu0
      %5284 = vmatprep.mubr.f32.mxu0 0.0
      %5285 = vmatmul.mubr.f32.gmra.mrb[0].mxu0 %v5149
      %v5286 = vpop.f32.mrb[0].mxu0
      %v5287 = vadd.f32 %v5110, %v5286
      %v5288 = vpop.f32.mrb[0].mxu0
      %5289 = vmatprep.mubr.f32.mxu0 0.0
      %5290 = vmatmul.mubr.f32.gmra.mrb[0].mxu0 %v5152
      %v5291 = vpop.f32.mrb[0].mxu0
      %v5292 = vadd.f32 %v5110, %v5291
      %v5293 = vpop.f32.mrb[0].mxu0
      %5294 = vmatprep.mubr.f32.mxu0 0.0
      %5295 = vmatmul.mubr.f32.gmra.mrb[0].mxu0 %v5155
      %v5296 = vpop.f32.mrb[0].mxu0
      %v5297 = vadd.f32 %v5110, %v5296
      %v5298 = vpop.f32.mrb[0].mxu0
      %5299 = vmatprep.mubr.f32.mxu0 0.0
      %5300 = vmatmul.mubr.f32.gmra.mrb[0].mxu0 %v5158
      %v5301 = vpop.f32.mrb[0].mxu0
      %v5302 = vadd.f32 %v5110, %v5301
      %v5303 = vpop.f32.mrb[0].mxu0
      %5304 = vdwg.mxu0
      %v5305 = vmax.f32 %v5227, 0.0
      %v5306 = vmax.f32 %v5232, 0.0
      %v5307 = vmax.f32 %v5237, 0.0
      %v5308 = vmax.f32 %v5242, 0.0
      %v5309 = vmax.f32 %v5247, 0.0
      %v5310 = vmax.f32 %v5252, 0.0
      %v5311 = vmax.f32 %v5257, 0.0
      %v5312 = vmax.f32 %v5262, 0.0
      %v5313 = vmax.f32 %v5267, 0.0
      %v5314 = vmax.f32 %v5272, 0.0
      %v5315 = vmax.f32 %v5277, 0.0
      %v5316 = vmax.f32 %v5282, 0.0
      %v5317 = vmax.f32 %v5287, 0.0
      %v5318 = vmax.f32 %v5292, 0.0
      %v5319 = vmax.f32 %v5297, 0.0
      %v5320 = vmax.f32 %v5302, 0.0
      %v5321 = vld [vmem:[%s878] sm:$0xff]
      %v5322 = vld [vmem:[%s878 + $0x8] sm:$0xff]
      %v5323 = vld [vmem:[%s878 + $0x10] sm:$0xff]
      %v5324 = vld [vmem:[%s878 + $0x18] sm:$0xff]
      %v5325 = vld [vmem:[%s878 + $0x20] sm:$0xff]
      %v5326 = vld [vmem:[%s878 + $0x28] sm:$0xff]
      %v5327 = vld [vmem:[%s878 + $0x30] sm:$0xff]
      %v5328 = vld [vmem:[%s878 + $0x38] sm:$0xff]
      %v5329 = vld [vmem:[%s882] sm:$0x1]
      %v5331 = vlaneseq
      %v5332 = vshrl.u32 %v5331, 7
      %v5333 = vsub.s32 0, %v5332
      %v5334 = vrot.slane %v5329, %v5333
      %vm5336 = vcmask 523264
      %v5338 = vsel %vm5336, %v5305, 0
      %v5341 = vsel %vm5336, %v5306, 0
      %v5344 = vsel %vm5336, %v5307, 0
      %v5347 = vsel %vm5336, %v5308, 0
      %v5350 = vsel %vm5336, %v5309, 0
      %v5353 = vsel %vm5336, %v5310, 0
      %v5356 = vsel %vm5336, %v5311, 0
      %v5359 = vsel %vm5336, %v5312, 0
      %v5362 = vsel %vm5336, %v5313, 0
      %v5365 = vsel %vm5336, %v5314, 0
      %v5368 = vsel %vm5336, %v5315, 0
      %v5371 = vsel %vm5336, %v5316, 0
      %v5374 = vsel %vm5336, %v5317, 0
      %v5377 = vsel %vm5336, %v5318, 0
      %v5380 = vsel %vm5336, %v5319, 0
      %v5383 = vsel %vm5336, %v5320, 0
      %5385 = vmatprep.subr.mxu0 0.0
      %5386 = vmatpush1.msra.mxu0 %v5321
      %5387 = vmatprep.subr.mxu0 0.0
      %5388 = vmatpush1.msra.mxu0 %v5322
      %5389 = vmatprep.subr.mxu0 0.0
      %5390 = vmatpush1.msra.mxu0 %v5323
      %5391 = vmatprep.subr.mxu0 0.0
      %5392 = vmatpush1.msra.mxu0 %v5324
      %5393 = vmatprep.subr.mxu0 0.0
      %5394 = vmatpush1.msra.mxu0 %v5325
      %5395 = vmatprep.subr.mxu0 0.0
      %5396 = vmatpush1.msra.mxu0 %v5326
      %5397 = vmatprep.subr.mxu0 0.0
      %5398 = vmatpush1.msra.mxu0 %v5327
      %5399 = vmatprep.subr.mxu0 0.0
      %5400 = vmatpush1.msra.mxu0 %v5328
      %5401 = vmatprep.subr.mxu0 0.0
      %5402 = vmatpush1.msra.mxu0 0.0
      %5403 = vmatprep.subr.mxu0 0.0
      %5404 = vmatpush1.msra.mxu0 0.0
      %5405 = vmatprep.subr.mxu0 0.0
      %5406 = vmatpush1.msra.mxu0 0.0
      %5407 = vmatprep.subr.mxu0 0.0
      %5408 = vmatpush1.msra.mxu0 0.0
      %5409 = vmatprep.subr.mxu0 0.0
      %5410 = vmatpush1.msra.mxu0 0.0
      %5411 = vmatprep.subr.mxu0 0.0
      %5412 = vmatpush1.msra.mxu0 0.0
      %5413 = vmatprep.subr.mxu0 0.0
      %5414 = vmatpush1.msra.mxu0 0.0
      %5415 = vmatprep.subr.mxu0 0.0
      %5416 = vmatpush1.msra.mxu0 0.0
      %5417 = vmatprep.subr.mxu0 0.0
      %5418 = vmatpush1.msra.mxu0 0.0
      %5419 = vmatprep.subr.mxu0 0.0
      %5420 = vmatpush1.msra.mxu0 0.0
      %5421 = vmatprep.subr.mxu0 0.0
      %5422 = vmatpush1.msra.mxu0 0.0
      %5423 = vmatprep.subr.mxu0 0.0
      %5424 = vmatpush1.msra.mxu0 0.0
      %5425 = vmatprep.subr.mxu0 0.0
      %5426 = vmatpush1.msra.mxu0 0.0
      %5427 = vmatprep.subr.mxu0 0.0
      %5428 = vmatpush1.msra.mxu0 0.0
      %5429 = vmatprep.subr.mxu0 0.0
      %5430 = vmatpush1.msra.mxu0 0.0
      %5431 = vmatprep.subr.mxu0 0.0
      %5432 = vmatpush1.msra.mxu0 0.0
      %5433 = vmatprep.subr.mxu0 0.0
      %5434 = vmatpush1.msra.mxu0 0.0
      %5435 = vmatprep.subr.mxu0 0.0
      %5436 = vmatpush1.msra.mxu0 0.0
      %5437 = vmatprep.subr.mxu0 0.0
      %5438 = vmatpush1.msra.mxu0 0.0
      %5439 = vmatprep.subr.mxu0 0.0
      %5440 = vmatpush1.msra.mxu0 0.0
      %5441 = vmatprep.subr.mxu0 0.0
      %5442 = vmatpush1.msra.mxu0 0.0
      %5443 = vmatprep.subr.mxu0 0.0
      %5444 = vmatpush1.msra.mxu0 0.0
      %5445 = vmatprep.subr.mxu0 0.0
      %5446 = vmatpush1.msra.mxu0 0.0
      %5447 = vmatprep.subr.mxu0 0.0
      %5448 = vmatpush1.msra.mxu0 0.0
      %5449 = vmatprep.mubr.f32.mxu0 0.0
      %5450 = vmatmul.mubr.f32.gmra.mrb[0].mxu0 %v5338
      %v5451 = vpop.f32.mrb[0].mxu0
      %v5452 = vadd.f32 %v5334, %v5451
      %v5453 = vpop.f32.mrb[0].mxu0
      %5454 = vmatprep.mubr.f32.mxu0 0.0
      %5455 = vmatmul.mubr.f32.gmra.mrb[0].mxu0 %v5341
      %v5456 = vpop.f32.mrb[0].mxu0
      %v5457 = vadd.f32 %v5334, %v5456
      %v5458 = vpop.f32.mrb[0].mxu0
      %5459 = vmatprep.mubr.f32.mxu0 0.0
      %5460 = vmatmul.mubr.f32.gmra.mrb[0].mxu0 %v5344
      %v5461 = vpop.f32.mrb[0].mxu0
      %v5462 = vadd.f32 %v5334, %v5461
      %v5463 = vpop.f32.mrb[0].mxu0
      %5464 = vmatprep.mubr.f32.mxu0 0.0
      %5465 = vmatmul.mubr.f32.gmra.mrb[0].mxu0 %v5347
      %v5466 = vpop.f32.mrb[0].mxu0
      %v5467 = vadd.f32 %v5334, %v5466
      %v5468 = vpop.f32.mrb[0].mxu0
      %5469 = vmatprep.mubr.f32.mxu0 0.0
      %5470 = vmatmul.mubr.f32.gmra.mrb[0].mxu0 %v5350
      %v5471 = vpop.f32.mrb[0].mxu0
      %v5472 = vadd.f32 %v5334, %v5471
      %v5473 = vpop.f32.mrb[0].mxu0
      %5474 = vmatprep.mubr.f32.mxu0 0.0
      %5475 = vmatmul.mubr.f32.gmra.mrb[0].mxu0 %v5353
      %v5476 = vpop.f32.mrb[0].mxu0
      %v5477 = vadd.f32 %v5334, %v5476
      %v5478 = vpop.f32.mrb[0].mxu0
      %5479 = vmatprep.mubr.f32.mxu0 0.0
      %5480 = vmatmul.mubr.f32.gmra.mrb[0].mxu0 %v5356
      %v5481 = vpop.f32.mrb[0].mxu0
      %v5482 = vadd.f32 %v5334, %v5481
      %v5483 = vpop.f32.mrb[0].mxu0
      %5484 = vmatprep.mubr.f32.mxu0 0.0
      %5485 = vmatmul.mubr.f32.gmra.mrb[0].mxu0 %v5359
      %v5486 = vpop.f32.mrb[0].mxu0
      %v5487 = vadd.f32 %v5334, %v5486
      %v5488 = vpop.f32.mrb[0].mxu0
      %5489 = vmatprep.mubr.f32.mxu0 0.0
      %5490 = vmatmul.mubr.f32.gmra.mrb[0].mxu0 %v5362
      %v5491 = vpop.f32.mrb[0].mxu0
      %v5492 = vadd.f32 %v5334, %v5491
      %v5493 = vpop.f32.mrb[0].mxu0
      %5494 = vmatprep.mubr.f32.mxu0 0.0
      %5495 = vmatmul.mubr.f32.gmra.mrb[0].mxu0 %v5365
      %v5496 = vpop.f32.mrb[0].mxu0
      %v5497 = vadd.f32 %v5334, %v5496
      %v5498 = vpop.f32.mrb[0].mxu0
      %5499 = vmatprep.mubr.f32.mxu0 0.0
      %5500 = vmatmul.mubr.f32.gmra.mrb[0].mxu0 %v5368
      %v5501 = vpop.f32.mrb[0].mxu0
      %v5502 = vadd.f32 %v5334, %v5501
      %v5503 = vpop.f32.mrb[0].mxu0
      %5504 = vmatprep.mubr.f32.mxu0 0.0
      %5505 = vmatmul.mubr.f32.gmra.mrb[0].mxu0 %v5371
      %v5506 = vpop.f32.mrb[0].mxu0
      %v5507 = vadd.f32 %v5334, %v5506
      %v5508 = vpop.f32.mrb[0].mxu0
      %5509 = vmatprep.mubr.f32.mxu0 0.0
      %5510 = vmatmul.mubr.f32.gmra.mrb[0].mxu0 %v5374
      %v5511 = vpop.f32.mrb[0].mxu0
      %v5512 = vadd.f32 %v5334, %v5511
      %v5513 = vpop.f32.mrb[0].mxu0
      %5514 = vmatprep.mubr.f32.mxu0 0.0
      %5515 = vmatmul.mubr.f32.gmra.mrb[0].mxu0 %v5377
      %v5516 = vpop.f32.mrb[0].mxu0
      %v5517 = vadd.f32 %v5334, %v5516
      %v5518 = vpop.f32.mrb[0].mxu0
      %5519 = vmatprep.mubr.f32.mxu0 0.0
      %5520 = vmatmul.mubr.f32.gmra.mrb[0].mxu0 %v5380
      %v5521 = vpop.f32.mrb[0].mxu0
      %v5522 = vadd.f32 %v5334, %v5521
      %v5523 = vpop.f32.mrb[0].mxu0
      %5524 = vmatprep.mubr.f32.mxu0 0.0
      %5525 = vmatmul.mubr.f32.gmra.mrb[0].mxu0 %v5383
      %v5526 = vpop.f32.mrb[0].mxu0
      %v5527 = vadd.f32 %v5334, %v5526
      %v5528 = vpop.f32.mrb[0].mxu0
      %5529 = vdwg.mxu0
      %v5530 = vadd.f32 %v5085, %v5452
      %v5531 = vadd.f32 %v5086, %v5457
      %v5532 = vadd.f32 %v5087, %v5462
      %v5533 = vadd.f32 %v5088, %v5467
      %v5534 = vadd.f32 %v5089, %v5472
      %v5535 = vadd.f32 %v5090, %v5477
      %v5536 = vadd.f32 %v5091, %v5482
      %v5537 = vadd.f32 %v5092, %v5487
      %v5538 = vadd.f32 %v5093, %v5492
      %v5539 = vadd.f32 %v5094, %v5497
      %v5540 = vadd.f32 %v5095, %v5502
      %v5541 = vadd.f32 %v5096, %v5507
      %v5542 = vadd.f32 %v5097, %v5512
      %v5543 = vadd.f32 %v5098, %v5517
      %v5544 = vadd.f32 %v5099, %v5522
      %v5545 = vadd.f32 %v5100, %v5527
      %v5546 = vld [vmem:[%s886] sm:$0x1]
      %v5547 = vld [vmem:[%s890] sm:$0x1]
      %v5548 = vsel %vm1185, %v5530, 0.0
      %5549 = vadd.xlane.f32.xlu0 %v5548
      %v5550 = vpop.xlane.xlu0 %5549
      %v5551 = vsel %vm1185, %v5531, 0.0
      %5552 = vadd.xlane.f32.xlu0 %v5551
      %v5553 = vpop.xlane.xlu0 %5552
      %v5554 = vsel %vm1185, %v5532, 0.0
      %5555 = vadd.xlane.f32.xlu0 %v5554
      %v5556 = vpop.xlane.xlu0 %5555
      %v5557 = vsel %vm1185, %v5533, 0.0
      %5558 = vadd.xlane.f32.xlu0 %v5557
      %v5559 = vpop.xlane.xlu0 %5558
      %v5560 = vsel %vm1185, %v5534, 0.0
      %5561 = vadd.xlane.f32.xlu0 %v5560
      %v5562 = vpop.xlane.xlu0 %5561
      %v5563 = vsel %vm1185, %v5535, 0.0
      %5564 = vadd.xlane.f32.xlu0 %v5563
      %v5565 = vpop.xlane.xlu0 %5564
      %v5566 = vsel %vm1185, %v5536, 0.0
      %5567 = vadd.xlane.f32.xlu0 %v5566
      %v5568 = vpop.xlane.xlu0 %5567
      %v5569 = vsel %vm1185, %v5537, 0.0
      %5570 = vadd.xlane.f32.xlu0 %v5569
      %v5571 = vpop.xlane.xlu0 %5570
      %v5572 = vsel %vm1185, %v5538, 0.0
      %5573 = vadd.xlane.f32.xlu0 %v5572
      %v5574 = vpop.xlane.xlu0 %5573
      %v5575 = vsel %vm1185, %v5539, 0.0
      %5576 = vadd.xlane.f32.xlu0 %v5575
      %v5577 = vpop.xlane.xlu0 %5576
      %v5578 = vsel %vm1185, %v5540, 0.0
      %5579 = vadd.xlane.f32.xlu0 %v5578
      %v5580 = vpop.xlane.xlu0 %5579
      %v5581 = vsel %vm1185, %v5541, 0.0
      %5582 = vadd.xlane.f32.xlu0 %v5581
      %v5583 = vpop.xlane.xlu0 %5582
      %v5584 = vsel %vm1185, %v5542, 0.0
      %5585 = vadd.xlane.f32.xlu0 %v5584
      %v5586 = vpop.xlane.xlu0 %5585
      %v5587 = vsel %vm1185, %v5543, 0.0
      %5588 = vadd.xlane.f32.xlu0 %v5587
      %v5589 = vpop.xlane.xlu0 %5588
      %v5590 = vsel %vm1185, %v5544, 0.0
      %5591 = vadd.xlane.f32.xlu0 %v5590
      %v5592 = vpop.xlane.xlu0 %5591
      %v5593 = vsel %vm1185, %v5545, 0.0
      %5594 = vadd.xlane.f32.xlu0 %v5593
      %v5595 = vpop.xlane.xlu0 %5594
      %v5596 = vmul.f32 %v5550, %v4896
      %v5597 = vmul.f32 %v5553, %v4896
      %v5598 = vmul.f32 %v5556, %v4896
      %v5599 = vmul.f32 %v5559, %v4896
      %v5600 = vmul.f32 %v5562, %v4896
      %v5601 = vmul.f32 %v5565, %v4896
      %v5602 = vmul.f32 %v5568, %v4896
      %v5603 = vmul.f32 %v5571, %v4896
      %v5604 = vmul.f32 %v5574, %v4896
      %v5605 = vmul.f32 %v5577, %v4896
      %v5606 = vmul.f32 %v5580, %v4896
      %v5607 = vmul.f32 %v5583, %v4896
      %v5608 = vmul.f32 %v5586, %v4896
      %v5609 = vmul.f32 %v5589, %v4896
      %v5610 = vmul.f32 %v5592, %v4896
      %v5611 = vmul.f32 %v5595, %v4896
      %v5612 = vsub.f32 %v5530, %v5596
      %v5613 = vsub.f32 %v5531, %v5597
      %v5614 = vsub.f32 %v5532, %v5598
      %v5615 = vsub.f32 %v5533, %v5599
      %v5616 = vsub.f32 %v5534, %v5600
      %v5617 = vsub.f32 %v5535, %v5601
      %v5618 = vsub.f32 %v5536, %v5602
      %v5619 = vsub.f32 %v5537, %v5603
      %v5620 = vsub.f32 %v5538, %v5604
      %v5621 = vsub.f32 %v5539, %v5605
      %v5622 = vsub.f32 %v5540, %v5606
      %v5623 = vsub.f32 %v5541, %v5607
      %v5624 = vsub.f32 %v5542, %v5608
      %v5625 = vsub.f32 %v5543, %v5609
      %v5626 = vsub.f32 %v5544, %v5610
      %v5627 = vsub.f32 %v5545, %v5611
      %v5628 = vmul.f32 %v5612, %v5612
      %v5629 = vmul.f32 %v5613, %v5613
      %v5630 = vmul.f32 %v5614, %v5614
      %v5631 = vmul.f32 %v5615, %v5615
      %v5632 = vmul.f32 %v5616, %v5616
      %v5633 = vmul.f32 %v5617, %v5617
      %v5634 = vmul.f32 %v5618, %v5618
      %v5635 = vmul.f32 %v5619, %v5619
      %v5636 = vmul.f32 %v5620, %v5620
      %v5637 = vmul.f32 %v5621, %v5621
      %v5638 = vmul.f32 %v5622, %v5622
      %v5639 = vmul.f32 %v5623, %v5623
      %v5640 = vmul.f32 %v5624, %v5624
      %v5641 = vmul.f32 %v5625, %v5625
      %v5642 = vmul.f32 %v5626, %v5626
      %v5643 = vmul.f32 %v5627, %v5627
      %v5644 = vsel %vm1185, %v5628, 0.0
      %5645 = vadd.xlane.f32.xlu0 %v5644
      %v5646 = vpop.xlane.xlu0 %5645
      %v5647 = vsel %vm1185, %v5629, 0.0
      %5648 = vadd.xlane.f32.xlu0 %v5647
      %v5649 = vpop.xlane.xlu0 %5648
      %v5650 = vsel %vm1185, %v5630, 0.0
      %5651 = vadd.xlane.f32.xlu0 %v5650
      %v5652 = vpop.xlane.xlu0 %5651
      %v5653 = vsel %vm1185, %v5631, 0.0
      %5654 = vadd.xlane.f32.xlu0 %v5653
      %v5655 = vpop.xlane.xlu0 %5654
      %v5656 = vsel %vm1185, %v5632, 0.0
      %5657 = vadd.xlane.f32.xlu0 %v5656
      %v5658 = vpop.xlane.xlu0 %5657
      %v5659 = vsel %vm1185, %v5633, 0.0
      %5660 = vadd.xlane.f32.xlu0 %v5659
      %v5661 = vpop.xlane.xlu0 %5660
      %v5662 = vsel %vm1185, %v5634, 0.0
      %5663 = vadd.xlane.f32.xlu0 %v5662
      %v5664 = vpop.xlane.xlu0 %5663
      %v5665 = vsel %vm1185, %v5635, 0.0
      %5666 = vadd.xlane.f32.xlu0 %v5665
      %v5667 = vpop.xlane.xlu0 %5666
      %v5668 = vsel %vm1185, %v5636, 0.0
      %5669 = vadd.xlane.f32.xlu0 %v5668
      %v5670 = vpop.xlane.xlu0 %5669
      %v5671 = vsel %vm1185, %v5637, 0.0
      %5672 = vadd.xlane.f32.xlu0 %v5671
      %v5673 = vpop.xlane.xlu0 %5672
      %v5674 = vsel %vm1185, %v5638, 0.0
      %5675 = vadd.xlane.f32.xlu0 %v5674
      %v5676 = vpop.xlane.xlu0 %5675
      %v5677 = vsel %vm1185, %v5639, 0.0
      %5678 = vadd.xlane.f32.xlu0 %v5677
      %v5679 = vpop.xlane.xlu0 %5678
      %v5680 = vsel %vm1185, %v5640, 0.0
      %5681 = vadd.xlane.f32.xlu0 %v5680
      %v5682 = vpop.xlane.xlu0 %5681
      %v5683 = vsel %vm1185, %v5641, 0.0
      %5684 = vadd.xlane.f32.xlu0 %v5683
      %v5685 = vpop.xlane.xlu0 %5684
      %v5686 = vsel %vm1185, %v5642, 0.0
      %5687 = vadd.xlane.f32.xlu0 %v5686
      %v5688 = vpop.xlane.xlu0 %5687
      %v5689 = vsel %vm1185, %v5643, 0.0
      %5690 = vadd.xlane.f32.xlu0 %v5689
      %v5691 = vpop.xlane.xlu0 %5690
      %v5692 = vmul.f32 %v5646, %v4896
      %v5693 = vmul.f32 %v5649, %v4896
      %v5694 = vmul.f32 %v5652, %v4896
      %v5695 = vmul.f32 %v5655, %v4896
      %v5696 = vmul.f32 %v5658, %v4896
      %v5697 = vmul.f32 %v5661, %v4896
      %v5698 = vmul.f32 %v5664, %v4896
      %v5699 = vmul.f32 %v5667, %v4896
      %v5700 = vmul.f32 %v5670, %v4896
      %v5701 = vmul.f32 %v5673, %v4896
      %v5702 = vmul.f32 %v5676, %v4896
      %v5703 = vmul.f32 %v5679, %v4896
      %v5704 = vmul.f32 %v5682, %v4896
      %v5705 = vmul.f32 %v5685, %v4896
      %v5706 = vmul.f32 %v5688, %v4896
      %v5707 = vmul.f32 %v5691, %v4896
      %v5708 = vadd.f32 %v5692, 1e-05
      %v5709 = vadd.f32 %v5693, 1e-05
      %v5710 = vadd.f32 %v5694, 1e-05
      %v5711 = vadd.f32 %v5695, 1e-05
      %v5712 = vadd.f32 %v5696, 1e-05
      %v5713 = vadd.f32 %v5697, 1e-05
      %v5714 = vadd.f32 %v5698, 1e-05
      %v5715 = vadd.f32 %v5699, 1e-05
      %v5716 = vadd.f32 %v5700, 1e-05
      %v5717 = vadd.f32 %v5701, 1e-05
      %v5718 = vadd.f32 %v5702, 1e-05
      %v5719 = vadd.f32 %v5703, 1e-05
      %v5720 = vadd.f32 %v5704, 1e-05
      %v5721 = vadd.f32 %v5705, 1e-05
      %v5722 = vadd.f32 %v5706, 1e-05
      %v5723 = vadd.f32 %v5707, 1e-05
      %v5724 = vrsqrt.pop %v5708
      %v5725 = vrsqrt.pop %v5709
      %v5726 = vrsqrt.pop %v5710
      %v5727 = vrsqrt.pop %v5711
      %v5728 = vrsqrt.pop %v5712
      %v5729 = vrsqrt.pop %v5713
      %v5730 = vrsqrt.pop %v5714
      %v5731 = vrsqrt.pop %v5715
      %v5732 = vrsqrt.pop %v5716
      %v5733 = vrsqrt.pop %v5717
      %v5734 = vrsqrt.pop %v5718
      %v5735 = vrsqrt.pop %v5719
      %v5736 = vrsqrt.pop %v5720
      %v5737 = vrsqrt.pop %v5721
      %v5738 = vrsqrt.pop %v5722
      %v5739 = vrsqrt.pop %v5723
      %v5740 = vmul.f32 %v5612, %v5724
      %v5741 = vmul.f32 %v5613, %v5725
      %v5742 = vmul.f32 %v5614, %v5726
      %v5743 = vmul.f32 %v5615, %v5727
      %v5744 = vmul.f32 %v5616, %v5728
      %v5745 = vmul.f32 %v5617, %v5729
      %v5746 = vmul.f32 %v5618, %v5730
      %v5747 = vmul.f32 %v5619, %v5731
      %v5748 = vmul.f32 %v5620, %v5732
      %v5749 = vmul.f32 %v5621, %v5733
      %v5750 = vmul.f32 %v5622, %v5734
      %v5751 = vmul.f32 %v5623, %v5735
      %v5752 = vmul.f32 %v5624, %v5736
      %v5753 = vmul.f32 %v5625, %v5737
      %v5754 = vmul.f32 %v5626, %v5738
      %v5755 = vmul.f32 %v5627, %v5739
      %v5757 = vlaneseq
      %v5758 = vshrl.u32 %v5757, 7
      %v5759 = vsub.s32 0, %v5758
      %v5760 = vrot.slane %v5546, %v5759
      %v5762 = vmul.f32 %v5740, %v5760
      %v5763 = vmul.f32 %v5741, %v5760
      %v5764 = vmul.f32 %v5742, %v5760
      %v5765 = vmul.f32 %v5743, %v5760
      %v5766 = vmul.f32 %v5744, %v5760
      %v5767 = vmul.f32 %v5745, %v5760
      %v5768 = vmul.f32 %v5746, %v5760
      %v5769 = vmul.f32 %v5747, %v5760
      %v5770 = vmul.f32 %v5748, %v5760
      %v5771 = vmul.f32 %v5749, %v5760
      %v5772 = vmul.f32 %v5750, %v5760
      %v5773 = vmul.f32 %v5751, %v5760
      %v5774 = vmul.f32 %v5752, %v5760
      %v5775 = vmul.f32 %v5753, %v5760
      %v5776 = vmul.f32 %v5754, %v5760
      %v5777 = vmul.f32 %v5755, %v5760
      %v5779 = vlaneseq
      %v5780 = vshrl.u32 %v5779, 7
      %v5781 = vsub.s32 0, %v5780
      %v5782 = vrot.slane %v5547, %v5781
      %v5784 = vadd.f32 %v5762, %v5782
      %v5785 = vadd.f32 %v5763, %v5782
      %v5786 = vadd.f32 %v5764, %v5782
      %v5787 = vadd.f32 %v5765, %v5782
      %v5788 = vadd.f32 %v5766, %v5782
      %v5789 = vadd.f32 %v5767, %v5782
      %v5790 = vadd.f32 %v5768, %v5782
      %v5791 = vadd.f32 %v5769, %v5782
      %v5792 = vadd.f32 %v5770, %v5782
      %v5793 = vadd.f32 %v5771, %v5782
      %v5794 = vadd.f32 %v5772, %v5782
      %v5795 = vadd.f32 %v5773, %v5782
      %v5796 = vadd.f32 %v5774, %v5782
      %v5797 = vadd.f32 %v5775, %v5782
      %v5798 = vadd.f32 %v5776, %v5782
      %v5799 = vadd.f32 %v5777, %v5782
      %s5800 = scalar_lea.vmem %s843, 32
      %v5801 = vld [vmem:[%s5800] sm:$0xff]
      %v5802 = vld [vmem:[%s5800 + $0x8] sm:$0xff]
      %v5803 = vld [vmem:[%s5800 + $0x10] sm:$0xff]
      %v5804 = vld [vmem:[%s5800 + $0x18] sm:$0xff]
      %s5805 = scalar_lea.vmem %s847, 1
      %v5806 = vld [vmem:[%s5805] sm:$0x1]
      %v5808 = vlaneseq
      %v5809 = vshrl.u32 %v5808, 7
      %v5810 = vsub.s32 0, %v5809
      %v5811 = vrot.slane %v5806, %v5810
      %v5814 = vsel %vm1185, %v5784, 0
      %v5817 = vsel %vm1185, %v5785, 0
      %v5820 = vsel %vm1185, %v5786, 0
      %v5823 = vsel %vm1185, %v5787, 0
      %v5826 = vsel %vm1185, %v5788, 0
      %v5829 = vsel %vm1185, %v5789, 0
      %v5832 = vsel %vm1185, %v5790, 0
      %v5835 = vsel %vm1185, %v5791, 0
      %v5838 = vsel %vm1185, %v5792, 0
      %v5841 = vsel %vm1185, %v5793, 0
      %v5844 = vsel %vm1185, %v5794, 0
      %v5847 = vsel %vm1185, %v5795, 0
      %v5850 = vsel %vm1185, %v5796, 0
      %v5853 = vsel %vm1185, %v5797, 0
      %v5856 = vsel %vm1185, %v5798, 0
      %v5859 = vsel %vm1185, %v5799, 0
      %5861 = vmatprep.subr.mxu0 0.0
      %5862 = vmatpush1.msra.mxu0 %v5801
      %5863 = vmatprep.subr.mxu0 0.0
      %5864 = vmatpush1.msra.mxu0 %v5802
      %5865 = vmatprep.subr.mxu0 0.0
      %5866 = vmatpush1.msra.mxu0 %v5803
      %5867 = vmatprep.subr.mxu0 0.0
      %5868 = vmatpush1.msra.mxu0 %v5804
      %5869 = vmatprep.subr.mxu0 0.0
      %5870 = vmatpush1.msra.mxu0 0.0
      %5871 = vmatprep.subr.mxu0 0.0
      %5872 = vmatpush1.msra.mxu0 0.0
      %5873 = vmatprep.subr.mxu0 0.0
      %5874 = vmatpush1.msra.mxu0 0.0
      %5875 = vmatprep.subr.mxu0 0.0
      %5876 = vmatpush1.msra.mxu0 0.0
      %5877 = vmatprep.subr.mxu0 0.0
      %5878 = vmatpush1.msra.mxu0 0.0
      %5879 = vmatprep.subr.mxu0 0.0
      %5880 = vmatpush1.msra.mxu0 0.0
      %5881 = vmatprep.subr.mxu0 0.0
      %5882 = vmatpush1.msra.mxu0 0.0
      %5883 = vmatprep.subr.mxu0 0.0
      %5884 = vmatpush1.msra.mxu0 0.0
      %5885 = vmatprep.subr.mxu0 0.0
      %5886 = vmatpush1.msra.mxu0 0.0
      %5887 = vmatprep.subr.mxu0 0.0
      %5888 = vmatpush1.msra.mxu0 0.0
      %5889 = vmatprep.subr.mxu0 0.0
      %5890 = vmatpush1.msra.mxu0 0.0
      %5891 = vmatprep.subr.mxu0 0.0
      %5892 = vmatpush1.msra.mxu0 0.0
      %5893 = vmatprep.subr.mxu0 0.0
      %5894 = vmatpush1.msra.mxu0 0.0
      %5895 = vmatprep.subr.mxu0 0.0
      %5896 = vmatpush1.msra.mxu0 0.0
      %5897 = vmatprep.subr.mxu0 0.0
      %5898 = vmatpush1.msra.mxu0 0.0
      %5899 = vmatprep.subr.mxu0 0.0
      %5900 = vmatpush1.msra.mxu0 0.0
      %5901 = vmatprep.subr.mxu0 0.0
      %5902 = vmatpush1.msra.mxu0 0.0
      %5903 = vmatprep.subr.mxu0 0.0
      %5904 = vmatpush1.msra.mxu0 0.0
      %5905 = vmatprep.subr.mxu0 0.0
      %5906 = vmatpush1.msra.mxu0 0.0
      %5907 = vmatprep.subr.mxu0 0.0
      %5908 = vmatpush1.msra.mxu0 0.0
      %5909 = vmatprep.subr.mxu0 0.0
      %5910 = vmatpush1.msra.mxu0 0.0
      %5911 = vmatprep.subr.mxu0 0.0
      %5912 = vmatpush1.msra.mxu0 0.0
      %5913 = vmatprep.subr.mxu0 0.0
      %5914 = vmatpush1.msra.mxu0 0.0
      %5915 = vmatprep.subr.mxu0 0.0
      %5916 = vmatpush1.msra.mxu0 0.0
      %5917 = vmatprep.subr.mxu0 0.0
      %5918 = vmatpush1.msra.mxu0 0.0
      %5919 = vmatprep.subr.mxu0 0.0
      %5920 = vmatpush1.msra.mxu0 0.0
      %5921 = vmatprep.subr.mxu0 0.0
      %5922 = vmatpush1.msra.mxu0 0.0
      %5923 = vmatprep.subr.mxu0 0.0
      %5924 = vmatpush1.msra.mxu0 0.0
      %5925 = vmatprep.mubr.f32.mxu0 0.0
      %5926 = vmatmul.mubr.f32.gmra.mrb[0].mxu0 %v5814
      %v5927 = vpop.f32.mrb[0].mxu0
      %v5928 = vadd.f32 %v5811, %v5927
      %v5929 = vpop.f32.mrb[0].mxu0
      %5930 = vmatprep.mubr.f32.mxu0 0.0
      %5931 = vmatmul.mubr.f32.gmra.mrb[0].mxu0 %v5817
      %v5932 = vpop.f32.mrb[0].mxu0
      %v5933 = vadd.f32 %v5811, %v5932
      %v5934 = vpop.f32.mrb[0].mxu0
      %5935 = vmatprep.mubr.f32.mxu0 0.0
      %5936 = vmatmul.mubr.f32.gmra.mrb[0].mxu0 %v5820
      %v5937 = vpop.f32.mrb[0].mxu0
      %v5938 = vadd.f32 %v5811, %v5937
      %v5939 = vpop.f32.mrb[0].mxu0
      %5940 = vmatprep.mubr.f32.mxu0 0.0
      %5941 = vmatmul.mubr.f32.gmra.mrb[0].mxu0 %v5823
      %v5942 = vpop.f32.mrb[0].mxu0
      %v5943 = vadd.f32 %v5811, %v5942
      %v5944 = vpop.f32.mrb[0].mxu0
      %5945 = vmatprep.mubr.f32.mxu0 0.0
      %5946 = vmatmul.mubr.f32.gmra.mrb[0].mxu0 %v5826
      %v5947 = vpop.f32.mrb[0].mxu0
      %v5948 = vadd.f32 %v5811, %v5947
      %v5949 = vpop.f32.mrb[0].mxu0
      %5950 = vmatprep.mubr.f32.mxu0 0.0
      %5951 = vmatmul.mubr.f32.gmra.mrb[0].mxu0 %v5829
      %v5952 = vpop.f32.mrb[0].mxu0
      %v5953 = vadd.f32 %v5811, %v5952
      %v5954 = vpop.f32.mrb[0].mxu0
      %5955 = vmatprep.mubr.f32.mxu0 0.0
      %5956 = vmatmul.mubr.f32.gmra.mrb[0].mxu0 %v5832
      %v5957 = vpop.f32.mrb[0].mxu0
      %v5958 = vadd.f32 %v5811, %v5957
      %v5959 = vpop.f32.mrb[0].mxu0
      %5960 = vmatprep.mubr.f32.mxu0 0.0
      %5961 = vmatmul.mubr.f32.gmra.mrb[0].mxu0 %v5835
      %v5962 = vpop.f32.mrb[0].mxu0
      %v5963 = vadd.f32 %v5811, %v5962
      %v5964 = vpop.f32.mrb[0].mxu0
      %5965 = vmatprep.mubr.f32.mxu0 0.0
      %5966 = vmatmul.mubr.f32.gmra.mrb[0].mxu0 %v5838
      %v5967 = vpop.f32.mrb[0].mxu0
      %v5968 = vadd.f32 %v5811, %v5967
      %v5969 = vpop.f32.mrb[0].mxu0
      %5970 = vmatprep.mubr.f32.mxu0 0.0
      %5971 = vmatmul.mubr.f32.gmra.mrb[0].mxu0 %v5841
      %v5972 = vpop.f32.mrb[0].mxu0
      %v5973 = vadd.f32 %v5811, %v5972
      %v5974 = vpop.f32.mrb[0].mxu0
      %5975 = vmatprep.mubr.f32.mxu0 0.0
      %5976 = vmatmul.mubr.f32.gmra.mrb[0].mxu0 %v5844
      %v5977 = vpop.f32.mrb[0].mxu0
      %v5978 = vadd.f32 %v5811, %v5977
      %v5979 = vpop.f32.mrb[0].mxu0
      %5980 = vmatprep.mubr.f32.mxu0 0.0
      %5981 = vmatmul.mubr.f32.gmra.mrb[0].mxu0 %v5847
      %v5982 = vpop.f32.mrb[0].mxu0
      %v5983 = vadd.f32 %v5811, %v5982
      %v5984 = vpop.f32.mrb[0].mxu0
      %5985 = vmatprep.mubr.f32.mxu0 0.0
      %5986 = vmatmul.mubr.f32.gmra.mrb[0].mxu0 %v5850
      %v5987 = vpop.f32.mrb[0].mxu0
      %v5988 = vadd.f32 %v5811, %v5987
      %v5989 = vpop.f32.mrb[0].mxu0
      %5990 = vmatprep.mubr.f32.mxu0 0.0
      %5991 = vmatmul.mubr.f32.gmra.mrb[0].mxu0 %v5853
      %v5992 = vpop.f32.mrb[0].mxu0
      %v5993 = vadd.f32 %v5811, %v5992
      %v5994 = vpop.f32.mrb[0].mxu0
      %5995 = vmatprep.mubr.f32.mxu0 0.0
      %5996 = vmatmul.mubr.f32.gmra.mrb[0].mxu0 %v5856
      %v5997 = vpop.f32.mrb[0].mxu0
      %v5998 = vadd.f32 %v5811, %v5997
      %v5999 = vpop.f32.mrb[0].mxu0
      %6000 = vmatprep.mubr.f32.mxu0 0.0
      %6001 = vmatmul.mubr.f32.gmra.mrb[0].mxu0 %v5859
      %v6002 = vpop.f32.mrb[0].mxu0
      %v6003 = vadd.f32 %v5811, %v6002
      %v6004 = vpop.f32.mrb[0].mxu0
      %6005 = vdwg.mxu0
      %s6006 = scalar_lea.vmem %s852, 32
      %v6007 = vld [vmem:[%s6006] sm:$0xff]
      %v6008 = vld [vmem:[%s6006 + $0x8] sm:$0xff]
      %v6009 = vld [vmem:[%s6006 + $0x10] sm:$0xff]
      %v6010 = vld [vmem:[%s6006 + $0x18] sm:$0xff]
      %6027 = vrot.lane.b32.xlu0 %v5928, 96
      %v6028 = vpop.permute.xlu0 %6027
      %6029 = vrot.lane.b32.xlu0 %v5933, 96
      %v6030 = vpop.permute.xlu0 %6029
      %6031 = vrot.lane.b32.xlu0 %v5938, 96
      %v6032 = vpop.permute.xlu0 %6031
      %6033 = vrot.lane.b32.xlu0 %v5943, 96
      %v6034 = vpop.permute.xlu0 %6033
      %6035 = vrot.lane.b32.xlu0 %v5948, 96
      %v6036 = vpop.permute.xlu0 %6035
      %6037 = vrot.lane.b32.xlu0 %v5953, 96
      %v6038 = vpop.permute.xlu0 %6037
      %6039 = vrot.lane.b32.xlu0 %v5958, 96
      %v6040 = vpop.permute.xlu0 %6039
      %6041 = vrot.lane.b32.xlu0 %v5963, 96
      %v6042 = vpop.permute.xlu0 %6041
      %6043 = vrot.lane.b32.xlu0 %v5968, 96
      %v6044 = vpop.permute.xlu0 %6043
      %6045 = vrot.lane.b32.xlu0 %v5973, 96
      %v6046 = vpop.permute.xlu0 %6045
      %6047 = vrot.lane.b32.xlu0 %v5978, 96
      %v6048 = vpop.permute.xlu0 %6047
      %6049 = vrot.lane.b32.xlu0 %v5983, 96
      %v6050 = vpop.permute.xlu0 %6049
      %6051 = vrot.lane.b32.xlu0 %v5988, 96
      %v6052 = vpop.permute.xlu0 %6051
      %6053 = vrot.lane.b32.xlu0 %v5993, 96
      %v6054 = vpop.permute.xlu0 %6053
      %6055 = vrot.lane.b32.xlu0 %v5998, 96
      %v6056 = vpop.permute.xlu0 %6055
      %6057 = vrot.lane.b32.xlu0 %v6003, 96
      %v6058 = vpop.permute.xlu0 %6057
      %v6059 = vsel %vm1431, %v5928, 0
      %v6061 = vsel %vm1431, %v5933, 0
      %v6063 = vsel %vm1431, %v5938, 0
      %v6065 = vsel %vm1431, %v5943, 0
      %v6067 = vsel %vm1431, %v5948, 0
      %v6069 = vsel %vm1431, %v5953, 0
      %v6071 = vsel %vm1431, %v5958, 0
      %v6073 = vsel %vm1431, %v5963, 0
      %v6075 = vsel %vm1431, %v5968, 0
      %v6077 = vsel %vm1431, %v5973, 0
      %v6079 = vsel %vm1431, %v5978, 0
      %v6081 = vsel %vm1431, %v5983, 0
      %v6083 = vsel %vm1431, %v5988, 0
      %v6085 = vsel %vm1431, %v5993, 0
      %v6087 = vsel %vm1431, %v5998, 0
      %v6089 = vsel %vm1431, %v6003, 0
      %v6091 = vsel %vm1431, %v6028, 0
      %v6093 = vsel %vm1431, %v6030, 0
      %v6095 = vsel %vm1431, %v6032, 0
      %v6097 = vsel %vm1431, %v6034, 0
      %v6099 = vsel %vm1431, %v6036, 0
      %v6101 = vsel %vm1431, %v6038, 0
      %v6103 = vsel %vm1431, %v6040, 0
      %v6105 = vsel %vm1431, %v6042, 0
      %v6107 = vsel %vm1431, %v6044, 0
      %v6109 = vsel %vm1431, %v6046, 0
      %v6111 = vsel %vm1431, %v6048, 0
      %v6113 = vsel %vm1431, %v6050, 0
      %v6115 = vsel %vm1431, %v6052, 0
      %v6117 = vsel %vm1431, %v6054, 0
      %v6119 = vsel %vm1431, %v6056, 0
      %v6121 = vsel %vm1431, %v6058, 0
      %6123 = vmatprep.subr.mxu0 0.0
      %6124 = vmatpush1.xpose.msra.mxu0 %v6091
      %6125 = vmatprep.subr.mxu0 0.0
      %6126 = vmatpush1.xpose.msra.mxu0 %v6093
      %6127 = vmatprep.subr.mxu0 0.0
      %6128 = vmatpush1.xpose.msra.mxu0 %v6095
      %6129 = vmatprep.subr.mxu0 0.0
      %6130 = vmatpush1.xpose.msra.mxu0 %v6097
      %6131 = vmatprep.subr.mxu0 0.0
      %6132 = vmatpush1.xpose.msra.mxu0 %v6099
      %6133 = vmatprep.subr.mxu0 0.0
      %6134 = vmatpush1.xpose.msra.mxu0 %v6101
      %6135 = vmatprep.subr.mxu0 0.0
      %6136 = vmatpush1.xpose.msra.mxu0 %v6103
      %6137 = vmatprep.subr.mxu0 0.0
      %6138 = vmatpush1.xpose.msra.mxu0 %v6105
      %6139 = vmatprep.subr.mxu0 0.0
      %6140 = vmatpush1.xpose.msra.mxu0 %v6107
      %6141 = vmatprep.subr.mxu0 0.0
      %6142 = vmatpush1.xpose.msra.mxu0 %v6109
      %6143 = vmatprep.subr.mxu0 0.0
      %6144 = vmatpush1.xpose.msra.mxu0 %v6111
      %6145 = vmatprep.subr.mxu0 0.0
      %6146 = vmatpush1.xpose.msra.mxu0 %v6113
      %6147 = vmatprep.subr.mxu0 0.0
      %6148 = vmatpush1.xpose.msra.mxu0 %v6115
      %6149 = vmatprep.subr.mxu0 0.0
      %6150 = vmatpush1.xpose.msra.mxu0 %v6117
      %6151 = vmatprep.subr.mxu0 0.0
      %6152 = vmatpush1.xpose.msra.mxu0 %v6119
      %6153 = vmatprep.subr.mxu0 0.0
      %6154 = vmatpush1.xpose.msra.mxu0 %v6121
      %6155 = vmatprep.subr.mxu0 0.0
      %6156 = vmatpush1.xpose.msra.mxu0 0.0
      %6157 = vmatprep.subr.mxu0 0.0
      %6158 = vmatpush1.xpose.msra.mxu0 0.0
      %6159 = vmatprep.subr.mxu0 0.0
      %6160 = vmatpush1.xpose.msra.mxu0 0.0
      %6161 = vmatprep.subr.mxu0 0.0
      %6162 = vmatpush1.xpose.msra.mxu0 0.0
      %6163 = vmatprep.subr.mxu0 0.0
      %6164 = vmatpush1.xpose.msra.mxu0 0.0
      %6165 = vmatprep.subr.mxu0 0.0
      %6166 = vmatpush1.xpose.msra.mxu0 0.0
      %6167 = vmatprep.subr.mxu0 0.0
      %6168 = vmatpush1.xpose.msra.mxu0 0.0
      %6169 = vmatprep.subr.mxu0 0.0
      %6170 = vmatpush1.xpose.msra.mxu0 0.0
      %6171 = vmatprep.subr.mxu0 0.0
      %6172 = vmatpush1.xpose.msra.mxu0 0.0
      %6173 = vmatprep.subr.mxu0 0.0
      %6174 = vmatpush1.xpose.msra.mxu0 0.0
      %6175 = vmatprep.subr.mxu0 0.0
      %6176 = vmatpush1.xpose.msra.mxu0 0.0
      %6177 = vmatprep.subr.mxu0 0.0
      %6178 = vmatpush1.xpose.msra.mxu0 0.0
      %6179 = vmatprep.subr.mxu0 0.0
      %6180 = vmatpush1.xpose.msra.mxu0 0.0
      %6181 = vmatprep.subr.mxu0 0.0
      %6182 = vmatpush1.xpose.msra.mxu0 0.0
      %6183 = vmatprep.subr.mxu0 0.0
      %6184 = vmatpush1.xpose.msra.mxu0 0.0
      %6185 = vmatprep.subr.mxu0 0.0
      %6186 = vmatpush1.xpose.msra.mxu0 0.0
      %6187 = vmatprep.mubr.f32.mxu0 0.0
      %6188 = vmatmul.mubr.f32.gmra.mrb[0].mxu0 %v6059
      %v6189 = vpop.f32.mrb[0].mxu0
      %v6190 = vadd.f32 0.0, %v6189
      %v6191 = vpop.f32.mrb[0].mxu0
      %6192 = vmatprep.mubr.f32.mxu0 0.0
      %6193 = vmatmul.mubr.f32.gmra.mrb[0].mxu0 %v6061
      %v6194 = vpop.f32.mrb[0].mxu0
      %v6195 = vadd.f32 0.0, %v6194
      %v6196 = vpop.f32.mrb[0].mxu0
      %6197 = vmatprep.mubr.f32.mxu0 0.0
      %6198 = vmatmul.mubr.f32.gmra.mrb[0].mxu0 %v6063
      %v6199 = vpop.f32.mrb[0].mxu0
      %v6200 = vadd.f32 0.0, %v6199
      %v6201 = vpop.f32.mrb[0].mxu0
      %6202 = vmatprep.mubr.f32.mxu0 0.0
      %6203 = vmatmul.mubr.f32.gmra.mrb[0].mxu0 %v6065
      %v6204 = vpop.f32.mrb[0].mxu0
      %v6205 = vadd.f32 0.0, %v6204
      %v6206 = vpop.f32.mrb[0].mxu0
      %6207 = vmatprep.mubr.f32.mxu0 0.0
      %6208 = vmatmul.mubr.f32.gmra.mrb[0].mxu0 %v6067
      %v6209 = vpop.f32.mrb[0].mxu0
      %v6210 = vadd.f32 0.0, %v6209
      %v6211 = vpop.f32.mrb[0].mxu0
      %6212 = vmatprep.mubr.f32.mxu0 0.0
      %6213 = vmatmul.mubr.f32.gmra.mrb[0].mxu0 %v6069
      %v6214 = vpop.f32.mrb[0].mxu0
      %v6215 = vadd.f32 0.0, %v6214
      %v6216 = vpop.f32.mrb[0].mxu0
      %6217 = vmatprep.mubr.f32.mxu0 0.0
      %6218 = vmatmul.mubr.f32.gmra.mrb[0].mxu0 %v6071
      %v6219 = vpop.f32.mrb[0].mxu0
      %v6220 = vadd.f32 0.0, %v6219
      %v6221 = vpop.f32.mrb[0].mxu0
      %6222 = vmatprep.mubr.f32.mxu0 0.0
      %6223 = vmatmul.mubr.f32.gmra.mrb[0].mxu0 %v6073
      %v6224 = vpop.f32.mrb[0].mxu0
      %v6225 = vadd.f32 0.0, %v6224
      %v6226 = vpop.f32.mrb[0].mxu0
      %6227 = vmatprep.mubr.f32.mxu0 0.0
      %6228 = vmatmul.mubr.f32.gmra.mrb[0].mxu0 %v6075
      %v6229 = vpop.f32.mrb[0].mxu0
      %v6230 = vadd.f32 0.0, %v6229
      %v6231 = vpop.f32.mrb[0].mxu0
      %6232 = vmatprep.mubr.f32.mxu0 0.0
      %6233 = vmatmul.mubr.f32.gmra.mrb[0].mxu0 %v6077
      %v6234 = vpop.f32.mrb[0].mxu0
      %v6235 = vadd.f32 0.0, %v6234
      %v6236 = vpop.f32.mrb[0].mxu0
      %6237 = vmatprep.mubr.f32.mxu0 0.0
      %6238 = vmatmul.mubr.f32.gmra.mrb[0].mxu0 %v6079
      %v6239 = vpop.f32.mrb[0].mxu0
      %v6240 = vadd.f32 0.0, %v6239
      %v6241 = vpop.f32.mrb[0].mxu0
      %6242 = vmatprep.mubr.f32.mxu0 0.0
      %6243 = vmatmul.mubr.f32.gmra.mrb[0].mxu0 %v6081
      %v6244 = vpop.f32.mrb[0].mxu0
      %v6245 = vadd.f32 0.0, %v6244
      %v6246 = vpop.f32.mrb[0].mxu0
      %6247 = vmatprep.mubr.f32.mxu0 0.0
      %6248 = vmatmul.mubr.f32.gmra.mrb[0].mxu0 %v6083
      %v6249 = vpop.f32.mrb[0].mxu0
      %v6250 = vadd.f32 0.0, %v6249
      %v6251 = vpop.f32.mrb[0].mxu0
      %6252 = vmatprep.mubr.f32.mxu0 0.0
      %6253 = vmatmul.mubr.f32.gmra.mrb[0].mxu0 %v6085
      %v6254 = vpop.f32.mrb[0].mxu0
      %v6255 = vadd.f32 0.0, %v6254
      %v6256 = vpop.f32.mrb[0].mxu0
      %6257 = vmatprep.mubr.f32.mxu0 0.0
      %6258 = vmatmul.mubr.f32.gmra.mrb[0].mxu0 %v6087
      %v6259 = vpop.f32.mrb[0].mxu0
      %v6260 = vadd.f32 0.0, %v6259
      %v6261 = vpop.f32.mrb[0].mxu0
      %6262 = vmatprep.mubr.f32.mxu0 0.0
      %6263 = vmatmul.mubr.f32.gmra.mrb[0].mxu0 %v6089
      %v6264 = vpop.f32.mrb[0].mxu0
      %v6265 = vadd.f32 0.0, %v6264
      %v6266 = vpop.f32.mrb[0].mxu0
      %6267 = vdwg.mxu0
      %v6268 = vmul.f32 %v6190, 0.35355338
      %v6269 = vmul.f32 %v6195, 0.35355338
      %v6270 = vmul.f32 %v6200, 0.35355338
      %v6271 = vmul.f32 %v6205, 0.35355338
      %v6272 = vmul.f32 %v6210, 0.35355338
      %v6273 = vmul.f32 %v6215, 0.35355338
      %v6274 = vmul.f32 %v6220, 0.35355338
      %v6275 = vmul.f32 %v6225, 0.35355338
      %v6276 = vmul.f32 %v6230, 0.35355338
      %v6277 = vmul.f32 %v6235, 0.35355338
      %v6278 = vmul.f32 %v6240, 0.35355338
      %v6279 = vmul.f32 %v6245, 0.35355338
      %v6280 = vmul.f32 %v6250, 0.35355338
      %v6281 = vmul.f32 %v6255, 0.35355338
      %v6282 = vmul.f32 %v6260, 0.35355338
      %v6283 = vmul.f32 %v6265, 0.35355338
      %v6284 = vld [vmem:[#allocation2] sm:$0xff]
      %v6285 = vld [vmem:[#allocation2 + $0x8] sm:$0xff]
      %v6286 = vld [vmem:[#allocation2 + $0x10] sm:$0xff]
      %v6287 = vld [vmem:[#allocation2 + $0x18] sm:$0xff]
      %v6288 = vld [vmem:[#allocation2 + $0x20] sm:$0xff]
      %v6289 = vld [vmem:[#allocation2 + $0x28] sm:$0xff]
      %v6290 = vld [vmem:[#allocation2 + $0x30] sm:$0xff]
      %v6291 = vld [vmem:[#allocation2 + $0x38] sm:$0xff]
      %v6292 = vld [vmem:[#allocation2 + $0x40] sm:$0xff]
      %v6293 = vld [vmem:[#allocation2 + $0x48] sm:$0xff]
      %v6294 = vld [vmem:[#allocation2 + $0x50] sm:$0xff]
      %v6295 = vld [vmem:[#allocation2 + $0x58] sm:$0xff]
      %v6296 = vld [vmem:[#allocation2 + $0x60] sm:$0xff]
      %v6297 = vld [vmem:[#allocation2 + $0x68] sm:$0xff]
      %v6298 = vld [vmem:[#allocation2 + $0x70] sm:$0xff]
      %v6299 = vld [vmem:[#allocation2 + $0x78] sm:$0xff]
      %v6300 = vadd.f32 %v6268, %v6284
      %v6301 = vadd.f32 %v6269, %v6285
      %v6302 = vadd.f32 %v6270, %v6286
      %v6303 = vadd.f32 %v6271, %v6287
      %v6304 = vadd.f32 %v6272, %v6288
      %v6305 = vadd.f32 %v6273, %v6289
      %v6306 = vadd.f32 %v6274, %v6290
      %v6307 = vadd.f32 %v6275, %v6291
      %v6308 = vadd.f32 %v6276, %v6292
      %v6309 = vadd.f32 %v6277, %v6293
      %v6310 = vadd.f32 %v6278, %v6294
      %v6311 = vadd.f32 %v6279, %v6295
      %v6312 = vadd.f32 %v6280, %v6296
      %v6313 = vadd.f32 %v6281, %v6297
      %v6314 = vadd.f32 %v6282, %v6298
      %v6315 = vadd.f32 %v6283, %v6299
      %v6316 = vadd.f32 %v6300, %v1158
      %v6317 = vadd.f32 %v6301, %v1159
      %v6318 = vadd.f32 %v6302, %v1160
      %v6319 = vadd.f32 %v6303, %v1161
      %v6320 = vadd.f32 %v6304, %v1162
      %v6321 = vadd.f32 %v6305, %v1163
      %v6322 = vadd.f32 %v6306, %v1164
      %v6323 = vadd.f32 %v6307, %v1165
      %v6324 = vadd.f32 %v6308, %v1166
      %v6325 = vadd.f32 %v6309, %v1167
      %v6326 = vadd.f32 %v6310, %v1168
      %v6327 = vadd.f32 %v6311, %v1169
      %v6328 = vadd.f32 %v6312, %v1170
      %v6329 = vadd.f32 %v6313, %v1171
      %v6330 = vadd.f32 %v6314, %v1172
      %v6331 = vadd.f32 %v6315, %v1173
      %6332 = vmax.xlane.f32.xlu0 %v6316
      %v6333 = vpop.xlane.xlu0 %6332
      %6334 = vmax.xlane.f32.xlu0 %v6317
      %v6335 = vpop.xlane.xlu0 %6334
      %6336 = vmax.xlane.f32.xlu0 %v6318
      %v6337 = vpop.xlane.xlu0 %6336
      %6338 = vmax.xlane.f32.xlu0 %v6319
      %v6339 = vpop.xlane.xlu0 %6338
      %6340 = vmax.xlane.f32.xlu0 %v6320
      %v6341 = vpop.xlane.xlu0 %6340
      %6342 = vmax.xlane.f32.xlu0 %v6321
      %v6343 = vpop.xlane.xlu0 %6342
      %6344 = vmax.xlane.f32.xlu0 %v6322
      %v6345 = vpop.xlane.xlu0 %6344
      %6346 = vmax.xlane.f32.xlu0 %v6323
      %v6347 = vpop.xlane.xlu0 %6346
      %6348 = vmax.xlane.f32.xlu0 %v6324
      %v6349 = vpop.xlane.xlu0 %6348
      %6350 = vmax.xlane.f32.xlu0 %v6325
      %v6351 = vpop.xlane.xlu0 %6350
      %6352 = vmax.xlane.f32.xlu0 %v6326
      %v6353 = vpop.xlane.xlu0 %6352
      %6354 = vmax.xlane.f32.xlu0 %v6327
      %v6355 = vpop.xlane.xlu0 %6354
      %6356 = vmax.xlane.f32.xlu0 %v6328
      %v6357 = vpop.xlane.xlu0 %6356
      %6358 = vmax.xlane.f32.xlu0 %v6329
      %v6359 = vpop.xlane.xlu0 %6358
      %6360 = vmax.xlane.f32.xlu0 %v6330
      %v6361 = vpop.xlane.xlu0 %6360
      %6362 = vmax.xlane.f32.xlu0 %v6331
      %v6363 = vpop.xlane.xlu0 %6362
      %v6364 = vsub.f32 %v6316, %v6333
      %v6365 = vsub.f32 %v6317, %v6335
      %v6366 = vsub.f32 %v6318, %v6337
      %v6367 = vsub.f32 %v6319, %v6339
      %v6368 = vsub.f32 %v6320, %v6341
      %v6369 = vsub.f32 %v6321, %v6343
      %v6370 = vsub.f32 %v6322, %v6345
      %v6371 = vsub.f32 %v6323, %v6347
      %v6372 = vsub.f32 %v6324, %v6349
      %v6373 = vsub.f32 %v6325, %v6351
      %v6374 = vsub.f32 %v6326, %v6353
      %v6375 = vsub.f32 %v6327, %v6355
      %v6376 = vsub.f32 %v6328, %v6357
      %v6377 = vsub.f32 %v6329, %v6359
      %v6378 = vsub.f32 %v6330, %v6361
      %v6379 = vsub.f32 %v6331, %v6363
      %v6380 = vmul.f32 %v6364, 1.442695
      %v6381 = vpow.pop %v6380
      %v6382 = vmul.f32 %v6365, 1.442695
      %v6383 = vpow.pop %v6382
      %v6384 = vmul.f32 %v6366, 1.442695
      %v6385 = vpow.pop %v6384
      %v6386 = vmul.f32 %v6367, 1.442695
      %v6387 = vpow.pop %v6386
      %v6388 = vmul.f32 %v6368, 1.442695
      %v6389 = vpow.pop %v6388
      %v6390 = vmul.f32 %v6369, 1.442695
      %v6391 = vpow.pop %v6390
      %v6392 = vmul.f32 %v6370, 1.442695
      %v6393 = vpow.pop %v6392
      %v6394 = vmul.f32 %v6371, 1.442695
      %v6395 = vpow.pop %v6394
      %v6396 = vmul.f32 %v6372, 1.442695
      %v6397 = vpow.pop %v6396
      %v6398 = vmul.f32 %v6373, 1.442695
      %v6399 = vpow.pop %v6398
      %v6400 = vmul.f32 %v6374, 1.442695
      %v6401 = vpow.pop %v6400
      %v6402 = vmul.f32 %v6375, 1.442695
      %v6403 = vpow.pop %v6402
      %v6404 = vmul.f32 %v6376, 1.442695
      %v6405 = vpow.pop %v6404
      %v6406 = vmul.f32 %v6377, 1.442695
      %v6407 = vpow.pop %v6406
      %v6408 = vmul.f32 %v6378, 1.442695
      %v6409 = vpow.pop %v6408
      %v6410 = vmul.f32 %v6379, 1.442695
      %v6411 = vpow.pop %v6410
      %6412 = vadd.xlane.f32.xlu0 %v6381
      %v6413 = vpop.xlane.xlu0 %6412
      %6414 = vadd.xlane.f32.xlu0 %v6383
      %v6415 = vpop.xlane.xlu0 %6414
      %6416 = vadd.xlane.f32.xlu0 %v6385
      %v6417 = vpop.xlane.xlu0 %6416
      %6418 = vadd.xlane.f32.xlu0 %v6387
      %v6419 = vpop.xlane.xlu0 %6418
      %6420 = vadd.xlane.f32.xlu0 %v6389
      %v6421 = vpop.xlane.xlu0 %6420
      %6422 = vadd.xlane.f32.xlu0 %v6391
      %v6423 = vpop.xlane.xlu0 %6422
      %6424 = vadd.xlane.f32.xlu0 %v6393
      %v6425 = vpop.xlane.xlu0 %6424
      %6426 = vadd.xlane.f32.xlu0 %v6395
      %v6427 = vpop.xlane.xlu0 %6426
      %6428 = vadd.xlane.f32.xlu0 %v6397
      %v6429 = vpop.xlane.xlu0 %6428
      %6430 = vadd.xlane.f32.xlu0 %v6399
      %v6431 = vpop.xlane.xlu0 %6430
      %6432 = vadd.xlane.f32.xlu0 %v6401
      %v6433 = vpop.xlane.xlu0 %6432
      %6434 = vadd.xlane.f32.xlu0 %v6403
      %v6435 = vpop.xlane.xlu0 %6434
      %6436 = vadd.xlane.f32.xlu0 %v6405
      %v6437 = vpop.xlane.xlu0 %6436
      %6438 = vadd.xlane.f32.xlu0 %v6407
      %v6439 = vpop.xlane.xlu0 %6438
      %6440 = vadd.xlane.f32.xlu0 %v6409
      %v6441 = vpop.xlane.xlu0 %6440
      %6442 = vadd.xlane.f32.xlu0 %v6411
      %v6443 = vpop.xlane.xlu0 %6442
      %v6444 = vrcp.pop %v6413
      %v6445 = vrcp.pop %v6415
      %v6446 = vrcp.pop %v6417
      %v6447 = vrcp.pop %v6419
      %v6448 = vrcp.pop %v6421
      %v6449 = vrcp.pop %v6423
      %v6450 = vrcp.pop %v6425
      %v6451 = vrcp.pop %v6427
      %v6452 = vrcp.pop %v6429
      %v6453 = vrcp.pop %v6431
      %v6454 = vrcp.pop %v6433
      %v6455 = vrcp.pop %v6435
      %v6456 = vrcp.pop %v6437
      %v6457 = vrcp.pop %v6439
      %v6458 = vrcp.pop %v6441
      %v6459 = vrcp.pop %v6443
      %v6460 = vmul.f32 %v6381, %v6444
      %v6461 = vmul.f32 %v6383, %v6445
      %v6462 = vmul.f32 %v6385, %v6446
      %v6463 = vmul.f32 %v6387, %v6447
      %v6464 = vmul.f32 %v6389, %v6448
      %v6465 = vmul.f32 %v6391, %v6449
      %v6466 = vmul.f32 %v6393, %v6450
      %v6467 = vmul.f32 %v6395, %v6451
      %v6468 = vmul.f32 %v6397, %v6452
      %v6469 = vmul.f32 %v6399, %v6453
      %v6470 = vmul.f32 %v6401, %v6454
      %v6471 = vmul.f32 %v6403, %v6455
      %v6472 = vmul.f32 %v6405, %v6456
      %v6473 = vmul.f32 %v6407, %v6457
      %v6474 = vmul.f32 %v6409, %v6458
      %v6475 = vmul.f32 %v6411, %v6459
      %6476 = vrot.lane.b32.xlu0 %v5928, 64
      %v6477 = vpop.permute.xlu0 %6476
      %6478 = vrot.lane.b32.xlu0 %v5933, 64
      %v6479 = vpop.permute.xlu0 %6478
      %6480 = vrot.lane.b32.xlu0 %v5938, 64
      %v6481 = vpop.permute.xlu0 %6480
      %6482 = vrot.lane.b32.xlu0 %v5943, 64
      %v6483 = vpop.permute.xlu0 %6482
      %6484 = vrot.lane.b32.xlu0 %v5948, 64
      %v6485 = vpop.permute.xlu0 %6484
      %6486 = vrot.lane.b32.xlu0 %v5953, 64
      %v6487 = vpop.permute.xlu0 %6486
      %6488 = vrot.lane.b32.xlu0 %v5958, 64
      %v6489 = vpop.permute.xlu0 %6488
      %6490 = vrot.lane.b32.xlu0 %v5963, 64
      %v6491 = vpop.permute.xlu0 %6490
      %6492 = vrot.lane.b32.xlu0 %v5968, 64
      %v6493 = vpop.permute.xlu0 %6492
      %6494 = vrot.lane.b32.xlu0 %v5973, 64
      %v6495 = vpop.permute.xlu0 %6494
      %6496 = vrot.lane.b32.xlu0 %v5978, 64
      %v6497 = vpop.permute.xlu0 %6496
      %6498 = vrot.lane.b32.xlu0 %v5983, 64
      %v6499 = vpop.permute.xlu0 %6498
      %6500 = vrot.lane.b32.xlu0 %v5988, 64
      %v6501 = vpop.permute.xlu0 %6500
      %6502 = vrot.lane.b32.xlu0 %v5993, 64
      %v6503 = vpop.permute.xlu0 %6502
      %6504 = vrot.lane.b32.xlu0 %v5998, 64
      %v6505 = vpop.permute.xlu0 %6504
      %6506 = vrot.lane.b32.xlu0 %v6003, 64
      %v6507 = vpop.permute.xlu0 %6506
      %6524 = vmatprep.subr.mxu0 0.0
      %6525 = vmatpush1.msra.mxu0 %v6477
      %6526 = vmatprep.subr.mxu0 0.0
      %6527 = vmatpush1.msra.mxu0 %v6479
      %6528 = vmatprep.subr.mxu0 0.0
      %6529 = vmatpush1.msra.mxu0 %v6481
      %6530 = vmatprep.subr.mxu0 0.0
      %6531 = vmatpush1.msra.mxu0 %v6483
      %6532 = vmatprep.subr.mxu0 0.0
      %6533 = vmatpush1.msra.mxu0 %v6485
      %6534 = vmatprep.subr.mxu0 0.0
      %6535 = vmatpush1.msra.mxu0 %v6487
      %6536 = vmatprep.subr.mxu0 0.0
      %6537 = vmatpush1.msra.mxu0 %v6489
      %6538 = vmatprep.subr.mxu0 0.0
      %6539 = vmatpush1.msra.mxu0 %v6491
      %6540 = vmatprep.subr.mxu0 0.0
      %6541 = vmatpush1.msra.mxu0 %v6493
      %6542 = vmatprep.subr.mxu0 0.0
      %6543 = vmatpush1.msra.mxu0 %v6495
      %6544 = vmatprep.subr.mxu0 0.0
      %6545 = vmatpush1.msra.mxu0 %v6497
      %6546 = vmatprep.subr.mxu0 0.0
      %6547 = vmatpush1.msra.mxu0 %v6499
      %6548 = vmatprep.subr.mxu0 0.0
      %6549 = vmatpush1.msra.mxu0 %v6501
      %6550 = vmatprep.subr.mxu0 0.0
      %6551 = vmatpush1.msra.mxu0 %v6503
      %6552 = vmatprep.subr.mxu0 0.0
      %6553 = vmatpush1.msra.mxu0 %v6505
      %6554 = vmatprep.subr.mxu0 0.0
      %6555 = vmatpush1.msra.mxu0 %v6507
      %6556 = vmatprep.subr.mxu0 0.0
      %6557 = vmatpush1.msra.mxu0 0.0
      %6558 = vmatprep.subr.mxu0 0.0
      %6559 = vmatpush1.msra.mxu0 0.0
      %6560 = vmatprep.subr.mxu0 0.0
      %6561 = vmatpush1.msra.mxu0 0.0
      %6562 = vmatprep.subr.mxu0 0.0
      %6563 = vmatpush1.msra.mxu0 0.0
      %6564 = vmatprep.subr.mxu0 0.0
      %6565 = vmatpush1.msra.mxu0 0.0
      %6566 = vmatprep.subr.mxu0 0.0
      %6567 = vmatpush1.msra.mxu0 0.0
      %6568 = vmatprep.subr.mxu0 0.0
      %6569 = vmatpush1.msra.mxu0 0.0
      %6570 = vmatprep.subr.mxu0 0.0
      %6571 = vmatpush1.msra.mxu0 0.0
      %6572 = vmatprep.subr.mxu0 0.0
      %6573 = vmatpush1.msra.mxu0 0.0
      %6574 = vmatprep.subr.mxu0 0.0
      %6575 = vmatpush1.msra.mxu0 0.0
      %6576 = vmatprep.subr.mxu0 0.0
      %6577 = vmatpush1.msra.mxu0 0.0
      %6578 = vmatprep.subr.mxu0 0.0
      %6579 = vmatpush1.msra.mxu0 0.0
      %6580 = vmatprep.subr.mxu0 0.0
      %6581 = vmatpush1.msra.mxu0 0.0
      %6582 = vmatprep.subr.mxu0 0.0
      %6583 = vmatpush1.msra.mxu0 0.0
      %6584 = vmatprep.subr.mxu0 0.0
      %6585 = vmatpush1.msra.mxu0 0.0
      %6586 = vmatprep.subr.mxu0 0.0
      %6587 = vmatpush1.msra.mxu0 0.0
      %6588 = vmatprep.mubr.f32.mxu0 0.0
      %6589 = vmatmul.mubr.f32.gmra.mrb[0].mxu0 %v6460
      %v6590 = vpop.f32.mrb[0].mxu0
      %v6591 = vadd.f32 0.0, %v6590
      %v6592 = vpop.f32.mrb[0].mxu0
      %6593 = vmatprep.mubr.f32.mxu0 0.0
      %6594 = vmatmul.mubr.f32.gmra.mrb[0].mxu0 %v6461
      %v6595 = vpop.f32.mrb[0].mxu0
      %v6596 = vadd.f32 0.0, %v6595
      %v6597 = vpop.f32.mrb[0].mxu0
      %6598 = vmatprep.mubr.f32.mxu0 0.0
      %6599 = vmatmul.mubr.f32.gmra.mrb[0].mxu0 %v6462
      %v6600 = vpop.f32.mrb[0].mxu0
      %v6601 = vadd.f32 0.0, %v6600
      %v6602 = vpop.f32.mrb[0].mxu0
      %6603 = vmatprep.mubr.f32.mxu0 0.0
      %6604 = vmatmul.mubr.f32.gmra.mrb[0].mxu0 %v6463
      %v6605 = vpop.f32.mrb[0].mxu0
      %v6606 = vadd.f32 0.0, %v6605
      %v6607 = vpop.f32.mrb[0].mxu0
      %6608 = vmatprep.mubr.f32.mxu0 0.0
      %6609 = vmatmul.mubr.f32.gmra.mrb[0].mxu0 %v6464
      %v6610 = vpop.f32.mrb[0].mxu0
      %v6611 = vadd.f32 0.0, %v6610
      %v6612 = vpop.f32.mrb[0].mxu0
      %6613 = vmatprep.mubr.f32.mxu0 0.0
      %6614 = vmatmul.mubr.f32.gmra.mrb[0].mxu0 %v6465
      %v6615 = vpop.f32.mrb[0].mxu0
      %v6616 = vadd.f32 0.0, %v6615
      %v6617 = vpop.f32.mrb[0].mxu0
      %6618 = vmatprep.mubr.f32.mxu0 0.0
      %6619 = vmatmul.mubr.f32.gmra.mrb[0].mxu0 %v6466
      %v6620 = vpop.f32.mrb[0].mxu0
      %v6621 = vadd.f32 0.0, %v6620
      %v6622 = vpop.f32.mrb[0].mxu0
      %6623 = vmatprep.mubr.f32.mxu0 0.0
      %6624 = vmatmul.mubr.f32.gmra.mrb[0].mxu0 %v6467
      %v6625 = vpop.f32.mrb[0].mxu0
      %v6626 = vadd.f32 0.0, %v6625
      %v6627 = vpop.f32.mrb[0].mxu0
      %6628 = vmatprep.mubr.f32.mxu0 0.0
      %6629 = vmatmul.mubr.f32.gmra.mrb[0].mxu0 %v6468
      %v6630 = vpop.f32.mrb[0].mxu0
      %v6631 = vadd.f32 0.0, %v6630
      %v6632 = vpop.f32.mrb[0].mxu0
      %6633 = vmatprep.mubr.f32.mxu0 0.0
      %6634 = vmatmul.mubr.f32.gmra.mrb[0].mxu0 %v6469
      %v6635 = vpop.f32.mrb[0].mxu0
      %v6636 = vadd.f32 0.0, %v6635
      %v6637 = vpop.f32.mrb[0].mxu0
      %6638 = vmatprep.mubr.f32.mxu0 0.0
      %6639 = vmatmul.mubr.f32.gmra.mrb[0].mxu0 %v6470
      %v6640 = vpop.f32.mrb[0].mxu0
      %v6641 = vadd.f32 0.0, %v6640
      %v6642 = vpop.f32.mrb[0].mxu0
      %6643 = vmatprep.mubr.f32.mxu0 0.0
      %6644 = vmatmul.mubr.f32.gmra.mrb[0].mxu0 %v6471
      %v6645 = vpop.f32.mrb[0].mxu0
      %v6646 = vadd.f32 0.0, %v6645
      %v6647 = vpop.f32.mrb[0].mxu0
      %6648 = vmatprep.mubr.f32.mxu0 0.0
      %6649 = vmatmul.mubr.f32.gmra.mrb[0].mxu0 %v6472
      %v6650 = vpop.f32.mrb[0].mxu0
      %v6651 = vadd.f32 0.0, %v6650
      %v6652 = vpop.f32.mrb[0].mxu0
      %6653 = vmatprep.mubr.f32.mxu0 0.0
      %6654 = vmatmul.mubr.f32.gmra.mrb[0].mxu0 %v6473
      %v6655 = vpop.f32.mrb[0].mxu0
      %v6656 = vadd.f32 0.0, %v6655
      %v6657 = vpop.f32.mrb[0].mxu0
      %6658 = vmatprep.mubr.f32.mxu0 0.0
      %6659 = vmatmul.mubr.f32.gmra.mrb[0].mxu0 %v6474
      %v6660 = vpop.f32.mrb[0].mxu0
      %v6661 = vadd.f32 0.0, %v6660
      %v6662 = vpop.f32.mrb[0].mxu0
      %6663 = vmatprep.mubr.f32.mxu0 0.0
      %6664 = vmatmul.mubr.f32.gmra.mrb[0].mxu0 %v6475
      %v6665 = vpop.f32.mrb[0].mxu0
      %v6666 = vadd.f32 0.0, %v6665
      %v6667 = vpop.f32.mrb[0].mxu0
      %6668 = vdwg.mxu0
      %6669 = vrot.lane.b32.xlu0 %v5928, 120
      %v6670 = vpop.permute.xlu0 %6669
      %6671 = vrot.lane.b32.xlu0 %v5933, 120
      %v6672 = vpop.permute.xlu0 %6671
      %6673 = vrot.lane.b32.xlu0 %v5938, 120
      %v6674 = vpop.permute.xlu0 %6673
      %6675 = vrot.lane.b32.xlu0 %v5943, 120
      %v6676 = vpop.permute.xlu0 %6675
      %6677 = vrot.lane.b32.xlu0 %v5948, 120
      %v6678 = vpop.permute.xlu0 %6677
      %6679 = vrot.lane.b32.xlu0 %v5953, 120
      %v6680 = vpop.permute.xlu0 %6679
      %6681 = vrot.lane.b32.xlu0 %v5958, 120
      %v6682 = vpop.permute.xlu0 %6681
      %6683 = vrot.lane.b32.xlu0 %v5963, 120
      %v6684 = vpop.permute.xlu0 %6683
      %6685 = vrot.lane.b32.xlu0 %v5968, 120
      %v6686 = vpop.permute.xlu0 %6685
      %6687 = vrot.lane.b32.xlu0 %v5973, 120
      %v6688 = vpop.permute.xlu0 %6687
      %6689 = vrot.lane.b32.xlu0 %v5978, 120
      %v6690 = vpop.permute.xlu0 %6689
      %6691 = vrot.lane.b32.xlu0 %v5983, 120
      %v6692 = vpop.permute.xlu0 %6691
      %6693 = vrot.lane.b32.xlu0 %v5988, 120
      %v6694 = vpop.permute.xlu0 %6693
      %6695 = vrot.lane.b32.xlu0 %v5993, 120
      %v6696 = vpop.permute.xlu0 %6695
      %6697 = vrot.lane.b32.xlu0 %v5998, 120
      %v6698 = vpop.permute.xlu0 %6697
      %6699 = vrot.lane.b32.xlu0 %v6003, 120
      %v6700 = vpop.permute.xlu0 %6699
      %6701 = vrot.lane.b32.xlu0 %v5928, 88
      %v6702 = vpop.permute.xlu0 %6701
      %6703 = vrot.lane.b32.xlu0 %v5933, 88
      %v6704 = vpop.permute.xlu0 %6703
      %6705 = vrot.lane.b32.xlu0 %v5938, 88
      %v6706 = vpop.permute.xlu0 %6705
      %6707 = vrot.lane.b32.xlu0 %v5943, 88
      %v6708 = vpop.permute.xlu0 %6707
      %6709 = vrot.lane.b32.xlu0 %v5948, 88
      %v6710 = vpop.permute.xlu0 %6709
      %6711 = vrot.lane.b32.xlu0 %v5953, 88
      %v6712 = vpop.permute.xlu0 %6711
      %6713 = vrot.lane.b32.xlu0 %v5958, 88
      %v6714 = vpop.permute.xlu0 %6713
      %6715 = vrot.lane.b32.xlu0 %v5963, 88
      %v6716 = vpop.permute.xlu0 %6715
      %6717 = vrot.lane.b32.xlu0 %v5968, 88
      %v6718 = vpop.permute.xlu0 %6717
      %6719 = vrot.lane.b32.xlu0 %v5973, 88
      %v6720 = vpop.permute.xlu0 %6719
      %6721 = vrot.lane.b32.xlu0 %v5978, 88
      %v6722 = vpop.permute.xlu0 %6721
      %6723 = vrot.lane.b32.xlu0 %v5983, 88
      %v6724 = vpop.permute.xlu0 %6723
      %6725 = vrot.lane.b32.xlu0 %v5988, 88
      %v6726 = vpop.permute.xlu0 %6725
      %6727 = vrot.lane.b32.xlu0 %v5993, 88
      %v6728 = vpop.permute.xlu0 %6727
      %6729 = vrot.lane.b32.xlu0 %v5998, 88
      %v6730 = vpop.permute.xlu0 %6729
      %6731 = vrot.lane.b32.xlu0 %v6003, 88
      %v6732 = vpop.permute.xlu0 %6731
      %v6733 = vsel %vm1431, %v6670, 0
      %v6735 = vsel %vm1431, %v6672, 0
      %v6737 = vsel %vm1431, %v6674, 0
      %v6739 = vsel %vm1431, %v6676, 0
      %v6741 = vsel %vm1431, %v6678, 0
      %v6743 = vsel %vm1431, %v6680, 0
      %v6745 = vsel %vm1431, %v6682, 0
      %v6747 = vsel %vm1431, %v6684, 0
      %v6749 = vsel %vm1431, %v6686, 0
      %v6751 = vsel %vm1431, %v6688, 0
      %v6753 = vsel %vm1431, %v6690, 0
      %v6755 = vsel %vm1431, %v6692, 0
      %v6757 = vsel %vm1431, %v6694, 0
      %v6759 = vsel %vm1431, %v6696, 0
      %v6761 = vsel %vm1431, %v6698, 0
      %v6763 = vsel %vm1431, %v6700, 0
      %v6765 = vsel %vm1431, %v6702, 0
      %v6767 = vsel %vm1431, %v6704, 0
      %v6769 = vsel %vm1431, %v6706, 0
      %v6771 = vsel %vm1431, %v6708, 0
      %v6773 = vsel %vm1431, %v6710, 0
      %v6775 = vsel %vm1431, %v6712, 0
      %v6777 = vsel %vm1431, %v6714, 0
      %v6779 = vsel %vm1431, %v6716, 0
      %v6781 = vsel %vm1431, %v6718, 0
      %v6783 = vsel %vm1431, %v6720, 0
      %v6785 = vsel %vm1431, %v6722, 0
      %v6787 = vsel %vm1431, %v6724, 0
      %v6789 = vsel %vm1431, %v6726, 0
      %v6791 = vsel %vm1431, %v6728, 0
      %v6793 = vsel %vm1431, %v6730, 0
      %v6795 = vsel %vm1431, %v6732, 0
      %6797 = vmatprep.subr.mxu0 0.0
      %6798 = vmatpush1.xpose.msra.mxu0 %v6765
      %6799 = vmatprep.subr.mxu0 0.0
      %6800 = vmatpush1.xpose.msra.mxu0 %v6767
      %6801 = vmatprep.subr.mxu0 0.0
      %6802 = vmatpush1.xpose.msra.mxu0 %v6769
      %6803 = vmatprep.subr.mxu0 0.0
      %6804 = vmatpush1.xpose.msra.mxu0 %v6771
      %6805 = vmatprep.subr.mxu0 0.0
      %6806 = vmatpush1.xpose.msra.mxu0 %v6773
      %6807 = vmatprep.subr.mxu0 0.0
      %6808 = vmatpush1.xpose.msra.mxu0 %v6775
      %6809 = vmatprep.subr.mxu0 0.0
      %6810 = vmatpush1.xpose.msra.mxu0 %v6777
      %6811 = vmatprep.subr.mxu0 0.0
      %6812 = vmatpush1.xpose.msra.mxu0 %v6779
      %6813 = vmatprep.subr.mxu0 0.0
      %6814 = vmatpush1.xpose.msra.mxu0 %v6781
      %6815 = vmatprep.subr.mxu0 0.0
      %6816 = vmatpush1.xpose.msra.mxu0 %v6783
      %6817 = vmatprep.subr.mxu0 0.0
      %6818 = vmatpush1.xpose.msra.mxu0 %v6785
      %6819 = vmatprep.subr.mxu0 0.0
      %6820 = vmatpush1.xpose.msra.mxu0 %v6787
      %6821 = vmatprep.subr.mxu0 0.0
      %6822 = vmatpush1.xpose.msra.mxu0 %v6789
      %6823 = vmatprep.subr.mxu0 0.0
      %6824 = vmatpush1.xpose.msra.mxu0 %v6791
      %6825 = vmatprep.subr.mxu0 0.0
      %6826 = vmatpush1.xpose.msra.mxu0 %v6793
      %6827 = vmatprep.subr.mxu0 0.0
      %6828 = vmatpush1.xpose.msra.mxu0 %v6795
      %6829 = vmatprep.subr.mxu0 0.0
      %6830 = vmatpush1.xpose.msra.mxu0 0.0
      %6831 = vmatprep.subr.mxu0 0.0
      %6832 = vmatpush1.xpose.msra.mxu0 0.0
      %6833 = vmatprep.subr.mxu0 0.0
      %6834 = vmatpush1.xpose.msra.mxu0 0.0
      %6835 = vmatprep.subr.mxu0 0.0
      %6836 = vmatpush1.xpose.msra.mxu0 0.0
      %6837 = vmatprep.subr.mxu0 0.0
      %6838 = vmatpush1.xpose.msra.mxu0 0.0
      %6839 = vmatprep.subr.mxu0 0.0
      %6840 = vmatpush1.xpose.msra.mxu0 0.0
      %6841 = vmatprep.subr.mxu0 0.0
      %6842 = vmatpush1.xpose.msra.mxu0 0.0
      %6843 = vmatprep.subr.mxu0 0.0
      %6844 = vmatpush1.xpose.msra.mxu0 0.0
      %6845 = vmatprep.subr.mxu0 0.0
      %6846 = vmatpush1.xpose.msra.mxu0 0.0
      %6847 = vmatprep.subr.mxu0 0.0
      %6848 = vmatpush1.xpose.msra.mxu0 0.0
      %6849 = vmatprep.subr.mxu0 0.0
      %6850 = vmatpush1.xpose.msra.mxu0 0.0
      %6851 = vmatprep.subr.mxu0 0.0
      %6852 = vmatpush1.xpose.msra.mxu0 0.0
      %6853 = vmatprep.subr.mxu0 0.0
      %6854 = vmatpush1.xpose.msra.mxu0 0.0
      %6855 = vmatprep.subr.mxu0 0.0
      %6856 = vmatpush1.xpose.msra.mxu0 0.0
      %6857 = vmatprep.subr.mxu0 0.0
      %6858 = vmatpush1.xpose.msra.mxu0 0.0
      %6859 = vmatprep.subr.mxu0 0.0
      %6860 = vmatpush1.xpose.msra.mxu0 0.0
      %6861 = vmatprep.mubr.f32.mxu0 0.0
      %6862 = vmatmul.mubr.f32.gmra.mrb[0].mxu0 %v6733
      %v6863 = vpop.f32.mrb[0].mxu0
      %v6864 = vadd.f32 0.0, %v6863
      %v6865 = vpop.f32.mrb[0].mxu0
      %6866 = vmatprep.mubr.f32.mxu0 0.0
      %6867 = vmatmul.mubr.f32.gmra.mrb[0].mxu0 %v6735
      %v6868 = vpop.f32.mrb[0].mxu0
      %v6869 = vadd.f32 0.0, %v6868
      %v6870 = vpop.f32.mrb[0].mxu0
      %6871 = vmatprep.mubr.f32.mxu0 0.0
      %6872 = vmatmul.mubr.f32.gmra.mrb[0].mxu0 %v6737
      %v6873 = vpop.f32.mrb[0].mxu0
      %v6874 = vadd.f32 0.0, %v6873
      %v6875 = vpop.f32.mrb[0].mxu0
      %6876 = vmatprep.mubr.f32.mxu0 0.0
      %6877 = vmatmul.mubr.f32.gmra.mrb[0].mxu0 %v6739
      %v6878 = vpop.f32.mrb[0].mxu0
      %v6879 = vadd.f32 0.0, %v6878
      %v6880 = vpop.f32.mrb[0].mxu0
      %6881 = vmatprep.mubr.f32.mxu0 0.0
      %6882 = vmatmul.mubr.f32.gmra.mrb[0].mxu0 %v6741
      %v6883 = vpop.f32.mrb[0].mxu0
      %v6884 = vadd.f32 0.0, %v6883
      %v6885 = vpop.f32.mrb[0].mxu0
      %6886 = vmatprep.mubr.f32.mxu0 0.0
      %6887 = vmatmul.mubr.f32.gmra.mrb[0].mxu0 %v6743
      %v6888 = vpop.f32.mrb[0].mxu0
      %v6889 = vadd.f32 0.0, %v6888
      %v6890 = vpop.f32.mrb[0].mxu0
      %6891 = vmatprep.mubr.f32.mxu0 0.0
      %6892 = vmatmul.mubr.f32.gmra.mrb[0].mxu0 %v6745
      %v6893 = vpop.f32.mrb[0].mxu0
      %v6894 = vadd.f32 0.0, %v6893
      %v6895 = vpop.f32.mrb[0].mxu0
      %6896 = vmatprep.mubr.f32.mxu0 0.0
      %6897 = vmatmul.mubr.f32.gmra.mrb[0].mxu0 %v6747
      %v6898 = vpop.f32.mrb[0].mxu0
      %v6899 = vadd.f32 0.0, %v6898
      %v6900 = vpop.f32.mrb[0].mxu0
      %6901 = vmatprep.mubr.f32.mxu0 0.0
      %6902 = vmatmul.mubr.f32.gmra.mrb[0].mxu0 %v6749
      %v6903 = vpop.f32.mrb[0].mxu0
      %v6904 = vadd.f32 0.0, %v6903
      %v6905 = vpop.f32.mrb[0].mxu0
      %6906 = vmatprep.mubr.f32.mxu0 0.0
      %6907 = vmatmul.mubr.f32.gmra.mrb[0].mxu0 %v6751
      %v6908 = vpop.f32.mrb[0].mxu0
      %v6909 = vadd.f32 0.0, %v6908
      %v6910 = vpop.f32.mrb[0].mxu0
      %6911 = vmatprep.mubr.f32.mxu0 0.0
      %6912 = vmatmul.mubr.f32.gmra.mrb[0].mxu0 %v6753
      %v6913 = vpop.f32.mrb[0].mxu0
      %v6914 = vadd.f32 0.0, %v6913
      %v6915 = vpop.f32.mrb[0].mxu0
      %6916 = vmatprep.mubr.f32.mxu0 0.0
      %6917 = vmatmul.mubr.f32.gmra.mrb[0].mxu0 %v6755
      %v6918 = vpop.f32.mrb[0].mxu0
      %v6919 = vadd.f32 0.0, %v6918
      %v6920 = vpop.f32.mrb[0].mxu0
      %6921 = vmatprep.mubr.f32.mxu0 0.0
      %6922 = vmatmul.mubr.f32.gmra.mrb[0].mxu0 %v6757
      %v6923 = vpop.f32.mrb[0].mxu0
      %v6924 = vadd.f32 0.0, %v6923
      %v6925 = vpop.f32.mrb[0].mxu0
      %6926 = vmatprep.mubr.f32.mxu0 0.0
      %6927 = vmatmul.mubr.f32.gmra.mrb[0].mxu0 %v6759
      %v6928 = vpop.f32.mrb[0].mxu0
      %v6929 = vadd.f32 0.0, %v6928
      %v6930 = vpop.f32.mrb[0].mxu0
      %6931 = vmatprep.mubr.f32.mxu0 0.0
      %6932 = vmatmul.mubr.f32.gmra.mrb[0].mxu0 %v6761
      %v6933 = vpop.f32.mrb[0].mxu0
      %v6934 = vadd.f32 0.0, %v6933
      %v6935 = vpop.f32.mrb[0].mxu0
      %6936 = vmatprep.mubr.f32.mxu0 0.0
      %6937 = vmatmul.mubr.f32.gmra.mrb[0].mxu0 %v6763
      %v6938 = vpop.f32.mrb[0].mxu0
      %v6939 = vadd.f32 0.0, %v6938
      %v6940 = vpop.f32.mrb[0].mxu0
      %6941 = vdwg.mxu0
      %v6942 = vmul.f32 %v6864, 0.35355338
      %v6943 = vmul.f32 %v6869, 0.35355338
      %v6944 = vmul.f32 %v6874, 0.35355338
      %v6945 = vmul.f32 %v6879, 0.35355338
      %v6946 = vmul.f32 %v6884, 0.35355338
      %v6947 = vmul.f32 %v6889, 0.35355338
      %v6948 = vmul.f32 %v6894, 0.35355338
      %v6949 = vmul.f32 %v6899, 0.35355338
      %v6950 = vmul.f32 %v6904, 0.35355338
      %v6951 = vmul.f32 %v6909, 0.35355338
      %v6952 = vmul.f32 %v6914, 0.35355338
      %v6953 = vmul.f32 %v6919, 0.35355338
      %v6954 = vmul.f32 %v6924, 0.35355338
      %v6955 = vmul.f32 %v6929, 0.35355338
      %v6956 = vmul.f32 %v6934, 0.35355338
      %v6957 = vmul.f32 %v6939, 0.35355338
      %v6958 = vld [vmem:[%s2315] sm:$0xff]
      %v6959 = vld [vmem:[%s2315 + $0x8] sm:$0xff]
      %v6960 = vld [vmem:[%s2315 + $0x10] sm:$0xff]
      %v6961 = vld [vmem:[%s2315 + $0x18] sm:$0xff]
      %v6962 = vld [vmem:[%s2315 + $0x20] sm:$0xff]
      %v6963 = vld [vmem:[%s2315 + $0x28] sm:$0xff]
      %v6964 = vld [vmem:[%s2315 + $0x30] sm:$0xff]
      %v6965 = vld [vmem:[%s2315 + $0x38] sm:$0xff]
      %v6966 = vld [vmem:[%s2315 + $0x40] sm:$0xff]
      %v6967 = vld [vmem:[%s2315 + $0x48] sm:$0xff]
      %v6968 = vld [vmem:[%s2315 + $0x50] sm:$0xff]
      %v6969 = vld [vmem:[%s2315 + $0x58] sm:$0xff]
      %v6970 = vld [vmem:[%s2315 + $0x60] sm:$0xff]
      %v6971 = vld [vmem:[%s2315 + $0x68] sm:$0xff]
      %v6972 = vld [vmem:[%s2315 + $0x70] sm:$0xff]
      %v6973 = vld [vmem:[%s2315 + $0x78] sm:$0xff]
      %v6974 = vadd.f32 %v6942, %v6958
      %v6975 = vadd.f32 %v6943, %v6959
      %v6976 = vadd.f32 %v6944, %v6960
      %v6977 = vadd.f32 %v6945, %v6961
      %v6978 = vadd.f32 %v6946, %v6962
      %v6979 = vadd.f32 %v6947, %v6963
      %v6980 = vadd.f32 %v6948, %v6964
      %v6981 = vadd.f32 %v6949, %v6965
      %v6982 = vadd.f32 %v6950, %v6966
      %v6983 = vadd.f32 %v6951, %v6967
      %v6984 = vadd.f32 %v6952, %v6968
      %v6985 = vadd.f32 %v6953, %v6969
      %v6986 = vadd.f32 %v6954, %v6970
      %v6987 = vadd.f32 %v6955, %v6971
      %v6988 = vadd.f32 %v6956, %v6972
      %v6989 = vadd.f32 %v6957, %v6973
      %v6990 = vadd.f32 %v6974, %v1158
      %v6991 = vadd.f32 %v6975, %v1159
      %v6992 = vadd.f32 %v6976, %v1160
      %v6993 = vadd.f32 %v6977, %v1161
      %v6994 = vadd.f32 %v6978, %v1162
      %v6995 = vadd.f32 %v6979, %v1163
      %v6996 = vadd.f32 %v6980, %v1164
      %v6997 = vadd.f32 %v6981, %v1165
      %v6998 = vadd.f32 %v6982, %v1166
      %v6999 = vadd.f32 %v6983, %v1167
      %v7000 = vadd.f32 %v6984, %v1168
      %v7001 = vadd.f32 %v6985, %v1169
      %v7002 = vadd.f32 %v6986, %v1170
      %v7003 = vadd.f32 %v6987, %v1171
      %v7004 = vadd.f32 %v6988, %v1172
      %v7005 = vadd.f32 %v6989, %v1173
      %7006 = vmax.xlane.f32.xlu0 %v6990
      %v7007 = vpop.xlane.xlu0 %7006
      %7008 = vmax.xlane.f32.xlu0 %v6991
      %v7009 = vpop.xlane.xlu0 %7008
      %7010 = vmax.xlane.f32.xlu0 %v6992
      %v7011 = vpop.xlane.xlu0 %7010
      %7012 = vmax.xlane.f32.xlu0 %v6993
      %v7013 = vpop.xlane.xlu0 %7012
      %7014 = vmax.xlane.f32.xlu0 %v6994
      %v7015 = vpop.xlane.xlu0 %7014
      %7016 = vmax.xlane.f32.xlu0 %v6995
      %v7017 = vpop.xlane.xlu0 %7016
      %7018 = vmax.xlane.f32.xlu0 %v6996
      %v7019 = vpop.xlane.xlu0 %7018
      %7020 = vmax.xlane.f32.xlu0 %v6997
      %v7021 = vpop.xlane.xlu0 %7020
      %7022 = vmax.xlane.f32.xlu0 %v6998
      %v7023 = vpop.xlane.xlu0 %7022
      %7024 = vmax.xlane.f32.xlu0 %v6999
      %v7025 = vpop.xlane.xlu0 %7024
      %7026 = vmax.xlane.f32.xlu0 %v7000
      %v7027 = vpop.xlane.xlu0 %7026
      %7028 = vmax.xlane.f32.xlu0 %v7001
      %v7029 = vpop.xlane.xlu0 %7028
      %7030 = vmax.xlane.f32.xlu0 %v7002
      %v7031 = vpop.xlane.xlu0 %7030
      %7032 = vmax.xlane.f32.xlu0 %v7003
      %v7033 = vpop.xlane.xlu0 %7032
      %7034 = vmax.xlane.f32.xlu0 %v7004
      %v7035 = vpop.xlane.xlu0 %7034
      %7036 = vmax.xlane.f32.xlu0 %v7005
      %v7037 = vpop.xlane.xlu0 %7036
      %v7038 = vsub.f32 %v6990, %v7007
      %v7039 = vsub.f32 %v6991, %v7009
      %v7040 = vsub.f32 %v6992, %v7011
      %v7041 = vsub.f32 %v6993, %v7013
      %v7042 = vsub.f32 %v6994, %v7015
      %v7043 = vsub.f32 %v6995, %v7017
      %v7044 = vsub.f32 %v6996, %v7019
      %v7045 = vsub.f32 %v6997, %v7021
      %v7046 = vsub.f32 %v6998, %v7023
      %v7047 = vsub.f32 %v6999, %v7025
      %v7048 = vsub.f32 %v7000, %v7027
      %v7049 = vsub.f32 %v7001, %v7029
      %v7050 = vsub.f32 %v7002, %v7031
      %v7051 = vsub.f32 %v7003, %v7033
      %v7052 = vsub.f32 %v7004, %v7035
      %v7053 = vsub.f32 %v7005, %v7037
      %v7054 = vmul.f32 %v7038, 1.442695
      %v7055 = vpow.pop %v7054
      %v7056 = vmul.f32 %v7039, 1.442695
      %v7057 = vpow.pop %v7056
      %v7058 = vmul.f32 %v7040, 1.442695
      %v7059 = vpow.pop %v7058
      %v7060 = vmul.f32 %v7041, 1.442695
      %v7061 = vpow.pop %v7060
      %v7062 = vmul.f32 %v7042, 1.442695
      %v7063 = vpow.pop %v7062
      %v7064 = vmul.f32 %v7043, 1.442695
      %v7065 = vpow.pop %v7064
      %v7066 = vmul.f32 %v7044, 1.442695
      %v7067 = vpow.pop %v7066
      %v7068 = vmul.f32 %v7045, 1.442695
      %v7069 = vpow.pop %v7068
      %v7070 = vmul.f32 %v7046, 1.442695
      %v7071 = vpow.pop %v7070
      %v7072 = vmul.f32 %v7047, 1.442695
      %v7073 = vpow.pop %v7072
      %v7074 = vmul.f32 %v7048, 1.442695
      %v7075 = vpow.pop %v7074
      %v7076 = vmul.f32 %v7049, 1.442695
      %v7077 = vpow.pop %v7076
      %v7078 = vmul.f32 %v7050, 1.442695
      %v7079 = vpow.pop %v7078
      %v7080 = vmul.f32 %v7051, 1.442695
      %v7081 = vpow.pop %v7080
      %v7082 = vmul.f32 %v7052, 1.442695
      %v7083 = vpow.pop %v7082
      %v7084 = vmul.f32 %v7053, 1.442695
      %v7085 = vpow.pop %v7084
      %7086 = vadd.xlane.f32.xlu0 %v7055
      %v7087 = vpop.xlane.xlu0 %7086
      %7088 = vadd.xlane.f32.xlu0 %v7057
      %v7089 = vpop.xlane.xlu0 %7088
      %7090 = vadd.xlane.f32.xlu0 %v7059
      %v7091 = vpop.xlane.xlu0 %7090
      %7092 = vadd.xlane.f32.xlu0 %v7061
      %v7093 = vpop.xlane.xlu0 %7092
      %7094 = vadd.xlane.f32.xlu0 %v7063
      %v7095 = vpop.xlane.xlu0 %7094
      %7096 = vadd.xlane.f32.xlu0 %v7065
      %v7097 = vpop.xlane.xlu0 %7096
      %7098 = vadd.xlane.f32.xlu0 %v7067
      %v7099 = vpop.xlane.xlu0 %7098
      %7100 = vadd.xlane.f32.xlu0 %v7069
      %v7101 = vpop.xlane.xlu0 %7100
      %7102 = vadd.xlane.f32.xlu0 %v7071
      %v7103 = vpop.xlane.xlu0 %7102
      %7104 = vadd.xlane.f32.xlu0 %v7073
      %v7105 = vpop.xlane.xlu0 %7104
      %7106 = vadd.xlane.f32.xlu0 %v7075
      %v7107 = vpop.xlane.xlu0 %7106
      %7108 = vadd.xlane.f32.xlu0 %v7077
      %v7109 = vpop.xlane.xlu0 %7108
      %7110 = vadd.xlane.f32.xlu0 %v7079
      %v7111 = vpop.xlane.xlu0 %7110
      %7112 = vadd.xlane.f32.xlu0 %v7081
      %v7113 = vpop.xlane.xlu0 %7112
      %7114 = vadd.xlane.f32.xlu0 %v7083
      %v7115 = vpop.xlane.xlu0 %7114
      %7116 = vadd.xlane.f32.xlu0 %v7085
      %v7117 = vpop.xlane.xlu0 %7116
      %v7118 = vrcp.pop %v7087
      %v7119 = vrcp.pop %v7089
      %v7120 = vrcp.pop %v7091
      %v7121 = vrcp.pop %v7093
      %v7122 = vrcp.pop %v7095
      %v7123 = vrcp.pop %v7097
      %v7124 = vrcp.pop %v7099
      %v7125 = vrcp.pop %v7101
      %v7126 = vrcp.pop %v7103
      %v7127 = vrcp.pop %v7105
      %v7128 = vrcp.pop %v7107
      %v7129 = vrcp.pop %v7109
      %v7130 = vrcp.pop %v7111
      %v7131 = vrcp.pop %v7113
      %v7132 = vrcp.pop %v7115
      %v7133 = vrcp.pop %v7117
      %v7134 = vmul.f32 %v7055, %v7118
      %v7135 = vmul.f32 %v7057, %v7119
      %v7136 = vmul.f32 %v7059, %v7120
      %v7137 = vmul.f32 %v7061, %v7121
      %v7138 = vmul.f32 %v7063, %v7122
      %v7139 = vmul.f32 %v7065, %v7123
      %v7140 = vmul.f32 %v7067, %v7124
      %v7141 = vmul.f32 %v7069, %v7125
      %v7142 = vmul.f32 %v7071, %v7126
      %v7143 = vmul.f32 %v7073, %v7127
      %v7144 = vmul.f32 %v7075, %v7128
      %v7145 = vmul.f32 %v7077, %v7129
      %v7146 = vmul.f32 %v7079, %v7130
      %v7147 = vmul.f32 %v7081, %v7131
      %v7148 = vmul.f32 %v7083, %v7132
      %v7149 = vmul.f32 %v7085, %v7133
      %7150 = vrot.lane.b32.xlu0 %v5928, 56
      %v7151 = vpop.permute.xlu0 %7150
      %7152 = vrot.lane.b32.xlu0 %v5933, 56
      %v7153 = vpop.permute.xlu0 %7152
      %7154 = vrot.lane.b32.xlu0 %v5938, 56
      %v7155 = vpop.permute.xlu0 %7154
      %7156 = vrot.lane.b32.xlu0 %v5943, 56
      %v7157 = vpop.permute.xlu0 %7156
      %7158 = vrot.lane.b32.xlu0 %v5948, 56
      %v7159 = vpop.permute.xlu0 %7158
      %7160 = vrot.lane.b32.xlu0 %v5953, 56
      %v7161 = vpop.permute.xlu0 %7160
      %7162 = vrot.lane.b32.xlu0 %v5958, 56
      %v7163 = vpop.permute.xlu0 %7162
      %7164 = vrot.lane.b32.xlu0 %v5963, 56
      %v7165 = vpop.permute.xlu0 %7164
      %7166 = vrot.lane.b32.xlu0 %v5968, 56
      %v7167 = vpop.permute.xlu0 %7166
      %7168 = vrot.lane.b32.xlu0 %v5973, 56
      %v7169 = vpop.permute.xlu0 %7168
      %7170 = vrot.lane.b32.xlu0 %v5978, 56
      %v7171 = vpop.permute.xlu0 %7170
      %7172 = vrot.lane.b32.xlu0 %v5983, 56
      %v7173 = vpop.permute.xlu0 %7172
      %7174 = vrot.lane.b32.xlu0 %v5988, 56
      %v7175 = vpop.permute.xlu0 %7174
      %7176 = vrot.lane.b32.xlu0 %v5993, 56
      %v7177 = vpop.permute.xlu0 %7176
      %7178 = vrot.lane.b32.xlu0 %v5998, 56
      %v7179 = vpop.permute.xlu0 %7178
      %7180 = vrot.lane.b32.xlu0 %v6003, 56
      %v7181 = vpop.permute.xlu0 %7180
      %7198 = vmatprep.subr.mxu0 0.0
      %7199 = vmatpush1.msra.mxu0 %v7151
      %7200 = vmatprep.subr.mxu0 0.0
      %7201 = vmatpush1.msra.mxu0 %v7153
      %7202 = vmatprep.subr.mxu0 0.0
      %7203 = vmatpush1.msra.mxu0 %v7155
      %7204 = vmatprep.subr.mxu0 0.0
      %7205 = vmatpush1.msra.mxu0 %v7157
      %7206 = vmatprep.subr.mxu0 0.0
      %7207 = vmatpush1.msra.mxu0 %v7159
      %7208 = vmatprep.subr.mxu0 0.0
      %7209 = vmatpush1.msra.mxu0 %v7161
      %7210 = vmatprep.subr.mxu0 0.0
      %7211 = vmatpush1.msra.mxu0 %v7163
      %7212 = vmatprep.subr.mxu0 0.0
      %7213 = vmatpush1.msra.mxu0 %v7165
      %7214 = vmatprep.subr.mxu0 0.0
      %7215 = vmatpush1.msra.mxu0 %v7167
      %7216 = vmatprep.subr.mxu0 0.0
      %7217 = vmatpush1.msra.mxu0 %v7169
      %7218 = vmatprep.subr.mxu0 0.0
      %7219 = vmatpush1.msra.mxu0 %v7171
      %7220 = vmatprep.subr.mxu0 0.0
      %7221 = vmatpush1.msra.mxu0 %v7173
      %7222 = vmatprep.subr.mxu0 0.0
      %7223 = vmatpush1.msra.mxu0 %v7175
      %7224 = vmatprep.subr.mxu0 0.0
      %7225 = vmatpush1.msra.mxu0 %v7177
      %7226 = vmatprep.subr.mxu0 0.0
      %7227 = vmatpush1.msra.mxu0 %v7179
      %7228 = vmatprep.subr.mxu0 0.0
      %7229 = vmatpush1.msra.mxu0 %v7181
      %7230 = vmatprep.subr.mxu0 0.0
      %7231 = vmatpush1.msra.mxu0 0.0
      %7232 = vmatprep.subr.mxu0 0.0
      %7233 = vmatpush1.msra.mxu0 0.0
      %7234 = vmatprep.subr.mxu0 0.0
      %7235 = vmatpush1.msra.mxu0 0.0
      %7236 = vmatprep.subr.mxu0 0.0
      %7237 = vmatpush1.msra.mxu0 0.0
      %7238 = vmatprep.subr.mxu0 0.0
      %7239 = vmatpush1.msra.mxu0 0.0
      %7240 = vmatprep.subr.mxu0 0.0
      %7241 = vmatpush1.msra.mxu0 0.0
      %7242 = vmatprep.subr.mxu0 0.0
      %7243 = vmatpush1.msra.mxu0 0.0
      %7244 = vmatprep.subr.mxu0 0.0
      %7245 = vmatpush1.msra.mxu0 0.0
      %7246 = vmatprep.subr.mxu0 0.0
      %7247 = vmatpush1.msra.mxu0 0.0
      %7248 = vmatprep.subr.mxu0 0.0
      %7249 = vmatpush1.msra.mxu0 0.0
      %7250 = vmatprep.subr.mxu0 0.0
      %7251 = vmatpush1.msra.mxu0 0.0
      %7252 = vmatprep.subr.mxu0 0.0
      %7253 = vmatpush1.msra.mxu0 0.0
      %7254 = vmatprep.subr.mxu0 0.0
      %7255 = vmatpush1.msra.mxu0 0.0
      %7256 = vmatprep.subr.mxu0 0.0
      %7257 = vmatpush1.msra.mxu0 0.0
      %7258 = vmatprep.subr.mxu0 0.0
      %7259 = vmatpush1.msra.mxu0 0.0
      %7260 = vmatprep.subr.mxu0 0.0
      %7261 = vmatpush1.msra.mxu0 0.0
      %7262 = vmatprep.mubr.f32.mxu0 0.0
      %7263 = vmatmul.mubr.f32.gmra.mrb[0].mxu0 %v7134
      %v7264 = vpop.f32.mrb[0].mxu0
      %v7265 = vadd.f32 0.0, %v7264
      %v7266 = vpop.f32.mrb[0].mxu0
      %7267 = vmatprep.mubr.f32.mxu0 0.0
      %7268 = vmatmul.mubr.f32.gmra.mrb[0].mxu0 %v7135
      %v7269 = vpop.f32.mrb[0].mxu0
      %v7270 = vadd.f32 0.0, %v7269
      %v7271 = vpop.f32.mrb[0].mxu0
      %7272 = vmatprep.mubr.f32.mxu0 0.0
      %7273 = vmatmul.mubr.f32.gmra.mrb[0].mxu0 %v7136
      %v7274 = vpop.f32.mrb[0].mxu0
      %v7275 = vadd.f32 0.0, %v7274
      %v7276 = vpop.f32.mrb[0].mxu0
      %7277 = vmatprep.mubr.f32.mxu0 0.0
      %7278 = vmatmul.mubr.f32.gmra.mrb[0].mxu0 %v7137
      %v7279 = vpop.f32.mrb[0].mxu0
      %v7280 = vadd.f32 0.0, %v7279
      %v7281 = vpop.f32.mrb[0].mxu0
      %7282 = vmatprep.mubr.f32.mxu0 0.0
      %7283 = vmatmul.mubr.f32.gmra.mrb[0].mxu0 %v7138
      %v7284 = vpop.f32.mrb[0].mxu0
      %v7285 = vadd.f32 0.0, %v7284
      %v7286 = vpop.f32.mrb[0].mxu0
      %7287 = vmatprep.mubr.f32.mxu0 0.0
      %7288 = vmatmul.mubr.f32.gmra.mrb[0].mxu0 %v7139
      %v7289 = vpop.f32.mrb[0].mxu0
      %v7290 = vadd.f32 0.0, %v7289
      %v7291 = vpop.f32.mrb[0].mxu0
      %7292 = vmatprep.mubr.f32.mxu0 0.0
      %7293 = vmatmul.mubr.f32.gmra.mrb[0].mxu0 %v7140
      %v7294 = vpop.f32.mrb[0].mxu0
      %v7295 = vadd.f32 0.0, %v7294
      %v7296 = vpop.f32.mrb[0].mxu0
      %7297 = vmatprep.mubr.f32.mxu0 0.0
      %7298 = vmatmul.mubr.f32.gmra.mrb[0].mxu0 %v7141
      %v7299 = vpop.f32.mrb[0].mxu0
      %v7300 = vadd.f32 0.0, %v7299
      %v7301 = vpop.f32.mrb[0].mxu0
      %7302 = vmatprep.mubr.f32.mxu0 0.0
      %7303 = vmatmul.mubr.f32.gmra.mrb[0].mxu0 %v7142
      %v7304 = vpop.f32.mrb[0].mxu0
      %v7305 = vadd.f32 0.0, %v7304
      %v7306 = vpop.f32.mrb[0].mxu0
      %7307 = vmatprep.mubr.f32.mxu0 0.0
      %7308 = vmatmul.mubr.f32.gmra.mrb[0].mxu0 %v7143
      %v7309 = vpop.f32.mrb[0].mxu0
      %v7310 = vadd.f32 0.0, %v7309
      %v7311 = vpop.f32.mrb[0].mxu0
      %7312 = vmatprep.mubr.f32.mxu0 0.0
      %7313 = vmatmul.mubr.f32.gmra.mrb[0].mxu0 %v7144
      %v7314 = vpop.f32.mrb[0].mxu0
      %v7315 = vadd.f32 0.0, %v7314
      %v7316 = vpop.f32.mrb[0].mxu0
      %7317 = vmatprep.mubr.f32.mxu0 0.0
      %7318 = vmatmul.mubr.f32.gmra.mrb[0].mxu0 %v7145
      %v7319 = vpop.f32.mrb[0].mxu0
      %v7320 = vadd.f32 0.0, %v7319
      %v7321 = vpop.f32.mrb[0].mxu0
      %7322 = vmatprep.mubr.f32.mxu0 0.0
      %7323 = vmatmul.mubr.f32.gmra.mrb[0].mxu0 %v7146
      %v7324 = vpop.f32.mrb[0].mxu0
      %v7325 = vadd.f32 0.0, %v7324
      %v7326 = vpop.f32.mrb[0].mxu0
      %7327 = vmatprep.mubr.f32.mxu0 0.0
      %7328 = vmatmul.mubr.f32.gmra.mrb[0].mxu0 %v7147
      %v7329 = vpop.f32.mrb[0].mxu0
      %v7330 = vadd.f32 0.0, %v7329
      %v7331 = vpop.f32.mrb[0].mxu0
      %7332 = vmatprep.mubr.f32.mxu0 0.0
      %7333 = vmatmul.mubr.f32.gmra.mrb[0].mxu0 %v7148
      %v7334 = vpop.f32.mrb[0].mxu0
      %v7335 = vadd.f32 0.0, %v7334
      %v7336 = vpop.f32.mrb[0].mxu0
      %7337 = vmatprep.mubr.f32.mxu0 0.0
      %7338 = vmatmul.mubr.f32.gmra.mrb[0].mxu0 %v7149
      %v7339 = vpop.f32.mrb[0].mxu0
      %v7340 = vadd.f32 0.0, %v7339
      %v7341 = vpop.f32.mrb[0].mxu0
      %7342 = vdwg.mxu0
      %v7344 = vsel %vm1431, %v7265, 0
      %v7347 = vsel %vm1431, %v7270, 0
      %v7350 = vsel %vm1431, %v7275, 0
      %v7353 = vsel %vm1431, %v7280, 0
      %v7356 = vsel %vm1431, %v7285, 0
      %v7359 = vsel %vm1431, %v7290, 0
      %v7362 = vsel %vm1431, %v7295, 0
      %v7365 = vsel %vm1431, %v7300, 0
      %v7368 = vsel %vm1431, %v7305, 0
      %v7371 = vsel %vm1431, %v7310, 0
      %v7374 = vsel %vm1431, %v7315, 0
      %v7377 = vsel %vm1431, %v7320, 0
      %v7380 = vsel %vm1431, %v7325, 0
      %v7383 = vsel %vm1431, %v7330, 0
      %v7386 = vsel %vm1431, %v7335, 0
      %v7389 = vsel %vm1431, %v7340, 0
      %7391 = vmatprep.subr.mxu0 0.0
      %7392 = vmatpush1.msra.mxu0 %v6008
      %7393 = vmatprep.subr.mxu0 0.0
      %7394 = vmatpush1.msra.mxu0 0.0
      %7395 = vmatprep.subr.mxu0 0.0
      %7396 = vmatpush1.msra.mxu0 0.0
      %7397 = vmatprep.subr.mxu0 0.0
      %7398 = vmatpush1.msra.mxu0 0.0
      %7399 = vmatprep.subr.mxu0 0.0
      %7400 = vmatpush1.msra.mxu0 0.0
      %7401 = vmatprep.subr.mxu0 0.0
      %7402 = vmatpush1.msra.mxu0 0.0
      %7403 = vmatprep.subr.mxu0 0.0
      %7404 = vmatpush1.msra.mxu0 0.0
      %7405 = vmatprep.subr.mxu0 0.0
      %7406 = vmatpush1.msra.mxu0 0.0
      %7407 = vmatprep.subr.mxu0 0.0
      %7408 = vmatpush1.msra.mxu0 0.0
      %7409 = vmatprep.subr.mxu0 0.0
      %7410 = vmatpush1.msra.mxu0 0.0
      %7411 = vmatprep.subr.mxu0 0.0
      %7412 = vmatpush1.msra.mxu0 0.0
      %7413 = vmatprep.subr.mxu0 0.0
      %7414 = vmatpush1.msra.mxu0 0.0
      %7415 = vmatprep.subr.mxu0 0.0
      %7416 = vmatpush1.msra.mxu0 0.0
      %7417 = vmatprep.subr.mxu0 0.0
      %7418 = vmatpush1.msra.mxu0 0.0
      %7419 = vmatprep.subr.mxu0 0.0
      %7420 = vmatpush1.msra.mxu0 0.0
      %7421 = vmatprep.subr.mxu0 0.0
      %7422 = vmatpush1.msra.mxu0 0.0
      %7423 = vmatprep.subr.mxu0 0.0
      %7424 = vmatpush1.msra.mxu0 0.0
      %7425 = vmatprep.subr.mxu0 0.0
      %7426 = vmatpush1.msra.mxu0 0.0
      %7427 = vmatprep.subr.mxu0 0.0
      %7428 = vmatpush1.msra.mxu0 0.0
      %7429 = vmatprep.subr.mxu0 0.0
      %7430 = vmatpush1.msra.mxu0 0.0
      %7431 = vmatprep.subr.mxu0 0.0
      %7432 = vmatpush1.msra.mxu0 0.0
      %7433 = vmatprep.subr.mxu0 0.0
      %7434 = vmatpush1.msra.mxu0 0.0
      %7435 = vmatprep.subr.mxu0 0.0
      %7436 = vmatpush1.msra.mxu0 0.0
      %7437 = vmatprep.subr.mxu0 0.0
      %7438 = vmatpush1.msra.mxu0 0.0
      %7439 = vmatprep.subr.mxu0 0.0
      %7440 = vmatpush1.msra.mxu0 0.0
      %7441 = vmatprep.subr.mxu0 0.0
      %7442 = vmatpush1.msra.mxu0 0.0
      %7443 = vmatprep.subr.mxu0 0.0
      %7444 = vmatpush1.msra.mxu0 0.0
      %7445 = vmatprep.subr.mxu0 0.0
      %7446 = vmatpush1.msra.mxu0 0.0
      %7447 = vmatprep.subr.mxu0 0.0
      %7448 = vmatpush1.msra.mxu0 0.0
      %7449 = vmatprep.subr.mxu0 0.0
      %7450 = vmatpush1.msra.mxu0 0.0
      %7451 = vmatprep.subr.mxu0 0.0
      %7452 = vmatpush1.msra.mxu0 0.0
      %7453 = vmatprep.subr.mxu0 0.0
      %7454 = vmatpush1.msra.mxu0 0.0
      %7455 = vmatprep.mubr.f32.mxu0 0.0
      %7456 = vmatmul.mubr.f32.gmra.mrb[0].mxu0 %v7344
      %v7457 = vpop.f32.mrb[0].mxu0
      %v7458 = vadd.f32 0.0, %v7457
      %v7459 = vpop.f32.mrb[0].mxu0
      %7460 = vmatprep.mubr.f32.mxu0 0.0
      %7461 = vmatmul.mubr.f32.gmra.mrb[0].mxu0 %v7347
      %v7462 = vpop.f32.mrb[0].mxu0
      %v7463 = vadd.f32 0.0, %v7462
      %v7464 = vpop.f32.mrb[0].mxu0
      %7465 = vmatprep.mubr.f32.mxu0 0.0
      %7466 = vmatmul.mubr.f32.gmra.mrb[0].mxu0 %v7350
      %v7467 = vpop.f32.mrb[0].mxu0
      %v7468 = vadd.f32 0.0, %v7467
      %v7469 = vpop.f32.mrb[0].mxu0
      %7470 = vmatprep.mubr.f32.mxu0 0.0
      %7471 = vmatmul.mubr.f32.gmra.mrb[0].mxu0 %v7353
      %v7472 = vpop.f32.mrb[0].mxu0
      %v7473 = vadd.f32 0.0, %v7472
      %v7474 = vpop.f32.mrb[0].mxu0
      %7475 = vmatprep.mubr.f32.mxu0 0.0
      %7476 = vmatmul.mubr.f32.gmra.mrb[0].mxu0 %v7356
      %v7477 = vpop.f32.mrb[0].mxu0
      %v7478 = vadd.f32 0.0, %v7477
      %v7479 = vpop.f32.mrb[0].mxu0
      %7480 = vmatprep.mubr.f32.mxu0 0.0
      %7481 = vmatmul.mubr.f32.gmra.mrb[0].mxu0 %v7359
      %v7482 = vpop.f32.mrb[0].mxu0
      %v7483 = vadd.f32 0.0, %v7482
      %v7484 = vpop.f32.mrb[0].mxu0
      %7485 = vmatprep.mubr.f32.mxu0 0.0
      %7486 = vmatmul.mubr.f32.gmra.mrb[0].mxu0 %v7362
      %v7487 = vpop.f32.mrb[0].mxu0
      %v7488 = vadd.f32 0.0, %v7487
      %v7489 = vpop.f32.mrb[0].mxu0
      %7490 = vmatprep.mubr.f32.mxu0 0.0
      %7491 = vmatmul.mubr.f32.gmra.mrb[0].mxu0 %v7365
      %v7492 = vpop.f32.mrb[0].mxu0
      %v7493 = vadd.f32 0.0, %v7492
      %v7494 = vpop.f32.mrb[0].mxu0
      %7495 = vmatprep.mubr.f32.mxu0 0.0
      %7496 = vmatmul.mubr.f32.gmra.mrb[0].mxu0 %v7368
      %v7497 = vpop.f32.mrb[0].mxu0
      %v7498 = vadd.f32 0.0, %v7497
      %v7499 = vpop.f32.mrb[0].mxu0
      %7500 = vmatprep.mubr.f32.mxu0 0.0
      %7501 = vmatmul.mubr.f32.gmra.mrb[0].mxu0 %v7371
      %v7502 = vpop.f32.mrb[0].mxu0
      %v7503 = vadd.f32 0.0, %v7502
      %v7504 = vpop.f32.mrb[0].mxu0
      %7505 = vmatprep.mubr.f32.mxu0 0.0
      %7506 = vmatmul.mubr.f32.gmra.mrb[0].mxu0 %v7374
      %v7507 = vpop.f32.mrb[0].mxu0
      %v7508 = vadd.f32 0.0, %v7507
      %v7509 = vpop.f32.mrb[0].mxu0
      %7510 = vmatprep.mubr.f32.mxu0 0.0
      %7511 = vmatmul.mubr.f32.gmra.mrb[0].mxu0 %v7377
      %v7512 = vpop.f32.mrb[0].mxu0
      %v7513 = vadd.f32 0.0, %v7512
      %v7514 = vpop.f32.mrb[0].mxu0
      %7515 = vmatprep.mubr.f32.mxu0 0.0
      %7516 = vmatmul.mubr.f32.gmra.mrb[0].mxu0 %v7380
      %v7517 = vpop.f32.mrb[0].mxu0
      %v7518 = vadd.f32 0.0, %v7517
      %v7519 = vpop.f32.mrb[0].mxu0
      %7520 = vmatprep.mubr.f32.mxu0 0.0
      %7521 = vmatmul.mubr.f32.gmra.mrb[0].mxu0 %v7383
      %v7522 = vpop.f32.mrb[0].mxu0
      %v7523 = vadd.f32 0.0, %v7522
      %v7524 = vpop.f32.mrb[0].mxu0
      %7525 = vmatprep.mubr.f32.mxu0 0.0
      %7526 = vmatmul.mubr.f32.gmra.mrb[0].mxu0 %v7386
      %v7527 = vpop.f32.mrb[0].mxu0
      %v7528 = vadd.f32 0.0, %v7527
      %v7529 = vpop.f32.mrb[0].mxu0
      %7530 = vmatprep.mubr.f32.mxu0 0.0
      %7531 = vmatmul.mubr.f32.gmra.mrb[0].mxu0 %v7389
      %v7532 = vpop.f32.mrb[0].mxu0
      %v7533 = vadd.f32 0.0, %v7532
      %v7534 = vpop.f32.mrb[0].mxu0
      %7535 = vdwg.mxu0
      %v7537 = vsel %vm1431, %v6591, 0
      %v7540 = vsel %vm1431, %v6596, 0
      %v7543 = vsel %vm1431, %v6601, 0
      %v7546 = vsel %vm1431, %v6606, 0
      %v7549 = vsel %vm1431, %v6611, 0
      %v7552 = vsel %vm1431, %v6616, 0
      %v7555 = vsel %vm1431, %v6621, 0
      %v7558 = vsel %vm1431, %v6626, 0
      %v7561 = vsel %vm1431, %v6631, 0
      %v7564 = vsel %vm1431, %v6636, 0
      %v7567 = vsel %vm1431, %v6641, 0
      %v7570 = vsel %vm1431, %v6646, 0
      %v7573 = vsel %vm1431, %v6651, 0
      %v7576 = vsel %vm1431, %v6656, 0
      %v7579 = vsel %vm1431, %v6661, 0
      %v7582 = vsel %vm1431, %v6666, 0
      %7584 = vmatprep.subr.mxu0 0.0
      %7585 = vmatpush1.msra.mxu0 %v6007
      %7586 = vmatprep.subr.mxu0 0.0
      %7587 = vmatpush1.msra.mxu0 0.0
      %7588 = vmatprep.subr.mxu0 0.0
      %7589 = vmatpush1.msra.mxu0 0.0
      %7590 = vmatprep.subr.mxu0 0.0
      %7591 = vmatpush1.msra.mxu0 0.0
      %7592 = vmatprep.subr.mxu0 0.0
      %7593 = vmatpush1.msra.mxu0 0.0
      %7594 = vmatprep.subr.mxu0 0.0
      %7595 = vmatpush1.msra.mxu0 0.0
      %7596 = vmatprep.subr.mxu0 0.0
      %7597 = vmatpush1.msra.mxu0 0.0
      %7598 = vmatprep.subr.mxu0 0.0
      %7599 = vmatpush1.msra.mxu0 0.0
      %7600 = vmatprep.subr.mxu0 0.0
      %7601 = vmatpush1.msra.mxu0 0.0
      %7602 = vmatprep.subr.mxu0 0.0
      %7603 = vmatpush1.msra.mxu0 0.0
      %7604 = vmatprep.subr.mxu0 0.0
      %7605 = vmatpush1.msra.mxu0 0.0
      %7606 = vmatprep.subr.mxu0 0.0
      %7607 = vmatpush1.msra.mxu0 0.0
      %7608 = vmatprep.subr.mxu0 0.0
      %7609 = vmatpush1.msra.mxu0 0.0
      %7610 = vmatprep.subr.mxu0 0.0
      %7611 = vmatpush1.msra.mxu0 0.0
      %7612 = vmatprep.subr.mxu0 0.0
      %7613 = vmatpush1.msra.mxu0 0.0
      %7614 = vmatprep.subr.mxu0 0.0
      %7615 = vmatpush1.msra.mxu0 0.0
      %7616 = vmatprep.subr.mxu0 0.0
      %7617 = vmatpush1.msra.mxu0 0.0
      %7618 = vmatprep.subr.mxu0 0.0
      %7619 = vmatpush1.msra.mxu0 0.0
      %7620 = vmatprep.subr.mxu0 0.0
      %7621 = vmatpush1.msra.mxu0 0.0
      %7622 = vmatprep.subr.mxu0 0.0
      %7623 = vmatpush1.msra.mxu0 0.0
      %7624 = vmatprep.subr.mxu0 0.0
      %7625 = vmatpush1.msra.mxu0 0.0
      %7626 = vmatprep.subr.mxu0 0.0
      %7627 = vmatpush1.msra.mxu0 0.0
      %7628 = vmatprep.subr.mxu0 0.0
      %7629 = vmatpush1.msra.mxu0 0.0
      %7630 = vmatprep.subr.mxu0 0.0
      %7631 = vmatpush1.msra.mxu0 0.0
      %7632 = vmatprep.subr.mxu0 0.0
      %7633 = vmatpush1.msra.mxu0 0.0
      %7634 = vmatprep.subr.mxu0 0.0
      %7635 = vmatpush1.msra.mxu0 0.0
      %7636 = vmatprep.subr.mxu0 0.0
      %7637 = vmatpush1.msra.mxu0 0.0
      %7638 = vmatprep.subr.mxu0 0.0
      %7639 = vmatpush1.msra.mxu0 0.0
      %7640 = vmatprep.subr.mxu0 0.0
      %7641 = vmatpush1.msra.mxu0 0.0
      %7642 = vmatprep.subr.mxu0 0.0
      %7643 = vmatpush1.msra.mxu0 0.0
      %7644 = vmatprep.subr.mxu0 0.0
      %7645 = vmatpush1.msra.mxu0 0.0
      %7646 = vmatprep.subr.mxu0 0.0
      %7647 = vmatpush1.msra.mxu0 0.0
      %7648 = vmatprep.mubr.f32.mxu0 0.0
      %7649 = vmatmul.mubr.f32.gmra.mrb[0].mxu0 %v7537
      %v7650 = vpop.f32.mrb[0].mxu0
      %v7651 = vadd.f32 %v7458, %v7650
      %v7652 = vpop.f32.mrb[0].mxu0
      %7653 = vmatprep.mubr.f32.mxu0 0.0
      %7654 = vmatmul.mubr.f32.gmra.mrb[0].mxu0 %v7540
      %v7655 = vpop.f32.mrb[0].mxu0
      %v7656 = vadd.f32 %v7463, %v7655
      %v7657 = vpop.f32.mrb[0].mxu0
      %7658 = vmatprep.mubr.f32.mxu0 0.0
      %7659 = vmatmul.mubr.f32.gmra.mrb[0].mxu0 %v7543
      %v7660 = vpop.f32.mrb[0].mxu0
      %v7661 = vadd.f32 %v7468, %v7660
      %v7662 = vpop.f32.mrb[0].mxu0
      %7663 = vmatprep.mubr.f32.mxu0 0.0
      %7664 = vmatmul.mubr.f32.gmra.mrb[0].mxu0 %v7546
      %v7665 = vpop.f32.mrb[0].mxu0
      %v7666 = vadd.f32 %v7473, %v7665
      %v7667 = vpop.f32.mrb[0].mxu0
      %7668 = vmatprep.mubr.f32.mxu0 0.0
      %7669 = vmatmul.mubr.f32.gmra.mrb[0].mxu0 %v7549
      %v7670 = vpop.f32.mrb[0].mxu0
      %v7671 = vadd.f32 %v7478, %v7670
      %v7672 = vpop.f32.mrb[0].mxu0
      %7673 = vmatprep.mubr.f32.mxu0 0.0
      %7674 = vmatmul.mubr.f32.gmra.mrb[0].mxu0 %v7552
      %v7675 = vpop.f32.mrb[0].mxu0
      %v7676 = vadd.f32 %v7483, %v7675
      %v7677 = vpop.f32.mrb[0].mxu0
      %7678 = vmatprep.mubr.f32.mxu0 0.0
      %7679 = vmatmul.mubr.f32.gmra.mrb[0].mxu0 %v7555
      %v7680 = vpop.f32.mrb[0].mxu0
      %v7681 = vadd.f32 %v7488, %v7680
      %v7682 = vpop.f32.mrb[0].mxu0
      %7683 = vmatprep.mubr.f32.mxu0 0.0
      %7684 = vmatmul.mubr.f32.gmra.mrb[0].mxu0 %v7558
      %v7685 = vpop.f32.mrb[0].mxu0
      %v7686 = vadd.f32 %v7493, %v7685
      %v7687 = vpop.f32.mrb[0].mxu0
      %7688 = vmatprep.mubr.f32.mxu0 0.0
      %7689 = vmatmul.mubr.f32.gmra.mrb[0].mxu0 %v7561
      %v7690 = vpop.f32.mrb[0].mxu0
      %v7691 = vadd.f32 %v7498, %v7690
      %v7692 = vpop.f32.mrb[0].mxu0
      %7693 = vmatprep.mubr.f32.mxu0 0.0
      %7694 = vmatmul.mubr.f32.gmra.mrb[0].mxu0 %v7564
      %v7695 = vpop.f32.mrb[0].mxu0
      %v7696 = vadd.f32 %v7503, %v7695
      %v7697 = vpop.f32.mrb[0].mxu0
      %7698 = vmatprep.mubr.f32.mxu0 0.0
      %7699 = vmatmul.mubr.f32.gmra.mrb[0].mxu0 %v7567
      %v7700 = vpop.f32.mrb[0].mxu0
      %v7701 = vadd.f32 %v7508, %v7700
      %v7702 = vpop.f32.mrb[0].mxu0
      %7703 = vmatprep.mubr.f32.mxu0 0.0
      %7704 = vmatmul.mubr.f32.gmra.mrb[0].mxu0 %v7570
      %v7705 = vpop.f32.mrb[0].mxu0
      %v7706 = vadd.f32 %v7513, %v7705
      %v7707 = vpop.f32.mrb[0].mxu0
      %7708 = vmatprep.mubr.f32.mxu0 0.0
      %7709 = vmatmul.mubr.f32.gmra.mrb[0].mxu0 %v7573
      %v7710 = vpop.f32.mrb[0].mxu0
      %v7711 = vadd.f32 %v7518, %v7710
      %v7712 = vpop.f32.mrb[0].mxu0
      %7713 = vmatprep.mubr.f32.mxu0 0.0
      %7714 = vmatmul.mubr.f32.gmra.mrb[0].mxu0 %v7576
      %v7715 = vpop.f32.mrb[0].mxu0
      %v7716 = vadd.f32 %v7523, %v7715
      %v7717 = vpop.f32.mrb[0].mxu0
      %7718 = vmatprep.mubr.f32.mxu0 0.0
      %7719 = vmatmul.mubr.f32.gmra.mrb[0].mxu0 %v7579
      %v7720 = vpop.f32.mrb[0].mxu0
      %v7721 = vadd.f32 %v7528, %v7720
      %v7722 = vpop.f32.mrb[0].mxu0
      %7723 = vmatprep.mubr.f32.mxu0 0.0
      %7724 = vmatmul.mubr.f32.gmra.mrb[0].mxu0 %v7582
      %v7725 = vpop.f32.mrb[0].mxu0
      %v7726 = vadd.f32 %v7533, %v7725
      %v7727 = vpop.f32.mrb[0].mxu0
      %7728 = vdwg.mxu0
      %7729 = vrot.lane.b32.xlu0 %v5928, 112
      %v7730 = vpop.permute.xlu0 %7729
      %7731 = vrot.lane.b32.xlu0 %v5933, 112
      %v7732 = vpop.permute.xlu0 %7731
      %7733 = vrot.lane.b32.xlu0 %v5938, 112
      %v7734 = vpop.permute.xlu0 %7733
      %7735 = vrot.lane.b32.xlu0 %v5943, 112
      %v7736 = vpop.permute.xlu0 %7735
      %7737 = vrot.lane.b32.xlu0 %v5948, 112
      %v7738 = vpop.permute.xlu0 %7737
      %7739 = vrot.lane.b32.xlu0 %v5953, 112
      %v7740 = vpop.permute.xlu0 %7739
      %7741 = vrot.lane.b32.xlu0 %v5958, 112
      %v7742 = vpop.permute.xlu0 %7741
      %7743 = vrot.lane.b32.xlu0 %v5963, 112
      %v7744 = vpop.permute.xlu0 %7743
      %7745 = vrot.lane.b32.xlu0 %v5968, 112
      %v7746 = vpop.permute.xlu0 %7745
      %7747 = vrot.lane.b32.xlu0 %v5973, 112
      %v7748 = vpop.permute.xlu0 %7747
      %7749 = vrot.lane.b32.xlu0 %v5978, 112
      %v7750 = vpop.permute.xlu0 %7749
      %7751 = vrot.lane.b32.xlu0 %v5983, 112
      %v7752 = vpop.permute.xlu0 %7751
      %7753 = vrot.lane.b32.xlu0 %v5988, 112
      %v7754 = vpop.permute.xlu0 %7753
      %7755 = vrot.lane.b32.xlu0 %v5993, 112
      %v7756 = vpop.permute.xlu0 %7755
      %7757 = vrot.lane.b32.xlu0 %v5998, 112
      %v7758 = vpop.permute.xlu0 %7757
      %7759 = vrot.lane.b32.xlu0 %v6003, 112
      %v7760 = vpop.permute.xlu0 %7759
      %7761 = vrot.lane.b32.xlu0 %v5928, 80
      %v7762 = vpop.permute.xlu0 %7761
      %7763 = vrot.lane.b32.xlu0 %v5933, 80
      %v7764 = vpop.permute.xlu0 %7763
      %7765 = vrot.lane.b32.xlu0 %v5938, 80
      %v7766 = vpop.permute.xlu0 %7765
      %7767 = vrot.lane.b32.xlu0 %v5943, 80
      %v7768 = vpop.permute.xlu0 %7767
      %7769 = vrot.lane.b32.xlu0 %v5948, 80
      %v7770 = vpop.permute.xlu0 %7769
      %7771 = vrot.lane.b32.xlu0 %v5953, 80
      %v7772 = vpop.permute.xlu0 %7771
      %7773 = vrot.lane.b32.xlu0 %v5958, 80
      %v7774 = vpop.permute.xlu0 %7773
      %7775 = vrot.lane.b32.xlu0 %v5963, 80
      %v7776 = vpop.permute.xlu0 %7775
      %7777 = vrot.lane.b32.xlu0 %v5968, 80
      %v7778 = vpop.permute.xlu0 %7777
      %7779 = vrot.lane.b32.xlu0 %v5973, 80
      %v7780 = vpop.permute.xlu0 %7779
      %7781 = vrot.lane.b32.xlu0 %v5978, 80
      %v7782 = vpop.permute.xlu0 %7781
      %7783 = vrot.lane.b32.xlu0 %v5983, 80
      %v7784 = vpop.permute.xlu0 %7783
      %7785 = vrot.lane.b32.xlu0 %v5988, 80
      %v7786 = vpop.permute.xlu0 %7785
      %7787 = vrot.lane.b32.xlu0 %v5993, 80
      %v7788 = vpop.permute.xlu0 %7787
      %7789 = vrot.lane.b32.xlu0 %v5998, 80
      %v7790 = vpop.permute.xlu0 %7789
      %7791 = vrot.lane.b32.xlu0 %v6003, 80
      %v7792 = vpop.permute.xlu0 %7791
      %v7793 = vsel %vm1431, %v7730, 0
      %v7795 = vsel %vm1431, %v7732, 0
      %v7797 = vsel %vm1431, %v7734, 0
      %v7799 = vsel %vm1431, %v7736, 0
      %v7801 = vsel %vm1431, %v7738, 0
      %v7803 = vsel %vm1431, %v7740, 0
      %v7805 = vsel %vm1431, %v7742, 0
      %v7807 = vsel %vm1431, %v7744, 0
      %v7809 = vsel %vm1431, %v7746, 0
      %v7811 = vsel %vm1431, %v7748, 0
      %v7813 = vsel %vm1431, %v7750, 0
      %v7815 = vsel %vm1431, %v7752, 0
      %v7817 = vsel %vm1431, %v7754, 0
      %v7819 = vsel %vm1431, %v7756, 0
      %v7821 = vsel %vm1431, %v7758, 0
      %v7823 = vsel %vm1431, %v7760, 0
      %v7825 = vsel %vm1431, %v7762, 0
      %v7827 = vsel %vm1431, %v7764, 0
      %v7829 = vsel %vm1431, %v7766, 0
      %v7831 = vsel %vm1431, %v7768, 0
      %v7833 = vsel %vm1431, %v7770, 0
      %v7835 = vsel %vm1431, %v7772, 0
      %v7837 = vsel %vm1431, %v7774, 0
      %v7839 = vsel %vm1431, %v7776, 0
      %v7841 = vsel %vm1431, %v7778, 0
      %v7843 = vsel %vm1431, %v7780, 0
      %v7845 = vsel %vm1431, %v7782, 0
      %v7847 = vsel %vm1431, %v7784, 0
      %v7849 = vsel %vm1431, %v7786, 0
      %v7851 = vsel %vm1431, %v7788, 0
      %v7853 = vsel %vm1431, %v7790, 0
      %v7855 = vsel %vm1431, %v7792, 0
      %7857 = vmatprep.subr.mxu0 0.0
      %7858 = vmatpush1.xpose.msra.mxu0 %v7825
      %7859 = vmatprep.subr.mxu0 0.0
      %7860 = vmatpush1.xpose.msra.mxu0 %v7827
      %7861 = vmatprep.subr.mxu0 0.0
      %7862 = vmatpush1.xpose.msra.mxu0 %v7829
      %7863 = vmatprep.subr.mxu0 0.0
      %7864 = vmatpush1.xpose.msra.mxu0 %v7831
      %7865 = vmatprep.subr.mxu0 0.0
      %7866 = vmatpush1.xpose.msra.mxu0 %v7833
      %7867 = vmatprep.subr.mxu0 0.0
      %7868 = vmatpush1.xpose.msra.mxu0 %v7835
      %7869 = vmatprep.subr.mxu0 0.0
      %7870 = vmatpush1.xpose.msra.mxu0 %v7837
      %7871 = vmatprep.subr.mxu0 0.0
      %7872 = vmatpush1.xpose.msra.mxu0 %v7839
      %7873 = vmatprep.subr.mxu0 0.0
      %7874 = vmatpush1.xpose.msra.mxu0 %v7841
      %7875 = vmatprep.subr.mxu0 0.0
      %7876 = vmatpush1.xpose.msra.mxu0 %v7843
      %7877 = vmatprep.subr.mxu0 0.0
      %7878 = vmatpush1.xpose.msra.mxu0 %v7845
      %7879 = vmatprep.subr.mxu0 0.0
      %7880 = vmatpush1.xpose.msra.mxu0 %v7847
      %7881 = vmatprep.subr.mxu0 0.0
      %7882 = vmatpush1.xpose.msra.mxu0 %v7849
      %7883 = vmatprep.subr.mxu0 0.0
      %7884 = vmatpush1.xpose.msra.mxu0 %v7851
      %7885 = vmatprep.subr.mxu0 0.0
      %7886 = vmatpush1.xpose.msra.mxu0 %v7853
      %7887 = vmatprep.subr.mxu0 0.0
      %7888 = vmatpush1.xpose.msra.mxu0 %v7855
      %7889 = vmatprep.subr.mxu0 0.0
      %7890 = vmatpush1.xpose.msra.mxu0 0.0
      %7891 = vmatprep.subr.mxu0 0.0
      %7892 = vmatpush1.xpose.msra.mxu0 0.0
      %7893 = vmatprep.subr.mxu0 0.0
      %7894 = vmatpush1.xpose.msra.mxu0 0.0
      %7895 = vmatprep.subr.mxu0 0.0
      %7896 = vmatpush1.xpose.msra.mxu0 0.0
      %7897 = vmatprep.subr.mxu0 0.0
      %7898 = vmatpush1.xpose.msra.mxu0 0.0
      %7899 = vmatprep.subr.mxu0 0.0
      %7900 = vmatpush1.xpose.msra.mxu0 0.0
      %7901 = vmatprep.subr.mxu0 0.0
      %7902 = vmatpush1.xpose.msra.mxu0 0.0
      %7903 = vmatprep.subr.mxu0 0.0
      %7904 = vmatpush1.xpose.msra.mxu0 0.0
      %7905 = vmatprep.subr.mxu0 0.0
      %7906 = vmatpush1.xpose.msra.mxu0 0.0
      %7907 = vmatprep.subr.mxu0 0.0
      %7908 = vmatpush1.xpose.msra.mxu0 0.0
      %7909 = vmatprep.subr.mxu0 0.0
      %7910 = vmatpush1.xpose.msra.mxu0 0.0
      %7911 = vmatprep.subr.mxu0 0.0
      %7912 = vmatpush1.xpose.msra.mxu0 0.0
      %7913 = vmatprep.subr.mxu0 0.0
      %7914 = vmatpush1.xpose.msra.mxu0 0.0
      %7915 = vmatprep.subr.mxu0 0.0
      %7916 = vmatpush1.xpose.msra.mxu0 0.0
      %7917 = vmatprep.subr.mxu0 0.0
      %7918 = vmatpush1.xpose.msra.mxu0 0.0
      %7919 = vmatprep.subr.mxu0 0.0
      %7920 = vmatpush1.xpose.msra.mxu0 0.0
      %7921 = vmatprep.mubr.f32.mxu0 0.0
      %7922 = vmatmul.mubr.f32.gmra.mrb[0].mxu0 %v7793
      %v7923 = vpop.f32.mrb[0].mxu0
      %v7924 = vadd.f32 0.0, %v7923
      %v7925 = vpop.f32.mrb[0].mxu0
      %7926 = vmatprep.mubr.f32.mxu0 0.0
      %7927 = vmatmul.mubr.f32.gmra.mrb[0].mxu0 %v7795
      %v7928 = vpop.f32.mrb[0].mxu0
      %v7929 = vadd.f32 0.0, %v7928
      %v7930 = vpop.f32.mrb[0].mxu0
      %7931 = vmatprep.mubr.f32.mxu0 0.0
      %7932 = vmatmul.mubr.f32.gmra.mrb[0].mxu0 %v7797
      %v7933 = vpop.f32.mrb[0].mxu0
      %v7934 = vadd.f32 0.0, %v7933
      %v7935 = vpop.f32.mrb[0].mxu0
      %7936 = vmatprep.mubr.f32.mxu0 0.0
      %7937 = vmatmul.mubr.f32.gmra.mrb[0].mxu0 %v7799
      %v7938 = vpop.f32.mrb[0].mxu0
      %v7939 = vadd.f32 0.0, %v7938
      %v7940 = vpop.f32.mrb[0].mxu0
      %7941 = vmatprep.mubr.f32.mxu0 0.0
      %7942 = vmatmul.mubr.f32.gmra.mrb[0].mxu0 %v7801
      %v7943 = vpop.f32.mrb[0].mxu0
      %v7944 = vadd.f32 0.0, %v7943
      %v7945 = vpop.f32.mrb[0].mxu0
      %7946 = vmatprep.mubr.f32.mxu0 0.0
      %7947 = vmatmul.mubr.f32.gmra.mrb[0].mxu0 %v7803
      %v7948 = vpop.f32.mrb[0].mxu0
      %v7949 = vadd.f32 0.0, %v7948
      %v7950 = vpop.f32.mrb[0].mxu0
      %7951 = vmatprep.mubr.f32.mxu0 0.0
      %7952 = vmatmul.mubr.f32.gmra.mrb[0].mxu0 %v7805
      %v7953 = vpop.f32.mrb[0].mxu0
      %v7954 = vadd.f32 0.0, %v7953
      %v7955 = vpop.f32.mrb[0].mxu0
      %7956 = vmatprep.mubr.f32.mxu0 0.0
      %7957 = vmatmul.mubr.f32.gmra.mrb[0].mxu0 %v7807
      %v7958 = vpop.f32.mrb[0].mxu0
      %v7959 = vadd.f32 0.0, %v7958
      %v7960 = vpop.f32.mrb[0].mxu0
      %7961 = vmatprep.mubr.f32.mxu0 0.0
      %7962 = vmatmul.mubr.f32.gmra.mrb[0].mxu0 %v7809
      %v7963 = vpop.f32.mrb[0].mxu0
      %v7964 = vadd.f32 0.0, %v7963
      %v7965 = vpop.f32.mrb[0].mxu0
      %7966 = vmatprep.mubr.f32.mxu0 0.0
      %7967 = vmatmul.mubr.f32.gmra.mrb[0].mxu0 %v7811
      %v7968 = vpop.f32.mrb[0].mxu0
      %v7969 = vadd.f32 0.0, %v7968
      %v7970 = vpop.f32.mrb[0].mxu0
      %7971 = vmatprep.mubr.f32.mxu0 0.0
      %7972 = vmatmul.mubr.f32.gmra.mrb[0].mxu0 %v7813
      %v7973 = vpop.f32.mrb[0].mxu0
      %v7974 = vadd.f32 0.0, %v7973
      %v7975 = vpop.f32.mrb[0].mxu0
      %7976 = vmatprep.mubr.f32.mxu0 0.0
      %7977 = vmatmul.mubr.f32.gmra.mrb[0].mxu0 %v7815
      %v7978 = vpop.f32.mrb[0].mxu0
      %v7979 = vadd.f32 0.0, %v7978
      %v7980 = vpop.f32.mrb[0].mxu0
      %7981 = vmatprep.mubr.f32.mxu0 0.0
      %7982 = vmatmul.mubr.f32.gmra.mrb[0].mxu0 %v7817
      %v7983 = vpop.f32.mrb[0].mxu0
      %v7984 = vadd.f32 0.0, %v7983
      %v7985 = vpop.f32.mrb[0].mxu0
      %7986 = vmatprep.mubr.f32.mxu0 0.0
      %7987 = vmatmul.mubr.f32.gmra.mrb[0].mxu0 %v7819
      %v7988 = vpop.f32.mrb[0].mxu0
      %v7989 = vadd.f32 0.0, %v7988
      %v7990 = vpop.f32.mrb[0].mxu0
      %7991 = vmatprep.mubr.f32.mxu0 0.0
      %7992 = vmatmul.mubr.f32.gmra.mrb[0].mxu0 %v7821
      %v7993 = vpop.f32.mrb[0].mxu0
      %v7994 = vadd.f32 0.0, %v7993
      %v7995 = vpop.f32.mrb[0].mxu0
      %7996 = vmatprep.mubr.f32.mxu0 0.0
      %7997 = vmatmul.mubr.f32.gmra.mrb[0].mxu0 %v7823
      %v7998 = vpop.f32.mrb[0].mxu0
      %v7999 = vadd.f32 0.0, %v7998
      %v8000 = vpop.f32.mrb[0].mxu0
      %8001 = vdwg.mxu0
      %v8002 = vmul.f32 %v7924, 0.35355338
      %v8003 = vmul.f32 %v7929, 0.35355338
      %v8004 = vmul.f32 %v7934, 0.35355338
      %v8005 = vmul.f32 %v7939, 0.35355338
      %v8006 = vmul.f32 %v7944, 0.35355338
      %v8007 = vmul.f32 %v7949, 0.35355338
      %v8008 = vmul.f32 %v7954, 0.35355338
      %v8009 = vmul.f32 %v7959, 0.35355338
      %v8010 = vmul.f32 %v7964, 0.35355338
      %v8011 = vmul.f32 %v7969, 0.35355338
      %v8012 = vmul.f32 %v7974, 0.35355338
      %v8013 = vmul.f32 %v7979, 0.35355338
      %v8014 = vmul.f32 %v7984, 0.35355338
      %v8015 = vmul.f32 %v7989, 0.35355338
      %v8016 = vmul.f32 %v7994, 0.35355338
      %v8017 = vmul.f32 %v7999, 0.35355338
      %v8018 = vld [vmem:[%s3360] sm:$0xff]
      %v8019 = vld [vmem:[%s3360 + $0x8] sm:$0xff]
      %v8020 = vld [vmem:[%s3360 + $0x10] sm:$0xff]
      %v8021 = vld [vmem:[%s3360 + $0x18] sm:$0xff]
      %v8022 = vld [vmem:[%s3360 + $0x20] sm:$0xff]
      %v8023 = vld [vmem:[%s3360 + $0x28] sm:$0xff]
      %v8024 = vld [vmem:[%s3360 + $0x30] sm:$0xff]
      %v8025 = vld [vmem:[%s3360 + $0x38] sm:$0xff]
      %v8026 = vld [vmem:[%s3360 + $0x40] sm:$0xff]
      %v8027 = vld [vmem:[%s3360 + $0x48] sm:$0xff]
      %v8028 = vld [vmem:[%s3360 + $0x50] sm:$0xff]
      %v8029 = vld [vmem:[%s3360 + $0x58] sm:$0xff]
      %v8030 = vld [vmem:[%s3360 + $0x60] sm:$0xff]
      %v8031 = vld [vmem:[%s3360 + $0x68] sm:$0xff]
      %v8032 = vld [vmem:[%s3360 + $0x70] sm:$0xff]
      %v8033 = vld [vmem:[%s3360 + $0x78] sm:$0xff]
      %v8034 = vadd.f32 %v8002, %v8018
      %v8035 = vadd.f32 %v8003, %v8019
      %v8036 = vadd.f32 %v8004, %v8020
      %v8037 = vadd.f32 %v8005, %v8021
      %v8038 = vadd.f32 %v8006, %v8022
      %v8039 = vadd.f32 %v8007, %v8023
      %v8040 = vadd.f32 %v8008, %v8024
      %v8041 = vadd.f32 %v8009, %v8025
      %v8042 = vadd.f32 %v8010, %v8026
      %v8043 = vadd.f32 %v8011, %v8027
      %v8044 = vadd.f32 %v8012, %v8028
      %v8045 = vadd.f32 %v8013, %v8029
      %v8046 = vadd.f32 %v8014, %v8030
      %v8047 = vadd.f32 %v8015, %v8031
      %v8048 = vadd.f32 %v8016, %v8032
      %v8049 = vadd.f32 %v8017, %v8033
      %v8050 = vadd.f32 %v8034, %v1158
      %v8051 = vadd.f32 %v8035, %v1159
      %v8052 = vadd.f32 %v8036, %v1160
      %v8053 = vadd.f32 %v8037, %v1161
      %v8054 = vadd.f32 %v8038, %v1162
      %v8055 = vadd.f32 %v8039, %v1163
      %v8056 = vadd.f32 %v8040, %v1164
      %v8057 = vadd.f32 %v8041, %v1165
      %v8058 = vadd.f32 %v8042, %v1166
      %v8059 = vadd.f32 %v8043, %v1167
      %v8060 = vadd.f32 %v8044, %v1168
      %v8061 = vadd.f32 %v8045, %v1169
      %v8062 = vadd.f32 %v8046, %v1170
      %v8063 = vadd.f32 %v8047, %v1171
      %v8064 = vadd.f32 %v8048, %v1172
      %v8065 = vadd.f32 %v8049, %v1173
      %8066 = vmax.xlane.f32.xlu0 %v8050
      %v8067 = vpop.xlane.xlu0 %8066
      %8068 = vmax.xlane.f32.xlu0 %v8051
      %v8069 = vpop.xlane.xlu0 %8068
      %8070 = vmax.xlane.f32.xlu0 %v8052
      %v8071 = vpop.xlane.xlu0 %8070
      %8072 = vmax.xlane.f32.xlu0 %v8053
      %v8073 = vpop.xlane.xlu0 %8072
      %8074 = vmax.xlane.f32.xlu0 %v8054
      %v8075 = vpop.xlane.xlu0 %8074
      %8076 = vmax.xlane.f32.xlu0 %v8055
      %v8077 = vpop.xlane.xlu0 %8076
      %8078 = vmax.xlane.f32.xlu0 %v8056
      %v8079 = vpop.xlane.xlu0 %8078
      %8080 = vmax.xlane.f32.xlu0 %v8057
      %v8081 = vpop.xlane.xlu0 %8080
      %8082 = vmax.xlane.f32.xlu0 %v8058
      %v8083 = vpop.xlane.xlu0 %8082
      %8084 = vmax.xlane.f32.xlu0 %v8059
      %v8085 = vpop.xlane.xlu0 %8084
      %8086 = vmax.xlane.f32.xlu0 %v8060
      %v8087 = vpop.xlane.xlu0 %8086
      %8088 = vmax.xlane.f32.xlu0 %v8061
      %v8089 = vpop.xlane.xlu0 %8088
      %8090 = vmax.xlane.f32.xlu0 %v8062
      %v8091 = vpop.xlane.xlu0 %8090
      %8092 = vmax.xlane.f32.xlu0 %v8063
      %v8093 = vpop.xlane.xlu0 %8092
      %8094 = vmax.xlane.f32.xlu0 %v8064
      %v8095 = vpop.xlane.xlu0 %8094
      %8096 = vmax.xlane.f32.xlu0 %v8065
      %v8097 = vpop.xlane.xlu0 %8096
      %v8098 = vsub.f32 %v8050, %v8067
      %v8099 = vsub.f32 %v8051, %v8069
      %v8100 = vsub.f32 %v8052, %v8071
      %v8101 = vsub.f32 %v8053, %v8073
      %v8102 = vsub.f32 %v8054, %v8075
      %v8103 = vsub.f32 %v8055, %v8077
      %v8104 = vsub.f32 %v8056, %v8079
      %v8105 = vsub.f32 %v8057, %v8081
      %v8106 = vsub.f32 %v8058, %v8083
      %v8107 = vsub.f32 %v8059, %v8085
      %v8108 = vsub.f32 %v8060, %v8087
      %v8109 = vsub.f32 %v8061, %v8089
      %v8110 = vsub.f32 %v8062, %v8091
      %v8111 = vsub.f32 %v8063, %v8093
      %v8112 = vsub.f32 %v8064, %v8095
      %v8113 = vsub.f32 %v8065, %v8097
      %v8114 = vmul.f32 %v8098, 1.442695
      %v8115 = vpow.pop %v8114
      %v8116 = vmul.f32 %v8099, 1.442695
      %v8117 = vpow.pop %v8116
      %v8118 = vmul.f32 %v8100, 1.442695
      %v8119 = vpow.pop %v8118
      %v8120 = vmul.f32 %v8101, 1.442695
      %v8121 = vpow.pop %v8120
      %v8122 = vmul.f32 %v8102, 1.442695
      %v8123 = vpow.pop %v8122
      %v8124 = vmul.f32 %v8103, 1.442695
      %v8125 = vpow.pop %v8124
      %v8126 = vmul.f32 %v8104, 1.442695
      %v8127 = vpow.pop %v8126
      %v8128 = vmul.f32 %v8105, 1.442695
      %v8129 = vpow.pop %v8128
      %v8130 = vmul.f32 %v8106, 1.442695
      %v8131 = vpow.pop %v8130
      %v8132 = vmul.f32 %v8107, 1.442695
      %v8133 = vpow.pop %v8132
      %v8134 = vmul.f32 %v8108, 1.442695
      %v8135 = vpow.pop %v8134
      %v8136 = vmul.f32 %v8109, 1.442695
      %v8137 = vpow.pop %v8136
      %v8138 = vmul.f32 %v8110, 1.442695
      %v8139 = vpow.pop %v8138
      %v8140 = vmul.f32 %v8111, 1.442695
      %v8141 = vpow.pop %v8140
      %v8142 = vmul.f32 %v8112, 1.442695
      %v8143 = vpow.pop %v8142
      %v8144 = vmul.f32 %v8113, 1.442695
      %v8145 = vpow.pop %v8144
      %8146 = vadd.xlane.f32.xlu0 %v8115
      %v8147 = vpop.xlane.xlu0 %8146
      %8148 = vadd.xlane.f32.xlu0 %v8117
      %v8149 = vpop.xlane.xlu0 %8148
      %8150 = vadd.xlane.f32.xlu0 %v8119
      %v8151 = vpop.xlane.xlu0 %8150
      %8152 = vadd.xlane.f32.xlu0 %v8121
      %v8153 = vpop.xlane.xlu0 %8152
      %8154 = vadd.xlane.f32.xlu0 %v8123
      %v8155 = vpop.xlane.xlu0 %8154
      %8156 = vadd.xlane.f32.xlu0 %v8125
      %v8157 = vpop.xlane.xlu0 %8156
      %8158 = vadd.xlane.f32.xlu0 %v8127
      %v8159 = vpop.xlane.xlu0 %8158
      %8160 = vadd.xlane.f32.xlu0 %v8129
      %v8161 = vpop.xlane.xlu0 %8160
      %8162 = vadd.xlane.f32.xlu0 %v8131
      %v8163 = vpop.xlane.xlu0 %8162
      %8164 = vadd.xlane.f32.xlu0 %v8133
      %v8165 = vpop.xlane.xlu0 %8164
      %8166 = vadd.xlane.f32.xlu0 %v8135
      %v8167 = vpop.xlane.xlu0 %8166
      %8168 = vadd.xlane.f32.xlu0 %v8137
      %v8169 = vpop.xlane.xlu0 %8168
      %8170 = vadd.xlane.f32.xlu0 %v8139
      %v8171 = vpop.xlane.xlu0 %8170
      %8172 = vadd.xlane.f32.xlu0 %v8141
      %v8173 = vpop.xlane.xlu0 %8172
      %8174 = vadd.xlane.f32.xlu0 %v8143
      %v8175 = vpop.xlane.xlu0 %8174
      %8176 = vadd.xlane.f32.xlu0 %v8145
      %v8177 = vpop.xlane.xlu0 %8176
      %v8178 = vrcp.pop %v8147
      %v8179 = vrcp.pop %v8149
      %v8180 = vrcp.pop %v8151
      %v8181 = vrcp.pop %v8153
      %v8182 = vrcp.pop %v8155
      %v8183 = vrcp.pop %v8157
      %v8184 = vrcp.pop %v8159
      %v8185 = vrcp.pop %v8161
      %v8186 = vrcp.pop %v8163
      %v8187 = vrcp.pop %v8165
      %v8188 = vrcp.pop %v8167
      %v8189 = vrcp.pop %v8169
      %v8190 = vrcp.pop %v8171
      %v8191 = vrcp.pop %v8173
      %v8192 = vrcp.pop %v8175
      %v8193 = vrcp.pop %v8177
      %v8194 = vmul.f32 %v8115, %v8178
      %v8195 = vmul.f32 %v8117, %v8179
      %v8196 = vmul.f32 %v8119, %v8180
      %v8197 = vmul.f32 %v8121, %v8181
      %v8198 = vmul.f32 %v8123, %v8182
      %v8199 = vmul.f32 %v8125, %v8183
      %v8200 = vmul.f32 %v8127, %v8184
      %v8201 = vmul.f32 %v8129, %v8185
      %v8202 = vmul.f32 %v8131, %v8186
      %v8203 = vmul.f32 %v8133, %v8187
      %v8204 = vmul.f32 %v8135, %v8188
      %v8205 = vmul.f32 %v8137, %v8189
      %v8206 = vmul.f32 %v8139, %v8190
      %v8207 = vmul.f32 %v8141, %v8191
      %v8208 = vmul.f32 %v8143, %v8192
      %v8209 = vmul.f32 %v8145, %v8193
      %8210 = vrot.lane.b32.xlu0 %v5928, 48
      %v8211 = vpop.permute.xlu0 %8210
      %8212 = vrot.lane.b32.xlu0 %v5933, 48
      %v8213 = vpop.permute.xlu0 %8212
      %8214 = vrot.lane.b32.xlu0 %v5938, 48
      %v8215 = vpop.permute.xlu0 %8214
      %8216 = vrot.lane.b32.xlu0 %v5943, 48
      %v8217 = vpop.permute.xlu0 %8216
      %8218 = vrot.lane.b32.xlu0 %v5948, 48
      %v8219 = vpop.permute.xlu0 %8218
      %8220 = vrot.lane.b32.xlu0 %v5953, 48
      %v8221 = vpop.permute.xlu0 %8220
      %8222 = vrot.lane.b32.xlu0 %v5958, 48
      %v8223 = vpop.permute.xlu0 %8222
      %8224 = vrot.lane.b32.xlu0 %v5963, 48
      %v8225 = vpop.permute.xlu0 %8224
      %8226 = vrot.lane.b32.xlu0 %v5968, 48
      %v8227 = vpop.permute.xlu0 %8226
      %8228 = vrot.lane.b32.xlu0 %v5973, 48
      %v8229 = vpop.permute.xlu0 %8228
      %8230 = vrot.lane.b32.xlu0 %v5978, 48
      %v8231 = vpop.permute.xlu0 %8230
      %8232 = vrot.lane.b32.xlu0 %v5983, 48
      %v8233 = vpop.permute.xlu0 %8232
      %8234 = vrot.lane.b32.xlu0 %v5988, 48
      %v8235 = vpop.permute.xlu0 %8234
      %8236 = vrot.lane.b32.xlu0 %v5993, 48
      %v8237 = vpop.permute.xlu0 %8236
      %8238 = vrot.lane.b32.xlu0 %v5998, 48
      %v8239 = vpop.permute.xlu0 %8238
      %8240 = vrot.lane.b32.xlu0 %v6003, 48
      %v8241 = vpop.permute.xlu0 %8240
      %8258 = vmatprep.subr.mxu0 0.0
      %8259 = vmatpush1.msra.mxu0 %v8211
      %8260 = vmatprep.subr.mxu0 0.0
      %8261 = vmatpush1.msra.mxu0 %v8213
      %8262 = vmatprep.subr.mxu0 0.0
      %8263 = vmatpush1.msra.mxu0 %v8215
      %8264 = vmatprep.subr.mxu0 0.0
      %8265 = vmatpush1.msra.mxu0 %v8217
      %8266 = vmatprep.subr.mxu0 0.0
      %8267 = vmatpush1.msra.mxu0 %v8219
      %8268 = vmatprep.subr.mxu0 0.0
      %8269 = vmatpush1.msra.mxu0 %v8221
      %8270 = vmatprep.subr.mxu0 0.0
      %8271 = vmatpush1.msra.mxu0 %v8223
      %8272 = vmatprep.subr.mxu0 0.0
      %8273 = vmatpush1.msra.mxu0 %v8225
      %8274 = vmatprep.subr.mxu0 0.0
      %8275 = vmatpush1.msra.mxu0 %v8227
      %8276 = vmatprep.subr.mxu0 0.0
      %8277 = vmatpush1.msra.mxu0 %v8229
      %8278 = vmatprep.subr.mxu0 0.0
      %8279 = vmatpush1.msra.mxu0 %v8231
      %8280 = vmatprep.subr.mxu0 0.0
      %8281 = vmatpush1.msra.mxu0 %v8233
      %8282 = vmatprep.subr.mxu0 0.0
      %8283 = vmatpush1.msra.mxu0 %v8235
      %8284 = vmatprep.subr.mxu0 0.0
      %8285 = vmatpush1.msra.mxu0 %v8237
      %8286 = vmatprep.subr.mxu0 0.0
      %8287 = vmatpush1.msra.mxu0 %v8239
      %8288 = vmatprep.subr.mxu0 0.0
      %8289 = vmatpush1.msra.mxu0 %v8241
      %8290 = vmatprep.subr.mxu0 0.0
      %8291 = vmatpush1.msra.mxu0 0.0
      %8292 = vmatprep.subr.mxu0 0.0
      %8293 = vmatpush1.msra.mxu0 0.0
      %8294 = vmatprep.subr.mxu0 0.0
      %8295 = vmatpush1.msra.mxu0 0.0
      %8296 = vmatprep.subr.mxu0 0.0
      %8297 = vmatpush1.msra.mxu0 0.0
      %8298 = vmatprep.subr.mxu0 0.0
      %8299 = vmatpush1.msra.mxu0 0.0
      %8300 = vmatprep.subr.mxu0 0.0
      %8301 = vmatpush1.msra.mxu0 0.0
      %8302 = vmatprep.subr.mxu0 0.0
      %8303 = vmatpush1.msra.mxu0 0.0
      %8304 = vmatprep.subr.mxu0 0.0
      %8305 = vmatpush1.msra.mxu0 0.0
      %8306 = vmatprep.subr.mxu0 0.0
      %8307 = vmatpush1.msra.mxu0 0.0
      %8308 = vmatprep.subr.mxu0 0.0
      %8309 = vmatpush1.msra.mxu0 0.0
      %8310 = vmatprep.subr.mxu0 0.0
      %8311 = vmatpush1.msra.mxu0 0.0
      %8312 = vmatprep.subr.mxu0 0.0
      %8313 = vmatpush1.msra.mxu0 0.0
      %8314 = vmatprep.subr.mxu0 0.0
      %8315 = vmatpush1.msra.mxu0 0.0
      %8316 = vmatprep.subr.mxu0 0.0
      %8317 = vmatpush1.msra.mxu0 0.0
      %8318 = vmatprep.subr.mxu0 0.0
      %8319 = vmatpush1.msra.mxu0 0.0
      %8320 = vmatprep.subr.mxu0 0.0
      %8321 = vmatpush1.msra.mxu0 0.0
      %8322 = vmatprep.mubr.f32.mxu0 0.0
      %8323 = vmatmul.mubr.f32.gmra.mrb[0].mxu0 %v8194
      %v8324 = vpop.f32.mrb[0].mxu0
      %v8325 = vadd.f32 0.0, %v8324
      %v8326 = vpop.f32.mrb[0].mxu0
      %8327 = vmatprep.mubr.f32.mxu0 0.0
      %8328 = vmatmul.mubr.f32.gmra.mrb[0].mxu0 %v8195
      %v8329 = vpop.f32.mrb[0].mxu0
      %v8330 = vadd.f32 0.0, %v8329
      %v8331 = vpop.f32.mrb[0].mxu0
      %8332 = vmatprep.mubr.f32.mxu0 0.0
      %8333 = vmatmul.mubr.f32.gmra.mrb[0].mxu0 %v8196
      %v8334 = vpop.f32.mrb[0].mxu0
      %v8335 = vadd.f32 0.0, %v8334
      %v8336 = vpop.f32.mrb[0].mxu0
      %8337 = vmatprep.mubr.f32.mxu0 0.0
      %8338 = vmatmul.mubr.f32.gmra.mrb[0].mxu0 %v8197
      %v8339 = vpop.f32.mrb[0].mxu0
      %v8340 = vadd.f32 0.0, %v8339
      %v8341 = vpop.f32.mrb[0].mxu0
      %8342 = vmatprep.mubr.f32.mxu0 0.0
      %8343 = vmatmul.mubr.f32.gmra.mrb[0].mxu0 %v8198
      %v8344 = vpop.f32.mrb[0].mxu0
      %v8345 = vadd.f32 0.0, %v8344
      %v8346 = vpop.f32.mrb[0].mxu0
      %8347 = vmatprep.mubr.f32.mxu0 0.0
      %8348 = vmatmul.mubr.f32.gmra.mrb[0].mxu0 %v8199
      %v8349 = vpop.f32.mrb[0].mxu0
      %v8350 = vadd.f32 0.0, %v8349
      %v8351 = vpop.f32.mrb[0].mxu0
      %8352 = vmatprep.mubr.f32.mxu0 0.0
      %8353 = vmatmul.mubr.f32.gmra.mrb[0].mxu0 %v8200
      %v8354 = vpop.f32.mrb[0].mxu0
      %v8355 = vadd.f32 0.0, %v8354
      %v8356 = vpop.f32.mrb[0].mxu0
      %8357 = vmatprep.mubr.f32.mxu0 0.0
      %8358 = vmatmul.mubr.f32.gmra.mrb[0].mxu0 %v8201
      %v8359 = vpop.f32.mrb[0].mxu0
      %v8360 = vadd.f32 0.0, %v8359
      %v8361 = vpop.f32.mrb[0].mxu0
      %8362 = vmatprep.mubr.f32.mxu0 0.0
      %8363 = vmatmul.mubr.f32.gmra.mrb[0].mxu0 %v8202
      %v8364 = vpop.f32.mrb[0].mxu0
      %v8365 = vadd.f32 0.0, %v8364
      %v8366 = vpop.f32.mrb[0].mxu0
      %8367 = vmatprep.mubr.f32.mxu0 0.0
      %8368 = vmatmul.mubr.f32.gmra.mrb[0].mxu0 %v8203
      %v8369 = vpop.f32.mrb[0].mxu0
      %v8370 = vadd.f32 0.0, %v8369
      %v8371 = vpop.f32.mrb[0].mxu0
      %8372 = vmatprep.mubr.f32.mxu0 0.0
      %8373 = vmatmul.mubr.f32.gmra.mrb[0].mxu0 %v8204
      %v8374 = vpop.f32.mrb[0].mxu0
      %v8375 = vadd.f32 0.0, %v8374
      %v8376 = vpop.f32.mrb[0].mxu0
      %8377 = vmatprep.mubr.f32.mxu0 0.0
      %8378 = vmatmul.mubr.f32.gmra.mrb[0].mxu0 %v8205
      %v8379 = vpop.f32.mrb[0].mxu0
      %v8380 = vadd.f32 0.0, %v8379
      %v8381 = vpop.f32.mrb[0].mxu0
      %8382 = vmatprep.mubr.f32.mxu0 0.0
      %8383 = vmatmul.mubr.f32.gmra.mrb[0].mxu0 %v8206
      %v8384 = vpop.f32.mrb[0].mxu0
      %v8385 = vadd.f32 0.0, %v8384
      %v8386 = vpop.f32.mrb[0].mxu0
      %8387 = vmatprep.mubr.f32.mxu0 0.0
      %8388 = vmatmul.mubr.f32.gmra.mrb[0].mxu0 %v8207
      %v8389 = vpop.f32.mrb[0].mxu0
      %v8390 = vadd.f32 0.0, %v8389
      %v8391 = vpop.f32.mrb[0].mxu0
      %8392 = vmatprep.mubr.f32.mxu0 0.0
      %8393 = vmatmul.mubr.f32.gmra.mrb[0].mxu0 %v8208
      %v8394 = vpop.f32.mrb[0].mxu0
      %v8395 = vadd.f32 0.0, %v8394
      %v8396 = vpop.f32.mrb[0].mxu0
      %8397 = vmatprep.mubr.f32.mxu0 0.0
      %8398 = vmatmul.mubr.f32.gmra.mrb[0].mxu0 %v8209
      %v8399 = vpop.f32.mrb[0].mxu0
      %v8400 = vadd.f32 0.0, %v8399
      %v8401 = vpop.f32.mrb[0].mxu0
      %8402 = vdwg.mxu0
      %v8404 = vsel %vm1431, %v8325, 0
      %v8407 = vsel %vm1431, %v8330, 0
      %v8410 = vsel %vm1431, %v8335, 0
      %v8413 = vsel %vm1431, %v8340, 0
      %v8416 = vsel %vm1431, %v8345, 0
      %v8419 = vsel %vm1431, %v8350, 0
      %v8422 = vsel %vm1431, %v8355, 0
      %v8425 = vsel %vm1431, %v8360, 0
      %v8428 = vsel %vm1431, %v8365, 0
      %v8431 = vsel %vm1431, %v8370, 0
      %v8434 = vsel %vm1431, %v8375, 0
      %v8437 = vsel %vm1431, %v8380, 0
      %v8440 = vsel %vm1431, %v8385, 0
      %v8443 = vsel %vm1431, %v8390, 0
      %v8446 = vsel %vm1431, %v8395, 0
      %v8449 = vsel %vm1431, %v8400, 0
      %8451 = vmatprep.subr.mxu0 0.0
      %8452 = vmatpush1.msra.mxu0 %v6009
      %8453 = vmatprep.subr.mxu0 0.0
      %8454 = vmatpush1.msra.mxu0 0.0
      %8455 = vmatprep.subr.mxu0 0.0
      %8456 = vmatpush1.msra.mxu0 0.0
      %8457 = vmatprep.subr.mxu0 0.0
      %8458 = vmatpush1.msra.mxu0 0.0
      %8459 = vmatprep.subr.mxu0 0.0
      %8460 = vmatpush1.msra.mxu0 0.0
      %8461 = vmatprep.subr.mxu0 0.0
      %8462 = vmatpush1.msra.mxu0 0.0
      %8463 = vmatprep.subr.mxu0 0.0
      %8464 = vmatpush1.msra.mxu0 0.0
      %8465 = vmatprep.subr.mxu0 0.0
      %8466 = vmatpush1.msra.mxu0 0.0
      %8467 = vmatprep.subr.mxu0 0.0
      %8468 = vmatpush1.msra.mxu0 0.0
      %8469 = vmatprep.subr.mxu0 0.0
      %8470 = vmatpush1.msra.mxu0 0.0
      %8471 = vmatprep.subr.mxu0 0.0
      %8472 = vmatpush1.msra.mxu0 0.0
      %8473 = vmatprep.subr.mxu0 0.0
      %8474 = vmatpush1.msra.mxu0 0.0
      %8475 = vmatprep.subr.mxu0 0.0
      %8476 = vmatpush1.msra.mxu0 0.0
      %8477 = vmatprep.subr.mxu0 0.0
      %8478 = vmatpush1.msra.mxu0 0.0
      %8479 = vmatprep.subr.mxu0 0.0
      %8480 = vmatpush1.msra.mxu0 0.0
      %8481 = vmatprep.subr.mxu0 0.0
      %8482 = vmatpush1.msra.mxu0 0.0
      %8483 = vmatprep.subr.mxu0 0.0
      %8484 = vmatpush1.msra.mxu0 0.0
      %8485 = vmatprep.subr.mxu0 0.0
      %8486 = vmatpush1.msra.mxu0 0.0
      %8487 = vmatprep.subr.mxu0 0.0
      %8488 = vmatpush1.msra.mxu0 0.0
      %8489 = vmatprep.subr.mxu0 0.0
      %8490 = vmatpush1.msra.mxu0 0.0
      %8491 = vmatprep.subr.mxu0 0.0
      %8492 = vmatpush1.msra.mxu0 0.0
      %8493 = vmatprep.subr.mxu0 0.0
      %8494 = vmatpush1.msra.mxu0 0.0
      %8495 = vmatprep.subr.mxu0 0.0
      %8496 = vmatpush1.msra.mxu0 0.0
      %8497 = vmatprep.subr.mxu0 0.0
      %8498 = vmatpush1.msra.mxu0 0.0
      %8499 = vmatprep.subr.mxu0 0.0
      %8500 = vmatpush1.msra.mxu0 0.0
      %8501 = vmatprep.subr.mxu0 0.0
      %8502 = vmatpush1.msra.mxu0 0.0
      %8503 = vmatprep.subr.mxu0 0.0
      %8504 = vmatpush1.msra.mxu0 0.0
      %8505 = vmatprep.subr.mxu0 0.0
      %8506 = vmatpush1.msra.mxu0 0.0
      %8507 = vmatprep.subr.mxu0 0.0
      %8508 = vmatpush1.msra.mxu0 0.0
      %8509 = vmatprep.subr.mxu0 0.0
      %8510 = vmatpush1.msra.mxu0 0.0
      %8511 = vmatprep.subr.mxu0 0.0
      %8512 = vmatpush1.msra.mxu0 0.0
      %8513 = vmatprep.subr.mxu0 0.0
      %8514 = vmatpush1.msra.mxu0 0.0
      %8515 = vmatprep.mubr.f32.mxu0 0.0
      %8516 = vmatmul.mubr.f32.gmra.mrb[0].mxu0 %v8404
      %v8517 = vpop.f32.mrb[0].mxu0
      %v8518 = vadd.f32 0.0, %v8517
      %v8519 = vpop.f32.mrb[0].mxu0
      %8520 = vmatprep.mubr.f32.mxu0 0.0
      %8521 = vmatmul.mubr.f32.gmra.mrb[0].mxu0 %v8407
      %v8522 = vpop.f32.mrb[0].mxu0
      %v8523 = vadd.f32 0.0, %v8522
      %v8524 = vpop.f32.mrb[0].mxu0
      %8525 = vmatprep.mubr.f32.mxu0 0.0
      %8526 = vmatmul.mubr.f32.gmra.mrb[0].mxu0 %v8410
      %v8527 = vpop.f32.mrb[0].mxu0
      %v8528 = vadd.f32 0.0, %v8527
      %v8529 = vpop.f32.mrb[0].mxu0
      %8530 = vmatprep.mubr.f32.mxu0 0.0
      %8531 = vmatmul.mubr.f32.gmra.mrb[0].mxu0 %v8413
      %v8532 = vpop.f32.mrb[0].mxu0
      %v8533 = vadd.f32 0.0, %v8532
      %v8534 = vpop.f32.mrb[0].mxu0
      %8535 = vmatprep.mubr.f32.mxu0 0.0
      %8536 = vmatmul.mubr.f32.gmra.mrb[0].mxu0 %v8416
      %v8537 = vpop.f32.mrb[0].mxu0
      %v8538 = vadd.f32 0.0, %v8537
      %v8539 = vpop.f32.mrb[0].mxu0
      %8540 = vmatprep.mubr.f32.mxu0 0.0
      %8541 = vmatmul.mubr.f32.gmra.mrb[0].mxu0 %v8419
      %v8542 = vpop.f32.mrb[0].mxu0
      %v8543 = vadd.f32 0.0, %v8542
      %v8544 = vpop.f32.mrb[0].mxu0
      %8545 = vmatprep.mubr.f32.mxu0 0.0
      %8546 = vmatmul.mubr.f32.gmra.mrb[0].mxu0 %v8422
      %v8547 = vpop.f32.mrb[0].mxu0
      %v8548 = vadd.f32 0.0, %v8547
      %v8549 = vpop.f32.mrb[0].mxu0
      %8550 = vmatprep.mubr.f32.mxu0 0.0
      %8551 = vmatmul.mubr.f32.gmra.mrb[0].mxu0 %v8425
      %v8552 = vpop.f32.mrb[0].mxu0
      %v8553 = vadd.f32 0.0, %v8552
      %v8554 = vpop.f32.mrb[0].mxu0
      %8555 = vmatprep.mubr.f32.mxu0 0.0
      %8556 = vmatmul.mubr.f32.gmra.mrb[0].mxu0 %v8428
      %v8557 = vpop.f32.mrb[0].mxu0
      %v8558 = vadd.f32 0.0, %v8557
      %v8559 = vpop.f32.mrb[0].mxu0
      %8560 = vmatprep.mubr.f32.mxu0 0.0
      %8561 = vmatmul.mubr.f32.gmra.mrb[0].mxu0 %v8431
      %v8562 = vpop.f32.mrb[0].mxu0
      %v8563 = vadd.f32 0.0, %v8562
      %v8564 = vpop.f32.mrb[0].mxu0
      %8565 = vmatprep.mubr.f32.mxu0 0.0
      %8566 = vmatmul.mubr.f32.gmra.mrb[0].mxu0 %v8434
      %v8567 = vpop.f32.mrb[0].mxu0
      %v8568 = vadd.f32 0.0, %v8567
      %v8569 = vpop.f32.mrb[0].mxu0
      %8570 = vmatprep.mubr.f32.mxu0 0.0
      %8571 = vmatmul.mubr.f32.gmra.mrb[0].mxu0 %v8437
      %v8572 = vpop.f32.mrb[0].mxu0
      %v8573 = vadd.f32 0.0, %v8572
      %v8574 = vpop.f32.mrb[0].mxu0
      %8575 = vmatprep.mubr.f32.mxu0 0.0
      %8576 = vmatmul.mubr.f32.gmra.mrb[0].mxu0 %v8440
      %v8577 = vpop.f32.mrb[0].mxu0
      %v8578 = vadd.f32 0.0, %v8577
      %v8579 = vpop.f32.mrb[0].mxu0
      %8580 = vmatprep.mubr.f32.mxu0 0.0
      %8581 = vmatmul.mubr.f32.gmra.mrb[0].mxu0 %v8443
      %v8582 = vpop.f32.mrb[0].mxu0
      %v8583 = vadd.f32 0.0, %v8582
      %v8584 = vpop.f32.mrb[0].mxu0
      %8585 = vmatprep.mubr.f32.mxu0 0.0
      %8586 = vmatmul.mubr.f32.gmra.mrb[0].mxu0 %v8446
      %v8587 = vpop.f32.mrb[0].mxu0
      %v8588 = vadd.f32 0.0, %v8587
      %v8589 = vpop.f32.mrb[0].mxu0
      %8590 = vmatprep.mubr.f32.mxu0 0.0
      %8591 = vmatmul.mubr.f32.gmra.mrb[0].mxu0 %v8449
      %v8592 = vpop.f32.mrb[0].mxu0
      %v8593 = vadd.f32 0.0, %v8592
      %v8594 = vpop.f32.mrb[0].mxu0
      %8595 = vdwg.mxu0
      %v8596 = vadd.f32 %v7651, %v8518
      %v8597 = vadd.f32 %v7656, %v8523
      %v8598 = vadd.f32 %v7661, %v8528
      %v8599 = vadd.f32 %v7666, %v8533
      %v8600 = vadd.f32 %v7671, %v8538
      %v8601 = vadd.f32 %v7676, %v8543
      %v8602 = vadd.f32 %v7681, %v8548
      %v8603 = vadd.f32 %v7686, %v8553
      %v8604 = vadd.f32 %v7691, %v8558
      %v8605 = vadd.f32 %v7696, %v8563
      %v8606 = vadd.f32 %v7701, %v8568
      %v8607 = vadd.f32 %v7706, %v8573
      %v8608 = vadd.f32 %v7711, %v8578
      %v8609 = vadd.f32 %v7716, %v8583
      %v8610 = vadd.f32 %v7721, %v8588
      %v8611 = vadd.f32 %v7726, %v8593
      %8612 = vrot.lane.b32.xlu0 %v5928, 104
      %v8613 = vpop.permute.xlu0 %8612
      %8614 = vrot.lane.b32.xlu0 %v5933, 104
      %v8615 = vpop.permute.xlu0 %8614
      %8616 = vrot.lane.b32.xlu0 %v5938, 104
      %v8617 = vpop.permute.xlu0 %8616
      %8618 = vrot.lane.b32.xlu0 %v5943, 104
      %v8619 = vpop.permute.xlu0 %8618
      %8620 = vrot.lane.b32.xlu0 %v5948, 104
      %v8621 = vpop.permute.xlu0 %8620
      %8622 = vrot.lane.b32.xlu0 %v5953, 104
      %v8623 = vpop.permute.xlu0 %8622
      %8624 = vrot.lane.b32.xlu0 %v5958, 104
      %v8625 = vpop.permute.xlu0 %8624
      %8626 = vrot.lane.b32.xlu0 %v5963, 104
      %v8627 = vpop.permute.xlu0 %8626
      %8628 = vrot.lane.b32.xlu0 %v5968, 104
      %v8629 = vpop.permute.xlu0 %8628
      %8630 = vrot.lane.b32.xlu0 %v5973, 104
      %v8631 = vpop.permute.xlu0 %8630
      %8632 = vrot.lane.b32.xlu0 %v5978, 104
      %v8633 = vpop.permute.xlu0 %8632
      %8634 = vrot.lane.b32.xlu0 %v5983, 104
      %v8635 = vpop.permute.xlu0 %8634
      %8636 = vrot.lane.b32.xlu0 %v5988, 104
      %v8637 = vpop.permute.xlu0 %8636
      %8638 = vrot.lane.b32.xlu0 %v5993, 104
      %v8639 = vpop.permute.xlu0 %8638
      %8640 = vrot.lane.b32.xlu0 %v5998, 104
      %v8641 = vpop.permute.xlu0 %8640
      %8642 = vrot.lane.b32.xlu0 %v6003, 104
      %v8643 = vpop.permute.xlu0 %8642
      %8644 = vrot.lane.b32.xlu0 %v5928, 72
      %v8645 = vpop.permute.xlu0 %8644
      %8646 = vrot.lane.b32.xlu0 %v5933, 72
      %v8647 = vpop.permute.xlu0 %8646
      %8648 = vrot.lane.b32.xlu0 %v5938, 72
      %v8649 = vpop.permute.xlu0 %8648
      %8650 = vrot.lane.b32.xlu0 %v5943, 72
      %v8651 = vpop.permute.xlu0 %8650
      %8652 = vrot.lane.b32.xlu0 %v5948, 72
      %v8653 = vpop.permute.xlu0 %8652
      %8654 = vrot.lane.b32.xlu0 %v5953, 72
      %v8655 = vpop.permute.xlu0 %8654
      %8656 = vrot.lane.b32.xlu0 %v5958, 72
      %v8657 = vpop.permute.xlu0 %8656
      %8658 = vrot.lane.b32.xlu0 %v5963, 72
      %v8659 = vpop.permute.xlu0 %8658
      %8660 = vrot.lane.b32.xlu0 %v5968, 72
      %v8661 = vpop.permute.xlu0 %8660
      %8662 = vrot.lane.b32.xlu0 %v5973, 72
      %v8663 = vpop.permute.xlu0 %8662
      %8664 = vrot.lane.b32.xlu0 %v5978, 72
      %v8665 = vpop.permute.xlu0 %8664
      %8666 = vrot.lane.b32.xlu0 %v5983, 72
      %v8667 = vpop.permute.xlu0 %8666
      %8668 = vrot.lane.b32.xlu0 %v5988, 72
      %v8669 = vpop.permute.xlu0 %8668
      %8670 = vrot.lane.b32.xlu0 %v5993, 72
      %v8671 = vpop.permute.xlu0 %8670
      %8672 = vrot.lane.b32.xlu0 %v5998, 72
      %v8673 = vpop.permute.xlu0 %8672
      %8674 = vrot.lane.b32.xlu0 %v6003, 72
      %v8675 = vpop.permute.xlu0 %8674
      %v8676 = vsel %vm1431, %v8613, 0
      %v8678 = vsel %vm1431, %v8615, 0
      %v8680 = vsel %vm1431, %v8617, 0
      %v8682 = vsel %vm1431, %v8619, 0
      %v8684 = vsel %vm1431, %v8621, 0
      %v8686 = vsel %vm1431, %v8623, 0
      %v8688 = vsel %vm1431, %v8625, 0
      %v8690 = vsel %vm1431, %v8627, 0
      %v8692 = vsel %vm1431, %v8629, 0
      %v8694 = vsel %vm1431, %v8631, 0
      %v8696 = vsel %vm1431, %v8633, 0
      %v8698 = vsel %vm1431, %v8635, 0
      %v8700 = vsel %vm1431, %v8637, 0
      %v8702 = vsel %vm1431, %v8639, 0
      %v8704 = vsel %vm1431, %v8641, 0
      %v8706 = vsel %vm1431, %v8643, 0
      %v8708 = vsel %vm1431, %v8645, 0
      %v8710 = vsel %vm1431, %v8647, 0
      %v8712 = vsel %vm1431, %v8649, 0
      %v8714 = vsel %vm1431, %v8651, 0
      %v8716 = vsel %vm1431, %v8653, 0
      %v8718 = vsel %vm1431, %v8655, 0
      %v8720 = vsel %vm1431, %v8657, 0
      %v8722 = vsel %vm1431, %v8659, 0
      %v8724 = vsel %vm1431, %v8661, 0
      %v8726 = vsel %vm1431, %v8663, 0
      %v8728 = vsel %vm1431, %v8665, 0
      %v8730 = vsel %vm1431, %v8667, 0
      %v8732 = vsel %vm1431, %v8669, 0
      %v8734 = vsel %vm1431, %v8671, 0
      %v8736 = vsel %vm1431, %v8673, 0
      %v8738 = vsel %vm1431, %v8675, 0
      %8740 = vmatprep.subr.mxu0 0.0
      %8741 = vmatpush1.xpose.msra.mxu0 %v8708
      %8742 = vmatprep.subr.mxu0 0.0
      %8743 = vmatpush1.xpose.msra.mxu0 %v8710
      %8744 = vmatprep.subr.mxu0 0.0
      %8745 = vmatpush1.xpose.msra.mxu0 %v8712
      %8746 = vmatprep.subr.mxu0 0.0
      %8747 = vmatpush1.xpose.msra.mxu0 %v8714
      %8748 = vmatprep.subr.mxu0 0.0
      %8749 = vmatpush1.xpose.msra.mxu0 %v8716
      %8750 = vmatprep.subr.mxu0 0.0
      %8751 = vmatpush1.xpose.msra.mxu0 %v8718
      %8752 = vmatprep.subr.mxu0 0.0
      %8753 = vmatpush1.xpose.msra.mxu0 %v8720
      %8754 = vmatprep.subr.mxu0 0.0
      %8755 = vmatpush1.xpose.msra.mxu0 %v8722
      %8756 = vmatprep.subr.mxu0 0.0
      %8757 = vmatpush1.xpose.msra.mxu0 %v8724
      %8758 = vmatprep.subr.mxu0 0.0
      %8759 = vmatpush1.xpose.msra.mxu0 %v8726
      %8760 = vmatprep.subr.mxu0 0.0
      %8761 = vmatpush1.xpose.msra.mxu0 %v8728
      %8762 = vmatprep.subr.mxu0 0.0
      %8763 = vmatpush1.xpose.msra.mxu0 %v8730
      %8764 = vmatprep.subr.mxu0 0.0
      %8765 = vmatpush1.xpose.msra.mxu0 %v8732
      %8766 = vmatprep.subr.mxu0 0.0
      %8767 = vmatpush1.xpose.msra.mxu0 %v8734
      %8768 = vmatprep.subr.mxu0 0.0
      %8769 = vmatpush1.xpose.msra.mxu0 %v8736
      %8770 = vmatprep.subr.mxu0 0.0
      %8771 = vmatpush1.xpose.msra.mxu0 %v8738
      %8772 = vmatprep.subr.mxu0 0.0
      %8773 = vmatpush1.xpose.msra.mxu0 0.0
      %8774 = vmatprep.subr.mxu0 0.0
      %8775 = vmatpush1.xpose.msra.mxu0 0.0
      %8776 = vmatprep.subr.mxu0 0.0
      %8777 = vmatpush1.xpose.msra.mxu0 0.0
      %8778 = vmatprep.subr.mxu0 0.0
      %8779 = vmatpush1.xpose.msra.mxu0 0.0
      %8780 = vmatprep.subr.mxu0 0.0
      %8781 = vmatpush1.xpose.msra.mxu0 0.0
      %8782 = vmatprep.subr.mxu0 0.0
      %8783 = vmatpush1.xpose.msra.mxu0 0.0
      %8784 = vmatprep.subr.mxu0 0.0
      %8785 = vmatpush1.xpose.msra.mxu0 0.0
      %8786 = vmatprep.subr.mxu0 0.0
      %8787 = vmatpush1.xpose.msra.mxu0 0.0
      %8788 = vmatprep.subr.mxu0 0.0
      %8789 = vmatpush1.xpose.msra.mxu0 0.0
      %8790 = vmatprep.subr.mxu0 0.0
      %8791 = vmatpush1.xpose.msra.mxu0 0.0
      %8792 = vmatprep.subr.mxu0 0.0
      %8793 = vmatpush1.xpose.msra.mxu0 0.0
      %8794 = vmatprep.subr.mxu0 0.0
      %8795 = vmatpush1.xpose.msra.mxu0 0.0
      %8796 = vmatprep.subr.mxu0 0.0
      %8797 = vmatpush1.xpose.msra.mxu0 0.0
      %8798 = vmatprep.subr.mxu0 0.0
      %8799 = vmatpush1.xpose.msra.mxu0 0.0
      %8800 = vmatprep.subr.mxu0 0.0
      %8801 = vmatpush1.xpose.msra.mxu0 0.0
      %8802 = vmatprep.subr.mxu0 0.0
      %8803 = vmatpush1.xpose.msra.mxu0 0.0
      %8804 = vmatprep.mubr.f32.mxu0 0.0
      %8805 = vmatmul.mubr.f32.gmra.mrb[0].mxu0 %v8676
      %v8806 = vpop.f32.mrb[0].mxu0
      %v8807 = vadd.f32 0.0, %v8806
      %v8808 = vpop.f32.mrb[0].mxu0
      %8809 = vmatprep.mubr.f32.mxu0 0.0
      %8810 = vmatmul.mubr.f32.gmra.mrb[0].mxu0 %v8678
      %v8811 = vpop.f32.mrb[0].mxu0
      %v8812 = vadd.f32 0.0, %v8811
      %v8813 = vpop.f32.mrb[0].mxu0
      %8814 = vmatprep.mubr.f32.mxu0 0.0
      %8815 = vmatmul.mubr.f32.gmra.mrb[0].mxu0 %v8680
      %v8816 = vpop.f32.mrb[0].mxu0
      %v8817 = vadd.f32 0.0, %v8816
      %v8818 = vpop.f32.mrb[0].mxu0
      %8819 = vmatprep.mubr.f32.mxu0 0.0
      %8820 = vmatmul.mubr.f32.gmra.mrb[0].mxu0 %v8682
      %v8821 = vpop.f32.mrb[0].mxu0
      %v8822 = vadd.f32 0.0, %v8821
      %v8823 = vpop.f32.mrb[0].mxu0
      %8824 = vmatprep.mubr.f32.mxu0 0.0
      %8825 = vmatmul.mubr.f32.gmra.mrb[0].mxu0 %v8684
      %v8826 = vpop.f32.mrb[0].mxu0
      %v8827 = vadd.f32 0.0, %v8826
      %v8828 = vpop.f32.mrb[0].mxu0
      %8829 = vmatprep.mubr.f32.mxu0 0.0
      %8830 = vmatmul.mubr.f32.gmra.mrb[0].mxu0 %v8686
      %v8831 = vpop.f32.mrb[0].mxu0
      %v8832 = vadd.f32 0.0, %v8831
      %v8833 = vpop.f32.mrb[0].mxu0
      %8834 = vmatprep.mubr.f32.mxu0 0.0
      %8835 = vmatmul.mubr.f32.gmra.mrb[0].mxu0 %v8688
      %v8836 = vpop.f32.mrb[0].mxu0
      %v8837 = vadd.f32 0.0, %v8836
      %v8838 = vpop.f32.mrb[0].mxu0
      %8839 = vmatprep.mubr.f32.mxu0 0.0
      %8840 = vmatmul.mubr.f32.gmra.mrb[0].mxu0 %v8690
      %v8841 = vpop.f32.mrb[0].mxu0
      %v8842 = vadd.f32 0.0, %v8841
      %v8843 = vpop.f32.mrb[0].mxu0
      %8844 = vmatprep.mubr.f32.mxu0 0.0
      %8845 = vmatmul.mubr.f32.gmra.mrb[0].mxu0 %v8692
      %v8846 = vpop.f32.mrb[0].mxu0
      %v8847 = vadd.f32 0.0, %v8846
      %v8848 = vpop.f32.mrb[0].mxu0
      %8849 = vmatprep.mubr.f32.mxu0 0.0
      %8850 = vmatmul.mubr.f32.gmra.mrb[0].mxu0 %v8694
      %v8851 = vpop.f32.mrb[0].mxu0
      %v8852 = vadd.f32 0.0, %v8851
      %v8853 = vpop.f32.mrb[0].mxu0
      %8854 = vmatprep.mubr.f32.mxu0 0.0
      %8855 = vmatmul.mubr.f32.gmra.mrb[0].mxu0 %v8696
      %v8856 = vpop.f32.mrb[0].mxu0
      %v8857 = vadd.f32 0.0, %v8856
      %v8858 = vpop.f32.mrb[0].mxu0
      %8859 = vmatprep.mubr.f32.mxu0 0.0
      %8860 = vmatmul.mubr.f32.gmra.mrb[0].mxu0 %v8698
      %v8861 = vpop.f32.mrb[0].mxu0
      %v8862 = vadd.f32 0.0, %v8861
      %v8863 = vpop.f32.mrb[0].mxu0
      %8864 = vmatprep.mubr.f32.mxu0 0.0
      %8865 = vmatmul.mubr.f32.gmra.mrb[0].mxu0 %v8700
      %v8866 = vpop.f32.mrb[0].mxu0
      %v8867 = vadd.f32 0.0, %v8866
      %v8868 = vpop.f32.mrb[0].mxu0
      %8869 = vmatprep.mubr.f32.mxu0 0.0
      %8870 = vmatmul.mubr.f32.gmra.mrb[0].mxu0 %v8702
      %v8871 = vpop.f32.mrb[0].mxu0
      %v8872 = vadd.f32 0.0, %v8871
      %v8873 = vpop.f32.mrb[0].mxu0
      %8874 = vmatprep.mubr.f32.mxu0 0.0
      %8875 = vmatmul.mubr.f32.gmra.mrb[0].mxu0 %v8704
      %v8876 = vpop.f32.mrb[0].mxu0
      %v8877 = vadd.f32 0.0, %v8876
      %v8878 = vpop.f32.mrb[0].mxu0
      %8879 = vmatprep.mubr.f32.mxu0 0.0
      %8880 = vmatmul.mubr.f32.gmra.mrb[0].mxu0 %v8706
      %v8881 = vpop.f32.mrb[0].mxu0
      %v8882 = vadd.f32 0.0, %v8881
      %v8883 = vpop.f32.mrb[0].mxu0
      %8884 = vdwg.mxu0
      %v8885 = vmul.f32 %v8807, 0.35355338
      %v8886 = vmul.f32 %v8812, 0.35355338
      %v8887 = vmul.f32 %v8817, 0.35355338
      %v8888 = vmul.f32 %v8822, 0.35355338
      %v8889 = vmul.f32 %v8827, 0.35355338
      %v8890 = vmul.f32 %v8832, 0.35355338
      %v8891 = vmul.f32 %v8837, 0.35355338
      %v8892 = vmul.f32 %v8842, 0.35355338
      %v8893 = vmul.f32 %v8847, 0.35355338
      %v8894 = vmul.f32 %v8852, 0.35355338
      %v8895 = vmul.f32 %v8857, 0.35355338
      %v8896 = vmul.f32 %v8862, 0.35355338
      %v8897 = vmul.f32 %v8867, 0.35355338
      %v8898 = vmul.f32 %v8872, 0.35355338
      %v8899 = vmul.f32 %v8877, 0.35355338
      %v8900 = vmul.f32 %v8882, 0.35355338
      %v8901 = vld [vmem:[%s4228] sm:$0xff]
      %v8902 = vld [vmem:[%s4228 + $0x8] sm:$0xff]
      %v8903 = vld [vmem:[%s4228 + $0x10] sm:$0xff]
      %v8904 = vld [vmem:[%s4228 + $0x18] sm:$0xff]
      %v8905 = vld [vmem:[%s4228 + $0x20] sm:$0xff]
      %v8906 = vld [vmem:[%s4228 + $0x28] sm:$0xff]
      %v8907 = vld [vmem:[%s4228 + $0x30] sm:$0xff]
      %v8908 = vld [vmem:[%s4228 + $0x38] sm:$0xff]
      %v8909 = vld [vmem:[%s4228 + $0x40] sm:$0xff]
      %v8910 = vld [vmem:[%s4228 + $0x48] sm:$0xff]
      %v8911 = vld [vmem:[%s4228 + $0x50] sm:$0xff]
      %v8912 = vld [vmem:[%s4228 + $0x58] sm:$0xff]
      %v8913 = vld [vmem:[%s4228 + $0x60] sm:$0xff]
      %v8914 = vld [vmem:[%s4228 + $0x68] sm:$0xff]
      %v8915 = vld [vmem:[%s4228 + $0x70] sm:$0xff]
      %v8916 = vld [vmem:[%s4228 + $0x78] sm:$0xff]
      %v8917 = vadd.f32 %v8885, %v8901
      %v8918 = vadd.f32 %v8886, %v8902
      %v8919 = vadd.f32 %v8887, %v8903
      %v8920 = vadd.f32 %v8888, %v8904
      %v8921 = vadd.f32 %v8889, %v8905
      %v8922 = vadd.f32 %v8890, %v8906
      %v8923 = vadd.f32 %v8891, %v8907
      %v8924 = vadd.f32 %v8892, %v8908
      %v8925 = vadd.f32 %v8893, %v8909
      %v8926 = vadd.f32 %v8894, %v8910
      %v8927 = vadd.f32 %v8895, %v8911
      %v8928 = vadd.f32 %v8896, %v8912
      %v8929 = vadd.f32 %v8897, %v8913
      %v8930 = vadd.f32 %v8898, %v8914
      %v8931 = vadd.f32 %v8899, %v8915
      %v8932 = vadd.f32 %v8900, %v8916
      %v8933 = vadd.f32 %v8917, %v1158
      %v8934 = vadd.f32 %v8918, %v1159
      %v8935 = vadd.f32 %v8919, %v1160
      %v8936 = vadd.f32 %v8920, %v1161
      %v8937 = vadd.f32 %v8921, %v1162
      %v8938 = vadd.f32 %v8922, %v1163
      %v8939 = vadd.f32 %v8923, %v1164
      %v8940 = vadd.f32 %v8924, %v1165
      %v8941 = vadd.f32 %v8925, %v1166
      %v8942 = vadd.f32 %v8926, %v1167
      %v8943 = vadd.f32 %v8927, %v1168
      %v8944 = vadd.f32 %v8928, %v1169
      %v8945 = vadd.f32 %v8929, %v1170
      %v8946 = vadd.f32 %v8930, %v1171
      %v8947 = vadd.f32 %v8931, %v1172
      %v8948 = vadd.f32 %v8932, %v1173
      %8949 = vmax.xlane.f32.xlu0 %v8933
      %v8950 = vpop.xlane.xlu0 %8949
      %8951 = vmax.xlane.f32.xlu0 %v8934
      %v8952 = vpop.xlane.xlu0 %8951
      %8953 = vmax.xlane.f32.xlu0 %v8935
      %v8954 = vpop.xlane.xlu0 %8953
      %8955 = vmax.xlane.f32.xlu0 %v8936
      %v8956 = vpop.xlane.xlu0 %8955
      %8957 = vmax.xlane.f32.xlu0 %v8937
      %v8958 = vpop.xlane.xlu0 %8957
      %8959 = vmax.xlane.f32.xlu0 %v8938
      %v8960 = vpop.xlane.xlu0 %8959
      %8961 = vmax.xlane.f32.xlu0 %v8939
      %v8962 = vpop.xlane.xlu0 %8961
      %8963 = vmax.xlane.f32.xlu0 %v8940
      %v8964 = vpop.xlane.xlu0 %8963
      %8965 = vmax.xlane.f32.xlu0 %v8941
      %v8966 = vpop.xlane.xlu0 %8965
      %8967 = vmax.xlane.f32.xlu0 %v8942
      %v8968 = vpop.xlane.xlu0 %8967
      %8969 = vmax.xlane.f32.xlu0 %v8943
      %v8970 = vpop.xlane.xlu0 %8969
      %8971 = vmax.xlane.f32.xlu0 %v8944
      %v8972 = vpop.xlane.xlu0 %8971
      %8973 = vmax.xlane.f32.xlu0 %v8945
      %v8974 = vpop.xlane.xlu0 %8973
      %8975 = vmax.xlane.f32.xlu0 %v8946
      %v8976 = vpop.xlane.xlu0 %8975
      %8977 = vmax.xlane.f32.xlu0 %v8947
      %v8978 = vpop.xlane.xlu0 %8977
      %8979 = vmax.xlane.f32.xlu0 %v8948
      %v8980 = vpop.xlane.xlu0 %8979
      %v8981 = vsub.f32 %v8933, %v8950
      %v8982 = vsub.f32 %v8934, %v8952
      %v8983 = vsub.f32 %v8935, %v8954
      %v8984 = vsub.f32 %v8936, %v8956
      %v8985 = vsub.f32 %v8937, %v8958
      %v8986 = vsub.f32 %v8938, %v8960
      %v8987 = vsub.f32 %v8939, %v8962
      %v8988 = vsub.f32 %v8940, %v8964
      %v8989 = vsub.f32 %v8941, %v8966
      %v8990 = vsub.f32 %v8942, %v8968
      %v8991 = vsub.f32 %v8943, %v8970
      %v8992 = vsub.f32 %v8944, %v8972
      %v8993 = vsub.f32 %v8945, %v8974
      %v8994 = vsub.f32 %v8946, %v8976
      %v8995 = vsub.f32 %v8947, %v8978
      %v8996 = vsub.f32 %v8948, %v8980
      %v8997 = vmul.f32 %v8981, 1.442695
      %v8998 = vpow.pop %v8997
      %v8999 = vmul.f32 %v8982, 1.442695
      %v9000 = vpow.pop %v8999
      %v9001 = vmul.f32 %v8983, 1.442695
      %v9002 = vpow.pop %v9001
      %v9003 = vmul.f32 %v8984, 1.442695
      %v9004 = vpow.pop %v9003
      %v9005 = vmul.f32 %v8985, 1.442695
      %v9006 = vpow.pop %v9005
      %v9007 = vmul.f32 %v8986, 1.442695
      %v9008 = vpow.pop %v9007
      %v9009 = vmul.f32 %v8987, 1.442695
      %v9010 = vpow.pop %v9009
      %v9011 = vmul.f32 %v8988, 1.442695
      %v9012 = vpow.pop %v9011
      %v9013 = vmul.f32 %v8989, 1.442695
      %v9014 = vpow.pop %v9013
      %v9015 = vmul.f32 %v8990, 1.442695
      %v9016 = vpow.pop %v9015
      %v9017 = vmul.f32 %v8991, 1.442695
      %v9018 = vpow.pop %v9017
      %v9019 = vmul.f32 %v8992, 1.442695
      %v9020 = vpow.pop %v9019
      %v9021 = vmul.f32 %v8993, 1.442695
      %v9022 = vpow.pop %v9021
      %v9023 = vmul.f32 %v8994, 1.442695
      %v9024 = vpow.pop %v9023
      %v9025 = vmul.f32 %v8995, 1.442695
      %v9026 = vpow.pop %v9025
      %v9027 = vmul.f32 %v8996, 1.442695
      %v9028 = vpow.pop %v9027
      %9029 = vadd.xlane.f32.xlu0 %v8998
      %v9030 = vpop.xlane.xlu0 %9029
      %9031 = vadd.xlane.f32.xlu0 %v9000
      %v9032 = vpop.xlane.xlu0 %9031
      %9033 = vadd.xlane.f32.xlu0 %v9002
      %v9034 = vpop.xlane.xlu0 %9033
      %9035 = vadd.xlane.f32.xlu0 %v9004
      %v9036 = vpop.xlane.xlu0 %9035
      %9037 = vadd.xlane.f32.xlu0 %v9006
      %v9038 = vpop.xlane.xlu0 %9037
      %9039 = vadd.xlane.f32.xlu0 %v9008
      %v9040 = vpop.xlane.xlu0 %9039
      %9041 = vadd.xlane.f32.xlu0 %v9010
      %v9042 = vpop.xlane.xlu0 %9041
      %9043 = vadd.xlane.f32.xlu0 %v9012
      %v9044 = vpop.xlane.xlu0 %9043
      %9045 = vadd.xlane.f32.xlu0 %v9014
      %v9046 = vpop.xlane.xlu0 %9045
      %9047 = vadd.xlane.f32.xlu0 %v9016
      %v9048 = vpop.xlane.xlu0 %9047
      %9049 = vadd.xlane.f32.xlu0 %v9018
      %v9050 = vpop.xlane.xlu0 %9049
      %9051 = vadd.xlane.f32.xlu0 %v9020
      %v9052 = vpop.xlane.xlu0 %9051
      %9053 = vadd.xlane.f32.xlu0 %v9022
      %v9054 = vpop.xlane.xlu0 %9053
      %9055 = vadd.xlane.f32.xlu0 %v9024
      %v9056 = vpop.xlane.xlu0 %9055
      %9057 = vadd.xlane.f32.xlu0 %v9026
      %v9058 = vpop.xlane.xlu0 %9057
      %9059 = vadd.xlane.f32.xlu0 %v9028
      %v9060 = vpop.xlane.xlu0 %9059
      %v9061 = vrcp.pop %v9030
      %v9062 = vrcp.pop %v9032
      %v9063 = vrcp.pop %v9034
      %v9064 = vrcp.pop %v9036
      %v9065 = vrcp.pop %v9038
      %v9066 = vrcp.pop %v9040
      %v9067 = vrcp.pop %v9042
      %v9068 = vrcp.pop %v9044
      %v9069 = vrcp.pop %v9046
      %v9070 = vrcp.pop %v9048
      %v9071 = vrcp.pop %v9050
      %v9072 = vrcp.pop %v9052
      %v9073 = vrcp.pop %v9054
      %v9074 = vrcp.pop %v9056
      %v9075 = vrcp.pop %v9058
      %v9076 = vrcp.pop %v9060
      %v9077 = vmul.f32 %v8998, %v9061
      %v9078 = vmul.f32 %v9000, %v9062
      %v9079 = vmul.f32 %v9002, %v9063
      %v9080 = vmul.f32 %v9004, %v9064
      %v9081 = vmul.f32 %v9006, %v9065
      %v9082 = vmul.f32 %v9008, %v9066
      %v9083 = vmul.f32 %v9010, %v9067
      %v9084 = vmul.f32 %v9012, %v9068
      %v9085 = vmul.f32 %v9014, %v9069
      %v9086 = vmul.f32 %v9016, %v9070
      %v9087 = vmul.f32 %v9018, %v9071
      %v9088 = vmul.f32 %v9020, %v9072
      %v9089 = vmul.f32 %v9022, %v9073
      %v9090 = vmul.f32 %v9024, %v9074
      %v9091 = vmul.f32 %v9026, %v9075
      %v9092 = vmul.f32 %v9028, %v9076
      %9093 = vrot.lane.b32.xlu0 %v5928, 40
      %v9094 = vpop.permute.xlu0 %9093
      %9095 = vrot.lane.b32.xlu0 %v5933, 40
      %v9096 = vpop.permute.xlu0 %9095
      %9097 = vrot.lane.b32.xlu0 %v5938, 40
      %v9098 = vpop.permute.xlu0 %9097
      %9099 = vrot.lane.b32.xlu0 %v5943, 40
      %v9100 = vpop.permute.xlu0 %9099
      %9101 = vrot.lane.b32.xlu0 %v5948, 40
      %v9102 = vpop.permute.xlu0 %9101
      %9103 = vrot.lane.b32.xlu0 %v5953, 40
      %v9104 = vpop.permute.xlu0 %9103
      %9105 = vrot.lane.b32.xlu0 %v5958, 40
      %v9106 = vpop.permute.xlu0 %9105
      %9107 = vrot.lane.b32.xlu0 %v5963, 40
      %v9108 = vpop.permute.xlu0 %9107
      %9109 = vrot.lane.b32.xlu0 %v5968, 40
      %v9110 = vpop.permute.xlu0 %9109
      %9111 = vrot.lane.b32.xlu0 %v5973, 40
      %v9112 = vpop.permute.xlu0 %9111
      %9113 = vrot.lane.b32.xlu0 %v5978, 40
      %v9114 = vpop.permute.xlu0 %9113
      %9115 = vrot.lane.b32.xlu0 %v5983, 40
      %v9116 = vpop.permute.xlu0 %9115
      %9117 = vrot.lane.b32.xlu0 %v5988, 40
      %v9118 = vpop.permute.xlu0 %9117
      %9119 = vrot.lane.b32.xlu0 %v5993, 40
      %v9120 = vpop.permute.xlu0 %9119
      %9121 = vrot.lane.b32.xlu0 %v5998, 40
      %v9122 = vpop.permute.xlu0 %9121
      %9123 = vrot.lane.b32.xlu0 %v6003, 40
      %v9124 = vpop.permute.xlu0 %9123
      %9141 = vmatprep.subr.mxu0 0.0
      %9142 = vmatpush1.msra.mxu0 %v9094
      %9143 = vmatprep.subr.mxu0 0.0
      %9144 = vmatpush1.msra.mxu0 %v9096
      %9145 = vmatprep.subr.mxu0 0.0
      %9146 = vmatpush1.msra.mxu0 %v9098
      %9147 = vmatprep.subr.mxu0 0.0
      %9148 = vmatpush1.msra.mxu0 %v9100
      %9149 = vmatprep.subr.mxu0 0.0
      %9150 = vmatpush1.msra.mxu0 %v9102
      %9151 = vmatprep.subr.mxu0 0.0
      %9152 = vmatpush1.msra.mxu0 %v9104
      %9153 = vmatprep.subr.mxu0 0.0
      %9154 = vmatpush1.msra.mxu0 %v9106
      %9155 = vmatprep.subr.mxu0 0.0
      %9156 = vmatpush1.msra.mxu0 %v9108
      %9157 = vmatprep.subr.mxu0 0.0
      %9158 = vmatpush1.msra.mxu0 %v9110
      %9159 = vmatprep.subr.mxu0 0.0
      %9160 = vmatpush1.msra.mxu0 %v9112
      %9161 = vmatprep.subr.mxu0 0.0
      %9162 = vmatpush1.msra.mxu0 %v9114
      %9163 = vmatprep.subr.mxu0 0.0
      %9164 = vmatpush1.msra.mxu0 %v9116
      %9165 = vmatprep.subr.mxu0 0.0
      %9166 = vmatpush1.msra.mxu0 %v9118
      %9167 = vmatprep.subr.mxu0 0.0
      %9168 = vmatpush1.msra.mxu0 %v9120
      %9169 = vmatprep.subr.mxu0 0.0
      %9170 = vmatpush1.msra.mxu0 %v9122
      %9171 = vmatprep.subr.mxu0 0.0
      %9172 = vmatpush1.msra.mxu0 %v9124
      %9173 = vmatprep.subr.mxu0 0.0
      %9174 = vmatpush1.msra.mxu0 0.0
      %9175 = vmatprep.subr.mxu0 0.0
      %9176 = vmatpush1.msra.mxu0 0.0
      %9177 = vmatprep.subr.mxu0 0.0
      %9178 = vmatpush1.msra.mxu0 0.0
      %9179 = vmatprep.subr.mxu0 0.0
      %9180 = vmatpush1.msra.mxu0 0.0
      %9181 = vmatprep.subr.mxu0 0.0
      %9182 = vmatpush1.msra.mxu0 0.0
      %9183 = vmatprep.subr.mxu0 0.0
      %9184 = vmatpush1.msra.mxu0 0.0
      %9185 = vmatprep.subr.mxu0 0.0
      %9186 = vmatpush1.msra.mxu0 0.0
      %9187 = vmatprep.subr.mxu0 0.0
      %9188 = vmatpush1.msra.mxu0 0.0
      %9189 = vmatprep.subr.mxu0 0.0
      %9190 = vmatpush1.msra.mxu0 0.0
      %9191 = vmatprep.subr.mxu0 0.0
      %9192 = vmatpush1.msra.mxu0 0.0
      %9193 = vmatprep.subr.mxu0 0.0
      %9194 = vmatpush1.msra.mxu0 0.0
      %9195 = vmatprep.subr.mxu0 0.0
      %9196 = vmatpush1.msra.mxu0 0.0
      %9197 = vmatprep.subr.mxu0 0.0
      %9198 = vmatpush1.msra.mxu0 0.0
      %9199 = vmatprep.subr.mxu0 0.0
      %9200 = vmatpush1.msra.mxu0 0.0
      %9201 = vmatprep.subr.mxu0 0.0
      %9202 = vmatpush1.msra.mxu0 0.0
      %9203 = vmatprep.subr.mxu0 0.0
      %9204 = vmatpush1.msra.mxu0 0.0
      %9205 = vmatprep.mubr.f32.mxu0 0.0
      %9206 = vmatmul.mubr.f32.gmra.mrb[0].mxu0 %v9077
      %v9207 = vpop.f32.mrb[0].mxu0
      %v9208 = vadd.f32 0.0, %v9207
      %v9209 = vpop.f32.mrb[0].mxu0
      %9210 = vmatprep.mubr.f32.mxu0 0.0
      %9211 = vmatmul.mubr.f32.gmra.mrb[0].mxu0 %v9078
      %v9212 = vpop.f32.mrb[0].mxu0
      %v9213 = vadd.f32 0.0, %v9212
      %v9214 = vpop.f32.mrb[0].mxu0
      %9215 = vmatprep.mubr.f32.mxu0 0.0
      %9216 = vmatmul.mubr.f32.gmra.mrb[0].mxu0 %v9079
      %v9217 = vpop.f32.mrb[0].mxu0
      %v9218 = vadd.f32 0.0, %v9217
      %v9219 = vpop.f32.mrb[0].mxu0
      %9220 = vmatprep.mubr.f32.mxu0 0.0
      %9221 = vmatmul.mubr.f32.gmra.mrb[0].mxu0 %v9080
      %v9222 = vpop.f32.mrb[0].mxu0
      %v9223 = vadd.f32 0.0, %v9222
      %v9224 = vpop.f32.mrb[0].mxu0
      %9225 = vmatprep.mubr.f32.mxu0 0.0
      %9226 = vmatmul.mubr.f32.gmra.mrb[0].mxu0 %v9081
      %v9227 = vpop.f32.mrb[0].mxu0
      %v9228 = vadd.f32 0.0, %v9227
      %v9229 = vpop.f32.mrb[0].mxu0
      %9230 = vmatprep.mubr.f32.mxu0 0.0
      %9231 = vmatmul.mubr.f32.gmra.mrb[0].mxu0 %v9082
      %v9232 = vpop.f32.mrb[0].mxu0
      %v9233 = vadd.f32 0.0, %v9232
      %v9234 = vpop.f32.mrb[0].mxu0
      %9235 = vmatprep.mubr.f32.mxu0 0.0
      %9236 = vmatmul.mubr.f32.gmra.mrb[0].mxu0 %v9083
      %v9237 = vpop.f32.mrb[0].mxu0
      %v9238 = vadd.f32 0.0, %v9237
      %v9239 = vpop.f32.mrb[0].mxu0
      %9240 = vmatprep.mubr.f32.mxu0 0.0
      %9241 = vmatmul.mubr.f32.gmra.mrb[0].mxu0 %v9084
      %v9242 = vpop.f32.mrb[0].mxu0
      %v9243 = vadd.f32 0.0, %v9242
      %v9244 = vpop.f32.mrb[0].mxu0
      %9245 = vmatprep.mubr.f32.mxu0 0.0
      %9246 = vmatmul.mubr.f32.gmra.mrb[0].mxu0 %v9085
      %v9247 = vpop.f32.mrb[0].mxu0
      %v9248 = vadd.f32 0.0, %v9247
      %v9249 = vpop.f32.mrb[0].mxu0
      %9250 = vmatprep.mubr.f32.mxu0 0.0
      %9251 = vmatmul.mubr.f32.gmra.mrb[0].mxu0 %v9086
      %v9252 = vpop.f32.mrb[0].mxu0
      %v9253 = vadd.f32 0.0, %v9252
      %v9254 = vpop.f32.mrb[0].mxu0
      %9255 = vmatprep.mubr.f32.mxu0 0.0
      %9256 = vmatmul.mubr.f32.gmra.mrb[0].mxu0 %v9087
      %v9257 = vpop.f32.mrb[0].mxu0
      %v9258 = vadd.f32 0.0, %v9257
      %v9259 = vpop.f32.mrb[0].mxu0
      %9260 = vmatprep.mubr.f32.mxu0 0.0
      %9261 = vmatmul.mubr.f32.gmra.mrb[0].mxu0 %v9088
      %v9262 = vpop.f32.mrb[0].mxu0
      %v9263 = vadd.f32 0.0, %v9262
      %v9264 = vpop.f32.mrb[0].mxu0
      %9265 = vmatprep.mubr.f32.mxu0 0.0
      %9266 = vmatmul.mubr.f32.gmra.mrb[0].mxu0 %v9089
      %v9267 = vpop.f32.mrb[0].mxu0
      %v9268 = vadd.f32 0.0, %v9267
      %v9269 = vpop.f32.mrb[0].mxu0
      %9270 = vmatprep.mubr.f32.mxu0 0.0
      %9271 = vmatmul.mubr.f32.gmra.mrb[0].mxu0 %v9090
      %v9272 = vpop.f32.mrb[0].mxu0
      %v9273 = vadd.f32 0.0, %v9272
      %v9274 = vpop.f32.mrb[0].mxu0
      %9275 = vmatprep.mubr.f32.mxu0 0.0
      %9276 = vmatmul.mubr.f32.gmra.mrb[0].mxu0 %v9091
      %v9277 = vpop.f32.mrb[0].mxu0
      %v9278 = vadd.f32 0.0, %v9277
      %v9279 = vpop.f32.mrb[0].mxu0
      %9280 = vmatprep.mubr.f32.mxu0 0.0
      %9281 = vmatmul.mubr.f32.gmra.mrb[0].mxu0 %v9092
      %v9282 = vpop.f32.mrb[0].mxu0
      %v9283 = vadd.f32 0.0, %v9282
      %v9284 = vpop.f32.mrb[0].mxu0
      %9285 = vdwg.mxu0
      %v9287 = vsel %vm1431, %v9208, 0
      %v9290 = vsel %vm1431, %v9213, 0
      %v9293 = vsel %vm1431, %v9218, 0
      %v9296 = vsel %vm1431, %v9223, 0
      %v9299 = vsel %vm1431, %v9228, 0
      %v9302 = vsel %vm1431, %v9233, 0
      %v9305 = vsel %vm1431, %v9238, 0
      %v9308 = vsel %vm1431, %v9243, 0
      %v9311 = vsel %vm1431, %v9248, 0
      %v9314 = vsel %vm1431, %v9253, 0
      %v9317 = vsel %vm1431, %v9258, 0
      %v9320 = vsel %vm1431, %v9263, 0
      %v9323 = vsel %vm1431, %v9268, 0
      %v9326 = vsel %vm1431, %v9273, 0
      %v9329 = vsel %vm1431, %v9278, 0
      %v9332 = vsel %vm1431, %v9283, 0
      %9334 = vmatprep.subr.mxu0 0.0
      %9335 = vmatpush1.msra.mxu0 %v6010
      %9336 = vmatprep.subr.mxu0 0.0
      %9337 = vmatpush1.msra.mxu0 0.0
      %9338 = vmatprep.subr.mxu0 0.0
      %9339 = vmatpush1.msra.mxu0 0.0
      %9340 = vmatprep.subr.mxu0 0.0
      %9341 = vmatpush1.msra.mxu0 0.0
      %9342 = vmatprep.subr.mxu0 0.0
      %9343 = vmatpush1.msra.mxu0 0.0
      %9344 = vmatprep.subr.mxu0 0.0
      %9345 = vmatpush1.msra.mxu0 0.0
      %9346 = vmatprep.subr.mxu0 0.0
      %9347 = vmatpush1.msra.mxu0 0.0
      %9348 = vmatprep.subr.mxu0 0.0
      %9349 = vmatpush1.msra.mxu0 0.0
      %9350 = vmatprep.subr.mxu0 0.0
      %9351 = vmatpush1.msra.mxu0 0.0
      %9352 = vmatprep.subr.mxu0 0.0
      %9353 = vmatpush1.msra.mxu0 0.0
      %9354 = vmatprep.subr.mxu0 0.0
      %9355 = vmatpush1.msra.mxu0 0.0
      %9356 = vmatprep.subr.mxu0 0.0
      %9357 = vmatpush1.msra.mxu0 0.0
      %9358 = vmatprep.subr.mxu0 0.0
      %9359 = vmatpush1.msra.mxu0 0.0
      %9360 = vmatprep.subr.mxu0 0.0
      %9361 = vmatpush1.msra.mxu0 0.0
      %9362 = vmatprep.subr.mxu0 0.0
      %9363 = vmatpush1.msra.mxu0 0.0
      %9364 = vmatprep.subr.mxu0 0.0
      %9365 = vmatpush1.msra.mxu0 0.0
      %9366 = vmatprep.subr.mxu0 0.0
      %9367 = vmatpush1.msra.mxu0 0.0
      %9368 = vmatprep.subr.mxu0 0.0
      %9369 = vmatpush1.msra.mxu0 0.0
      %9370 = vmatprep.subr.mxu0 0.0
      %9371 = vmatpush1.msra.mxu0 0.0
      %9372 = vmatprep.subr.mxu0 0.0
      %9373 = vmatpush1.msra.mxu0 0.0
      %9374 = vmatprep.subr.mxu0 0.0
      %9375 = vmatpush1.msra.mxu0 0.0
      %9376 = vmatprep.subr.mxu0 0.0
      %9377 = vmatpush1.msra.mxu0 0.0
      %9378 = vmatprep.subr.mxu0 0.0
      %9379 = vmatpush1.msra.mxu0 0.0
      %9380 = vmatprep.subr.mxu0 0.0
      %9381 = vmatpush1.msra.mxu0 0.0
      %9382 = vmatprep.subr.mxu0 0.0
      %9383 = vmatpush1.msra.mxu0 0.0
      %9384 = vmatprep.subr.mxu0 0.0
      %9385 = vmatpush1.msra.mxu0 0.0
      %9386 = vmatprep.subr.mxu0 0.0
      %9387 = vmatpush1.msra.mxu0 0.0
      %9388 = vmatprep.subr.mxu0 0.0
      %9389 = vmatpush1.msra.mxu0 0.0
      %9390 = vmatprep.subr.mxu0 0.0
      %9391 = vmatpush1.msra.mxu0 0.0
      %9392 = vmatprep.subr.mxu0 0.0
      %9393 = vmatpush1.msra.mxu0 0.0
      %9394 = vmatprep.subr.mxu0 0.0
      %9395 = vmatpush1.msra.mxu0 0.0
      %9396 = vmatprep.subr.mxu0 0.0
      %9397 = vmatpush1.msra.mxu0 0.0
      %9398 = vmatprep.mubr.f32.mxu0 0.0
      %9399 = vmatmul.mubr.f32.gmra.mrb[0].mxu0 %v9287
      %v9400 = vpop.f32.mrb[0].mxu0
      %v9401 = vadd.f32 0.0, %v9400
      %v9402 = vpop.f32.mrb[0].mxu0
      %9403 = vmatprep.mubr.f32.mxu0 0.0
      %9404 = vmatmul.mubr.f32.gmra.mrb[0].mxu0 %v9290
      %v9405 = vpop.f32.mrb[0].mxu0
      %v9406 = vadd.f32 0.0, %v9405
      %v9407 = vpop.f32.mrb[0].mxu0
      %9408 = vmatprep.mubr.f32.mxu0 0.0
      %9409 = vmatmul.mubr.f32.gmra.mrb[0].mxu0 %v9293
      %v9410 = vpop.f32.mrb[0].mxu0
      %v9411 = vadd.f32 0.0, %v9410
      %v9412 = vpop.f32.mrb[0].mxu0
      %9413 = vmatprep.mubr.f32.mxu0 0.0
      %9414 = vmatmul.mubr.f32.gmra.mrb[0].mxu0 %v9296
      %v9415 = vpop.f32.mrb[0].mxu0
      %v9416 = vadd.f32 0.0, %v9415
      %v9417 = vpop.f32.mrb[0].mxu0
      %9418 = vmatprep.mubr.f32.mxu0 0.0
      %9419 = vmatmul.mubr.f32.gmra.mrb[0].mxu0 %v9299
      %v9420 = vpop.f32.mrb[0].mxu0
      %v9421 = vadd.f32 0.0, %v9420
      %v9422 = vpop.f32.mrb[0].mxu0
      %9423 = vmatprep.mubr.f32.mxu0 0.0
      %9424 = vmatmul.mubr.f32.gmra.mrb[0].mxu0 %v9302
      %v9425 = vpop.f32.mrb[0].mxu0
      %v9426 = vadd.f32 0.0, %v9425
      %v9427 = vpop.f32.mrb[0].mxu0
      %9428 = vmatprep.mubr.f32.mxu0 0.0
      %9429 = vmatmul.mubr.f32.gmra.mrb[0].mxu0 %v9305
      %v9430 = vpop.f32.mrb[0].mxu0
      %v9431 = vadd.f32 0.0, %v9430
      %v9432 = vpop.f32.mrb[0].mxu0
      %9433 = vmatprep.mubr.f32.mxu0 0.0
      %9434 = vmatmul.mubr.f32.gmra.mrb[0].mxu0 %v9308
      %v9435 = vpop.f32.mrb[0].mxu0
      %v9436 = vadd.f32 0.0, %v9435
      %v9437 = vpop.f32.mrb[0].mxu0
      %9438 = vmatprep.mubr.f32.mxu0 0.0
      %9439 = vmatmul.mubr.f32.gmra.mrb[0].mxu0 %v9311
      %v9440 = vpop.f32.mrb[0].mxu0
      %v9441 = vadd.f32 0.0, %v9440
      %v9442 = vpop.f32.mrb[0].mxu0
      %9443 = vmatprep.mubr.f32.mxu0 0.0
      %9444 = vmatmul.mubr.f32.gmra.mrb[0].mxu0 %v9314
      %v9445 = vpop.f32.mrb[0].mxu0
      %v9446 = vadd.f32 0.0, %v9445
      %v9447 = vpop.f32.mrb[0].mxu0
      %9448 = vmatprep.mubr.f32.mxu0 0.0
      %9449 = vmatmul.mubr.f32.gmra.mrb[0].mxu0 %v9317
      %v9450 = vpop.f32.mrb[0].mxu0
      %v9451 = vadd.f32 0.0, %v9450
      %v9452 = vpop.f32.mrb[0].mxu0
      %9453 = vmatprep.mubr.f32.mxu0 0.0
      %9454 = vmatmul.mubr.f32.gmra.mrb[0].mxu0 %v9320
      %v9455 = vpop.f32.mrb[0].mxu0
      %v9456 = vadd.f32 0.0, %v9455
      %v9457 = vpop.f32.mrb[0].mxu0
      %9458 = vmatprep.mubr.f32.mxu0 0.0
      %9459 = vmatmul.mubr.f32.gmra.mrb[0].mxu0 %v9323
      %v9460 = vpop.f32.mrb[0].mxu0
      %v9461 = vadd.f32 0.0, %v9460
      %v9462 = vpop.f32.mrb[0].mxu0
      %9463 = vmatprep.mubr.f32.mxu0 0.0
      %9464 = vmatmul.mubr.f32.gmra.mrb[0].mxu0 %v9326
      %v9465 = vpop.f32.mrb[0].mxu0
      %v9466 = vadd.f32 0.0, %v9465
      %v9467 = vpop.f32.mrb[0].mxu0
      %9468 = vmatprep.mubr.f32.mxu0 0.0
      %9469 = vmatmul.mubr.f32.gmra.mrb[0].mxu0 %v9329
      %v9470 = vpop.f32.mrb[0].mxu0
      %v9471 = vadd.f32 0.0, %v9470
      %v9472 = vpop.f32.mrb[0].mxu0
      %9473 = vmatprep.mubr.f32.mxu0 0.0
      %9474 = vmatmul.mubr.f32.gmra.mrb[0].mxu0 %v9332
      %v9475 = vpop.f32.mrb[0].mxu0
      %v9476 = vadd.f32 0.0, %v9475
      %v9477 = vpop.f32.mrb[0].mxu0
      %9478 = vdwg.mxu0
      %v9479 = vadd.f32 %v8596, %v9401
      %v9480 = vadd.f32 %v8597, %v9406
      %v9481 = vadd.f32 %v8598, %v9411
      %v9482 = vadd.f32 %v8599, %v9416
      %v9483 = vadd.f32 %v8600, %v9421
      %v9484 = vadd.f32 %v8601, %v9426
      %v9485 = vadd.f32 %v8602, %v9431
      %v9486 = vadd.f32 %v8603, %v9436
      %v9487 = vadd.f32 %v8604, %v9441
      %v9488 = vadd.f32 %v8605, %v9446
      %v9489 = vadd.f32 %v8606, %v9451
      %v9490 = vadd.f32 %v8607, %v9456
      %v9491 = vadd.f32 %v8608, %v9461
      %v9492 = vadd.f32 %v8609, %v9466
      %v9493 = vadd.f32 %v8610, %v9471
      %v9494 = vadd.f32 %v8611, %v9476
      %s9495 = scalar_lea.vmem %s856, 1
      %v9496 = vld [vmem:[%s9495] sm:$0x1]
      %v9498 = vlaneseq
      %v9499 = vshrl.u32 %v9498, 7
      %v9500 = vsub.s32 0, %v9499
      %v9501 = vrot.slane %v9496, %v9500
      %v9503 = vadd.f32 %v9479, %v9501
      %v9504 = vadd.f32 %v9480, %v9501
      %v9505 = vadd.f32 %v9481, %v9501
      %v9506 = vadd.f32 %v9482, %v9501
      %v9507 = vadd.f32 %v9483, %v9501
      %v9508 = vadd.f32 %v9484, %v9501
      %v9509 = vadd.f32 %v9485, %v9501
      %v9510 = vadd.f32 %v9486, %v9501
      %v9511 = vadd.f32 %v9487, %v9501
      %v9512 = vadd.f32 %v9488, %v9501
      %v9513 = vadd.f32 %v9489, %v9501
      %v9514 = vadd.f32 %v9490, %v9501
      %v9515 = vadd.f32 %v9491, %v9501
      %v9516 = vadd.f32 %v9492, %v9501
      %v9517 = vadd.f32 %v9493, %v9501
      %v9518 = vadd.f32 %v9494, %v9501
      %v9519 = vadd.f32 %v5784, %v9503
      %v9520 = vadd.f32 %v5785, %v9504
      %v9521 = vadd.f32 %v5786, %v9505
      %v9522 = vadd.f32 %v5787, %v9506
      %v9523 = vadd.f32 %v5788, %v9507
      %v9524 = vadd.f32 %v5789, %v9508
      %v9525 = vadd.f32 %v5790, %v9509
      %v9526 = vadd.f32 %v5791, %v9510
      %v9527 = vadd.f32 %v5792, %v9511
      %v9528 = vadd.f32 %v5793, %v9512
      %v9529 = vadd.f32 %v5794, %v9513
      %v9530 = vadd.f32 %v5795, %v9514
      %v9531 = vadd.f32 %v5796, %v9515
      %v9532 = vadd.f32 %v5797, %v9516
      %v9533 = vadd.f32 %v5798, %v9517
      %v9534 = vadd.f32 %v5799, %v9518
      %s9535 = scalar_lea.vmem %s860, 1
      %v9536 = vld [vmem:[%s9535] sm:$0x1]
      %s9537 = scalar_lea.vmem %s864, 1
      %v9538 = vld [vmem:[%s9537] sm:$0x1]
      %v9539 = vsel %vm1185, %v9519, 0.0
      %9540 = vadd.xlane.f32.xlu0 %v9539
      %v9541 = vpop.xlane.xlu0 %9540
      %v9542 = vsel %vm1185, %v9520, 0.0
      %9543 = vadd.xlane.f32.xlu0 %v9542
      %v9544 = vpop.xlane.xlu0 %9543
      %v9545 = vsel %vm1185, %v9521, 0.0
      %9546 = vadd.xlane.f32.xlu0 %v9545
      %v9547 = vpop.xlane.xlu0 %9546
      %v9548 = vsel %vm1185, %v9522, 0.0
      %9549 = vadd.xlane.f32.xlu0 %v9548
      %v9550 = vpop.xlane.xlu0 %9549
      %v9551 = vsel %vm1185, %v9523, 0.0
      %9552 = vadd.xlane.f32.xlu0 %v9551
      %v9553 = vpop.xlane.xlu0 %9552
      %v9554 = vsel %vm1185, %v9524, 0.0
      %9555 = vadd.xlane.f32.xlu0 %v9554
      %v9556 = vpop.xlane.xlu0 %9555
      %v9557 = vsel %vm1185, %v9525, 0.0
      %9558 = vadd.xlane.f32.xlu0 %v9557
      %v9559 = vpop.xlane.xlu0 %9558
      %v9560 = vsel %vm1185, %v9526, 0.0
      %9561 = vadd.xlane.f32.xlu0 %v9560
      %v9562 = vpop.xlane.xlu0 %9561
      %v9563 = vsel %vm1185, %v9527, 0.0
      %9564 = vadd.xlane.f32.xlu0 %v9563
      %v9565 = vpop.xlane.xlu0 %9564
      %v9566 = vsel %vm1185, %v9528, 0.0
      %9567 = vadd.xlane.f32.xlu0 %v9566
      %v9568 = vpop.xlane.xlu0 %9567
      %v9569 = vsel %vm1185, %v9529, 0.0
      %9570 = vadd.xlane.f32.xlu0 %v9569
      %v9571 = vpop.xlane.xlu0 %9570
      %v9572 = vsel %vm1185, %v9530, 0.0
      %9573 = vadd.xlane.f32.xlu0 %v9572
      %v9574 = vpop.xlane.xlu0 %9573
      %v9575 = vsel %vm1185, %v9531, 0.0
      %9576 = vadd.xlane.f32.xlu0 %v9575
      %v9577 = vpop.xlane.xlu0 %9576
      %v9578 = vsel %vm1185, %v9532, 0.0
      %9579 = vadd.xlane.f32.xlu0 %v9578
      %v9580 = vpop.xlane.xlu0 %9579
      %v9581 = vsel %vm1185, %v9533, 0.0
      %9582 = vadd.xlane.f32.xlu0 %v9581
      %v9583 = vpop.xlane.xlu0 %9582
      %v9584 = vsel %vm1185, %v9534, 0.0
      %9585 = vadd.xlane.f32.xlu0 %v9584
      %v9586 = vpop.xlane.xlu0 %9585
      %v9587 = vmul.f32 %v9541, %v4896
      %v9588 = vmul.f32 %v9544, %v4896
      %v9589 = vmul.f32 %v9547, %v4896
      %v9590 = vmul.f32 %v9550, %v4896
      %v9591 = vmul.f32 %v9553, %v4896
      %v9592 = vmul.f32 %v9556, %v4896
      %v9593 = vmul.f32 %v9559, %v4896
      %v9594 = vmul.f32 %v9562, %v4896
      %v9595 = vmul.f32 %v9565, %v4896
      %v9596 = vmul.f32 %v9568, %v4896
      %v9597 = vmul.f32 %v9571, %v4896
      %v9598 = vmul.f32 %v9574, %v4896
      %v9599 = vmul.f32 %v9577, %v4896
      %v9600 = vmul.f32 %v9580, %v4896
      %v9601 = vmul.f32 %v9583, %v4896
      %v9602 = vmul.f32 %v9586, %v4896
      %v9603 = vsub.f32 %v9519, %v9587
      %v9604 = vsub.f32 %v9520, %v9588
      %v9605 = vsub.f32 %v9521, %v9589
      %v9606 = vsub.f32 %v9522, %v9590
      %v9607 = vsub.f32 %v9523, %v9591
      %v9608 = vsub.f32 %v9524, %v9592
      %v9609 = vsub.f32 %v9525, %v9593
      %v9610 = vsub.f32 %v9526, %v9594
      %v9611 = vsub.f32 %v9527, %v9595
      %v9612 = vsub.f32 %v9528, %v9596
      %v9613 = vsub.f32 %v9529, %v9597
      %v9614 = vsub.f32 %v9530, %v9598
      %v9615 = vsub.f32 %v9531, %v9599
      %v9616 = vsub.f32 %v9532, %v9600
      %v9617 = vsub.f32 %v9533, %v9601
      %v9618 = vsub.f32 %v9534, %v9602
      %v9619 = vmul.f32 %v9603, %v9603
      %v9620 = vmul.f32 %v9604, %v9604
      %v9621 = vmul.f32 %v9605, %v9605
      %v9622 = vmul.f32 %v9606, %v9606
      %v9623 = vmul.f32 %v9607, %v9607
      %v9624 = vmul.f32 %v9608, %v9608
      %v9625 = vmul.f32 %v9609, %v9609
      %v9626 = vmul.f32 %v9610, %v9610
      %v9627 = vmul.f32 %v9611, %v9611
      %v9628 = vmul.f32 %v9612, %v9612
      %v9629 = vmul.f32 %v9613, %v9613
      %v9630 = vmul.f32 %v9614, %v9614
      %v9631 = vmul.f32 %v9615, %v9615
      %v9632 = vmul.f32 %v9616, %v9616
      %v9633 = vmul.f32 %v9617, %v9617
      %v9634 = vmul.f32 %v9618, %v9618
      %v9635 = vsel %vm1185, %v9619, 0.0
      %9636 = vadd.xlane.f32.xlu0 %v9635
      %v9637 = vpop.xlane.xlu0 %9636
      %v9638 = vsel %vm1185, %v9620, 0.0
      %9639 = vadd.xlane.f32.xlu0 %v9638
      %v9640 = vpop.xlane.xlu0 %9639
      %v9641 = vsel %vm1185, %v9621, 0.0
      %9642 = vadd.xlane.f32.xlu0 %v9641
      %v9643 = vpop.xlane.xlu0 %9642
      %v9644 = vsel %vm1185, %v9622, 0.0
      %9645 = vadd.xlane.f32.xlu0 %v9644
      %v9646 = vpop.xlane.xlu0 %9645
      %v9647 = vsel %vm1185, %v9623, 0.0
      %9648 = vadd.xlane.f32.xlu0 %v9647
      %v9649 = vpop.xlane.xlu0 %9648
      %v9650 = vsel %vm1185, %v9624, 0.0
      %9651 = vadd.xlane.f32.xlu0 %v9650
      %v9652 = vpop.xlane.xlu0 %9651
      %v9653 = vsel %vm1185, %v9625, 0.0
      %9654 = vadd.xlane.f32.xlu0 %v9653
      %v9655 = vpop.xlane.xlu0 %9654
      %v9656 = vsel %vm1185, %v9626, 0.0
      %9657 = vadd.xlane.f32.xlu0 %v9656
      %v9658 = vpop.xlane.xlu0 %9657
      %v9659 = vsel %vm1185, %v9627, 0.0
      %9660 = vadd.xlane.f32.xlu0 %v9659
      %v9661 = vpop.xlane.xlu0 %9660
      %v9662 = vsel %vm1185, %v9628, 0.0
      %9663 = vadd.xlane.f32.xlu0 %v9662
      %v9664 = vpop.xlane.xlu0 %9663
      %v9665 = vsel %vm1185, %v9629, 0.0
      %9666 = vadd.xlane.f32.xlu0 %v9665
      %v9667 = vpop.xlane.xlu0 %9666
      %v9668 = vsel %vm1185, %v9630, 0.0
      %9669 = vadd.xlane.f32.xlu0 %v9668
      %v9670 = vpop.xlane.xlu0 %9669
      %v9671 = vsel %vm1185, %v9631, 0.0
      %9672 = vadd.xlane.f32.xlu0 %v9671
      %v9673 = vpop.xlane.xlu0 %9672
      %v9674 = vsel %vm1185, %v9632, 0.0
      %9675 = vadd.xlane.f32.xlu0 %v9674
      %v9676 = vpop.xlane.xlu0 %9675
      %v9677 = vsel %vm1185, %v9633, 0.0
      %9678 = vadd.xlane.f32.xlu0 %v9677
      %v9679 = vpop.xlane.xlu0 %9678
      %v9680 = vsel %vm1185, %v9634, 0.0
      %9681 = vadd.xlane.f32.xlu0 %v9680
      %v9682 = vpop.xlane.xlu0 %9681
      %v9683 = vmul.f32 %v9637, %v4896
      %v9684 = vmul.f32 %v9640, %v4896
      %v9685 = vmul.f32 %v9643, %v4896
      %v9686 = vmul.f32 %v9646, %v4896
      %v9687 = vmul.f32 %v9649, %v4896
      %v9688 = vmul.f32 %v9652, %v4896
      %v9689 = vmul.f32 %v9655, %v4896
      %v9690 = vmul.f32 %v9658, %v4896
      %v9691 = vmul.f32 %v9661, %v4896
      %v9692 = vmul.f32 %v9664, %v4896
      %v9693 = vmul.f32 %v9667, %v4896
      %v9694 = vmul.f32 %v9670, %v4896
      %v9695 = vmul.f32 %v9673, %v4896
      %v9696 = vmul.f32 %v9676, %v4896
      %v9697 = vmul.f32 %v9679, %v4896
      %v9698 = vmul.f32 %v9682, %v4896
      %v9699 = vadd.f32 %v9683, 1e-05
      %v9700 = vadd.f32 %v9684, 1e-05
      %v9701 = vadd.f32 %v9685, 1e-05
      %v9702 = vadd.f32 %v9686, 1e-05
      %v9703 = vadd.f32 %v9687, 1e-05
      %v9704 = vadd.f32 %v9688, 1e-05
      %v9705 = vadd.f32 %v9689, 1e-05
      %v9706 = vadd.f32 %v9690, 1e-05
      %v9707 = vadd.f32 %v9691, 1e-05
      %v9708 = vadd.f32 %v9692, 1e-05
      %v9709 = vadd.f32 %v9693, 1e-05
      %v9710 = vadd.f32 %v9694, 1e-05
      %v9711 = vadd.f32 %v9695, 1e-05
      %v9712 = vadd.f32 %v9696, 1e-05
      %v9713 = vadd.f32 %v9697, 1e-05
      %v9714 = vadd.f32 %v9698, 1e-05
      %v9715 = vrsqrt.pop %v9699
      %v9716 = vrsqrt.pop %v9700
      %v9717 = vrsqrt.pop %v9701
      %v9718 = vrsqrt.pop %v9702
      %v9719 = vrsqrt.pop %v9703
      %v9720 = vrsqrt.pop %v9704
      %v9721 = vrsqrt.pop %v9705
      %v9722 = vrsqrt.pop %v9706
      %v9723 = vrsqrt.pop %v9707
      %v9724 = vrsqrt.pop %v9708
      %v9725 = vrsqrt.pop %v9709
      %v9726 = vrsqrt.pop %v9710
      %v9727 = vrsqrt.pop %v9711
      %v9728 = vrsqrt.pop %v9712
      %v9729 = vrsqrt.pop %v9713
      %v9730 = vrsqrt.pop %v9714
      %v9731 = vmul.f32 %v9603, %v9715
      %v9732 = vmul.f32 %v9604, %v9716
      %v9733 = vmul.f32 %v9605, %v9717
      %v9734 = vmul.f32 %v9606, %v9718
      %v9735 = vmul.f32 %v9607, %v9719
      %v9736 = vmul.f32 %v9608, %v9720
      %v9737 = vmul.f32 %v9609, %v9721
      %v9738 = vmul.f32 %v9610, %v9722
      %v9739 = vmul.f32 %v9611, %v9723
      %v9740 = vmul.f32 %v9612, %v9724
      %v9741 = vmul.f32 %v9613, %v9725
      %v9742 = vmul.f32 %v9614, %v9726
      %v9743 = vmul.f32 %v9615, %v9727
      %v9744 = vmul.f32 %v9616, %v9728
      %v9745 = vmul.f32 %v9617, %v9729
      %v9746 = vmul.f32 %v9618, %v9730
      %v9748 = vlaneseq
      %v9749 = vshrl.u32 %v9748, 7
      %v9750 = vsub.s32 0, %v9749
      %v9751 = vrot.slane %v9536, %v9750
      %v9753 = vmul.f32 %v9731, %v9751
      %v9754 = vmul.f32 %v9732, %v9751
      %v9755 = vmul.f32 %v9733, %v9751
      %v9756 = vmul.f32 %v9734, %v9751
      %v9757 = vmul.f32 %v9735, %v9751
      %v9758 = vmul.f32 %v9736, %v9751
      %v9759 = vmul.f32 %v9737, %v9751
      %v9760 = vmul.f32 %v9738, %v9751
      %v9761 = vmul.f32 %v9739, %v9751
      %v9762 = vmul.f32 %v9740, %v9751
      %v9763 = vmul.f32 %v9741, %v9751
      %v9764 = vmul.f32 %v9742, %v9751
      %v9765 = vmul.f32 %v9743, %v9751
      %v9766 = vmul.f32 %v9744, %v9751
      %v9767 = vmul.f32 %v9745, %v9751
      %v9768 = vmul.f32 %v9746, %v9751
      %v9770 = vlaneseq
      %v9771 = vshrl.u32 %v9770, 7
      %v9772 = vsub.s32 0, %v9771
      %v9773 = vrot.slane %v9538, %v9772
      %v9775 = vadd.f32 %v9753, %v9773
      %v9776 = vadd.f32 %v9754, %v9773
      %v9777 = vadd.f32 %v9755, %v9773
      %v9778 = vadd.f32 %v9756, %v9773
      %v9779 = vadd.f32 %v9757, %v9773
      %v9780 = vadd.f32 %v9758, %v9773
      %v9781 = vadd.f32 %v9759, %v9773
      %v9782 = vadd.f32 %v9760, %v9773
      %v9783 = vadd.f32 %v9761, %v9773
      %v9784 = vadd.f32 %v9762, %v9773
      %v9785 = vadd.f32 %v9763, %v9773
      %v9786 = vadd.f32 %v9764, %v9773
      %v9787 = vadd.f32 %v9765, %v9773
      %v9788 = vadd.f32 %v9766, %v9773
      %v9789 = vadd.f32 %v9767, %v9773
      %v9790 = vadd.f32 %v9768, %v9773
      %s9791 = scalar_lea.vmem %s869, 32
      %v9792 = vld [vmem:[%s9791] sm:$0xff]
      %v9793 = vld [vmem:[%s9791 + $0x8] sm:$0xff]
      %v9794 = vld [vmem:[%s9791 + $0x10] sm:$0xff]
      %v9795 = vld [vmem:[%s9791 + $0x18] sm:$0xff]
      %s9796 = scalar_lea.vmem %s873, 1
      %v9797 = vld [vmem:[%s9796] sm:$0x1]
      %v9799 = vlaneseq
      %v9800 = vshrl.u32 %v9799, 7
      %v9801 = vsub.s32 0, %v9800
      %v9802 = vrot.slane %v9797, %v9801
      %v9805 = vsel %vm1185, %v9775, 0
      %v9808 = vsel %vm1185, %v9776, 0
      %v9811 = vsel %vm1185, %v9777, 0
      %v9814 = vsel %vm1185, %v9778, 0
      %v9817 = vsel %vm1185, %v9779, 0
      %v9820 = vsel %vm1185, %v9780, 0
      %v9823 = vsel %vm1185, %v9781, 0
      %v9826 = vsel %vm1185, %v9782, 0
      %v9829 = vsel %vm1185, %v9783, 0
      %v9832 = vsel %vm1185, %v9784, 0
      %v9835 = vsel %vm1185, %v9785, 0
      %v9838 = vsel %vm1185, %v9786, 0
      %v9841 = vsel %vm1185, %v9787, 0
      %v9844 = vsel %vm1185, %v9788, 0
      %v9847 = vsel %vm1185, %v9789, 0
      %v9850 = vsel %vm1185, %v9790, 0
      %9852 = vmatprep.subr.mxu0 0.0
      %9853 = vmatpush1.msra.mxu0 %v9792
      %9854 = vmatprep.subr.mxu0 0.0
      %9855 = vmatpush1.msra.mxu0 %v9793
      %9856 = vmatprep.subr.mxu0 0.0
      %9857 = vmatpush1.msra.mxu0 %v9794
      %9858 = vmatprep.subr.mxu0 0.0
      %9859 = vmatpush1.msra.mxu0 %v9795
      %9860 = vmatprep.subr.mxu0 0.0
      %9861 = vmatpush1.msra.mxu0 0.0
      %9862 = vmatprep.subr.mxu0 0.0
      %9863 = vmatpush1.msra.mxu0 0.0
      %9864 = vmatprep.subr.mxu0 0.0
      %9865 = vmatpush1.msra.mxu0 0.0
      %9866 = vmatprep.subr.mxu0 0.0
      %9867 = vmatpush1.msra.mxu0 0.0
      %9868 = vmatprep.subr.mxu0 0.0
      %9869 = vmatpush1.msra.mxu0 0.0
      %9870 = vmatprep.subr.mxu0 0.0
      %9871 = vmatpush1.msra.mxu0 0.0
      %9872 = vmatprep.subr.mxu0 0.0
      %9873 = vmatpush1.msra.mxu0 0.0
      %9874 = vmatprep.subr.mxu0 0.0
      %9875 = vmatpush1.msra.mxu0 0.0
      %9876 = vmatprep.subr.mxu0 0.0
      %9877 = vmatpush1.msra.mxu0 0.0
      %9878 = vmatprep.subr.mxu0 0.0
      %9879 = vmatpush1.msra.mxu0 0.0
      %9880 = vmatprep.subr.mxu0 0.0
      %9881 = vmatpush1.msra.mxu0 0.0
      %9882 = vmatprep.subr.mxu0 0.0
      %9883 = vmatpush1.msra.mxu0 0.0
      %9884 = vmatprep.subr.mxu0 0.0
      %9885 = vmatpush1.msra.mxu0 0.0
      %9886 = vmatprep.subr.mxu0 0.0
      %9887 = vmatpush1.msra.mxu0 0.0
      %9888 = vmatprep.subr.mxu0 0.0
      %9889 = vmatpush1.msra.mxu0 0.0
      %9890 = vmatprep.subr.mxu0 0.0
      %9891 = vmatpush1.msra.mxu0 0.0
      %9892 = vmatprep.subr.mxu0 0.0
      %9893 = vmatpush1.msra.mxu0 0.0
      %9894 = vmatprep.subr.mxu0 0.0
      %9895 = vmatpush1.msra.mxu0 0.0
      %9896 = vmatprep.subr.mxu0 0.0
      %9897 = vmatpush1.msra.mxu0 0.0
      %9898 = vmatprep.subr.mxu0 0.0
      %9899 = vmatpush1.msra.mxu0 0.0
      %9900 = vmatprep.subr.mxu0 0.0
      %9901 = vmatpush1.msra.mxu0 0.0
      %9902 = vmatprep.subr.mxu0 0.0
      %9903 = vmatpush1.msra.mxu0 0.0
      %9904 = vmatprep.subr.mxu0 0.0
      %9905 = vmatpush1.msra.mxu0 0.0
      %9906 = vmatprep.subr.mxu0 0.0
      %9907 = vmatpush1.msra.mxu0 0.0
      %9908 = vmatprep.subr.mxu0 0.0
      %9909 = vmatpush1.msra.mxu0 0.0
      %9910 = vmatprep.subr.mxu0 0.0
      %9911 = vmatpush1.msra.mxu0 0.0
      %9912 = vmatprep.subr.mxu0 0.0
      %9913 = vmatpush1.msra.mxu0 0.0
      %9914 = vmatprep.subr.mxu0 0.0
      %9915 = vmatpush1.msra.mxu0 0.0
      %9916 = vmatprep.mubr.f32.mxu0 0.0
      %9917 = vmatmul.mubr.f32.gmra.mrb[0].mxu0 %v9805
      %v9918 = vpop.f32.mrb[0].mxu0
      %v9919 = vadd.f32 %v9802, %v9918
      %v9920 = vpop.f32.mrb[0].mxu0
      %9921 = vmatprep.mubr.f32.mxu0 0.0
      %9922 = vmatmul.mubr.f32.gmra.mrb[0].mxu0 %v9808
      %v9923 = vpop.f32.mrb[0].mxu0
      %v9924 = vadd.f32 %v9802, %v9923
      %v9925 = vpop.f32.mrb[0].mxu0
      %9926 = vmatprep.mubr.f32.mxu0 0.0
      %9927 = vmatmul.mubr.f32.gmra.mrb[0].mxu0 %v9811
      %v9928 = vpop.f32.mrb[0].mxu0
      %v9929 = vadd.f32 %v9802, %v9928
      %v9930 = vpop.f32.mrb[0].mxu0
      %9931 = vmatprep.mubr.f32.mxu0 0.0
      %9932 = vmatmul.mubr.f32.gmra.mrb[0].mxu0 %v9814
      %v9933 = vpop.f32.mrb[0].mxu0
      %v9934 = vadd.f32 %v9802, %v9933
      %v9935 = vpop.f32.mrb[0].mxu0
      %9936 = vmatprep.mubr.f32.mxu0 0.0
      %9937 = vmatmul.mubr.f32.gmra.mrb[0].mxu0 %v9817
      %v9938 = vpop.f32.mrb[0].mxu0
      %v9939 = vadd.f32 %v9802, %v9938
      %v9940 = vpop.f32.mrb[0].mxu0
      %9941 = vmatprep.mubr.f32.mxu0 0.0
      %9942 = vmatmul.mubr.f32.gmra.mrb[0].mxu0 %v9820
      %v9943 = vpop.f32.mrb[0].mxu0
      %v9944 = vadd.f32 %v9802, %v9943
      %v9945 = vpop.f32.mrb[0].mxu0
      %9946 = vmatprep.mubr.f32.mxu0 0.0
      %9947 = vmatmul.mubr.f32.gmra.mrb[0].mxu0 %v9823
      %v9948 = vpop.f32.mrb[0].mxu0
      %v9949 = vadd.f32 %v9802, %v9948
      %v9950 = vpop.f32.mrb[0].mxu0
      %9951 = vmatprep.mubr.f32.mxu0 0.0
      %9952 = vmatmul.mubr.f32.gmra.mrb[0].mxu0 %v9826
      %v9953 = vpop.f32.mrb[0].mxu0
      %v9954 = vadd.f32 %v9802, %v9953
      %v9955 = vpop.f32.mrb[0].mxu0
      %9956 = vmatprep.mubr.f32.mxu0 0.0
      %9957 = vmatmul.mubr.f32.gmra.mrb[0].mxu0 %v9829
      %v9958 = vpop.f32.mrb[0].mxu0
      %v9959 = vadd.f32 %v9802, %v9958
      %v9960 = vpop.f32.mrb[0].mxu0
      %9961 = vmatprep.mubr.f32.mxu0 0.0
      %9962 = vmatmul.mubr.f32.gmra.mrb[0].mxu0 %v9832
      %v9963 = vpop.f32.mrb[0].mxu0
      %v9964 = vadd.f32 %v9802, %v9963
      %v9965 = vpop.f32.mrb[0].mxu0
      %9966 = vmatprep.mubr.f32.mxu0 0.0
      %9967 = vmatmul.mubr.f32.gmra.mrb[0].mxu0 %v9835
      %v9968 = vpop.f32.mrb[0].mxu0
      %v9969 = vadd.f32 %v9802, %v9968
      %v9970 = vpop.f32.mrb[0].mxu0
      %9971 = vmatprep.mubr.f32.mxu0 0.0
      %9972 = vmatmul.mubr.f32.gmra.mrb[0].mxu0 %v9838
      %v9973 = vpop.f32.mrb[0].mxu0
      %v9974 = vadd.f32 %v9802, %v9973
      %v9975 = vpop.f32.mrb[0].mxu0
      %9976 = vmatprep.mubr.f32.mxu0 0.0
      %9977 = vmatmul.mubr.f32.gmra.mrb[0].mxu0 %v9841
      %v9978 = vpop.f32.mrb[0].mxu0
      %v9979 = vadd.f32 %v9802, %v9978
      %v9980 = vpop.f32.mrb[0].mxu0
      %9981 = vmatprep.mubr.f32.mxu0 0.0
      %9982 = vmatmul.mubr.f32.gmra.mrb[0].mxu0 %v9844
      %v9983 = vpop.f32.mrb[0].mxu0
      %v9984 = vadd.f32 %v9802, %v9983
      %v9985 = vpop.f32.mrb[0].mxu0
      %9986 = vmatprep.mubr.f32.mxu0 0.0
      %9987 = vmatmul.mubr.f32.gmra.mrb[0].mxu0 %v9847
      %v9988 = vpop.f32.mrb[0].mxu0
      %v9989 = vadd.f32 %v9802, %v9988
      %v9990 = vpop.f32.mrb[0].mxu0
      %9991 = vmatprep.mubr.f32.mxu0 0.0
      %9992 = vmatmul.mubr.f32.gmra.mrb[0].mxu0 %v9850
      %v9993 = vpop.f32.mrb[0].mxu0
      %v9994 = vadd.f32 %v9802, %v9993
      %v9995 = vpop.f32.mrb[0].mxu0
      %9996 = vdwg.mxu0
      %v9997 = vmax.f32 %v9919, 0.0
      %v9998 = vmax.f32 %v9924, 0.0
      %v9999 = vmax.f32 %v9929, 0.0
      %v10000 = vmax.f32 %v9934, 0.0
      %v10001 = vmax.f32 %v9939, 0.0
      %v10002 = vmax.f32 %v9944, 0.0
      %v10003 = vmax.f32 %v9949, 0.0
      %v10004 = vmax.f32 %v9954, 0.0
      %v10005 = vmax.f32 %v9959, 0.0
      %v10006 = vmax.f32 %v9964, 0.0
      %v10007 = vmax.f32 %v9969, 0.0
      %v10008 = vmax.f32 %v9974, 0.0
      %v10009 = vmax.f32 %v9979, 0.0
      %v10010 = vmax.f32 %v9984, 0.0
      %v10011 = vmax.f32 %v9989, 0.0
      %v10012 = vmax.f32 %v9994, 0.0
      %s10013 = scalar_lea.vmem %s878, 64
      %v10014 = vld [vmem:[%s10013] sm:$0xff]
      %v10015 = vld [vmem:[%s10013 + $0x8] sm:$0xff]
      %v10016 = vld [vmem:[%s10013 + $0x10] sm:$0xff]
      %v10017 = vld [vmem:[%s10013 + $0x18] sm:$0xff]
      %v10018 = vld [vmem:[%s10013 + $0x20] sm:$0xff]
      %v10019 = vld [vmem:[%s10013 + $0x28] sm:$0xff]
      %v10020 = vld [vmem:[%s10013 + $0x30] sm:$0xff]
      %v10021 = vld [vmem:[%s10013 + $0x38] sm:$0xff]
      %s10022 = scalar_lea.vmem %s882, 1
      %v10023 = vld [vmem:[%s10022] sm:$0x1]
      %v10025 = vlaneseq
      %v10026 = vshrl.u32 %v10025, 7
      %v10027 = vsub.s32 0, %v10026
      %v10028 = vrot.slane %v10023, %v10027
      %v10031 = vsel %vm5336, %v9997, 0
      %v10034 = vsel %vm5336, %v9998, 0
      %v10037 = vsel %vm5336, %v9999, 0
      %v10040 = vsel %vm5336, %v10000, 0
      %v10043 = vsel %vm5336, %v10001, 0
      %v10046 = vsel %vm5336, %v10002, 0
      %v10049 = vsel %vm5336, %v10003, 0
      %v10052 = vsel %vm5336, %v10004, 0
      %v10055 = vsel %vm5336, %v10005, 0
      %v10058 = vsel %vm5336, %v10006, 0
      %v10061 = vsel %vm5336, %v10007, 0
      %v10064 = vsel %vm5336, %v10008, 0
      %v10067 = vsel %vm5336, %v10009, 0
      %v10070 = vsel %vm5336, %v10010, 0
      %v10073 = vsel %vm5336, %v10011, 0
      %v10076 = vsel %vm5336, %v10012, 0
      %10078 = vmatprep.subr.mxu0 0.0
      %10079 = vmatpush1.msra.mxu0 %v10014
      %10080 = vmatprep.subr.mxu0 0.0
      %10081 = vmatpush1.msra.mxu0 %v10015
      %10082 = vmatprep.subr.mxu0 0.0
      %10083 = vmatpush1.msra.mxu0 %v10016
      %10084 = vmatprep.subr.mxu0 0.0
      %10085 = vmatpush1.msra.mxu0 %v10017
      %10086 = vmatprep.subr.mxu0 0.0
      %10087 = vmatpush1.msra.mxu0 %v10018
      %10088 = vmatprep.subr.mxu0 0.0
      %10089 = vmatpush1.msra.mxu0 %v10019
      %10090 = vmatprep.subr.mxu0 0.0
      %10091 = vmatpush1.msra.mxu0 %v10020
      %10092 = vmatprep.subr.mxu0 0.0
      %10093 = vmatpush1.msra.mxu0 %v10021
      %10094 = vmatprep.subr.mxu0 0.0
      %10095 = vmatpush1.msra.mxu0 0.0
      %10096 = vmatprep.subr.mxu0 0.0
      %10097 = vmatpush1.msra.mxu0 0.0
      %10098 = vmatprep.subr.mxu0 0.0
      %10099 = vmatpush1.msra.mxu0 0.0
      %10100 = vmatprep.subr.mxu0 0.0
      %10101 = vmatpush1.msra.mxu0 0.0
      %10102 = vmatprep.subr.mxu0 0.0
      %10103 = vmatpush1.msra.mxu0 0.0
      %10104 = vmatprep.subr.mxu0 0.0
      %10105 = vmatpush1.msra.mxu0 0.0
      %10106 = vmatprep.subr.mxu0 0.0
      %10107 = vmatpush1.msra.mxu0 0.0
      %10108 = vmatprep.subr.mxu0 0.0
      %10109 = vmatpush1.msra.mxu0 0.0
      %10110 = vmatprep.subr.mxu0 0.0
      %10111 = vmatpush1.msra.mxu0 0.0
      %10112 = vmatprep.subr.mxu0 0.0
      %10113 = vmatpush1.msra.mxu0 0.0
      %10114 = vmatprep.subr.mxu0 0.0
      %10115 = vmatpush1.msra.mxu0 0.0
      %10116 = vmatprep.subr.mxu0 0.0
      %10117 = vmatpush1.msra.mxu0 0.0
      %10118 = vmatprep.subr.mxu0 0.0
      %10119 = vmatpush1.msra.mxu0 0.0
      %10120 = vmatprep.subr.mxu0 0.0
      %10121 = vmatpush1.msra.mxu0 0.0
      %10122 = vmatprep.subr.mxu0 0.0
      %10123 = vmatpush1.msra.mxu0 0.0
      %10124 = vmatprep.subr.mxu0 0.0
      %10125 = vmatpush1.msra.mxu0 0.0
      %10126 = vmatprep.subr.mxu0 0.0
      %10127 = vmatpush1.msra.mxu0 0.0
      %10128 = vmatprep.subr.mxu0 0.0
      %10129 = vmatpush1.msra.mxu0 0.0
      %10130 = vmatprep.subr.mxu0 0.0
      %10131 = vmatpush1.msra.mxu0 0.0
      %10132 = vmatprep.subr.mxu0 0.0
      %10133 = vmatpush1.msra.mxu0 0.0
      %10134 = vmatprep.subr.mxu0 0.0
      %10135 = vmatpush1.msra.mxu0 0.0
      %10136 = vmatprep.subr.mxu0 0.0
      %10137 = vmatpush1.msra.mxu0 0.0
      %10138 = vmatprep.subr.mxu0 0.0
      %10139 = vmatpush1.msra.mxu0 0.0
      %10140 = vmatprep.subr.mxu0 0.0
      %10141 = vmatpush1.msra.mxu0 0.0
      %10142 = vmatprep.mubr.f32.mxu0 0.0
      %10143 = vmatmul.mubr.f32.gmra.mrb[0].mxu0 %v10031
      %v10144 = vpop.f32.mrb[0].mxu0
      %v10145 = vadd.f32 %v10028, %v10144
      %v10146 = vpop.f32.mrb[0].mxu0
      %10147 = vmatprep.mubr.f32.mxu0 0.0
      %10148 = vmatmul.mubr.f32.gmra.mrb[0].mxu0 %v10034
      %v10149 = vpop.f32.mrb[0].mxu0
      %v10150 = vadd.f32 %v10028, %v10149
      %v10151 = vpop.f32.mrb[0].mxu0
      %10152 = vmatprep.mubr.f32.mxu0 0.0
      %10153 = vmatmul.mubr.f32.gmra.mrb[0].mxu0 %v10037
      %v10154 = vpop.f32.mrb[0].mxu0
      %v10155 = vadd.f32 %v10028, %v10154
      %v10156 = vpop.f32.mrb[0].mxu0
      %10157 = vmatprep.mubr.f32.mxu0 0.0
      %10158 = vmatmul.mubr.f32.gmra.mrb[0].mxu0 %v10040
      %v10159 = vpop.f32.mrb[0].mxu0
      %v10160 = vadd.f32 %v10028, %v10159
      %v10161 = vpop.f32.mrb[0].mxu0
      %10162 = vmatprep.mubr.f32.mxu0 0.0
      %10163 = vmatmul.mubr.f32.gmra.mrb[0].mxu0 %v10043
      %v10164 = vpop.f32.mrb[0].mxu0
      %v10165 = vadd.f32 %v10028, %v10164
      %v10166 = vpop.f32.mrb[0].mxu0
      %10167 = vmatprep.mubr.f32.mxu0 0.0
      %10168 = vmatmul.mubr.f32.gmra.mrb[0].mxu0 %v10046
      %v10169 = vpop.f32.mrb[0].mxu0
      %v10170 = vadd.f32 %v10028, %v10169
      %v10171 = vpop.f32.mrb[0].mxu0
      %10172 = vmatprep.mubr.f32.mxu0 0.0
      %10173 = vmatmul.mubr.f32.gmra.mrb[0].mxu0 %v10049
      %v10174 = vpop.f32.mrb[0].mxu0
      %v10175 = vadd.f32 %v10028, %v10174
      %v10176 = vpop.f32.mrb[0].mxu0
      %10177 = vmatprep.mubr.f32.mxu0 0.0
      %10178 = vmatmul.mubr.f32.gmra.mrb[0].mxu0 %v10052
      %v10179 = vpop.f32.mrb[0].mxu0
      %v10180 = vadd.f32 %v10028, %v10179
      %v10181 = vpop.f32.mrb[0].mxu0
      %10182 = vmatprep.mubr.f32.mxu0 0.0
      %10183 = vmatmul.mubr.f32.gmra.mrb[0].mxu0 %v10055
      %v10184 = vpop.f32.mrb[0].mxu0
      %v10185 = vadd.f32 %v10028, %v10184
      %v10186 = vpop.f32.mrb[0].mxu0
      %10187 = vmatprep.mubr.f32.mxu0 0.0
      %10188 = vmatmul.mubr.f32.gmra.mrb[0].mxu0 %v10058
      %v10189 = vpop.f32.mrb[0].mxu0
      %v10190 = vadd.f32 %v10028, %v10189
      %v10191 = vpop.f32.mrb[0].mxu0
      %10192 = vmatprep.mubr.f32.mxu0 0.0
      %10193 = vmatmul.mubr.f32.gmra.mrb[0].mxu0 %v10061
      %v10194 = vpop.f32.mrb[0].mxu0
      %v10195 = vadd.f32 %v10028, %v10194
      %v10196 = vpop.f32.mrb[0].mxu0
      %10197 = vmatprep.mubr.f32.mxu0 0.0
      %10198 = vmatmul.mubr.f32.gmra.mrb[0].mxu0 %v10064
      %v10199 = vpop.f32.mrb[0].mxu0
      %v10200 = vadd.f32 %v10028, %v10199
      %v10201 = vpop.f32.mrb[0].mxu0
      %10202 = vmatprep.mubr.f32.mxu0 0.0
      %10203 = vmatmul.mubr.f32.gmra.mrb[0].mxu0 %v10067
      %v10204 = vpop.f32.mrb[0].mxu0
      %v10205 = vadd.f32 %v10028, %v10204
      %v10206 = vpop.f32.mrb[0].mxu0
      %10207 = vmatprep.mubr.f32.mxu0 0.0
      %10208 = vmatmul.mubr.f32.gmra.mrb[0].mxu0 %v10070
      %v10209 = vpop.f32.mrb[0].mxu0
      %v10210 = vadd.f32 %v10028, %v10209
      %v10211 = vpop.f32.mrb[0].mxu0
      %10212 = vmatprep.mubr.f32.mxu0 0.0
      %10213 = vmatmul.mubr.f32.gmra.mrb[0].mxu0 %v10073
      %v10214 = vpop.f32.mrb[0].mxu0
      %v10215 = vadd.f32 %v10028, %v10214
      %v10216 = vpop.f32.mrb[0].mxu0
      %10217 = vmatprep.mubr.f32.mxu0 0.0
      %10218 = vmatmul.mubr.f32.gmra.mrb[0].mxu0 %v10076
      %v10219 = vpop.f32.mrb[0].mxu0
      %v10220 = vadd.f32 %v10028, %v10219
      %v10221 = vpop.f32.mrb[0].mxu0
      %10222 = vdwg.mxu0
      %v10223 = vadd.f32 %v9775, %v10145
      %v10224 = vadd.f32 %v9776, %v10150
      %v10225 = vadd.f32 %v9777, %v10155
      %v10226 = vadd.f32 %v9778, %v10160
      %v10227 = vadd.f32 %v9779, %v10165
      %v10228 = vadd.f32 %v9780, %v10170
      %v10229 = vadd.f32 %v9781, %v10175
      %v10230 = vadd.f32 %v9782, %v10180
      %v10231 = vadd.f32 %v9783, %v10185
      %v10232 = vadd.f32 %v9784, %v10190
      %v10233 = vadd.f32 %v9785, %v10195
      %v10234 = vadd.f32 %v9786, %v10200
      %v10235 = vadd.f32 %v9787, %v10205
      %v10236 = vadd.f32 %v9788, %v10210
      %v10237 = vadd.f32 %v9789, %v10215
      %v10238 = vadd.f32 %v9790, %v10220
      %s10239 = scalar_lea.vmem %s886, 1
      %v10240 = vld [vmem:[%s10239] sm:$0x1]
      %s10241 = scalar_lea.vmem %s890, 1
      %v10242 = vld [vmem:[%s10241] sm:$0x1]
      %v10243 = vsel %vm1185, %v10223, 0.0
      %10244 = vadd.xlane.f32.xlu0 %v10243
      %v10245 = vpop.xlane.xlu0 %10244
      %v10246 = vsel %vm1185, %v10224, 0.0
      %10247 = vadd.xlane.f32.xlu0 %v10246
      %v10248 = vpop.xlane.xlu0 %10247
      %v10249 = vsel %vm1185, %v10225, 0.0
      %10250 = vadd.xlane.f32.xlu0 %v10249
      %v10251 = vpop.xlane.xlu0 %10250
      %v10252 = vsel %vm1185, %v10226, 0.0
      %10253 = vadd.xlane.f32.xlu0 %v10252
      %v10254 = vpop.xlane.xlu0 %10253
      %v10255 = vsel %vm1185, %v10227, 0.0
      %10256 = vadd.xlane.f32.xlu0 %v10255
      %v10257 = vpop.xlane.xlu0 %10256
      %v10258 = vsel %vm1185, %v10228, 0.0
      %10259 = vadd.xlane.f32.xlu0 %v10258
      %v10260 = vpop.xlane.xlu0 %10259
      %v10261 = vsel %vm1185, %v10229, 0.0
      %10262 = vadd.xlane.f32.xlu0 %v10261
      %v10263 = vpop.xlane.xlu0 %10262
      %v10264 = vsel %vm1185, %v10230, 0.0
      %10265 = vadd.xlane.f32.xlu0 %v10264
      %v10266 = vpop.xlane.xlu0 %10265
      %v10267 = vsel %vm1185, %v10231, 0.0
      %10268 = vadd.xlane.f32.xlu0 %v10267
      %v10269 = vpop.xlane.xlu0 %10268
      %v10270 = vsel %vm1185, %v10232, 0.0
      %10271 = vadd.xlane.f32.xlu0 %v10270
      %v10272 = vpop.xlane.xlu0 %10271
      %v10273 = vsel %vm1185, %v10233, 0.0
      %10274 = vadd.xlane.f32.xlu0 %v10273
      %v10275 = vpop.xlane.xlu0 %10274
      %v10276 = vsel %vm1185, %v10234, 0.0
      %10277 = vadd.xlane.f32.xlu0 %v10276
      %v10278 = vpop.xlane.xlu0 %10277
      %v10279 = vsel %vm1185, %v10235, 0.0
      %10280 = vadd.xlane.f32.xlu0 %v10279
      %v10281 = vpop.xlane.xlu0 %10280
      %v10282 = vsel %vm1185, %v10236, 0.0
      %10283 = vadd.xlane.f32.xlu0 %v10282
      %v10284 = vpop.xlane.xlu0 %10283
      %v10285 = vsel %vm1185, %v10237, 0.0
      %10286 = vadd.xlane.f32.xlu0 %v10285
      %v10287 = vpop.xlane.xlu0 %10286
      %v10288 = vsel %vm1185, %v10238, 0.0
      %10289 = vadd.xlane.f32.xlu0 %v10288
      %v10290 = vpop.xlane.xlu0 %10289
      %v10291 = vmul.f32 %v10245, %v4896
      %v10292 = vmul.f32 %v10248, %v4896
      %v10293 = vmul.f32 %v10251, %v4896
      %v10294 = vmul.f32 %v10254, %v4896
      %v10295 = vmul.f32 %v10257, %v4896
      %v10296 = vmul.f32 %v10260, %v4896
      %v10297 = vmul.f32 %v10263, %v4896
      %v10298 = vmul.f32 %v10266, %v4896
      %v10299 = vmul.f32 %v10269, %v4896
      %v10300 = vmul.f32 %v10272, %v4896
      %v10301 = vmul.f32 %v10275, %v4896
      %v10302 = vmul.f32 %v10278, %v4896
      %v10303 = vmul.f32 %v10281, %v4896
      %v10304 = vmul.f32 %v10284, %v4896
      %v10305 = vmul.f32 %v10287, %v4896
      %v10306 = vmul.f32 %v10290, %v4896
      %v10307 = vsub.f32 %v10223, %v10291
      %v10308 = vsub.f32 %v10224, %v10292
      %v10309 = vsub.f32 %v10225, %v10293
      %v10310 = vsub.f32 %v10226, %v10294
      %v10311 = vsub.f32 %v10227, %v10295
      %v10312 = vsub.f32 %v10228, %v10296
      %v10313 = vsub.f32 %v10229, %v10297
      %v10314 = vsub.f32 %v10230, %v10298
      %v10315 = vsub.f32 %v10231, %v10299
      %v10316 = vsub.f32 %v10232, %v10300
      %v10317 = vsub.f32 %v10233, %v10301
      %v10318 = vsub.f32 %v10234, %v10302
      %v10319 = vsub.f32 %v10235, %v10303
      %v10320 = vsub.f32 %v10236, %v10304
      %v10321 = vsub.f32 %v10237, %v10305
      %v10322 = vsub.f32 %v10238, %v10306
      %v10323 = vmul.f32 %v10307, %v10307
      %v10324 = vmul.f32 %v10308, %v10308
      %v10325 = vmul.f32 %v10309, %v10309
      %v10326 = vmul.f32 %v10310, %v10310
      %v10327 = vmul.f32 %v10311, %v10311
      %v10328 = vmul.f32 %v10312, %v10312
      %v10329 = vmul.f32 %v10313, %v10313
      %v10330 = vmul.f32 %v10314, %v10314
      %v10331 = vmul.f32 %v10315, %v10315
      %v10332 = vmul.f32 %v10316, %v10316
      %v10333 = vmul.f32 %v10317, %v10317
      %v10334 = vmul.f32 %v10318, %v10318
      %v10335 = vmul.f32 %v10319, %v10319
      %v10336 = vmul.f32 %v10320, %v10320
      %v10337 = vmul.f32 %v10321, %v10321
      %v10338 = vmul.f32 %v10322, %v10322
      %v10339 = vsel %vm1185, %v10323, 0.0
      %10340 = vadd.xlane.f32.xlu0 %v10339
      %v10341 = vpop.xlane.xlu0 %10340
      %v10342 = vsel %vm1185, %v10324, 0.0
      %10343 = vadd.xlane.f32.xlu0 %v10342
      %v10344 = vpop.xlane.xlu0 %10343
      %v10345 = vsel %vm1185, %v10325, 0.0
      %10346 = vadd.xlane.f32.xlu0 %v10345
      %v10347 = vpop.xlane.xlu0 %10346
      %v10348 = vsel %vm1185, %v10326, 0.0
      %10349 = vadd.xlane.f32.xlu0 %v10348
      %v10350 = vpop.xlane.xlu0 %10349
      %v10351 = vsel %vm1185, %v10327, 0.0
      %10352 = vadd.xlane.f32.xlu0 %v10351
      %v10353 = vpop.xlane.xlu0 %10352
      %v10354 = vsel %vm1185, %v10328, 0.0
      %10355 = vadd.xlane.f32.xlu0 %v10354
      %v10356 = vpop.xlane.xlu0 %10355
      %v10357 = vsel %vm1185, %v10329, 0.0
      %10358 = vadd.xlane.f32.xlu0 %v10357
      %v10359 = vpop.xlane.xlu0 %10358
      %v10360 = vsel %vm1185, %v10330, 0.0
      %10361 = vadd.xlane.f32.xlu0 %v10360
      %v10362 = vpop.xlane.xlu0 %10361
      %v10363 = vsel %vm1185, %v10331, 0.0
      %10364 = vadd.xlane.f32.xlu0 %v10363
      %v10365 = vpop.xlane.xlu0 %10364
      %v10366 = vsel %vm1185, %v10332, 0.0
      %10367 = vadd.xlane.f32.xlu0 %v10366
      %v10368 = vpop.xlane.xlu0 %10367
      %v10369 = vsel %vm1185, %v10333, 0.0
      %10370 = vadd.xlane.f32.xlu0 %v10369
      %v10371 = vpop.xlane.xlu0 %10370
      %v10372 = vsel %vm1185, %v10334, 0.0
      %10373 = vadd.xlane.f32.xlu0 %v10372
      %v10374 = vpop.xlane.xlu0 %10373
      %v10375 = vsel %vm1185, %v10335, 0.0
      %10376 = vadd.xlane.f32.xlu0 %v10375
      %v10377 = vpop.xlane.xlu0 %10376
      %v10378 = vsel %vm1185, %v10336, 0.0
      %10379 = vadd.xlane.f32.xlu0 %v10378
      %v10380 = vpop.xlane.xlu0 %10379
      %v10381 = vsel %vm1185, %v10337, 0.0
      %10382 = vadd.xlane.f32.xlu0 %v10381
      %v10383 = vpop.xlane.xlu0 %10382
      %v10384 = vsel %vm1185, %v10338, 0.0
      %10385 = vadd.xlane.f32.xlu0 %v10384
      %v10386 = vpop.xlane.xlu0 %10385
      %v10387 = vmul.f32 %v10341, %v4896
      %v10388 = vmul.f32 %v10344, %v4896
      %v10389 = vmul.f32 %v10347, %v4896
      %v10390 = vmul.f32 %v10350, %v4896
      %v10391 = vmul.f32 %v10353, %v4896
      %v10392 = vmul.f32 %v10356, %v4896
      %v10393 = vmul.f32 %v10359, %v4896
      %v10394 = vmul.f32 %v10362, %v4896
      %v10395 = vmul.f32 %v10365, %v4896
      %v10396 = vmul.f32 %v10368, %v4896
      %v10397 = vmul.f32 %v10371, %v4896
      %v10398 = vmul.f32 %v10374, %v4896
      %v10399 = vmul.f32 %v10377, %v4896
      %v10400 = vmul.f32 %v10380, %v4896
      %v10401 = vmul.f32 %v10383, %v4896
      %v10402 = vmul.f32 %v10386, %v4896
      %v10403 = vadd.f32 %v10387, 1e-05
      %v10404 = vadd.f32 %v10388, 1e-05
      %v10405 = vadd.f32 %v10389, 1e-05
      %v10406 = vadd.f32 %v10390, 1e-05
      %v10407 = vadd.f32 %v10391, 1e-05
      %v10408 = vadd.f32 %v10392, 1e-05
      %v10409 = vadd.f32 %v10393, 1e-05
      %v10410 = vadd.f32 %v10394, 1e-05
      %v10411 = vadd.f32 %v10395, 1e-05
      %v10412 = vadd.f32 %v10396, 1e-05
      %v10413 = vadd.f32 %v10397, 1e-05
      %v10414 = vadd.f32 %v10398, 1e-05
      %v10415 = vadd.f32 %v10399, 1e-05
      %v10416 = vadd.f32 %v10400, 1e-05
      %v10417 = vadd.f32 %v10401, 1e-05
      %v10418 = vadd.f32 %v10402, 1e-05
      %v10419 = vrsqrt.pop %v10403
      %v10420 = vrsqrt.pop %v10404
      %v10421 = vrsqrt.pop %v10405
      %v10422 = vrsqrt.pop %v10406
      %v10423 = vrsqrt.pop %v10407
      %v10424 = vrsqrt.pop %v10408
      %v10425 = vrsqrt.pop %v10409
      %v10426 = vrsqrt.pop %v10410
      %v10427 = vrsqrt.pop %v10411
      %v10428 = vrsqrt.pop %v10412
      %v10429 = vrsqrt.pop %v10413
      %v10430 = vrsqrt.pop %v10414
      %v10431 = vrsqrt.pop %v10415
      %v10432 = vrsqrt.pop %v10416
      %v10433 = vrsqrt.pop %v10417
      %v10434 = vrsqrt.pop %v10418
      %v10435 = vmul.f32 %v10307, %v10419
      %v10436 = vmul.f32 %v10308, %v10420
      %v10437 = vmul.f32 %v10309, %v10421
      %v10438 = vmul.f32 %v10310, %v10422
      %v10439 = vmul.f32 %v10311, %v10423
      %v10440 = vmul.f32 %v10312, %v10424
      %v10441 = vmul.f32 %v10313, %v10425
      %v10442 = vmul.f32 %v10314, %v10426
      %v10443 = vmul.f32 %v10315, %v10427
      %v10444 = vmul.f32 %v10316, %v10428
      %v10445 = vmul.f32 %v10317, %v10429
      %v10446 = vmul.f32 %v10318, %v10430
      %v10447 = vmul.f32 %v10319, %v10431
      %v10448 = vmul.f32 %v10320, %v10432
      %v10449 = vmul.f32 %v10321, %v10433
      %v10450 = vmul.f32 %v10322, %v10434
      %v10452 = vlaneseq
      %v10453 = vshrl.u32 %v10452, 7
      %v10454 = vsub.s32 0, %v10453
      %v10455 = vrot.slane %v10240, %v10454
      %v10457 = vmul.f32 %v10435, %v10455
      %v10458 = vmul.f32 %v10436, %v10455
      %v10459 = vmul.f32 %v10437, %v10455
      %v10460 = vmul.f32 %v10438, %v10455
      %v10461 = vmul.f32 %v10439, %v10455
      %v10462 = vmul.f32 %v10440, %v10455
      %v10463 = vmul.f32 %v10441, %v10455
      %v10464 = vmul.f32 %v10442, %v10455
      %v10465 = vmul.f32 %v10443, %v10455
      %v10466 = vmul.f32 %v10444, %v10455
      %v10467 = vmul.f32 %v10445, %v10455
      %v10468 = vmul.f32 %v10446, %v10455
      %v10469 = vmul.f32 %v10447, %v10455
      %v10470 = vmul.f32 %v10448, %v10455
      %v10471 = vmul.f32 %v10449, %v10455
      %v10472 = vmul.f32 %v10450, %v10455
      %v10474 = vlaneseq
      %v10475 = vshrl.u32 %v10474, 7
      %v10476 = vsub.s32 0, %v10475
      %v10477 = vrot.slane %v10242, %v10476
      %v10479 = vadd.f32 %v10457, %v10477
      %v10480 = vadd.f32 %v10458, %v10477
      %v10481 = vadd.f32 %v10459, %v10477
      %v10482 = vadd.f32 %v10460, %v10477
      %v10483 = vadd.f32 %v10461, %v10477
      %v10484 = vadd.f32 %v10462, %v10477
      %v10485 = vadd.f32 %v10463, %v10477
      %v10486 = vadd.f32 %v10464, %v10477
      %v10487 = vadd.f32 %v10465, %v10477
      %v10488 = vadd.f32 %v10466, %v10477
      %v10489 = vadd.f32 %v10467, %v10477
      %v10490 = vadd.f32 %v10468, %v10477
      %v10491 = vadd.f32 %v10469, %v10477
      %v10492 = vadd.f32 %v10470, %v10477
      %v10493 = vadd.f32 %v10471, %v10477
      %v10494 = vadd.f32 %v10472, %v10477
      %v10495 = vld [vmem:[%s895] sm:$0xff]
      %v10496 = vld [vmem:[%s895 + $0x8] sm:$0xff]
      %v10497 = vld [vmem:[%s898] sm:$0x1]
      %v10499 = vlaneseq
      %v10500 = vshrl.u32 %v10499, 7
      %v10501 = vsub.s32 0, %v10500
      %v10502 = vrot.slane %v10497, %v10501
      %10503 = vset.pattern.permute.xlu0 0
      %10504 = vperm.xlu0 %10503, %v10502
      %v10505 = vpop.permute.xlu0 %10504
      %10507 = vmatprep.subr.mxu0 0.0
      %10508 = vmatpush1.msra.mxu0 %v10479
      %10509 = vmatprep.subr.mxu0 0.0
      %10510 = vmatpush1.msra.mxu0 %v10480
      %10511 = vmatprep.subr.mxu0 0.0
      %10512 = vmatpush1.msra.mxu0 %v10481
      %10513 = vmatprep.subr.mxu0 0.0
      %10514 = vmatpush1.msra.mxu0 %v10482
      %10515 = vmatprep.subr.mxu0 0.0
      %10516 = vmatpush1.msra.mxu0 %v10483
      %10517 = vmatprep.subr.mxu0 0.0
      %10518 = vmatpush1.msra.mxu0 %v10484
      %10519 = vmatprep.subr.mxu0 0.0
      %10520 = vmatpush1.msra.mxu0 %v10485
      %10521 = vmatprep.subr.mxu0 0.0
      %10522 = vmatpush1.msra.mxu0 %v10486
      %10523 = vmatprep.subr.mxu0 0.0
      %10524 = vmatpush1.msra.mxu0 %v10487
      %10525 = vmatprep.subr.mxu0 0.0
      %10526 = vmatpush1.msra.mxu0 %v10488
      %10527 = vmatprep.subr.mxu0 0.0
      %10528 = vmatpush1.msra.mxu0 %v10489
      %10529 = vmatprep.subr.mxu0 0.0
      %10530 = vmatpush1.msra.mxu0 %v10490
      %10531 = vmatprep.subr.mxu0 0.0
      %10532 = vmatpush1.msra.mxu0 %v10491
      %10533 = vmatprep.subr.mxu0 0.0
      %10534 = vmatpush1.msra.mxu0 %v10492
      %10535 = vmatprep.subr.mxu0 0.0
      %10536 = vmatpush1.msra.mxu0 %v10493
      %10537 = vmatprep.subr.mxu0 0.0
      %10538 = vmatpush1.msra.mxu0 %v10494
      %10539 = vmatprep.subr.mxu0 0.0
      %10540 = vmatpush1.msra.mxu0 0.0
      %10541 = vmatprep.subr.mxu0 0.0
      %10542 = vmatpush1.msra.mxu0 0.0
      %10543 = vmatprep.subr.mxu0 0.0
      %10544 = vmatpush1.msra.mxu0 0.0
      %10545 = vmatprep.subr.mxu0 0.0
      %10546 = vmatpush1.msra.mxu0 0.0
      %10547 = vmatprep.subr.mxu0 0.0
      %10548 = vmatpush1.msra.mxu0 0.0
      %10549 = vmatprep.subr.mxu0 0.0
      %10550 = vmatpush1.msra.mxu0 0.0
      %10551 = vmatprep.subr.mxu0 0.0
      %10552 = vmatpush1.msra.mxu0 0.0
      %10553 = vmatprep.subr.mxu0 0.0
      %10554 = vmatpush1.msra.mxu0 0.0
      %10555 = vmatprep.subr.mxu0 0.0
      %10556 = vmatpush1.msra.mxu0 0.0
      %10557 = vmatprep.subr.mxu0 0.0
      %10558 = vmatpush1.msra.mxu0 0.0
      %10559 = vmatprep.subr.mxu0 0.0
      %10560 = vmatpush1.msra.mxu0 0.0
      %10561 = vmatprep.subr.mxu0 0.0
      %10562 = vmatpush1.msra.mxu0 0.0
      %10563 = vmatprep.subr.mxu0 0.0
      %10564 = vmatpush1.msra.mxu0 0.0
      %10565 = vmatprep.subr.mxu0 0.0
      %10566 = vmatpush1.msra.mxu0 0.0
      %10567 = vmatprep.subr.mxu0 0.0
      %10568 = vmatpush1.msra.mxu0 0.0
      %10569 = vmatprep.subr.mxu0 0.0
      %10570 = vmatpush1.msra.mxu0 0.0
      %10571 = vmatprep.mubr.f32.mxu0 0.0
      %10572 = vmatmul.mubr.f32.gmra.mrb[0].mxu0 %v10495
      %v10573 = vpop.f32.mrb[0].mxu0
      %v10574 = vadd.f32 %v10505, %v10573
      %v10575 = vpop.f32.mrb[0].mxu0
      %10576 = vmatprep.mubr.f32.mxu0 0.0
      %10577 = vmatmul.mubr.f32.gmra.mrb[0].mxu0 %v10496
      %v10578 = vpop.f32.mrb[0].mxu0
      %v10579 = vadd.f32 %v10505, %v10578
      %v10580 = vpop.f32.mrb[0].mxu0
      %10581 = vdwg.mxu0
      %10582 = vst.msk [vmem:[%s903] sm:$0xff] %vm1185, %v10574
      %10583 = vst.msk [vmem:[%s903 + $0x8] sm:$0xff] %vm1185, %v10579
      %p10584 = scmp.lt.s32.totalorder %s30, 1
      %s10585 = scalar_select %p10584, %s30, 1
      %s10586 = smul.addr %s10585, 2
      %s10587 = smul.addr %s10586, 8
      %s10588 = scalar_lea.vmem %s19, %s10587
      // Predicated region
      $region97: #{forward.1} parent=95 // pred_check
        %p10589 = pneg %p537
      $region98: #{forward.1} parent=95 // pred_check_branch
        %10591 = sbr.rel (%p10589) target = $region100
      $region99: #{forward.1} parent=95 // pred_region
        _
      $region100: #{forward.1} parent=95 // pred_fallthru
        _
    $region96: #{forward.1} parent=5 // pred_fallthru
      _
    %p10592 = scmp.le.s32.totalorder 2, %s25
    // Predicated region
    $region101: #{forward.1} parent=5 // pred_check
      %p10593 = pneg %p10592
    $region102: #{forward.1} parent=5 // pred_check_branch
      %10595 = sbr.rel (%p10593) target = $region104
    $region103: #{forward.1} parent=5 // pred_region
      %s10596 = ssub.s32 %s25, 2
      // Predicated region
      $region105: #{forward.1} parent=103 // pred_check
        %p10597 = pneg %p543
      $region106: #{forward.1} parent=103 // pred_check_branch
        %10599 = sbr.rel (%p10597) target = $region108
      $region107: #{forward.1} parent=103 // pred_region
        %p10600 = scmp.lt.s32.totalorder %s31, 1
        %s10601 = scalar_select %p10600, %s31, 1
        %s10602 = smul.addr %s10601, 2
        %s10603 = smul.addr %s10602, 8
        %s10604 = scalar_lea.vmem %s19, %s10603
      $region108: #{forward.1} parent=103 // pred_fallthru
        _
    $region104: #{forward.1} parent=5 // pred_fallthru
      _
  $region6: #{forward.1} parent=0 // loop_footer
    %s29 = sadd.s32 1, %s25
  $region7: #{forward.1} parent=0 // loop_footer_branch
    %24 = sbr.rel target = $region3
  $region8: #{forward.1} parent=0 // loop_exit
    _

</llo_original>
